<compile_context>
chip_gen: v7x
topology: tpu7x:2x2x1
jax: 0.10.0
libtpu: 0.0.40
codegen_flags: <defaults>
</compile_context>

<pallas_src>
import functools

import jax
import jax.numpy as jnp
import numpy as np
from jax.experimental import pallas as pl
from jax.experimental.pallas import tpu as pltpu

C = 512  # self.inchannel in the module


def _graph_prop_kernel(state_ref, m_ref, v_ref, rowg_ref, colg_ref, out_ref):
    """Fused graph propagation + pooled graph mean for a group of G videos.

    state_ref : (G, N, C)  collected node features, bf16
    m_ref     : (C, C)     fused W1^T @ W2, bf16
    v_ref     : (1, C)     fused W2^T @ b1, f32
    rowg_ref  : (G*N, 1)   video index of each row, int32
    colg_ref  : (1, G*N)   video index of each column, int32
    out_ref   : (G, C)     per-video graph mean, f32
    """
    G, N, c = state_ref.shape
    GN = G * N

    x3 = state_ref[...]                                   # (G, N, C) bf16
    x = x3.reshape(GN, c)                                  # one lane-dense slab

    # Fused 1x1 conv pair: p = state @ (W1^T W2) + (W2^T b1) row-bias.
    p = jnp.dot(x, m_ref[...],
                preferred_element_type=jnp.float32) + v_ref[...]   # (GN, C) f32

    # ONE dense (GN, C) @ (C, GN) adjacency matmul for all videos at once.
    adj = jnp.einsum('nc,mc->nm', p.astype(jnp.bfloat16), x,
                     preferred_element_type=jnp.float32)           # (GN, GN)

    # Block-diagonal mask: kill cross-video attention BEFORE the softmax.
    same_video = rowg_ref[...] == colg_ref[...]                    # (GN, GN)
    adj = jnp.where(same_video, adj, -1e30)

    # Row softmax (torch.nn.Softmax(dim=1) on each video's NxN block).
    mx = jnp.max(adj, axis=1, keepdims=True)
    e = jnp.exp(adj - mx)                                          # masked -> 0
    soft = e * pl.reciprocal(jnp.sum(e, axis=1, keepdims=True), approx=True)

    # mean_rows(soft @ S + S) per video, via linearity:
    #   colsum3[g, j] = sum_{i in video g} soft[i, j]   (zero for j not in g)
    colsum3 = jnp.sum(soft.reshape(G, N, GN), axis=1)              # (G, GN) f32
    upd = jnp.dot(colsum3.astype(jnp.bfloat16), x,
                  preferred_element_type=jnp.float32)              # (G, C)
    blocksum = jnp.sum(x3.astype(jnp.float32), axis=1)             # (G, C)
    out_ref[...] = (upd + blocksum) * (1.0 / N)


def _num_tensorcores():
    """Generation heuristic: 2 TensorCores per chip on v7x, 1 on v5e/v6e."""
    # TODO(synk): replace the device_kind string match with a proper TC query.
    try:
        kind = jax.devices()[0].device_kind.lower()
    except Exception:
        return 1
    return 2 if "v7" in kind else 1


def _pick_group(batch, num_tc):
    """Videos per grid step.

    Single-TC chips (v5e/v6e): one grid step (group = B) -- extra steps are
    just serial-loop + writeback overhead.  2-TC chips (v7x): two grid steps
    so the 'parallel' grid axis can shard across the TensorCores; keep the
    group size a multiple of 8 for sublane-friendly output blocks.
    """
    if num_tc >= 2 and batch >= 16:
        half = -(-batch // 2)
        return -(-half // 8) * 8
    return batch


def _forward_impl(clt_nodes, scene_nodes, m_fused, v_row, *, num_tc):
    B, N, c = clt_nodes.shape
    group = _pick_group(B, num_tc)
    num_groups = pl.cdiv(B, group)
    b_pad = num_groups * group
    gn = group * N

    # bf16 state halves the dominant input DMA; the MXU path is bf16 anyway.
    clt = clt_nodes.astype(jnp.bfloat16)
    if b_pad != B:
        # Padded (all-zero) videos are masked into their own blocks and never
        # touch the real videos' results; they are sliced off below.
        clt = jnp.pad(clt, ((0, b_pad - B), (0, 0), (0, 0)))

    # Trace-time (numpy) group ids -> tiny constant inputs used to build the
    # block-diagonal mask of the merged (GN, GN) adjacency inside the kernel.
    gid = np.repeat(np.arange(group, dtype=np.int32), N)
    row_gid = jnp.asarray(gid.reshape(gn, 1))
    col_gid = jnp.asarray(gid.reshape(1, gn))

    gp = pl.pallas_call(
        _graph_prop_kernel,
        out_shape=jax.ShapeDtypeStruct((b_pad, c), jnp.float32),
        grid_spec=pltpu.PrefetchScalarGridSpec(
            num_scalar_prefetch=0,
            grid=(num_groups,),
            in_specs=[
                pl.BlockSpec((group, N, c), lambda g: (g, 0, 0)),
                # Constant index maps: weights / bias / group ids are DMA'd
                # once (Pallas skips re-copies when the block index repeats).
                pl.BlockSpec((c, c), lambda g: (0, 0)),
                pl.BlockSpec((1, c), lambda g: (0, 0)),
                pl.BlockSpec((gn, 1), lambda g: (0, 0)),
                pl.BlockSpec((1, gn), lambda g: (0, 0)),
            ],
            out_specs=pl.BlockSpec((group, c), lambda g: (g, 0)),
        ),
        compiler_params=pltpu.CompilerParams(
            dimension_semantics=(pltpu.PARALLEL,)),
    )(clt, m_fused, v_row, row_gid, col_gid)

    gp = gp[:B]                                            # drop batch padding
    scene_mean = jnp.mean(scene_nodes, axis=1)             # trivial; plain JAX
    return jnp.concatenate([scene_mean, gp], axis=1)       # (B, 2C)


def make_conv_graph_v1(w1, b1, w2, b2, num_tc=None):
    """One-time parameter fusion (hoisted out of the per-call wrapper):
         M = W1^T @ W2  (f32 matmul, stored bf16)
         v = W2^T @ b1  (f32 row bias)
       b2 only shifts each softmax row by a constant, so it drops out of the
       forward output entirely.  Returns a jitted forward(clt, scene)."""
    del b2  # cancels under the row softmax
    c = w1.shape[0]
    w1f = jnp.asarray(w1, jnp.float32)
    w2f = jnp.asarray(w2, jnp.float32)
    m_fused = jnp.dot(w1f.T, w2f).astype(jnp.bfloat16)            # (C, C)
    v_row = jnp.dot(w2f.T, jnp.asarray(b1, jnp.float32)).reshape(1, c)
    if num_tc is None:
        num_tc = _num_tensorcores()
    fwd = jax.jit(functools.partial(_forward_impl, num_tc=num_tc))

    def forward(clt_nodes, scene_nodes):
        return fwd(clt_nodes, scene_nodes, m_fused, v_row)

    return forward


def _reference_forward(clt_nodes, scene_nodes, w1, b1, w2, b2):
    """Plain-JAX f32 reference of the original (unfused) module math."""
    def per_video(st, sc):
        mat1 = st @ w1.T + b1
        mat2 = st @ w2.T + b2
        adj = mat1 @ mat2.T
        soft = jax.nn.softmax(adj, axis=1)
        new_state = soft @ st + st
        return jnp.concatenate([sc.mean(0), new_state.mean(0)], axis=0)
    return jax.vmap(per_video)(clt_nodes, scene_nodes)


if __name__ == "__main__":
    key = jax.random.PRNGKey(0)
    k_clt, k_scene, k_w1, k_b1, k_w2, k_b2 = jax.random.split(key, 6)

    B = 32     # videos in the batch
    N = 16     # collected (human/object/HOI/fake) nodes per video
    S = 8      # scene nodes per video

    # Synthetic result of the host-side gather/cat (ts_colt / vd_scene).
    clt_nodes = jax.random.normal(k_clt, (B, N, C), dtype=jnp.float32)
    scene_nodes = jax.random.normal(k_scene, (B, S, C), dtype=jnp.float32)

    # Deterministic param init matching the module: normal(0, 0.01).
    w1 = 0.01 * jax.random.normal(k_w1, (C, C), dtype=jnp.float32)
    b1 = 0.01 * jax.random.normal(k_b1, (C,), dtype=jnp.float32)
    w2 = 0.01 * jax.random.normal(k_w2, (C, C), dtype=jnp.float32)
    b2 = 0.01 * jax.random.normal(k_b2, (C,), dtype=jnp.float32)

    forward = make_conv_graph_v1(w1, b1, w2, b2)
    out = jax.block_until_ready(forward(clt_nodes, scene_nodes))

    ref = _reference_forward(clt_nodes, scene_nodes, w1, b1, w2, b2)
    assert out.shape == (B, 2 * C), out.shape
    assert jnp.allclose(out, ref, rtol=2e-2, atol=2e-2), "mismatch vs reference"

    print("KERNEL_OK")
</pallas_src>

<mosaic_0001>
module attributes {stable_mosaic.version = 11 : i64} {
  func.func @_graph_prop_kernel(%arg0: i32, %arg1: memref<32x16x512xbf16, #tpu.memory_space<vmem>>, %arg2: memref<512x512xbf16, #tpu.memory_space<vmem>>, %arg3: memref<1x512xf32, #tpu.memory_space<vmem>>, %arg4: memref<512x1xi32, #tpu.memory_space<vmem>>, %arg5: memref<1x512xi32, #tpu.memory_space<vmem>>, %arg6: memref<32x512xf32, #tpu.memory_space<vmem>>) attributes {dimension_semantics = [#tpu.dimension_semantics<parallel>], iteration_bounds = array<i64: 1>, scalar_prefetch = 0 : i64, scratch_operands = 0 : i64, tpu.core_type = #tpu.core_type<tc>, window_params = [{transform_indices = @transform_0, window_bounds = array<i64: 32, 16, 512>}, {pipeline_mode = #tpu.pipeline_mode<synchronous>, transform_indices = @transform_1, window_bounds = array<i64: 512, 512>}, {pipeline_mode = #tpu.pipeline_mode<synchronous>, transform_indices = @transform_2, window_bounds = array<i64: 1, 512>}, {pipeline_mode = #tpu.pipeline_mode<synchronous>, transform_indices = @transform_3, window_bounds = array<i64: 512, 1>}, {pipeline_mode = #tpu.pipeline_mode<synchronous>, transform_indices = @transform_4, window_bounds = array<i64: 1, 512>}, {transform_indices = @transform_5, window_bounds = array<i64: 32, 512>}]} {
    %c0 = arith.constant 0 : index
    %c0_0 = arith.constant 0 : index
    %c0_1 = arith.constant 0 : index
    %0 = vector.load %arg1[%c0, %c0_0, %c0_1] : memref<32x16x512xbf16, #tpu.memory_space<vmem>>, vector<32x16x512xbf16>
    %1 = vector.shape_cast %0 : vector<32x16x512xbf16> to vector<512x512xbf16>
    %c0_2 = arith.constant 0 : index
    %c0_3 = arith.constant 0 : index
    %2 = vector.load %arg2[%c0_2, %c0_3] : memref<512x512xbf16, #tpu.memory_space<vmem>>, vector<512x512xbf16>
    %cst = arith.constant dense<0.000000e+00> : vector<512x512xf32>
    %3 = tpu.matmul %1, %2, %cst {dimension_numbers = #tpu.dot_dimension_numbers<[1], [0], [0], [1], [0, 0, 1, 1], [], []>} : vector<512x512xbf16>, vector<512x512xbf16>, vector<512x512xf32> -> vector<512x512xf32>
    %c0_4 = arith.constant 0 : index
    %c0_5 = arith.constant 0 : index
    %4 = vector.load %arg3[%c0_4, %c0_5] : memref<1x512xf32, #tpu.memory_space<vmem>>, vector<1x512xf32>
    %5 = vector.broadcast %4 : vector<1x512xf32> to vector<512x512xf32>
    %6 = arith.addf %3, %5 : vector<512x512xf32>
    %7 = arith.truncf %6 : vector<512x512xf32> to vector<512x512xbf16>
    "tpu.trace_start"() <{level = 10 : i32, message = "nc,mc->nm"}> : () -> ()
    %cst_6 = arith.constant dense<0.000000e+00> : vector<512x512xf32>
    %8 = tpu.matmul %7, %1, %cst_6 {dimension_numbers = #tpu.dot_dimension_numbers<[1], [1], [0], [0], [0, 0, 1, 0], [], []>} : vector<512x512xbf16>, vector<512x512xbf16>, vector<512x512xf32> -> vector<512x512xf32>
    "tpu.trace_stop"() : () -> ()
    %c0_7 = arith.constant 0 : index
    %c0_8 = arith.constant 0 : index
    %9 = vector.load %arg4[%c0_7, %c0_8] : memref<512x1xi32, #tpu.memory_space<vmem>>, vector<512x1xi32>
    %c0_9 = arith.constant 0 : index
    %c0_10 = arith.constant 0 : index
    %10 = vector.load %arg5[%c0_9, %c0_10] : memref<1x512xi32, #tpu.memory_space<vmem>>, vector<1x512xi32>
    %11 = vector.broadcast %9 : vector<512x1xi32> to vector<512x512xi32>
    %12 = vector.broadcast %10 : vector<1x512xi32> to vector<512x512xi32>
    %13 = arith.cmpi eq, %11, %12 : vector<512x512xi32>
    %cst_11 = arith.constant -1.000000e+30 : f32
    %14 = vector.broadcast %cst_11 : f32 to vector<512x512xf32>
    %15 = arith.select %13, %8, %14 : vector<512x512xi1>, vector<512x512xf32>
    %cst_12 = arith.constant dense<0xFF800000> : vector<512xf32>
    %16 = vector.multi_reduction <maximumf>, %15, %cst_12 [1] : vector<512x512xf32> to vector<512xf32>
    %17 = vector.shape_cast %16 : vector<512xf32> to vector<512x1xf32>
    %18 = vector.broadcast %17 : vector<512x1xf32> to vector<512x512xf32>
    %19 = arith.subf %15, %18 : vector<512x512xf32>
    %20 = math.exp %19 : vector<512x512xf32>
    %cst_13 = arith.constant dense<0.000000e+00> : vector<512xf32>
    %21 = vector.multi_reduction <add>, %20, %cst_13 [1] : vector<512x512xf32> to vector<512xf32>
    %22 = vector.shape_cast %21 : vector<512xf32> to vector<512x1xf32>
    %23 = tpu.reciprocal %22 {approx = true} : vector<512x1xf32> -> vector<512x1xf32>
    %24 = vector.broadcast %23 : vector<512x1xf32> to vector<512x512xf32>
    %25 = arith.mulf %20, %24 : vector<512x512xf32>
    %26 = vector.shape_cast %25 : vector<512x512xf32> to vector<32x16x512xf32>
    %cst_14 = arith.constant dense<0.000000e+00> : vector<32x512xf32>
    %27 = vector.multi_reduction <add>, %26, %cst_14 [1] : vector<32x16x512xf32> to vector<32x512xf32>
    %28 = arith.truncf %27 : vector<32x512xf32> to vector<32x512xbf16>
    %cst_15 = arith.constant dense<0.000000e+00> : vector<32x512xf32>
    %29 = tpu.matmul %28, %1, %cst_15 {dimension_numbers = #tpu.dot_dimension_numbers<[1], [0], [0], [1], [0, 0, 1, 1], [], []>} : vector<32x512xbf16>, vector<512x512xbf16>, vector<32x512xf32> -> vector<32x512xf32>
    %30 = arith.extf %0 : vector<32x16x512xbf16> to vector<32x16x512xf32>
    %cst_16 = arith.constant dense<0.000000e+00> : vector<32x512xf32>
    %31 = vector.multi_reduction <add>, %30, %cst_16 [1] : vector<32x16x512xf32> to vector<32x512xf32>
    %32 = arith.addf %29, %31 : vector<32x512xf32>
    %cst_17 = arith.constant 6.250000e-02 : f32
    %33 = vector.broadcast %cst_17 : f32 to vector<32x512xf32>
    %34 = arith.mulf %32, %33 : vector<32x512xf32>
    %c0_18 = arith.constant 0 : index
    %c0_19 = arith.constant 0 : index
    %35 = vector.load %arg6[%c0_18, %c0_19] : memref<32x512xf32, #tpu.memory_space<vmem>>, vector<32x512xf32>
    tpu.vector_store %arg6[%c0_18, %c0_19], %34 {strides = array<i32>} : memref<32x512xf32, #tpu.memory_space<vmem>>, vector<32x512xf32>,
    return
  }
  func.func @transform_0(%arg0: i32) -> (i32, i32, i32) {
    %c0_i32 = arith.constant 0 : i32
    %c0_i32_0 = arith.constant 0 : i32
    %c0_i32_1 = arith.constant 0 : i32
    return %arg0, %c0_i32, %c0_i32_0 : i32, i32, i32
  }
  func.func @transform_1(%arg0: i32) -> (i32, i32) {
    %c0_i32 = arith.constant 0 : i32
    %c0_i32_0 = arith.constant 0 : i32
    %c0_i32_1 = arith.constant 0 : i32
    return %c0_i32, %c0_i32_0 : i32, i32
  }
  func.func @transform_2(%arg0: i32) -> (i32, i32) {
    %c0_i32 = arith.constant 0 : i32
    %c0_i32_0 = arith.constant 0 : i32
    %c0_i32_1 = arith.constant 0 : i32
    return %c0_i32, %c0_i32_0 : i32, i32
  }
  func.func @transform_3(%arg0: i32) -> (i32, i32) {
    %c0_i32 = arith.constant 0 : i32
    %c0_i32_0 = arith.constant 0 : i32
    %c0_i32_1 = arith.constant 0 : i32
    return %c0_i32, %c0_i32_0 : i32, i32
  }
  func.func @transform_4(%arg0: i32) -> (i32, i32) {
    %c0_i32 = arith.constant 0 : i32
    %c0_i32_0 = arith.constant 0 : i32
    %c0_i32_1 = arith.constant 0 : i32
    return %c0_i32, %c0_i32_0 : i32, i32
  }
  func.func @transform_5(%arg0: i32) -> (i32, i32) {
    %c0_i32 = arith.constant 0 : i32
    %c0_i32_0 = arith.constant 0 : i32
    return %arg0, %c0_i32 : i32, i32
  }
}

</mosaic_0001>

<llo_original>
// kernel: _forward_impl.1
$region0: #{_forward_impl.1}
  #allocation0 [shape = 'u32[]', space=smem, size = 0x4, offset = 0x4, fixed_abs, tag = 'smem constant byte address 0x4 - core index']
  #allocation1 [shape = 'u32[144,128]{1,0:T(1,128)}', space=vmem, size = 0x12000, scoped, tag = 'internal scratch']
  %s0 = inlined_call_operand.vmem [shape: bf16[32,16,512], index: 0, kind: input, shape index: {}]
  %s1 = inlined_call_operand.vmem [shape: bf16[512,512], index: 1, kind: input, shape index: {}]
  %s2 = inlined_call_operand.vmem [shape: f32[1,512], index: 2, kind: input, shape index: {}]
  %s3 = inlined_call_operand.vmem [shape: s32[512,1], index: 3, kind: input, shape index: {}]
  %s4 = inlined_call_operand.vmem [shape: s32[1,512], index: 4, kind: input, shape index: {}]
  %s5 = inlined_call_operand.vmem [shape: f32[32,512], index: 5, kind: output, shape index: {}]
  %s6 = sld [smem:[#allocation0]]
  $region30: #{_forward_impl.1} parent=0
    _
  %s8 = ssub.s32 1, %s6
  %s9 = scalar_select 0, %s8, %s6
  // Predicated region
  $region2: #{_forward_impl.1} parent=0 // pred_check
    _
  $region3: #{_forward_impl.1} parent=0 // pred_check_branch
    %11 = sbr.rel (0) target = $region5
  $region4: #{_forward_impl.1} parent=0 // pred_region
    _
  $region5: #{_forward_impl.1} parent=0 // pred_fallthru
    _
  // Predicated region
  $region6: #{_forward_impl.1} parent=0 // pred_check
    _
  $region7: #{_forward_impl.1} parent=0 // pred_check_branch
    %13 = sbr.rel (0) target = $region9
  $region8: #{_forward_impl.1} parent=0 // pred_region
    _
  $region9: #{_forward_impl.1} parent=0 // pred_fallthru
    _
  // Predicated region
  $region10: #{_forward_impl.1} parent=0 // pred_check
    _
  $region11: #{_forward_impl.1} parent=0 // pred_check_branch
    %15 = sbr.rel (0) target = $region13
  $region12: #{_forward_impl.1} parent=0 // pred_region
    _
  $region13: #{_forward_impl.1} parent=0 // pred_fallthru
    _
  // Predicated region
  $region14: #{_forward_impl.1} parent=0 // pred_check
    _
  $region15: #{_forward_impl.1} parent=0 // pred_check_branch
    %17 = sbr.rel (0) target = $region17
  $region16: #{_forward_impl.1} parent=0 // pred_region
    _
  $region17: #{_forward_impl.1} parent=0 // pred_fallthru
    _
  // Predicated region
  $region18: #{_forward_impl.1} parent=0 // pred_check
    _
  $region19: #{_forward_impl.1} parent=0 // pred_check_branch
    %19 = sbr.rel (0) target = $region21
  $region20: #{_forward_impl.1} parent=0 // pred_region
    _
  $region21: #{_forward_impl.1} parent=0 // pred_fallthru
    _
  %v20 = vld [vmem:[%s0] sm:$0xff]
  %v21 = vld [vmem:[%s0 + $0x8] sm:$0xff]
  %v22 = vld [vmem:[%s0 + $0x10] sm:$0xff]
  %v23 = vld [vmem:[%s0 + $0x18] sm:$0xff]
  %v24 = vld [vmem:[%s0 + $0x20] sm:$0xff]
  %v25 = vld [vmem:[%s0 + $0x28] sm:$0xff]
  %v26 = vld [vmem:[%s0 + $0x30] sm:$0xff]
  %v27 = vld [vmem:[%s0 + $0x38] sm:$0xff]
  %v28 = vld [vmem:[%s0 + $0x40] sm:$0xff]
  %v29 = vld [vmem:[%s0 + $0x48] sm:$0xff]
  %v30 = vld [vmem:[%s0 + $0x50] sm:$0xff]
  %v31 = vld [vmem:[%s0 + $0x58] sm:$0xff]
  %v32 = vld [vmem:[%s0 + $0x60] sm:$0xff]
  %v33 = vld [vmem:[%s0 + $0x68] sm:$0xff]
  %v34 = vld [vmem:[%s0 + $0x70] sm:$0xff]
  %v35 = vld [vmem:[%s0 + $0x78] sm:$0xff]
  %v36 = vld [vmem:[%s0 + $0x80] sm:$0xff]
  %v37 = vld [vmem:[%s0 + $0x88] sm:$0xff]
  %v38 = vld [vmem:[%s0 + $0x90] sm:$0xff]
  %v39 = vld [vmem:[%s0 + $0x98] sm:$0xff]
  %v40 = vld [vmem:[%s0 + $0xa0] sm:$0xff]
  %v41 = vld [vmem:[%s0 + $0xa8] sm:$0xff]
  %v42 = vld [vmem:[%s0 + $0xb0] sm:$0xff]
  %v43 = vld [vmem:[%s0 + $0xb8] sm:$0xff]
  %v44 = vld [vmem:[%s0 + $0xc0] sm:$0xff]
  %v45 = vld [vmem:[%s0 + $0xc8] sm:$0xff]
  %v46 = vld [vmem:[%s0 + $0xd0] sm:$0xff]
  %v47 = vld [vmem:[%s0 + $0xd8] sm:$0xff]
  %v48 = vld [vmem:[%s0 + $0xe0] sm:$0xff]
  %v49 = vld [vmem:[%s0 + $0xe8] sm:$0xff]
  %v50 = vld [vmem:[%s0 + $0xf0] sm:$0xff]
  %v51 = vld [vmem:[%s0 + $0xf8] sm:$0xff]
  %v52 = vld [vmem:[%s0 + $0x100] sm:$0xff]
  %v53 = vld [vmem:[%s0 + $0x108] sm:$0xff]
  %v54 = vld [vmem:[%s0 + $0x110] sm:$0xff]
  %v55 = vld [vmem:[%s0 + $0x118] sm:$0xff]
  %v56 = vld [vmem:[%s0 + $0x120] sm:$0xff]
  %v57 = vld [vmem:[%s0 + $0x128] sm:$0xff]
  %v58 = vld [vmem:[%s0 + $0x130] sm:$0xff]
  %v59 = vld [vmem:[%s0 + $0x138] sm:$0xff]
  %v60 = vld [vmem:[%s0 + $0x140] sm:$0xff]
  %v61 = vld [vmem:[%s0 + $0x148] sm:$0xff]
  %v62 = vld [vmem:[%s0 + $0x150] sm:$0xff]
  %v63 = vld [vmem:[%s0 + $0x158] sm:$0xff]
  %v64 = vld [vmem:[%s0 + $0x160] sm:$0xff]
  %v65 = vld [vmem:[%s0 + $0x168] sm:$0xff]
  %v66 = vld [vmem:[%s0 + $0x170] sm:$0xff]
  %v67 = vld [vmem:[%s0 + $0x178] sm:$0xff]
  %v68 = vld [vmem:[%s0 + $0x180] sm:$0xff]
  %v69 = vld [vmem:[%s0 + $0x188] sm:$0xff]
  %v70 = vld [vmem:[%s0 + $0x190] sm:$0xff]
  %v71 = vld [vmem:[%s0 + $0x198] sm:$0xff]
  %v72 = vld [vmem:[%s0 + $0x1a0] sm:$0xff]
  %v73 = vld [vmem:[%s0 + $0x1a8] sm:$0xff]
  %v74 = vld [vmem:[%s0 + $0x1b0] sm:$0xff]
  %v75 = vld [vmem:[%s0 + $0x1b8] sm:$0xff]
  %v76 = vld [vmem:[%s0 + $0x1c0] sm:$0xff]
  %v77 = vld [vmem:[%s0 + $0x1c8] sm:$0xff]
  %v78 = vld [vmem:[%s0 + $0x1d0] sm:$0xff]
  %v79 = vld [vmem:[%s0 + $0x1d8] sm:$0xff]
  %v80 = vld [vmem:[%s0 + $0x1e0] sm:$0xff]
  %v81 = vld [vmem:[%s0 + $0x1e8] sm:$0xff]
  %v82 = vld [vmem:[%s0 + $0x1f0] sm:$0xff]
  %v83 = vld [vmem:[%s0 + $0x1f8] sm:$0xff]
  %v84 = vld [vmem:[%s0 + $0x200] sm:$0xff]
  %v85 = vld [vmem:[%s0 + $0x208] sm:$0xff]
  %v86 = vld [vmem:[%s0 + $0x210] sm:$0xff]
  %v87 = vld [vmem:[%s0 + $0x218] sm:$0xff]
  %v88 = vld [vmem:[%s0 + $0x220] sm:$0xff]
  %v89 = vld [vmem:[%s0 + $0x228] sm:$0xff]
  %v90 = vld [vmem:[%s0 + $0x230] sm:$0xff]
  %v91 = vld [vmem:[%s0 + $0x238] sm:$0xff]
  %v92 = vld [vmem:[%s0 + $0x240] sm:$0xff]
  %v93 = vld [vmem:[%s0 + $0x248] sm:$0xff]
  %v94 = vld [vmem:[%s0 + $0x250] sm:$0xff]
  %v95 = vld [vmem:[%s0 + $0x258] sm:$0xff]
  %v96 = vld [vmem:[%s0 + $0x260] sm:$0xff]
  %v97 = vld [vmem:[%s0 + $0x268] sm:$0xff]
  %v98 = vld [vmem:[%s0 + $0x270] sm:$0xff]
  %v99 = vld [vmem:[%s0 + $0x278] sm:$0xff]
  %v100 = vld [vmem:[%s0 + $0x280] sm:$0xff]
  %v101 = vld [vmem:[%s0 + $0x288] sm:$0xff]
  %v102 = vld [vmem:[%s0 + $0x290] sm:$0xff]
  %v103 = vld [vmem:[%s0 + $0x298] sm:$0xff]
  %v104 = vld [vmem:[%s0 + $0x2a0] sm:$0xff]
  %v105 = vld [vmem:[%s0 + $0x2a8] sm:$0xff]
  %v106 = vld [vmem:[%s0 + $0x2b0] sm:$0xff]
  %v107 = vld [vmem:[%s0 + $0x2b8] sm:$0xff]
  %v108 = vld [vmem:[%s0 + $0x2c0] sm:$0xff]
  %v109 = vld [vmem:[%s0 + $0x2c8] sm:$0xff]
  %v110 = vld [vmem:[%s0 + $0x2d0] sm:$0xff]
  %v111 = vld [vmem:[%s0 + $0x2d8] sm:$0xff]
  %v112 = vld [vmem:[%s0 + $0x2e0] sm:$0xff]
  %v113 = vld [vmem:[%s0 + $0x2e8] sm:$0xff]
  %v114 = vld [vmem:[%s0 + $0x2f0] sm:$0xff]
  %v115 = vld [vmem:[%s0 + $0x2f8] sm:$0xff]
  %v116 = vld [vmem:[%s0 + $0x300] sm:$0xff]
  %v117 = vld [vmem:[%s0 + $0x308] sm:$0xff]
  %v118 = vld [vmem:[%s0 + $0x310] sm:$0xff]
  %v119 = vld [vmem:[%s0 + $0x318] sm:$0xff]
  %v120 = vld [vmem:[%s0 + $0x320] sm:$0xff]
  %v121 = vld [vmem:[%s0 + $0x328] sm:$0xff]
  %v122 = vld [vmem:[%s0 + $0x330] sm:$0xff]
  %v123 = vld [vmem:[%s0 + $0x338] sm:$0xff]
  %v124 = vld [vmem:[%s0 + $0x340] sm:$0xff]
  %v125 = vld [vmem:[%s0 + $0x348] sm:$0xff]
  %v126 = vld [vmem:[%s0 + $0x350] sm:$0xff]
  %v127 = vld [vmem:[%s0 + $0x358] sm:$0xff]
  %v128 = vld [vmem:[%s0 + $0x360] sm:$0xff]
  %v129 = vld [vmem:[%s0 + $0x368] sm:$0xff]
  %v130 = vld [vmem:[%s0 + $0x370] sm:$0xff]
  %v131 = vld [vmem:[%s0 + $0x378] sm:$0xff]
  %v132 = vld [vmem:[%s0 + $0x380] sm:$0xff]
  %v133 = vld [vmem:[%s0 + $0x388] sm:$0xff]
  %v134 = vld [vmem:[%s0 + $0x390] sm:$0xff]
  %v135 = vld [vmem:[%s0 + $0x398] sm:$0xff]
  %v136 = vld [vmem:[%s0 + $0x3a0] sm:$0xff]
  %v137 = vld [vmem:[%s0 + $0x3a8] sm:$0xff]
  %v138 = vld [vmem:[%s0 + $0x3b0] sm:$0xff]
  %v139 = vld [vmem:[%s0 + $0x3b8] sm:$0xff]
  %v140 = vld [vmem:[%s0 + $0x3c0] sm:$0xff]
  %v141 = vld [vmem:[%s0 + $0x3c8] sm:$0xff]
  %v142 = vld [vmem:[%s0 + $0x3d0] sm:$0xff]
  %v143 = vld [vmem:[%s0 + $0x3d8] sm:$0xff]
  %v144 = vld [vmem:[%s0 + $0x3e0] sm:$0xff]
  %v145 = vld [vmem:[%s0 + $0x3e8] sm:$0xff]
  %v146 = vld [vmem:[%s0 + $0x3f0] sm:$0xff]
  %v147 = vld [vmem:[%s0 + $0x3f8] sm:$0xff]
  %v148 = vld [vmem:[%s1] sm:$0xff]
  %v149 = vld [vmem:[%s1 + $0x8] sm:$0xff]
  %v150 = vld [vmem:[%s1 + $0x10] sm:$0xff]
  %v151 = vld [vmem:[%s1 + $0x18] sm:$0xff]
  %v152 = vld [vmem:[%s1 + $0x20] sm:$0xff]
  %v153 = vld [vmem:[%s1 + $0x28] sm:$0xff]
  %v154 = vld [vmem:[%s1 + $0x30] sm:$0xff]
  %v155 = vld [vmem:[%s1 + $0x38] sm:$0xff]
  %v156 = vld [vmem:[%s1 + $0x40] sm:$0xff]
  %v157 = vld [vmem:[%s1 + $0x48] sm:$0xff]
  %v158 = vld [vmem:[%s1 + $0x50] sm:$0xff]
  %v159 = vld [vmem:[%s1 + $0x58] sm:$0xff]
  %v160 = vld [vmem:[%s1 + $0x60] sm:$0xff]
  %v161 = vld [vmem:[%s1 + $0x68] sm:$0xff]
  %v162 = vld [vmem:[%s1 + $0x70] sm:$0xff]
  %v163 = vld [vmem:[%s1 + $0x78] sm:$0xff]
  %v164 = vld [vmem:[%s1 + $0x80] sm:$0xff]
  %v165 = vld [vmem:[%s1 + $0x88] sm:$0xff]
  %v166 = vld [vmem:[%s1 + $0x90] sm:$0xff]
  %v167 = vld [vmem:[%s1 + $0x98] sm:$0xff]
  %v168 = vld [vmem:[%s1 + $0xa0] sm:$0xff]
  %v169 = vld [vmem:[%s1 + $0xa8] sm:$0xff]
  %v170 = vld [vmem:[%s1 + $0xb0] sm:$0xff]
  %v171 = vld [vmem:[%s1 + $0xb8] sm:$0xff]
  %v172 = vld [vmem:[%s1 + $0xc0] sm:$0xff]
  %v173 = vld [vmem:[%s1 + $0xc8] sm:$0xff]
  %v174 = vld [vmem:[%s1 + $0xd0] sm:$0xff]
  %v175 = vld [vmem:[%s1 + $0xd8] sm:$0xff]
  %v176 = vld [vmem:[%s1 + $0xe0] sm:$0xff]
  %v177 = vld [vmem:[%s1 + $0xe8] sm:$0xff]
  %v178 = vld [vmem:[%s1 + $0xf0] sm:$0xff]
  %v179 = vld [vmem:[%s1 + $0xf8] sm:$0xff]
  %v180 = vld [vmem:[%s1 + $0x100] sm:$0xff]
  %v181 = vld [vmem:[%s1 + $0x108] sm:$0xff]
  %v182 = vld [vmem:[%s1 + $0x110] sm:$0xff]
  %v183 = vld [vmem:[%s1 + $0x118] sm:$0xff]
  %v184 = vld [vmem:[%s1 + $0x120] sm:$0xff]
  %v185 = vld [vmem:[%s1 + $0x128] sm:$0xff]
  %v186 = vld [vmem:[%s1 + $0x130] sm:$0xff]
  %v187 = vld [vmem:[%s1 + $0x138] sm:$0xff]
  %v188 = vld [vmem:[%s1 + $0x140] sm:$0xff]
  %v189 = vld [vmem:[%s1 + $0x148] sm:$0xff]
  %v190 = vld [vmem:[%s1 + $0x150] sm:$0xff]
  %v191 = vld [vmem:[%s1 + $0x158] sm:$0xff]
  %v192 = vld [vmem:[%s1 + $0x160] sm:$0xff]
  %v193 = vld [vmem:[%s1 + $0x168] sm:$0xff]
  %v194 = vld [vmem:[%s1 + $0x170] sm:$0xff]
  %v195 = vld [vmem:[%s1 + $0x178] sm:$0xff]
  %v196 = vld [vmem:[%s1 + $0x180] sm:$0xff]
  %v197 = vld [vmem:[%s1 + $0x188] sm:$0xff]
  %v198 = vld [vmem:[%s1 + $0x190] sm:$0xff]
  %v199 = vld [vmem:[%s1 + $0x198] sm:$0xff]
  %v200 = vld [vmem:[%s1 + $0x1a0] sm:$0xff]
  %v201 = vld [vmem:[%s1 + $0x1a8] sm:$0xff]
  %v202 = vld [vmem:[%s1 + $0x1b0] sm:$0xff]
  %v203 = vld [vmem:[%s1 + $0x1b8] sm:$0xff]
  %v204 = vld [vmem:[%s1 + $0x1c0] sm:$0xff]
  %v205 = vld [vmem:[%s1 + $0x1c8] sm:$0xff]
  %v206 = vld [vmem:[%s1 + $0x1d0] sm:$0xff]
  %v207 = vld [vmem:[%s1 + $0x1d8] sm:$0xff]
  %v208 = vld [vmem:[%s1 + $0x1e0] sm:$0xff]
  %v209 = vld [vmem:[%s1 + $0x1e8] sm:$0xff]
  %v210 = vld [vmem:[%s1 + $0x1f0] sm:$0xff]
  %v211 = vld [vmem:[%s1 + $0x1f8] sm:$0xff]
  %v212 = vld [vmem:[%s1 + $0x200] sm:$0xff]
  %v213 = vld [vmem:[%s1 + $0x208] sm:$0xff]
  %v214 = vld [vmem:[%s1 + $0x210] sm:$0xff]
  %v215 = vld [vmem:[%s1 + $0x218] sm:$0xff]
  %v216 = vld [vmem:[%s1 + $0x220] sm:$0xff]
  %v217 = vld [vmem:[%s1 + $0x228] sm:$0xff]
  %v218 = vld [vmem:[%s1 + $0x230] sm:$0xff]
  %v219 = vld [vmem:[%s1 + $0x238] sm:$0xff]
  %v220 = vld [vmem:[%s1 + $0x240] sm:$0xff]
  %v221 = vld [vmem:[%s1 + $0x248] sm:$0xff]
  %v222 = vld [vmem:[%s1 + $0x250] sm:$0xff]
  %v223 = vld [vmem:[%s1 + $0x258] sm:$0xff]
  %v224 = vld [vmem:[%s1 + $0x260] sm:$0xff]
  %v225 = vld [vmem:[%s1 + $0x268] sm:$0xff]
  %v226 = vld [vmem:[%s1 + $0x270] sm:$0xff]
  %v227 = vld [vmem:[%s1 + $0x278] sm:$0xff]
  %v228 = vld [vmem:[%s1 + $0x280] sm:$0xff]
  %v229 = vld [vmem:[%s1 + $0x288] sm:$0xff]
  %v230 = vld [vmem:[%s1 + $0x290] sm:$0xff]
  %v231 = vld [vmem:[%s1 + $0x298] sm:$0xff]
  %v232 = vld [vmem:[%s1 + $0x2a0] sm:$0xff]
  %v233 = vld [vmem:[%s1 + $0x2a8] sm:$0xff]
  %v234 = vld [vmem:[%s1 + $0x2b0] sm:$0xff]
  %v235 = vld [vmem:[%s1 + $0x2b8] sm:$0xff]
  %v236 = vld [vmem:[%s1 + $0x2c0] sm:$0xff]
  %v237 = vld [vmem:[%s1 + $0x2c8] sm:$0xff]
  %v238 = vld [vmem:[%s1 + $0x2d0] sm:$0xff]
  %v239 = vld [vmem:[%s1 + $0x2d8] sm:$0xff]
  %v240 = vld [vmem:[%s1 + $0x2e0] sm:$0xff]
  %v241 = vld [vmem:[%s1 + $0x2e8] sm:$0xff]
  %v242 = vld [vmem:[%s1 + $0x2f0] sm:$0xff]
  %v243 = vld [vmem:[%s1 + $0x2f8] sm:$0xff]
  %v244 = vld [vmem:[%s1 + $0x300] sm:$0xff]
  %v245 = vld [vmem:[%s1 + $0x308] sm:$0xff]
  %v246 = vld [vmem:[%s1 + $0x310] sm:$0xff]
  %v247 = vld [vmem:[%s1 + $0x318] sm:$0xff]
  %v248 = vld [vmem:[%s1 + $0x320] sm:$0xff]
  %v249 = vld [vmem:[%s1 + $0x328] sm:$0xff]
  %v250 = vld [vmem:[%s1 + $0x330] sm:$0xff]
  %v251 = vld [vmem:[%s1 + $0x338] sm:$0xff]
  %v252 = vld [vmem:[%s1 + $0x340] sm:$0xff]
  %v253 = vld [vmem:[%s1 + $0x348] sm:$0xff]
  %v254 = vld [vmem:[%s1 + $0x350] sm:$0xff]
  %v255 = vld [vmem:[%s1 + $0x358] sm:$0xff]
  %v256 = vld [vmem:[%s1 + $0x360] sm:$0xff]
  %v257 = vld [vmem:[%s1 + $0x368] sm:$0xff]
  %v258 = vld [vmem:[%s1 + $0x370] sm:$0xff]
  %v259 = vld [vmem:[%s1 + $0x378] sm:$0xff]
  %v260 = vld [vmem:[%s1 + $0x380] sm:$0xff]
  %v261 = vld [vmem:[%s1 + $0x388] sm:$0xff]
  %v262 = vld [vmem:[%s1 + $0x390] sm:$0xff]
  %v263 = vld [vmem:[%s1 + $0x398] sm:$0xff]
  %v264 = vld [vmem:[%s1 + $0x3a0] sm:$0xff]
  %v265 = vld [vmem:[%s1 + $0x3a8] sm:$0xff]
  %v266 = vld [vmem:[%s1 + $0x3b0] sm:$0xff]
  %v267 = vld [vmem:[%s1 + $0x3b8] sm:$0xff]
  %v268 = vld [vmem:[%s1 + $0x3c0] sm:$0xff]
  %v269 = vld [vmem:[%s1 + $0x3c8] sm:$0xff]
  %v270 = vld [vmem:[%s1 + $0x3d0] sm:$0xff]
  %v271 = vld [vmem:[%s1 + $0x3d8] sm:$0xff]
  %v272 = vld [vmem:[%s1 + $0x3e0] sm:$0xff]
  %v273 = vld [vmem:[%s1 + $0x3e8] sm:$0xff]
  %v274 = vld [vmem:[%s1 + $0x3f0] sm:$0xff]
  %v275 = vld [vmem:[%s1 + $0x3f8] sm:$0xff]
  %v276 = vld [vmem:[%s2] sm:$0xf]
  %v278 = vlaneseq
  %v279 = vshrl.u32 %v278, 7
  %v280 = vsub.s32 0, %v279
  %v281 = vrot.slane %v276, %v280
  %v282 = vlaneseq
  %v283 = vshrl.u32 %v282, 7
  %v284 = vsub.s32 1, %v283
  %v285 = vrot.slane %v276, %v284
  %v286 = vlaneseq
  %v287 = vshrl.u32 %v286, 7
  %v288 = vsub.s32 2, %v287
  %v289 = vrot.slane %v276, %v288
  %v290 = vlaneseq
  %v291 = vshrl.u32 %v290, 7
  %v292 = vsub.s32 3, %v291
  %v293 = vrot.slane %v276, %v292
  %v426 = vunpack.c.l.b16 %v20
  %v427 = vunpack.c.h.b16 %v20
  %v428 = vunpack.c.l.b16 %v21
  %v429 = vunpack.c.h.b16 %v21
  %v430 = vunpack.c.l.b16 %v22
  %v431 = vunpack.c.h.b16 %v22
  %v432 = vunpack.c.l.b16 %v23
  %v433 = vunpack.c.h.b16 %v23
  %v434 = vunpack.c.l.b16 %v24
  %v435 = vunpack.c.h.b16 %v24
  %v436 = vunpack.c.l.b16 %v25
  %v437 = vunpack.c.h.b16 %v25
  %v438 = vunpack.c.l.b16 %v26
  %v439 = vunpack.c.h.b16 %v26
  %v440 = vunpack.c.l.b16 %v27
  %v441 = vunpack.c.h.b16 %v27
  %v442 = vunpack.c.l.b16 %v28
  %v443 = vunpack.c.h.b16 %v28
  %v444 = vunpack.c.l.b16 %v29
  %v445 = vunpack.c.h.b16 %v29
  %v446 = vunpack.c.l.b16 %v30
  %v447 = vunpack.c.h.b16 %v30
  %v448 = vunpack.c.l.b16 %v31
  %v449 = vunpack.c.h.b16 %v31
  %v450 = vunpack.c.l.b16 %v32
  %v451 = vunpack.c.h.b16 %v32
  %v452 = vunpack.c.l.b16 %v33
  %v453 = vunpack.c.h.b16 %v33
  %v454 = vunpack.c.l.b16 %v34
  %v455 = vunpack.c.h.b16 %v34
  %v456 = vunpack.c.l.b16 %v35
  %v457 = vunpack.c.h.b16 %v35
  %v458 = vunpack.c.l.b16 %v36
  %v459 = vunpack.c.h.b16 %v36
  %v460 = vunpack.c.l.b16 %v37
  %v461 = vunpack.c.h.b16 %v37
  %v462 = vunpack.c.l.b16 %v38
  %v463 = vunpack.c.h.b16 %v38
  %v464 = vunpack.c.l.b16 %v39
  %v465 = vunpack.c.h.b16 %v39
  %v466 = vunpack.c.l.b16 %v40
  %v467 = vunpack.c.h.b16 %v40
  %v468 = vunpack.c.l.b16 %v41
  %v469 = vunpack.c.h.b16 %v41
  %v470 = vunpack.c.l.b16 %v42
  %v471 = vunpack.c.h.b16 %v42
  %v472 = vunpack.c.l.b16 %v43
  %v473 = vunpack.c.h.b16 %v43
  %v474 = vunpack.c.l.b16 %v44
  %v475 = vunpack.c.h.b16 %v44
  %v476 = vunpack.c.l.b16 %v45
  %v477 = vunpack.c.h.b16 %v45
  %v478 = vunpack.c.l.b16 %v46
  %v479 = vunpack.c.h.b16 %v46
  %v480 = vunpack.c.l.b16 %v47
  %v481 = vunpack.c.h.b16 %v47
  %v482 = vunpack.c.l.b16 %v48
  %v483 = vunpack.c.h.b16 %v48
  %v484 = vunpack.c.l.b16 %v49
  %v485 = vunpack.c.h.b16 %v49
  %v486 = vunpack.c.l.b16 %v50
  %v487 = vunpack.c.h.b16 %v50
  %v488 = vunpack.c.l.b16 %v51
  %v489 = vunpack.c.h.b16 %v51
  %v490 = vunpack.c.l.b16 %v52
  %v491 = vunpack.c.h.b16 %v52
  %v492 = vunpack.c.l.b16 %v53
  %v493 = vunpack.c.h.b16 %v53
  %v494 = vunpack.c.l.b16 %v54
  %v495 = vunpack.c.h.b16 %v54
  %v496 = vunpack.c.l.b16 %v55
  %v497 = vunpack.c.h.b16 %v55
  %v498 = vunpack.c.l.b16 %v56
  %v499 = vunpack.c.h.b16 %v56
  %v500 = vunpack.c.l.b16 %v57
  %v501 = vunpack.c.h.b16 %v57
  %v502 = vunpack.c.l.b16 %v58
  %v503 = vunpack.c.h.b16 %v58
  %v504 = vunpack.c.l.b16 %v59
  %v505 = vunpack.c.h.b16 %v59
  %v506 = vunpack.c.l.b16 %v60
  %v507 = vunpack.c.h.b16 %v60
  %v508 = vunpack.c.l.b16 %v61
  %v509 = vunpack.c.h.b16 %v61
  %v510 = vunpack.c.l.b16 %v62
  %v511 = vunpack.c.h.b16 %v62
  %v512 = vunpack.c.l.b16 %v63
  %v513 = vunpack.c.h.b16 %v63
  %v514 = vunpack.c.l.b16 %v64
  %v515 = vunpack.c.h.b16 %v64
  %v516 = vunpack.c.l.b16 %v65
  %v517 = vunpack.c.h.b16 %v65
  %v518 = vunpack.c.l.b16 %v66
  %v519 = vunpack.c.h.b16 %v66
  %v520 = vunpack.c.l.b16 %v67
  %v521 = vunpack.c.h.b16 %v67
  %v522 = vunpack.c.l.b16 %v68
  %v523 = vunpack.c.h.b16 %v68
  %v524 = vunpack.c.l.b16 %v69
  %v525 = vunpack.c.h.b16 %v69
  %v526 = vunpack.c.l.b16 %v70
  %v527 = vunpack.c.h.b16 %v70
  %v528 = vunpack.c.l.b16 %v71
  %v529 = vunpack.c.h.b16 %v71
  %v530 = vunpack.c.l.b16 %v72
  %v531 = vunpack.c.h.b16 %v72
  %v532 = vunpack.c.l.b16 %v73
  %v533 = vunpack.c.h.b16 %v73
  %v534 = vunpack.c.l.b16 %v74
  %v535 = vunpack.c.h.b16 %v74
  %v536 = vunpack.c.l.b16 %v75
  %v537 = vunpack.c.h.b16 %v75
  %v538 = vunpack.c.l.b16 %v76
  %v539 = vunpack.c.h.b16 %v76
  %v540 = vunpack.c.l.b16 %v77
  %v541 = vunpack.c.h.b16 %v77
  %v542 = vunpack.c.l.b16 %v78
  %v543 = vunpack.c.h.b16 %v78
  %v544 = vunpack.c.l.b16 %v79
  %v545 = vunpack.c.h.b16 %v79
  %v546 = vunpack.c.l.b16 %v80
  %v547 = vunpack.c.h.b16 %v80
  %v548 = vunpack.c.l.b16 %v81
  %v549 = vunpack.c.h.b16 %v81
  %v550 = vunpack.c.l.b16 %v82
  %v551 = vunpack.c.h.b16 %v82
  %v552 = vunpack.c.l.b16 %v83
  %v553 = vunpack.c.h.b16 %v83
  %v554 = vunpack.c.l.b16 %v84
  %v555 = vunpack.c.h.b16 %v84
  %v556 = vunpack.c.l.b16 %v85
  %v557 = vunpack.c.h.b16 %v85
  %v558 = vunpack.c.l.b16 %v86
  %v559 = vunpack.c.h.b16 %v86
  %v560 = vunpack.c.l.b16 %v87
  %v561 = vunpack.c.h.b16 %v87
  %v562 = vunpack.c.l.b16 %v88
  %v563 = vunpack.c.h.b16 %v88
  %v564 = vunpack.c.l.b16 %v89
  %v565 = vunpack.c.h.b16 %v89
  %v566 = vunpack.c.l.b16 %v90
  %v567 = vunpack.c.h.b16 %v90
  %v568 = vunpack.c.l.b16 %v91
  %v569 = vunpack.c.h.b16 %v91
  %v570 = vunpack.c.l.b16 %v92
  %v571 = vunpack.c.h.b16 %v92
  %v572 = vunpack.c.l.b16 %v93
  %v573 = vunpack.c.h.b16 %v93
  %v574 = vunpack.c.l.b16 %v94
  %v575 = vunpack.c.h.b16 %v94
  %v576 = vunpack.c.l.b16 %v95
  %v577 = vunpack.c.h.b16 %v95
  %v578 = vunpack.c.l.b16 %v96
  %v579 = vunpack.c.h.b16 %v96
  %v580 = vunpack.c.l.b16 %v97
  %v581 = vunpack.c.h.b16 %v97
  %v582 = vunpack.c.l.b16 %v98
  %v583 = vunpack.c.h.b16 %v98
  %v584 = vunpack.c.l.b16 %v99
  %v585 = vunpack.c.h.b16 %v99
  %v586 = vunpack.c.l.b16 %v100
  %v587 = vunpack.c.h.b16 %v100
  %v588 = vunpack.c.l.b16 %v101
  %v589 = vunpack.c.h.b16 %v101
  %v590 = vunpack.c.l.b16 %v102
  %v591 = vunpack.c.h.b16 %v102
  %v592 = vunpack.c.l.b16 %v103
  %v593 = vunpack.c.h.b16 %v103
  %v594 = vunpack.c.l.b16 %v104
  %v595 = vunpack.c.h.b16 %v104
  %v596 = vunpack.c.l.b16 %v105
  %v597 = vunpack.c.h.b16 %v105
  %v598 = vunpack.c.l.b16 %v106
  %v599 = vunpack.c.h.b16 %v106
  %v600 = vunpack.c.l.b16 %v107
  %v601 = vunpack.c.h.b16 %v107
  %v602 = vunpack.c.l.b16 %v108
  %v603 = vunpack.c.h.b16 %v108
  %v604 = vunpack.c.l.b16 %v109
  %v605 = vunpack.c.h.b16 %v109
  %v606 = vunpack.c.l.b16 %v110
  %v607 = vunpack.c.h.b16 %v110
  %v608 = vunpack.c.l.b16 %v111
  %v609 = vunpack.c.h.b16 %v111
  %v610 = vunpack.c.l.b16 %v112
  %v611 = vunpack.c.h.b16 %v112
  %v612 = vunpack.c.l.b16 %v113
  %v613 = vunpack.c.h.b16 %v113
  %v614 = vunpack.c.l.b16 %v114
  %v615 = vunpack.c.h.b16 %v114
  %v616 = vunpack.c.l.b16 %v115
  %v617 = vunpack.c.h.b16 %v115
  %v618 = vunpack.c.l.b16 %v116
  %v619 = vunpack.c.h.b16 %v116
  %v620 = vunpack.c.l.b16 %v117
  %v621 = vunpack.c.h.b16 %v117
  %v622 = vunpack.c.l.b16 %v118
  %v623 = vunpack.c.h.b16 %v118
  %v624 = vunpack.c.l.b16 %v119
  %v625 = vunpack.c.h.b16 %v119
  %v626 = vunpack.c.l.b16 %v120
  %v627 = vunpack.c.h.b16 %v120
  %v628 = vunpack.c.l.b16 %v121
  %v629 = vunpack.c.h.b16 %v121
  %v630 = vunpack.c.l.b16 %v122
  %v631 = vunpack.c.h.b16 %v122
  %v632 = vunpack.c.l.b16 %v123
  %v633 = vunpack.c.h.b16 %v123
  %v634 = vunpack.c.l.b16 %v124
  %v635 = vunpack.c.h.b16 %v124
  %v636 = vunpack.c.l.b16 %v125
  %v637 = vunpack.c.h.b16 %v125
  %v638 = vunpack.c.l.b16 %v126
  %v639 = vunpack.c.h.b16 %v126
  %v640 = vunpack.c.l.b16 %v127
  %v641 = vunpack.c.h.b16 %v127
  %v642 = vunpack.c.l.b16 %v128
  %v643 = vunpack.c.h.b16 %v128
  %v644 = vunpack.c.l.b16 %v129
  %v645 = vunpack.c.h.b16 %v129
  %v646 = vunpack.c.l.b16 %v130
  %v647 = vunpack.c.h.b16 %v130
  %v648 = vunpack.c.l.b16 %v131
  %v649 = vunpack.c.h.b16 %v131
  %v650 = vunpack.c.l.b16 %v132
  %v651 = vunpack.c.h.b16 %v132
  %v652 = vunpack.c.l.b16 %v133
  %v653 = vunpack.c.h.b16 %v133
  %v654 = vunpack.c.l.b16 %v134
  %v655 = vunpack.c.h.b16 %v134
  %v656 = vunpack.c.l.b16 %v135
  %v657 = vunpack.c.h.b16 %v135
  %v658 = vunpack.c.l.b16 %v136
  %v659 = vunpack.c.h.b16 %v136
  %v660 = vunpack.c.l.b16 %v137
  %v661 = vunpack.c.h.b16 %v137
  %v662 = vunpack.c.l.b16 %v138
  %v663 = vunpack.c.h.b16 %v138
  %v664 = vunpack.c.l.b16 %v139
  %v665 = vunpack.c.h.b16 %v139
  %v666 = vunpack.c.l.b16 %v140
  %v667 = vunpack.c.h.b16 %v140
  %v668 = vunpack.c.l.b16 %v141
  %v669 = vunpack.c.h.b16 %v141
  %v670 = vunpack.c.l.b16 %v142
  %v671 = vunpack.c.h.b16 %v142
  %v672 = vunpack.c.l.b16 %v143
  %v673 = vunpack.c.h.b16 %v143
  %v674 = vunpack.c.l.b16 %v144
  %v675 = vunpack.c.h.b16 %v144
  %v676 = vunpack.c.l.b16 %v145
  %v677 = vunpack.c.h.b16 %v145
  %v678 = vunpack.c.l.b16 %v146
  %v679 = vunpack.c.h.b16 %v146
  %v680 = vunpack.c.l.b16 %v147
  %v681 = vunpack.c.h.b16 %v147
  %v682 = vpack.c.b16 %v430, %v426
  %v683 = vpack.c.b16 %v431, %v427
  %v684 = vpack.c.b16 %v432, %v428
  %v685 = vpack.c.b16 %v433, %v429
  %v686 = vpack.c.b16 %v438, %v434
  %v687 = vpack.c.b16 %v439, %v435
  %v688 = vpack.c.b16 %v440, %v436
  %v689 = vpack.c.b16 %v441, %v437
  %v690 = vpack.c.b16 %v446, %v442
  %v691 = vpack.c.b16 %v447, %v443
  %v692 = vpack.c.b16 %v448, %v444
  %v693 = vpack.c.b16 %v449, %v445
  %v694 = vpack.c.b16 %v454, %v450
  %v695 = vpack.c.b16 %v455, %v451
  %v696 = vpack.c.b16 %v456, %v452
  %v697 = vpack.c.b16 %v457, %v453
  %v698 = vpack.c.b16 %v462, %v458
  %v699 = vpack.c.b16 %v463, %v459
  %v700 = vpack.c.b16 %v464, %v460
  %v701 = vpack.c.b16 %v465, %v461
  %v702 = vpack.c.b16 %v470, %v466
  %v703 = vpack.c.b16 %v471, %v467
  %v704 = vpack.c.b16 %v472, %v468
  %v705 = vpack.c.b16 %v473, %v469
  %v706 = vpack.c.b16 %v478, %v474
  %v707 = vpack.c.b16 %v479, %v475
  %v708 = vpack.c.b16 %v480, %v476
  %v709 = vpack.c.b16 %v481, %v477
  %v710 = vpack.c.b16 %v486, %v482
  %v711 = vpack.c.b16 %v487, %v483
  %v712 = vpack.c.b16 %v488, %v484
  %v713 = vpack.c.b16 %v489, %v485
  %v714 = vpack.c.b16 %v494, %v490
  %v715 = vpack.c.b16 %v495, %v491
  %v716 = vpack.c.b16 %v496, %v492
  %v717 = vpack.c.b16 %v497, %v493
  %v718 = vpack.c.b16 %v502, %v498
  %v719 = vpack.c.b16 %v503, %v499
  %v720 = vpack.c.b16 %v504, %v500
  %v721 = vpack.c.b16 %v505, %v501
  %v722 = vpack.c.b16 %v510, %v506
  %v723 = vpack.c.b16 %v511, %v507
  %v724 = vpack.c.b16 %v512, %v508
  %v725 = vpack.c.b16 %v513, %v509
  %v726 = vpack.c.b16 %v518, %v514
  %v727 = vpack.c.b16 %v519, %v515
  %v728 = vpack.c.b16 %v520, %v516
  %v729 = vpack.c.b16 %v521, %v517
  %v730 = vpack.c.b16 %v526, %v522
  %v731 = vpack.c.b16 %v527, %v523
  %v732 = vpack.c.b16 %v528, %v524
  %v733 = vpack.c.b16 %v529, %v525
  %v734 = vpack.c.b16 %v534, %v530
  %v735 = vpack.c.b16 %v535, %v531
  %v736 = vpack.c.b16 %v536, %v532
  %v737 = vpack.c.b16 %v537, %v533
  %v738 = vpack.c.b16 %v542, %v538
  %v739 = vpack.c.b16 %v543, %v539
  %v740 = vpack.c.b16 %v544, %v540
  %v741 = vpack.c.b16 %v545, %v541
  %v742 = vpack.c.b16 %v550, %v546
  %v743 = vpack.c.b16 %v551, %v547
  %v744 = vpack.c.b16 %v552, %v548
  %v745 = vpack.c.b16 %v553, %v549
  %v746 = vpack.c.b16 %v558, %v554
  %v747 = vpack.c.b16 %v559, %v555
  %v748 = vpack.c.b16 %v560, %v556
  %v749 = vpack.c.b16 %v561, %v557
  %v750 = vpack.c.b16 %v566, %v562
  %v751 = vpack.c.b16 %v567, %v563
  %v752 = vpack.c.b16 %v568, %v564
  %v753 = vpack.c.b16 %v569, %v565
  %v754 = vpack.c.b16 %v574, %v570
  %v755 = vpack.c.b16 %v575, %v571
  %v756 = vpack.c.b16 %v576, %v572
  %v757 = vpack.c.b16 %v577, %v573
  %v758 = vpack.c.b16 %v582, %v578
  %v759 = vpack.c.b16 %v583, %v579
  %v760 = vpack.c.b16 %v584, %v580
  %v761 = vpack.c.b16 %v585, %v581
  %v762 = vpack.c.b16 %v590, %v586
  %v763 = vpack.c.b16 %v591, %v587
  %v764 = vpack.c.b16 %v592, %v588
  %v765 = vpack.c.b16 %v593, %v589
  %v766 = vpack.c.b16 %v598, %v594
  %v767 = vpack.c.b16 %v599, %v595
  %v768 = vpack.c.b16 %v600, %v596
  %v769 = vpack.c.b16 %v601, %v597
  %v770 = vpack.c.b16 %v606, %v602
  %v771 = vpack.c.b16 %v607, %v603
  %v772 = vpack.c.b16 %v608, %v604
  %v773 = vpack.c.b16 %v609, %v605
  %v774 = vpack.c.b16 %v614, %v610
  %v775 = vpack.c.b16 %v615, %v611
  %v776 = vpack.c.b16 %v616, %v612
  %v777 = vpack.c.b16 %v617, %v613
  %v778 = vpack.c.b16 %v622, %v618
  %v779 = vpack.c.b16 %v623, %v619
  %v780 = vpack.c.b16 %v624, %v620
  %v781 = vpack.c.b16 %v625, %v621
  %v782 = vpack.c.b16 %v630, %v626
  %v783 = vpack.c.b16 %v631, %v627
  %v784 = vpack.c.b16 %v632, %v628
  %v785 = vpack.c.b16 %v633, %v629
  %v786 = vpack.c.b16 %v638, %v634
  %v787 = vpack.c.b16 %v639, %v635
  %v788 = vpack.c.b16 %v640, %v636
  %v789 = vpack.c.b16 %v641, %v637
  %v790 = vpack.c.b16 %v646, %v642
  %v791 = vpack.c.b16 %v647, %v643
  %v792 = vpack.c.b16 %v648, %v644
  %v793 = vpack.c.b16 %v649, %v645
  %v794 = vpack.c.b16 %v654, %v650
  %v795 = vpack.c.b16 %v655, %v651
  %v796 = vpack.c.b16 %v656, %v652
  %v797 = vpack.c.b16 %v657, %v653
  %v798 = vpack.c.b16 %v662, %v658
  %v799 = vpack.c.b16 %v663, %v659
  %v800 = vpack.c.b16 %v664, %v660
  %v801 = vpack.c.b16 %v665, %v661
  %v802 = vpack.c.b16 %v670, %v666
  %v803 = vpack.c.b16 %v671, %v667
  %v804 = vpack.c.b16 %v672, %v668
  %v805 = vpack.c.b16 %v673, %v669
  %v806 = vpack.c.b16 %v678, %v674
  %v807 = vpack.c.b16 %v679, %v675
  %v808 = vpack.c.b16 %v680, %v676
  %v809 = vpack.c.b16 %v681, %v677
  %v1066 = vunpack.c.l.b16 %v148
  %v1067 = vunpack.c.h.b16 %v148
  %v1068 = vunpack.c.l.b16 %v149
  %v1069 = vunpack.c.h.b16 %v149
  %v1070 = vunpack.c.l.b16 %v150
  %v1071 = vunpack.c.h.b16 %v150
  %v1072 = vunpack.c.l.b16 %v151
  %v1073 = vunpack.c.h.b16 %v151
  %v1074 = vunpack.c.l.b16 %v152
  %v1075 = vunpack.c.h.b16 %v152
  %v1076 = vunpack.c.l.b16 %v153
  %v1077 = vunpack.c.h.b16 %v153
  %v1078 = vunpack.c.l.b16 %v154
  %v1079 = vunpack.c.h.b16 %v154
  %v1080 = vunpack.c.l.b16 %v155
  %v1081 = vunpack.c.h.b16 %v155
  %v1082 = vunpack.c.l.b16 %v156
  %v1083 = vunpack.c.h.b16 %v156
  %v1084 = vunpack.c.l.b16 %v157
  %v1085 = vunpack.c.h.b16 %v157
  %v1086 = vunpack.c.l.b16 %v158
  %v1087 = vunpack.c.h.b16 %v158
  %v1088 = vunpack.c.l.b16 %v159
  %v1089 = vunpack.c.h.b16 %v159
  %v1090 = vunpack.c.l.b16 %v160
  %v1091 = vunpack.c.h.b16 %v160
  %v1092 = vunpack.c.l.b16 %v161
  %v1093 = vunpack.c.h.b16 %v161
  %v1094 = vunpack.c.l.b16 %v162
  %v1095 = vunpack.c.h.b16 %v162
  %v1096 = vunpack.c.l.b16 %v163
  %v1097 = vunpack.c.h.b16 %v163
  %v1098 = vunpack.c.l.b16 %v164
  %v1099 = vunpack.c.h.b16 %v164
  %v1100 = vunpack.c.l.b16 %v165
  %v1101 = vunpack.c.h.b16 %v165
  %v1102 = vunpack.c.l.b16 %v166
  %v1103 = vunpack.c.h.b16 %v166
  %v1104 = vunpack.c.l.b16 %v167
  %v1105 = vunpack.c.h.b16 %v167
  %v1106 = vunpack.c.l.b16 %v168
  %v1107 = vunpack.c.h.b16 %v168
  %v1108 = vunpack.c.l.b16 %v169
  %v1109 = vunpack.c.h.b16 %v169
  %v1110 = vunpack.c.l.b16 %v170
  %v1111 = vunpack.c.h.b16 %v170
  %v1112 = vunpack.c.l.b16 %v171
  %v1113 = vunpack.c.h.b16 %v171
  %v1114 = vunpack.c.l.b16 %v172
  %v1115 = vunpack.c.h.b16 %v172
  %v1116 = vunpack.c.l.b16 %v173
  %v1117 = vunpack.c.h.b16 %v173
  %v1118 = vunpack.c.l.b16 %v174
  %v1119 = vunpack.c.h.b16 %v174
  %v1120 = vunpack.c.l.b16 %v175
  %v1121 = vunpack.c.h.b16 %v175
  %v1122 = vunpack.c.l.b16 %v176
  %v1123 = vunpack.c.h.b16 %v176
  %v1124 = vunpack.c.l.b16 %v177
  %v1125 = vunpack.c.h.b16 %v177
  %v1126 = vunpack.c.l.b16 %v178
  %v1127 = vunpack.c.h.b16 %v178
  %v1128 = vunpack.c.l.b16 %v179
  %v1129 = vunpack.c.h.b16 %v179
  %v1130 = vunpack.c.l.b16 %v180
  %v1131 = vunpack.c.h.b16 %v180
  %v1132 = vunpack.c.l.b16 %v181
  %v1133 = vunpack.c.h.b16 %v181
  %v1134 = vunpack.c.l.b16 %v182
  %v1135 = vunpack.c.h.b16 %v182
  %v1136 = vunpack.c.l.b16 %v183
  %v1137 = vunpack.c.h.b16 %v183
  %v1138 = vunpack.c.l.b16 %v184
  %v1139 = vunpack.c.h.b16 %v184
  %v1140 = vunpack.c.l.b16 %v185
  %v1141 = vunpack.c.h.b16 %v185
  %v1142 = vunpack.c.l.b16 %v186
  %v1143 = vunpack.c.h.b16 %v186
  %v1144 = vunpack.c.l.b16 %v187
  %v1145 = vunpack.c.h.b16 %v187
  %v1146 = vunpack.c.l.b16 %v188
  %v1147 = vunpack.c.h.b16 %v188
  %v1148 = vunpack.c.l.b16 %v189
  %v1149 = vunpack.c.h.b16 %v189
  %v1150 = vunpack.c.l.b16 %v190
  %v1151 = vunpack.c.h.b16 %v190
  %v1152 = vunpack.c.l.b16 %v191
  %v1153 = vunpack.c.h.b16 %v191
  %v1154 = vunpack.c.l.b16 %v192
  %v1155 = vunpack.c.h.b16 %v192
  %v1156 = vunpack.c.l.b16 %v193
  %v1157 = vunpack.c.h.b16 %v193
  %v1158 = vunpack.c.l.b16 %v194
  %v1159 = vunpack.c.h.b16 %v194
  %v1160 = vunpack.c.l.b16 %v195
  %v1161 = vunpack.c.h.b16 %v195
  %v1162 = vunpack.c.l.b16 %v196
  %v1163 = vunpack.c.h.b16 %v196
  %v1164 = vunpack.c.l.b16 %v197
  %v1165 = vunpack.c.h.b16 %v197
  %v1166 = vunpack.c.l.b16 %v198
  %v1167 = vunpack.c.h.b16 %v198
  %v1168 = vunpack.c.l.b16 %v199
  %v1169 = vunpack.c.h.b16 %v199
  %v1170 = vunpack.c.l.b16 %v200
  %v1171 = vunpack.c.h.b16 %v200
  %v1172 = vunpack.c.l.b16 %v201
  %v1173 = vunpack.c.h.b16 %v201
  %v1174 = vunpack.c.l.b16 %v202
  %v1175 = vunpack.c.h.b16 %v202
  %v1176 = vunpack.c.l.b16 %v203
  %v1177 = vunpack.c.h.b16 %v203
  %v1178 = vunpack.c.l.b16 %v204
  %v1179 = vunpack.c.h.b16 %v204
  %v1180 = vunpack.c.l.b16 %v205
  %v1181 = vunpack.c.h.b16 %v205
  %v1182 = vunpack.c.l.b16 %v206
  %v1183 = vunpack.c.h.b16 %v206
  %v1184 = vunpack.c.l.b16 %v207
  %v1185 = vunpack.c.h.b16 %v207
  %v1186 = vunpack.c.l.b16 %v208
  %v1187 = vunpack.c.h.b16 %v208
  %v1188 = vunpack.c.l.b16 %v209
  %v1189 = vunpack.c.h.b16 %v209
  %v1190 = vunpack.c.l.b16 %v210
  %v1191 = vunpack.c.h.b16 %v210
  %v1192 = vunpack.c.l.b16 %v211
  %v1193 = vunpack.c.h.b16 %v211
  %v1194 = vunpack.c.l.b16 %v212
  %v1195 = vunpack.c.h.b16 %v212
  %v1196 = vunpack.c.l.b16 %v213
  %v1197 = vunpack.c.h.b16 %v213
  %v1198 = vunpack.c.l.b16 %v214
  %v1199 = vunpack.c.h.b16 %v214
  %v1200 = vunpack.c.l.b16 %v215
  %v1201 = vunpack.c.h.b16 %v215
  %v1202 = vunpack.c.l.b16 %v216
  %v1203 = vunpack.c.h.b16 %v216
  %v1204 = vunpack.c.l.b16 %v217
  %v1205 = vunpack.c.h.b16 %v217
  %v1206 = vunpack.c.l.b16 %v218
  %v1207 = vunpack.c.h.b16 %v218
  %v1208 = vunpack.c.l.b16 %v219
  %v1209 = vunpack.c.h.b16 %v219
  %v1210 = vunpack.c.l.b16 %v220
  %v1211 = vunpack.c.h.b16 %v220
  %v1212 = vunpack.c.l.b16 %v221
  %v1213 = vunpack.c.h.b16 %v221
  %v1214 = vunpack.c.l.b16 %v222
  %v1215 = vunpack.c.h.b16 %v222
  %v1216 = vunpack.c.l.b16 %v223
  %v1217 = vunpack.c.h.b16 %v223
  %v1218 = vunpack.c.l.b16 %v224
  %v1219 = vunpack.c.h.b16 %v224
  %v1220 = vunpack.c.l.b16 %v225
  %v1221 = vunpack.c.h.b16 %v225
  %v1222 = vunpack.c.l.b16 %v226
  %v1223 = vunpack.c.h.b16 %v226
  %v1224 = vunpack.c.l.b16 %v227
  %v1225 = vunpack.c.h.b16 %v227
  %v1226 = vunpack.c.l.b16 %v228
  %v1227 = vunpack.c.h.b16 %v228
  %v1228 = vunpack.c.l.b16 %v229
  %v1229 = vunpack.c.h.b16 %v229
  %v1230 = vunpack.c.l.b16 %v230
  %v1231 = vunpack.c.h.b16 %v230
  %v1232 = vunpack.c.l.b16 %v231
  %v1233 = vunpack.c.h.b16 %v231
  %v1234 = vunpack.c.l.b16 %v232
  %v1235 = vunpack.c.h.b16 %v232
  %v1236 = vunpack.c.l.b16 %v233
  %v1237 = vunpack.c.h.b16 %v233
  %v1238 = vunpack.c.l.b16 %v234
  %v1239 = vunpack.c.h.b16 %v234
  %v1240 = vunpack.c.l.b16 %v235
  %v1241 = vunpack.c.h.b16 %v235
  %v1242 = vunpack.c.l.b16 %v236
  %v1243 = vunpack.c.h.b16 %v236
  %v1244 = vunpack.c.l.b16 %v237
  %v1245 = vunpack.c.h.b16 %v237
  %v1246 = vunpack.c.l.b16 %v238
  %v1247 = vunpack.c.h.b16 %v238
  %v1248 = vunpack.c.l.b16 %v239
  %v1249 = vunpack.c.h.b16 %v239
  %v1250 = vunpack.c.l.b16 %v240
  %v1251 = vunpack.c.h.b16 %v240
  %v1252 = vunpack.c.l.b16 %v241
  %v1253 = vunpack.c.h.b16 %v241
  %v1254 = vunpack.c.l.b16 %v242
  %v1255 = vunpack.c.h.b16 %v242
  %v1256 = vunpack.c.l.b16 %v243
  %v1257 = vunpack.c.h.b16 %v243
  %v1258 = vunpack.c.l.b16 %v244
  %v1259 = vunpack.c.h.b16 %v244
  %v1260 = vunpack.c.l.b16 %v245
  %v1261 = vunpack.c.h.b16 %v245
  %v1262 = vunpack.c.l.b16 %v246
  %v1263 = vunpack.c.h.b16 %v246
  %v1264 = vunpack.c.l.b16 %v247
  %v1265 = vunpack.c.h.b16 %v247
  %v1266 = vunpack.c.l.b16 %v248
  %v1267 = vunpack.c.h.b16 %v248
  %v1268 = vunpack.c.l.b16 %v249
  %v1269 = vunpack.c.h.b16 %v249
  %v1270 = vunpack.c.l.b16 %v250
  %v1271 = vunpack.c.h.b16 %v250
  %v1272 = vunpack.c.l.b16 %v251
  %v1273 = vunpack.c.h.b16 %v251
  %v1274 = vunpack.c.l.b16 %v252
  %v1275 = vunpack.c.h.b16 %v252
  %v1276 = vunpack.c.l.b16 %v253
  %v1277 = vunpack.c.h.b16 %v253
  %v1278 = vunpack.c.l.b16 %v254
  %v1279 = vunpack.c.h.b16 %v254
  %v1280 = vunpack.c.l.b16 %v255
  %v1281 = vunpack.c.h.b16 %v255
  %v1282 = vunpack.c.l.b16 %v256
  %v1283 = vunpack.c.h.b16 %v256
  %v1284 = vunpack.c.l.b16 %v257
  %v1285 = vunpack.c.h.b16 %v257
  %v1286 = vunpack.c.l.b16 %v258
  %v1287 = vunpack.c.h.b16 %v258
  %v1288 = vunpack.c.l.b16 %v259
  %v1289 = vunpack.c.h.b16 %v259
  %v1290 = vunpack.c.l.b16 %v260
  %v1291 = vunpack.c.h.b16 %v260
  %v1292 = vunpack.c.l.b16 %v261
  %v1293 = vunpack.c.h.b16 %v261
  %v1294 = vunpack.c.l.b16 %v262
  %v1295 = vunpack.c.h.b16 %v262
  %v1296 = vunpack.c.l.b16 %v263
  %v1297 = vunpack.c.h.b16 %v263
  %v1298 = vunpack.c.l.b16 %v264
  %v1299 = vunpack.c.h.b16 %v264
  %v1300 = vunpack.c.l.b16 %v265
  %v1301 = vunpack.c.h.b16 %v265
  %v1302 = vunpack.c.l.b16 %v266
  %v1303 = vunpack.c.h.b16 %v266
  %v1304 = vunpack.c.l.b16 %v267
  %v1305 = vunpack.c.h.b16 %v267
  %v1306 = vunpack.c.l.b16 %v268
  %v1307 = vunpack.c.h.b16 %v268
  %v1308 = vunpack.c.l.b16 %v269
  %v1309 = vunpack.c.h.b16 %v269
  %v1310 = vunpack.c.l.b16 %v270
  %v1311 = vunpack.c.h.b16 %v270
  %v1312 = vunpack.c.l.b16 %v271
  %v1313 = vunpack.c.h.b16 %v271
  %v1314 = vunpack.c.l.b16 %v272
  %v1315 = vunpack.c.h.b16 %v272
  %v1316 = vunpack.c.l.b16 %v273
  %v1317 = vunpack.c.h.b16 %v273
  %v1318 = vunpack.c.l.b16 %v274
  %v1319 = vunpack.c.h.b16 %v274
  %v1320 = vunpack.c.l.b16 %v275
  %v1321 = vunpack.c.h.b16 %v275
  %v1322 = vpack.c.b16 %v1070, %v1066
  %v1323 = vpack.c.b16 %v1071, %v1067
  %v1324 = vpack.c.b16 %v1072, %v1068
  %v1325 = vpack.c.b16 %v1073, %v1069
  %v1326 = vpack.c.b16 %v1078, %v1074
  %v1327 = vpack.c.b16 %v1079, %v1075
  %v1328 = vpack.c.b16 %v1080, %v1076
  %v1329 = vpack.c.b16 %v1081, %v1077
  %v1330 = vpack.c.b16 %v1086, %v1082
  %v1331 = vpack.c.b16 %v1087, %v1083
  %v1332 = vpack.c.b16 %v1088, %v1084
  %v1333 = vpack.c.b16 %v1089, %v1085
  %v1334 = vpack.c.b16 %v1094, %v1090
  %v1335 = vpack.c.b16 %v1095, %v1091
  %v1336 = vpack.c.b16 %v1096, %v1092
  %v1337 = vpack.c.b16 %v1097, %v1093
  %v1338 = vpack.c.b16 %v1102, %v1098
  %v1339 = vpack.c.b16 %v1103, %v1099
  %v1340 = vpack.c.b16 %v1104, %v1100
  %v1341 = vpack.c.b16 %v1105, %v1101
  %v1342 = vpack.c.b16 %v1110, %v1106
  %v1343 = vpack.c.b16 %v1111, %v1107
  %v1344 = vpack.c.b16 %v1112, %v1108
  %v1345 = vpack.c.b16 %v1113, %v1109
  %v1346 = vpack.c.b16 %v1118, %v1114
  %v1347 = vpack.c.b16 %v1119, %v1115
  %v1348 = vpack.c.b16 %v1120, %v1116
  %v1349 = vpack.c.b16 %v1121, %v1117
  %v1350 = vpack.c.b16 %v1126, %v1122
  %v1351 = vpack.c.b16 %v1127, %v1123
  %v1352 = vpack.c.b16 %v1128, %v1124
  %v1353 = vpack.c.b16 %v1129, %v1125
  %v1354 = vpack.c.b16 %v1134, %v1130
  %v1355 = vpack.c.b16 %v1135, %v1131
  %v1356 = vpack.c.b16 %v1136, %v1132
  %v1357 = vpack.c.b16 %v1137, %v1133
  %v1358 = vpack.c.b16 %v1142, %v1138
  %v1359 = vpack.c.b16 %v1143, %v1139
  %v1360 = vpack.c.b16 %v1144, %v1140
  %v1361 = vpack.c.b16 %v1145, %v1141
  %v1362 = vpack.c.b16 %v1150, %v1146
  %v1363 = vpack.c.b16 %v1151, %v1147
  %v1364 = vpack.c.b16 %v1152, %v1148
  %v1365 = vpack.c.b16 %v1153, %v1149
  %v1366 = vpack.c.b16 %v1158, %v1154
  %v1367 = vpack.c.b16 %v1159, %v1155
  %v1368 = vpack.c.b16 %v1160, %v1156
  %v1369 = vpack.c.b16 %v1161, %v1157
  %v1370 = vpack.c.b16 %v1166, %v1162
  %v1371 = vpack.c.b16 %v1167, %v1163
  %v1372 = vpack.c.b16 %v1168, %v1164
  %v1373 = vpack.c.b16 %v1169, %v1165
  %v1374 = vpack.c.b16 %v1174, %v1170
  %v1375 = vpack.c.b16 %v1175, %v1171
  %v1376 = vpack.c.b16 %v1176, %v1172
  %v1377 = vpack.c.b16 %v1177, %v1173
  %v1378 = vpack.c.b16 %v1182, %v1178
  %v1379 = vpack.c.b16 %v1183, %v1179
  %v1380 = vpack.c.b16 %v1184, %v1180
  %v1381 = vpack.c.b16 %v1185, %v1181
  %v1382 = vpack.c.b16 %v1190, %v1186
  %v1383 = vpack.c.b16 %v1191, %v1187
  %v1384 = vpack.c.b16 %v1192, %v1188
  %v1385 = vpack.c.b16 %v1193, %v1189
  %v1386 = vpack.c.b16 %v1198, %v1194
  %v1387 = vpack.c.b16 %v1199, %v1195
  %v1388 = vpack.c.b16 %v1200, %v1196
  %v1389 = vpack.c.b16 %v1201, %v1197
  %v1390 = vpack.c.b16 %v1206, %v1202
  %v1391 = vpack.c.b16 %v1207, %v1203
  %v1392 = vpack.c.b16 %v1208, %v1204
  %v1393 = vpack.c.b16 %v1209, %v1205
  %v1394 = vpack.c.b16 %v1214, %v1210
  %v1395 = vpack.c.b16 %v1215, %v1211
  %v1396 = vpack.c.b16 %v1216, %v1212
  %v1397 = vpack.c.b16 %v1217, %v1213
  %v1398 = vpack.c.b16 %v1222, %v1218
  %v1399 = vpack.c.b16 %v1223, %v1219
  %v1400 = vpack.c.b16 %v1224, %v1220
  %v1401 = vpack.c.b16 %v1225, %v1221
  %v1402 = vpack.c.b16 %v1230, %v1226
  %v1403 = vpack.c.b16 %v1231, %v1227
  %v1404 = vpack.c.b16 %v1232, %v1228
  %v1405 = vpack.c.b16 %v1233, %v1229
  %v1406 = vpack.c.b16 %v1238, %v1234
  %v1407 = vpack.c.b16 %v1239, %v1235
  %v1408 = vpack.c.b16 %v1240, %v1236
  %v1409 = vpack.c.b16 %v1241, %v1237
  %v1410 = vpack.c.b16 %v1246, %v1242
  %v1411 = vpack.c.b16 %v1247, %v1243
  %v1412 = vpack.c.b16 %v1248, %v1244
  %v1413 = vpack.c.b16 %v1249, %v1245
  %v1414 = vpack.c.b16 %v1254, %v1250
  %v1415 = vpack.c.b16 %v1255, %v1251
  %v1416 = vpack.c.b16 %v1256, %v1252
  %v1417 = vpack.c.b16 %v1257, %v1253
  %v1418 = vpack.c.b16 %v1262, %v1258
  %v1419 = vpack.c.b16 %v1263, %v1259
  %v1420 = vpack.c.b16 %v1264, %v1260
  %v1421 = vpack.c.b16 %v1265, %v1261
  %v1422 = vpack.c.b16 %v1270, %v1266
  %v1423 = vpack.c.b16 %v1271, %v1267
  %v1424 = vpack.c.b16 %v1272, %v1268
  %v1425 = vpack.c.b16 %v1273, %v1269
  %v1426 = vpack.c.b16 %v1278, %v1274
  %v1427 = vpack.c.b16 %v1279, %v1275
  %v1428 = vpack.c.b16 %v1280, %v1276
  %v1429 = vpack.c.b16 %v1281, %v1277
  %v1430 = vpack.c.b16 %v1286, %v1282
  %v1431 = vpack.c.b16 %v1287, %v1283
  %v1432 = vpack.c.b16 %v1288, %v1284
  %v1433 = vpack.c.b16 %v1289, %v1285
  %v1434 = vpack.c.b16 %v1294, %v1290
  %v1435 = vpack.c.b16 %v1295, %v1291
  %v1436 = vpack.c.b16 %v1296, %v1292
  %v1437 = vpack.c.b16 %v1297, %v1293
  %v1438 = vpack.c.b16 %v1302, %v1298
  %v1439 = vpack.c.b16 %v1303, %v1299
  %v1440 = vpack.c.b16 %v1304, %v1300
  %v1441 = vpack.c.b16 %v1305, %v1301
  %v1442 = vpack.c.b16 %v1310, %v1306
  %v1443 = vpack.c.b16 %v1311, %v1307
  %v1444 = vpack.c.b16 %v1312, %v1308
  %v1445 = vpack.c.b16 %v1313, %v1309
  %v1446 = vpack.c.b16 %v1318, %v1314
  %v1447 = vpack.c.b16 %v1319, %v1315
  %v1448 = vpack.c.b16 %v1320, %v1316
  %v1449 = vpack.c.b16 %v1321, %v1317
  %1578 = vmatprep.subr.bf16.mxu0 %v1323
  %1579 = vmatpush1.bf16.msra.mxu0 %v1322
  %1580 = vmatprep.subr.bf16.mxu0 %v1327
  %1581 = vmatpush1.bf16.msra.mxu0 %v1326
  %1582 = vmatprep.subr.bf16.mxu0 %v1331
  %1583 = vmatpush1.bf16.msra.mxu0 %v1330
  %1584 = vmatprep.subr.bf16.mxu0 %v1335
  %1585 = vmatpush1.bf16.msra.mxu0 %v1334
  %1586 = vmatprep.subr.bf16.mxu0 %v1339
  %1587 = vmatpush1.bf16.msra.mxu0 %v1338
  %1588 = vmatprep.subr.bf16.mxu0 %v1343
  %1589 = vmatpush1.bf16.msra.mxu0 %v1342
  %1590 = vmatprep.subr.bf16.mxu0 %v1347
  %1591 = vmatpush1.bf16.msra.mxu0 %v1346
  %1592 = vmatprep.subr.bf16.mxu0 %v1351
  %1593 = vmatpush1.bf16.msra.mxu0 %v1350
  %1594 = vmatprep.subr.bf16.mxu0 %v1355
  %1595 = vmatpush1.bf16.msra.mxu0 %v1354
  %1596 = vmatprep.subr.bf16.mxu0 %v1359
  %1597 = vmatpush1.bf16.msra.mxu0 %v1358
  %1598 = vmatprep.subr.bf16.mxu0 %v1363
  %1599 = vmatpush1.bf16.msra.mxu0 %v1362
  %1600 = vmatprep.subr.bf16.mxu0 %v1367
  %1601 = vmatpush1.bf16.msra.mxu0 %v1366
  %1602 = vmatprep.subr.bf16.mxu0 %v1371
  %1603 = vmatpush1.bf16.msra.mxu0 %v1370
  %1604 = vmatprep.subr.bf16.mxu0 %v1375
  %1605 = vmatpush1.bf16.msra.mxu0 %v1374
  %1606 = vmatprep.subr.bf16.mxu0 %v1379
  %1607 = vmatpush1.bf16.msra.mxu0 %v1378
  %1608 = vmatprep.subr.bf16.mxu0 %v1383
  %1609 = vmatpush1.bf16.msra.mxu0 %v1382
  %1610 = vmatprep.mubr.bf16.mxu0 %v683
  %1611 = vmatmul.mubr.bf16.gmra.mrb[0].mxu0 %v682
  %v1612 = vpop.f32.mrb[0].mxu0
  %v1613 = vadd.f32 %v281, %v1612
  %v1614 = vpop.f32.mrb[0].mxu0
  %v1615 = vadd.f32 %v285, %v1614
  %v1616 = vpop.f32.mrb[0].mxu0
  %v1617 = vadd.f32 %v281, %v1616
  %v1618 = vpop.f32.mrb[0].mxu0
  %v1619 = vadd.f32 %v285, %v1618
  %1620 = vmatprep.mubr.bf16.mxu0 %v687
  %1621 = vmatmul.mubr.bf16.gmra.mrb[0].mxu0 %v686
  %v1622 = vpop.f32.mrb[0].mxu0
  %v1623 = vadd.f32 %v281, %v1622
  %v1624 = vpop.f32.mrb[0].mxu0
  %v1625 = vadd.f32 %v285, %v1624
  %v1626 = vpop.f32.mrb[0].mxu0
  %v1627 = vadd.f32 %v281, %v1626
  %v1628 = vpop.f32.mrb[0].mxu0
  %v1629 = vadd.f32 %v285, %v1628
  %1630 = vmatprep.mubr.bf16.mxu0 %v691
  %1631 = vmatmul.mubr.bf16.gmra.mrb[0].mxu0 %v690
  %v1632 = vpop.f32.mrb[0].mxu0
  %v1633 = vadd.f32 %v281, %v1632
  %v1634 = vpop.f32.mrb[0].mxu0
  %v1635 = vadd.f32 %v285, %v1634
  %v1636 = vpop.f32.mrb[0].mxu0
  %v1637 = vadd.f32 %v281, %v1636
  %v1638 = vpop.f32.mrb[0].mxu0
  %v1639 = vadd.f32 %v285, %v1638
  %1640 = vmatprep.mubr.bf16.mxu0 %v695
  %1641 = vmatmul.mubr.bf16.gmra.mrb[0].mxu0 %v694
  %v1642 = vpop.f32.mrb[0].mxu0
  %v1643 = vadd.f32 %v281, %v1642
  %v1644 = vpop.f32.mrb[0].mxu0
  %v1645 = vadd.f32 %v285, %v1644
  %v1646 = vpop.f32.mrb[0].mxu0
  %v1647 = vadd.f32 %v281, %v1646
  %v1648 = vpop.f32.mrb[0].mxu0
  %v1649 = vadd.f32 %v285, %v1648
  %1650 = vmatprep.mubr.bf16.mxu0 %v699
  %1651 = vmatmul.mubr.bf16.gmra.mrb[0].mxu0 %v698
  %v1652 = vpop.f32.mrb[0].mxu0
  %v1653 = vadd.f32 %v281, %v1652
  %v1654 = vpop.f32.mrb[0].mxu0
  %v1655 = vadd.f32 %v285, %v1654
  %v1656 = vpop.f32.mrb[0].mxu0
  %v1657 = vadd.f32 %v281, %v1656
  %v1658 = vpop.f32.mrb[0].mxu0
  %v1659 = vadd.f32 %v285, %v1658
  %1660 = vmatprep.mubr.bf16.mxu0 %v703
  %1661 = vmatmul.mubr.bf16.gmra.mrb[0].mxu0 %v702
  %v1662 = vpop.f32.mrb[0].mxu0
  %v1663 = vadd.f32 %v281, %v1662
  %v1664 = vpop.f32.mrb[0].mxu0
  %v1665 = vadd.f32 %v285, %v1664
  %v1666 = vpop.f32.mrb[0].mxu0
  %v1667 = vadd.f32 %v281, %v1666
  %v1668 = vpop.f32.mrb[0].mxu0
  %v1669 = vadd.f32 %v285, %v1668
  %1670 = vmatprep.mubr.bf16.mxu0 %v707
  %1671 = vmatmul.mubr.bf16.gmra.mrb[0].mxu0 %v706
  %v1672 = vpop.f32.mrb[0].mxu0
  %v1673 = vadd.f32 %v281, %v1672
  %v1674 = vpop.f32.mrb[0].mxu0
  %v1675 = vadd.f32 %v285, %v1674
  %v1676 = vpop.f32.mrb[0].mxu0
  %v1677 = vadd.f32 %v281, %v1676
  %v1678 = vpop.f32.mrb[0].mxu0
  %v1679 = vadd.f32 %v285, %v1678
  %1680 = vmatprep.mubr.bf16.mxu0 %v711
  %1681 = vmatmul.mubr.bf16.gmra.mrb[0].mxu0 %v710
  %v1682 = vpop.f32.mrb[0].mxu0
  %v1683 = vadd.f32 %v281, %v1682
  %v1684 = vpop.f32.mrb[0].mxu0
  %v1685 = vadd.f32 %v285, %v1684
  %v1686 = vpop.f32.mrb[0].mxu0
  %v1687 = vadd.f32 %v281, %v1686
  %v1688 = vpop.f32.mrb[0].mxu0
  %v1689 = vadd.f32 %v285, %v1688
  %1690 = vmatprep.mubr.bf16.mxu0 %v715
  %1691 = vmatmul.mubr.bf16.gmra.mrb[0].mxu0 %v714
  %v1692 = vpop.f32.mrb[0].mxu0
  %v1693 = vadd.f32 %v281, %v1692
  %v1694 = vpop.f32.mrb[0].mxu0
  %v1695 = vadd.f32 %v285, %v1694
  %v1696 = vpop.f32.mrb[0].mxu0
  %v1697 = vadd.f32 %v281, %v1696
  %v1698 = vpop.f32.mrb[0].mxu0
  %v1699 = vadd.f32 %v285, %v1698
  %1700 = vmatprep.mubr.bf16.mxu0 %v719
  %1701 = vmatmul.mubr.bf16.gmra.mrb[0].mxu0 %v718
  %v1702 = vpop.f32.mrb[0].mxu0
  %v1703 = vadd.f32 %v281, %v1702
  %v1704 = vpop.f32.mrb[0].mxu0
  %v1705 = vadd.f32 %v285, %v1704
  %v1706 = vpop.f32.mrb[0].mxu0
  %v1707 = vadd.f32 %v281, %v1706
  %v1708 = vpop.f32.mrb[0].mxu0
  %v1709 = vadd.f32 %v285, %v1708
  %1710 = vmatprep.mubr.bf16.mxu0 %v723
  %1711 = vmatmul.mubr.bf16.gmra.mrb[0].mxu0 %v722
  %v1712 = vpop.f32.mrb[0].mxu0
  %v1713 = vadd.f32 %v281, %v1712
  %v1714 = vpop.f32.mrb[0].mxu0
  %v1715 = vadd.f32 %v285, %v1714
  %v1716 = vpop.f32.mrb[0].mxu0
  %v1717 = vadd.f32 %v281, %v1716
  %v1718 = vpop.f32.mrb[0].mxu0
  %v1719 = vadd.f32 %v285, %v1718
  %1720 = vmatprep.mubr.bf16.mxu0 %v727
  %1721 = vmatmul.mubr.bf16.gmra.mrb[0].mxu0 %v726
  %v1722 = vpop.f32.mrb[0].mxu0
  %v1723 = vadd.f32 %v281, %v1722
  %v1724 = vpop.f32.mrb[0].mxu0
  %v1725 = vadd.f32 %v285, %v1724
  %v1726 = vpop.f32.mrb[0].mxu0
  %v1727 = vadd.f32 %v281, %v1726
  %v1728 = vpop.f32.mrb[0].mxu0
  %v1729 = vadd.f32 %v285, %v1728
  %1730 = vmatprep.mubr.bf16.mxu0 %v731
  %1731 = vmatmul.mubr.bf16.gmra.mrb[0].mxu0 %v730
  %v1732 = vpop.f32.mrb[0].mxu0
  %v1733 = vadd.f32 %v281, %v1732
  %v1734 = vpop.f32.mrb[0].mxu0
  %v1735 = vadd.f32 %v285, %v1734
  %v1736 = vpop.f32.mrb[0].mxu0
  %v1737 = vadd.f32 %v281, %v1736
  %v1738 = vpop.f32.mrb[0].mxu0
  %v1739 = vadd.f32 %v285, %v1738
  %1740 = vmatprep.mubr.bf16.mxu0 %v735
  %1741 = vmatmul.mubr.bf16.gmra.mrb[0].mxu0 %v734
  %v1742 = vpop.f32.mrb[0].mxu0
  %v1743 = vadd.f32 %v281, %v1742
  %v1744 = vpop.f32.mrb[0].mxu0
  %v1745 = vadd.f32 %v285, %v1744
  %v1746 = vpop.f32.mrb[0].mxu0
  %v1747 = vadd.f32 %v281, %v1746
  %v1748 = vpop.f32.mrb[0].mxu0
  %v1749 = vadd.f32 %v285, %v1748
  %1750 = vmatprep.mubr.bf16.mxu0 %v739
  %1751 = vmatmul.mubr.bf16.gmra.mrb[0].mxu0 %v738
  %v1752 = vpop.f32.mrb[0].mxu0
  %v1753 = vadd.f32 %v281, %v1752
  %v1754 = vpop.f32.mrb[0].mxu0
  %v1755 = vadd.f32 %v285, %v1754
  %v1756 = vpop.f32.mrb[0].mxu0
  %v1757 = vadd.f32 %v281, %v1756
  %v1758 = vpop.f32.mrb[0].mxu0
  %v1759 = vadd.f32 %v285, %v1758
  %1760 = vmatprep.mubr.bf16.mxu0 %v743
  %1761 = vmatmul.mubr.bf16.gmra.mrb[0].mxu0 %v742
  %v1762 = vpop.f32.mrb[0].mxu0
  %v1763 = vadd.f32 %v281, %v1762
  %v1764 = vpop.f32.mrb[0].mxu0
  %v1765 = vadd.f32 %v285, %v1764
  %v1766 = vpop.f32.mrb[0].mxu0
  %v1767 = vadd.f32 %v281, %v1766
  %v1768 = vpop.f32.mrb[0].mxu0
  %v1769 = vadd.f32 %v285, %v1768
  %1770 = vmatprep.mubr.bf16.mxu0 %v747
  %1771 = vmatmul.mubr.bf16.gmra.mrb[0].mxu0 %v746
  %v1772 = vpop.f32.mrb[0].mxu0
  %v1773 = vadd.f32 %v281, %v1772
  %v1774 = vpop.f32.mrb[0].mxu0
  %v1775 = vadd.f32 %v285, %v1774
  %v1776 = vpop.f32.mrb[0].mxu0
  %v1777 = vadd.f32 %v281, %v1776
  %v1778 = vpop.f32.mrb[0].mxu0
  %v1779 = vadd.f32 %v285, %v1778
  %1780 = vmatprep.mubr.bf16.mxu0 %v751
  %1781 = vmatmul.mubr.bf16.gmra.mrb[0].mxu0 %v750
  %v1782 = vpop.f32.mrb[0].mxu0
  %v1783 = vadd.f32 %v281, %v1782
  %v1784 = vpop.f32.mrb[0].mxu0
  %v1785 = vadd.f32 %v285, %v1784
  %v1786 = vpop.f32.mrb[0].mxu0
  %v1787 = vadd.f32 %v281, %v1786
  %v1788 = vpop.f32.mrb[0].mxu0
  %v1789 = vadd.f32 %v285, %v1788
  %1790 = vmatprep.mubr.bf16.mxu0 %v755
  %1791 = vmatmul.mubr.bf16.gmra.mrb[0].mxu0 %v754
  %v1792 = vpop.f32.mrb[0].mxu0
  %v1793 = vadd.f32 %v281, %v1792
  %v1794 = vpop.f32.mrb[0].mxu0
  %v1795 = vadd.f32 %v285, %v1794
  %v1796 = vpop.f32.mrb[0].mxu0
  %v1797 = vadd.f32 %v281, %v1796
  %v1798 = vpop.f32.mrb[0].mxu0
  %v1799 = vadd.f32 %v285, %v1798
  %1800 = vmatprep.mubr.bf16.mxu0 %v759
  %1801 = vmatmul.mubr.bf16.gmra.mrb[0].mxu0 %v758
  %v1802 = vpop.f32.mrb[0].mxu0
  %v1803 = vadd.f32 %v281, %v1802
  %v1804 = vpop.f32.mrb[0].mxu0
  %v1805 = vadd.f32 %v285, %v1804
  %v1806 = vpop.f32.mrb[0].mxu0
  %v1807 = vadd.f32 %v281, %v1806
  %v1808 = vpop.f32.mrb[0].mxu0
  %v1809 = vadd.f32 %v285, %v1808
  %1810 = vmatprep.mubr.bf16.mxu0 %v763
  %1811 = vmatmul.mubr.bf16.gmra.mrb[0].mxu0 %v762
  %v1812 = vpop.f32.mrb[0].mxu0
  %v1813 = vadd.f32 %v281, %v1812
  %v1814 = vpop.f32.mrb[0].mxu0
  %v1815 = vadd.f32 %v285, %v1814
  %v1816 = vpop.f32.mrb[0].mxu0
  %v1817 = vadd.f32 %v281, %v1816
  %v1818 = vpop.f32.mrb[0].mxu0
  %v1819 = vadd.f32 %v285, %v1818
  %1820 = vmatprep.mubr.bf16.mxu0 %v767
  %1821 = vmatmul.mubr.bf16.gmra.mrb[0].mxu0 %v766
  %v1822 = vpop.f32.mrb[0].mxu0
  %v1823 = vadd.f32 %v281, %v1822
  %v1824 = vpop.f32.mrb[0].mxu0
  %v1825 = vadd.f32 %v285, %v1824
  %v1826 = vpop.f32.mrb[0].mxu0
  %v1827 = vadd.f32 %v281, %v1826
  %v1828 = vpop.f32.mrb[0].mxu0
  %v1829 = vadd.f32 %v285, %v1828
  %1830 = vmatprep.mubr.bf16.mxu0 %v771
  %1831 = vmatmul.mubr.bf16.gmra.mrb[0].mxu0 %v770
  %v1832 = vpop.f32.mrb[0].mxu0
  %v1833 = vadd.f32 %v281, %v1832
  %v1834 = vpop.f32.mrb[0].mxu0
  %v1835 = vadd.f32 %v285, %v1834
  %v1836 = vpop.f32.mrb[0].mxu0
  %v1837 = vadd.f32 %v281, %v1836
  %v1838 = vpop.f32.mrb[0].mxu0
  %v1839 = vadd.f32 %v285, %v1838
  %1840 = vmatprep.mubr.bf16.mxu0 %v775
  %1841 = vmatmul.mubr.bf16.gmra.mrb[0].mxu0 %v774
  %v1842 = vpop.f32.mrb[0].mxu0
  %v1843 = vadd.f32 %v281, %v1842
  %v1844 = vpop.f32.mrb[0].mxu0
  %v1845 = vadd.f32 %v285, %v1844
  %v1846 = vpop.f32.mrb[0].mxu0
  %v1847 = vadd.f32 %v281, %v1846
  %v1848 = vpop.f32.mrb[0].mxu0
  %v1849 = vadd.f32 %v285, %v1848
  %1850 = vmatprep.mubr.bf16.mxu0 %v779
  %1851 = vmatmul.mubr.bf16.gmra.mrb[0].mxu0 %v778
  %v1852 = vpop.f32.mrb[0].mxu0
  %v1853 = vadd.f32 %v281, %v1852
  %v1854 = vpop.f32.mrb[0].mxu0
  %v1855 = vadd.f32 %v285, %v1854
  %v1856 = vpop.f32.mrb[0].mxu0
  %v1857 = vadd.f32 %v281, %v1856
  %v1858 = vpop.f32.mrb[0].mxu0
  %v1859 = vadd.f32 %v285, %v1858
  %1860 = vmatprep.mubr.bf16.mxu0 %v783
  %1861 = vmatmul.mubr.bf16.gmra.mrb[0].mxu0 %v782
  %v1862 = vpop.f32.mrb[0].mxu0
  %v1863 = vadd.f32 %v281, %v1862
  %v1864 = vpop.f32.mrb[0].mxu0
  %v1865 = vadd.f32 %v285, %v1864
  %v1866 = vpop.f32.mrb[0].mxu0
  %v1867 = vadd.f32 %v281, %v1866
  %v1868 = vpop.f32.mrb[0].mxu0
  %v1869 = vadd.f32 %v285, %v1868
  %1870 = vmatprep.mubr.bf16.mxu0 %v787
  %1871 = vmatmul.mubr.bf16.gmra.mrb[0].mxu0 %v786
  %v1872 = vpop.f32.mrb[0].mxu0
  %v1873 = vadd.f32 %v281, %v1872
  %v1874 = vpop.f32.mrb[0].mxu0
  %v1875 = vadd.f32 %v285, %v1874
  %v1876 = vpop.f32.mrb[0].mxu0
  %v1877 = vadd.f32 %v281, %v1876
  %v1878 = vpop.f32.mrb[0].mxu0
  %v1879 = vadd.f32 %v285, %v1878
  %1880 = vmatprep.mubr.bf16.mxu0 %v791
  %1881 = vmatmul.mubr.bf16.gmra.mrb[0].mxu0 %v790
  %v1882 = vpop.f32.mrb[0].mxu0
  %v1883 = vadd.f32 %v281, %v1882
  %v1884 = vpop.f32.mrb[0].mxu0
  %v1885 = vadd.f32 %v285, %v1884
  %v1886 = vpop.f32.mrb[0].mxu0
  %v1887 = vadd.f32 %v281, %v1886
  %v1888 = vpop.f32.mrb[0].mxu0
  %v1889 = vadd.f32 %v285, %v1888
  %1890 = vmatprep.mubr.bf16.mxu0 %v795
  %1891 = vmatmul.mubr.bf16.gmra.mrb[0].mxu0 %v794
  %v1892 = vpop.f32.mrb[0].mxu0
  %v1893 = vadd.f32 %v281, %v1892
  %v1894 = vpop.f32.mrb[0].mxu0
  %v1895 = vadd.f32 %v285, %v1894
  %v1896 = vpop.f32.mrb[0].mxu0
  %v1897 = vadd.f32 %v281, %v1896
  %v1898 = vpop.f32.mrb[0].mxu0
  %v1899 = vadd.f32 %v285, %v1898
  %1900 = vmatprep.mubr.bf16.mxu0 %v799
  %1901 = vmatmul.mubr.bf16.gmra.mrb[0].mxu0 %v798
  %v1902 = vpop.f32.mrb[0].mxu0
  %v1903 = vadd.f32 %v281, %v1902
  %v1904 = vpop.f32.mrb[0].mxu0
  %v1905 = vadd.f32 %v285, %v1904
  %v1906 = vpop.f32.mrb[0].mxu0
  %v1907 = vadd.f32 %v281, %v1906
  %v1908 = vpop.f32.mrb[0].mxu0
  %v1909 = vadd.f32 %v285, %v1908
  %1910 = vmatprep.mubr.bf16.mxu0 %v803
  %1911 = vmatmul.mubr.bf16.gmra.mrb[0].mxu0 %v802
  %v1912 = vpop.f32.mrb[0].mxu0
  %v1913 = vadd.f32 %v281, %v1912
  %v1914 = vpop.f32.mrb[0].mxu0
  %v1915 = vadd.f32 %v285, %v1914
  %v1916 = vpop.f32.mrb[0].mxu0
  %v1917 = vadd.f32 %v281, %v1916
  %v1918 = vpop.f32.mrb[0].mxu0
  %v1919 = vadd.f32 %v285, %v1918
  %1920 = vmatprep.mubr.bf16.mxu0 %v807
  %1921 = vmatmul.mubr.bf16.gmra.mrb[0].mxu0 %v806
  %v1922 = vpop.f32.mrb[0].mxu0
  %v1923 = vadd.f32 %v281, %v1922
  %v1924 = vpop.f32.mrb[0].mxu0
  %v1925 = vadd.f32 %v285, %v1924
  %v1926 = vpop.f32.mrb[0].mxu0
  %v1927 = vadd.f32 %v281, %v1926
  %v1928 = vpop.f32.mrb[0].mxu0
  %v1929 = vadd.f32 %v285, %v1928
  %1930 = vdwg.mxu0
  %1931 = vmatprep.subr.bf16.mxu0 %v1387
  %1932 = vmatpush1.bf16.msra.mxu0 %v1386
  %1933 = vmatprep.subr.bf16.mxu0 %v1391
  %1934 = vmatpush1.bf16.msra.mxu0 %v1390
  %1935 = vmatprep.subr.bf16.mxu0 %v1395
  %1936 = vmatpush1.bf16.msra.mxu0 %v1394
  %1937 = vmatprep.subr.bf16.mxu0 %v1399
  %1938 = vmatpush1.bf16.msra.mxu0 %v1398
  %1939 = vmatprep.subr.bf16.mxu0 %v1403
  %1940 = vmatpush1.bf16.msra.mxu0 %v1402
  %1941 = vmatprep.subr.bf16.mxu0 %v1407
  %1942 = vmatpush1.bf16.msra.mxu0 %v1406
  %1943 = vmatprep.subr.bf16.mxu0 %v1411
  %1944 = vmatpush1.bf16.msra.mxu0 %v1410
  %1945 = vmatprep.subr.bf16.mxu0 %v1415
  %1946 = vmatpush1.bf16.msra.mxu0 %v1414
  %1947 = vmatprep.subr.bf16.mxu0 %v1419
  %1948 = vmatpush1.bf16.msra.mxu0 %v1418
  %1949 = vmatprep.subr.bf16.mxu0 %v1423
  %1950 = vmatpush1.bf16.msra.mxu0 %v1422
  %1951 = vmatprep.subr.bf16.mxu0 %v1427
  %1952 = vmatpush1.bf16.msra.mxu0 %v1426
  %1953 = vmatprep.subr.bf16.mxu0 %v1431
  %1954 = vmatpush1.bf16.msra.mxu0 %v1430
  %1955 = vmatprep.subr.bf16.mxu0 %v1435
  %1956 = vmatpush1.bf16.msra.mxu0 %v1434
  %1957 = vmatprep.subr.bf16.mxu0 %v1439
  %1958 = vmatpush1.bf16.msra.mxu0 %v1438
  %1959 = vmatprep.subr.bf16.mxu0 %v1443
  %1960 = vmatpush1.bf16.msra.mxu0 %v1442
  %1961 = vmatprep.subr.bf16.mxu0 %v1447
  %1962 = vmatpush1.bf16.msra.mxu0 %v1446
  %1963 = vmatprep.mubr.bf16.mxu0 %v685
  %1964 = vmatmul.mubr.bf16.gmra.mrb[0].mxu0 %v684
  %v1965 = vpop.f32.mrb[0].mxu0
  %v1966 = vadd.f32 %v1613, %v1965
  %v1967 = vpop.f32.mrb[0].mxu0
  %v1968 = vadd.f32 %v1615, %v1967
  %v1969 = vpop.f32.mrb[0].mxu0
  %v1970 = vadd.f32 %v1617, %v1969
  %v1971 = vpop.f32.mrb[0].mxu0
  %v1972 = vadd.f32 %v1619, %v1971
  %1973 = vmatprep.mubr.bf16.mxu0 %v689
  %1974 = vmatmul.mubr.bf16.gmra.mrb[0].mxu0 %v688
  %v1975 = vpop.f32.mrb[0].mxu0
  %v1976 = vadd.f32 %v1623, %v1975
  %v1977 = vpop.f32.mrb[0].mxu0
  %v1978 = vadd.f32 %v1625, %v1977
  %v1979 = vpop.f32.mrb[0].mxu0
  %v1980 = vadd.f32 %v1627, %v1979
  %v1981 = vpop.f32.mrb[0].mxu0
  %v1982 = vadd.f32 %v1629, %v1981
  %1983 = vmatprep.mubr.bf16.mxu0 %v693
  %1984 = vmatmul.mubr.bf16.gmra.mrb[0].mxu0 %v692
  %v1985 = vpop.f32.mrb[0].mxu0
  %v1986 = vadd.f32 %v1633, %v1985
  %v1987 = vpop.f32.mrb[0].mxu0
  %v1988 = vadd.f32 %v1635, %v1987
  %v1989 = vpop.f32.mrb[0].mxu0
  %v1990 = vadd.f32 %v1637, %v1989
  %v1991 = vpop.f32.mrb[0].mxu0
  %v1992 = vadd.f32 %v1639, %v1991
  %1993 = vmatprep.mubr.bf16.mxu0 %v697
  %1994 = vmatmul.mubr.bf16.gmra.mrb[0].mxu0 %v696
  %v1995 = vpop.f32.mrb[0].mxu0
  %v1996 = vadd.f32 %v1643, %v1995
  %v1997 = vpop.f32.mrb[0].mxu0
  %v1998 = vadd.f32 %v1645, %v1997
  %v1999 = vpop.f32.mrb[0].mxu0
  %v2000 = vadd.f32 %v1647, %v1999
  %v2001 = vpop.f32.mrb[0].mxu0
  %v2002 = vadd.f32 %v1649, %v2001
  %2003 = vmatprep.mubr.bf16.mxu0 %v701
  %2004 = vmatmul.mubr.bf16.gmra.mrb[0].mxu0 %v700
  %v2005 = vpop.f32.mrb[0].mxu0
  %v2006 = vadd.f32 %v1653, %v2005
  %v2007 = vpop.f32.mrb[0].mxu0
  %v2008 = vadd.f32 %v1655, %v2007
  %v2009 = vpop.f32.mrb[0].mxu0
  %v2010 = vadd.f32 %v1657, %v2009
  %v2011 = vpop.f32.mrb[0].mxu0
  %v2012 = vadd.f32 %v1659, %v2011
  %2013 = vmatprep.mubr.bf16.mxu0 %v705
  %2014 = vmatmul.mubr.bf16.gmra.mrb[0].mxu0 %v704
  %v2015 = vpop.f32.mrb[0].mxu0
  %v2016 = vadd.f32 %v1663, %v2015
  %v2017 = vpop.f32.mrb[0].mxu0
  %v2018 = vadd.f32 %v1665, %v2017
  %v2019 = vpop.f32.mrb[0].mxu0
  %v2020 = vadd.f32 %v1667, %v2019
  %v2021 = vpop.f32.mrb[0].mxu0
  %v2022 = vadd.f32 %v1669, %v2021
  %2023 = vmatprep.mubr.bf16.mxu0 %v709
  %2024 = vmatmul.mubr.bf16.gmra.mrb[0].mxu0 %v708
  %v2025 = vpop.f32.mrb[0].mxu0
  %v2026 = vadd.f32 %v1673, %v2025
  %v2027 = vpop.f32.mrb[0].mxu0
  %v2028 = vadd.f32 %v1675, %v2027
  %v2029 = vpop.f32.mrb[0].mxu0
  %v2030 = vadd.f32 %v1677, %v2029
  %v2031 = vpop.f32.mrb[0].mxu0
  %v2032 = vadd.f32 %v1679, %v2031
  %2033 = vmatprep.mubr.bf16.mxu0 %v713
  %2034 = vmatmul.mubr.bf16.gmra.mrb[0].mxu0 %v712
  %v2035 = vpop.f32.mrb[0].mxu0
  %v2036 = vadd.f32 %v1683, %v2035
  %v2037 = vpop.f32.mrb[0].mxu0
  %v2038 = vadd.f32 %v1685, %v2037
  %v2039 = vpop.f32.mrb[0].mxu0
  %v2040 = vadd.f32 %v1687, %v2039
  %v2041 = vpop.f32.mrb[0].mxu0
  %v2042 = vadd.f32 %v1689, %v2041
  %2043 = vmatprep.mubr.bf16.mxu0 %v717
  %2044 = vmatmul.mubr.bf16.gmra.mrb[0].mxu0 %v716
  %v2045 = vpop.f32.mrb[0].mxu0
  %v2046 = vadd.f32 %v1693, %v2045
  %v2047 = vpop.f32.mrb[0].mxu0
  %v2048 = vadd.f32 %v1695, %v2047
  %v2049 = vpop.f32.mrb[0].mxu0
  %v2050 = vadd.f32 %v1697, %v2049
  %v2051 = vpop.f32.mrb[0].mxu0
  %v2052 = vadd.f32 %v1699, %v2051
  %2053 = vmatprep.mubr.bf16.mxu0 %v721
  %2054 = vmatmul.mubr.bf16.gmra.mrb[0].mxu0 %v720
  %v2055 = vpop.f32.mrb[0].mxu0
  %v2056 = vadd.f32 %v1703, %v2055
  %v2057 = vpop.f32.mrb[0].mxu0
  %v2058 = vadd.f32 %v1705, %v2057
  %v2059 = vpop.f32.mrb[0].mxu0
  %v2060 = vadd.f32 %v1707, %v2059
  %v2061 = vpop.f32.mrb[0].mxu0
  %v2062 = vadd.f32 %v1709, %v2061
  %2063 = vmatprep.mubr.bf16.mxu0 %v725
  %2064 = vmatmul.mubr.bf16.gmra.mrb[0].mxu0 %v724
  %v2065 = vpop.f32.mrb[0].mxu0
  %v2066 = vadd.f32 %v1713, %v2065
  %v2067 = vpop.f32.mrb[0].mxu0
  %v2068 = vadd.f32 %v1715, %v2067
  %v2069 = vpop.f32.mrb[0].mxu0
  %v2070 = vadd.f32 %v1717, %v2069
  %v2071 = vpop.f32.mrb[0].mxu0
  %v2072 = vadd.f32 %v1719, %v2071
  %2073 = vmatprep.mubr.bf16.mxu0 %v729
  %2074 = vmatmul.mubr.bf16.gmra.mrb[0].mxu0 %v728
  %v2075 = vpop.f32.mrb[0].mxu0
  %v2076 = vadd.f32 %v1723, %v2075
  %v2077 = vpop.f32.mrb[0].mxu0
  %v2078 = vadd.f32 %v1725, %v2077
  %v2079 = vpop.f32.mrb[0].mxu0
  %v2080 = vadd.f32 %v1727, %v2079
  %v2081 = vpop.f32.mrb[0].mxu0
  %v2082 = vadd.f32 %v1729, %v2081
  %2083 = vmatprep.mubr.bf16.mxu0 %v733
  %2084 = vmatmul.mubr.bf16.gmra.mrb[0].mxu0 %v732
  %v2085 = vpop.f32.mrb[0].mxu0
  %v2086 = vadd.f32 %v1733, %v2085
  %v2087 = vpop.f32.mrb[0].mxu0
  %v2088 = vadd.f32 %v1735, %v2087
  %v2089 = vpop.f32.mrb[0].mxu0
  %v2090 = vadd.f32 %v1737, %v2089
  %v2091 = vpop.f32.mrb[0].mxu0
  %v2092 = vadd.f32 %v1739, %v2091
  %2093 = vmatprep.mubr.bf16.mxu0 %v737
  %2094 = vmatmul.mubr.bf16.gmra.mrb[0].mxu0 %v736
  %v2095 = vpop.f32.mrb[0].mxu0
  %v2096 = vadd.f32 %v1743, %v2095
  %v2097 = vpop.f32.mrb[0].mxu0
  %v2098 = vadd.f32 %v1745, %v2097
  %v2099 = vpop.f32.mrb[0].mxu0
  %v2100 = vadd.f32 %v1747, %v2099
  %v2101 = vpop.f32.mrb[0].mxu0
  %v2102 = vadd.f32 %v1749, %v2101
  %2103 = vmatprep.mubr.bf16.mxu0 %v741
  %2104 = vmatmul.mubr.bf16.gmra.mrb[0].mxu0 %v740
  %v2105 = vpop.f32.mrb[0].mxu0
  %v2106 = vadd.f32 %v1753, %v2105
  %v2107 = vpop.f32.mrb[0].mxu0
  %v2108 = vadd.f32 %v1755, %v2107
  %v2109 = vpop.f32.mrb[0].mxu0
  %v2110 = vadd.f32 %v1757, %v2109
  %v2111 = vpop.f32.mrb[0].mxu0
  %v2112 = vadd.f32 %v1759, %v2111
  %2113 = vmatprep.mubr.bf16.mxu0 %v745
  %2114 = vmatmul.mubr.bf16.gmra.mrb[0].mxu0 %v744
  %v2115 = vpop.f32.mrb[0].mxu0
  %v2116 = vadd.f32 %v1763, %v2115
  %v2117 = vpop.f32.mrb[0].mxu0
  %v2118 = vadd.f32 %v1765, %v2117
  %v2119 = vpop.f32.mrb[0].mxu0
  %v2120 = vadd.f32 %v1767, %v2119
  %v2121 = vpop.f32.mrb[0].mxu0
  %v2122 = vadd.f32 %v1769, %v2121
  %2123 = vmatprep.mubr.bf16.mxu0 %v749
  %2124 = vmatmul.mubr.bf16.gmra.mrb[0].mxu0 %v748
  %v2125 = vpop.f32.mrb[0].mxu0
  %v2126 = vadd.f32 %v1773, %v2125
  %v2127 = vpop.f32.mrb[0].mxu0
  %v2128 = vadd.f32 %v1775, %v2127
  %v2129 = vpop.f32.mrb[0].mxu0
  %v2130 = vadd.f32 %v1777, %v2129
  %v2131 = vpop.f32.mrb[0].mxu0
  %v2132 = vadd.f32 %v1779, %v2131
  %2133 = vmatprep.mubr.bf16.mxu0 %v753
  %2134 = vmatmul.mubr.bf16.gmra.mrb[0].mxu0 %v752
  %v2135 = vpop.f32.mrb[0].mxu0
  %v2136 = vadd.f32 %v1783, %v2135
  %v2137 = vpop.f32.mrb[0].mxu0
  %v2138 = vadd.f32 %v1785, %v2137
  %v2139 = vpop.f32.mrb[0].mxu0
  %v2140 = vadd.f32 %v1787, %v2139
  %v2141 = vpop.f32.mrb[0].mxu0
  %v2142 = vadd.f32 %v1789, %v2141
  %2143 = vmatprep.mubr.bf16.mxu0 %v757
  %2144 = vmatmul.mubr.bf16.gmra.mrb[0].mxu0 %v756
  %v2145 = vpop.f32.mrb[0].mxu0
  %v2146 = vadd.f32 %v1793, %v2145
  %v2147 = vpop.f32.mrb[0].mxu0
  %v2148 = vadd.f32 %v1795, %v2147
  %v2149 = vpop.f32.mrb[0].mxu0
  %v2150 = vadd.f32 %v1797, %v2149
  %v2151 = vpop.f32.mrb[0].mxu0
  %v2152 = vadd.f32 %v1799, %v2151
  %2153 = vmatprep.mubr.bf16.mxu0 %v761
  %2154 = vmatmul.mubr.bf16.gmra.mrb[0].mxu0 %v760
  %v2155 = vpop.f32.mrb[0].mxu0
  %v2156 = vadd.f32 %v1803, %v2155
  %v2157 = vpop.f32.mrb[0].mxu0
  %v2158 = vadd.f32 %v1805, %v2157
  %v2159 = vpop.f32.mrb[0].mxu0
  %v2160 = vadd.f32 %v1807, %v2159
  %v2161 = vpop.f32.mrb[0].mxu0
  %v2162 = vadd.f32 %v1809, %v2161
  %2163 = vmatprep.mubr.bf16.mxu0 %v765
  %2164 = vmatmul.mubr.bf16.gmra.mrb[0].mxu0 %v764
  %v2165 = vpop.f32.mrb[0].mxu0
  %v2166 = vadd.f32 %v1813, %v2165
  %v2167 = vpop.f32.mrb[0].mxu0
  %v2168 = vadd.f32 %v1815, %v2167
  %v2169 = vpop.f32.mrb[0].mxu0
  %v2170 = vadd.f32 %v1817, %v2169
  %v2171 = vpop.f32.mrb[0].mxu0
  %v2172 = vadd.f32 %v1819, %v2171
  %2173 = vmatprep.mubr.bf16.mxu0 %v769
  %2174 = vmatmul.mubr.bf16.gmra.mrb[0].mxu0 %v768
  %v2175 = vpop.f32.mrb[0].mxu0
  %v2176 = vadd.f32 %v1823, %v2175
  %v2177 = vpop.f32.mrb[0].mxu0
  %v2178 = vadd.f32 %v1825, %v2177
  %v2179 = vpop.f32.mrb[0].mxu0
  %v2180 = vadd.f32 %v1827, %v2179
  %v2181 = vpop.f32.mrb[0].mxu0
  %v2182 = vadd.f32 %v1829, %v2181
  %2183 = vmatprep.mubr.bf16.mxu0 %v773
  %2184 = vmatmul.mubr.bf16.gmra.mrb[0].mxu0 %v772
  %v2185 = vpop.f32.mrb[0].mxu0
  %v2186 = vadd.f32 %v1833, %v2185
  %v2187 = vpop.f32.mrb[0].mxu0
  %v2188 = vadd.f32 %v1835, %v2187
  %v2189 = vpop.f32.mrb[0].mxu0
  %v2190 = vadd.f32 %v1837, %v2189
  %v2191 = vpop.f32.mrb[0].mxu0
  %v2192 = vadd.f32 %v1839, %v2191
  %2193 = vmatprep.mubr.bf16.mxu0 %v777
  %2194 = vmatmul.mubr.bf16.gmra.mrb[0].mxu0 %v776
  %v2195 = vpop.f32.mrb[0].mxu0
  %v2196 = vadd.f32 %v1843, %v2195
  %v2197 = vpop.f32.mrb[0].mxu0
  %v2198 = vadd.f32 %v1845, %v2197
  %v2199 = vpop.f32.mrb[0].mxu0
  %v2200 = vadd.f32 %v1847, %v2199
  %v2201 = vpop.f32.mrb[0].mxu0
  %v2202 = vadd.f32 %v1849, %v2201
  %2203 = vmatprep.mubr.bf16.mxu0 %v781
  %2204 = vmatmul.mubr.bf16.gmra.mrb[0].mxu0 %v780
  %v2205 = vpop.f32.mrb[0].mxu0
  %v2206 = vadd.f32 %v1853, %v2205
  %v2207 = vpop.f32.mrb[0].mxu0
  %v2208 = vadd.f32 %v1855, %v2207
  %v2209 = vpop.f32.mrb[0].mxu0
  %v2210 = vadd.f32 %v1857, %v2209
  %v2211 = vpop.f32.mrb[0].mxu0
  %v2212 = vadd.f32 %v1859, %v2211
  %2213 = vmatprep.mubr.bf16.mxu0 %v785
  %2214 = vmatmul.mubr.bf16.gmra.mrb[0].mxu0 %v784
  %v2215 = vpop.f32.mrb[0].mxu0
  %v2216 = vadd.f32 %v1863, %v2215
  %v2217 = vpop.f32.mrb[0].mxu0
  %v2218 = vadd.f32 %v1865, %v2217
  %v2219 = vpop.f32.mrb[0].mxu0
  %v2220 = vadd.f32 %v1867, %v2219
  %v2221 = vpop.f32.mrb[0].mxu0
  %v2222 = vadd.f32 %v1869, %v2221
  %2223 = vmatprep.mubr.bf16.mxu0 %v789
  %2224 = vmatmul.mubr.bf16.gmra.mrb[0].mxu0 %v788
  %v2225 = vpop.f32.mrb[0].mxu0
  %v2226 = vadd.f32 %v1873, %v2225
  %v2227 = vpop.f32.mrb[0].mxu0
  %v2228 = vadd.f32 %v1875, %v2227
  %v2229 = vpop.f32.mrb[0].mxu0
  %v2230 = vadd.f32 %v1877, %v2229
  %v2231 = vpop.f32.mrb[0].mxu0
  %v2232 = vadd.f32 %v1879, %v2231
  %2233 = vmatprep.mubr.bf16.mxu0 %v793
  %2234 = vmatmul.mubr.bf16.gmra.mrb[0].mxu0 %v792
  %v2235 = vpop.f32.mrb[0].mxu0
  %v2236 = vadd.f32 %v1883, %v2235
  %v2237 = vpop.f32.mrb[0].mxu0
  %v2238 = vadd.f32 %v1885, %v2237
  %v2239 = vpop.f32.mrb[0].mxu0
  %v2240 = vadd.f32 %v1887, %v2239
  %v2241 = vpop.f32.mrb[0].mxu0
  %v2242 = vadd.f32 %v1889, %v2241
  %2243 = vmatprep.mubr.bf16.mxu0 %v797
  %2244 = vmatmul.mubr.bf16.gmra.mrb[0].mxu0 %v796
  %v2245 = vpop.f32.mrb[0].mxu0
  %v2246 = vadd.f32 %v1893, %v2245
  %v2247 = vpop.f32.mrb[0].mxu0
  %v2248 = vadd.f32 %v1895, %v2247
  %v2249 = vpop.f32.mrb[0].mxu0
  %v2250 = vadd.f32 %v1897, %v2249
  %v2251 = vpop.f32.mrb[0].mxu0
  %v2252 = vadd.f32 %v1899, %v2251
  %2253 = vmatprep.mubr.bf16.mxu0 %v801
  %2254 = vmatmul.mubr.bf16.gmra.mrb[0].mxu0 %v800
  %v2255 = vpop.f32.mrb[0].mxu0
  %v2256 = vadd.f32 %v1903, %v2255
  %v2257 = vpop.f32.mrb[0].mxu0
  %v2258 = vadd.f32 %v1905, %v2257
  %v2259 = vpop.f32.mrb[0].mxu0
  %v2260 = vadd.f32 %v1907, %v2259
  %v2261 = vpop.f32.mrb[0].mxu0
  %v2262 = vadd.f32 %v1909, %v2261
  %2263 = vmatprep.mubr.bf16.mxu0 %v805
  %2264 = vmatmul.mubr.bf16.gmra.mrb[0].mxu0 %v804
  %v2265 = vpop.f32.mrb[0].mxu0
  %v2266 = vadd.f32 %v1913, %v2265
  %v2267 = vpop.f32.mrb[0].mxu0
  %v2268 = vadd.f32 %v1915, %v2267
  %v2269 = vpop.f32.mrb[0].mxu0
  %v2270 = vadd.f32 %v1917, %v2269
  %v2271 = vpop.f32.mrb[0].mxu0
  %v2272 = vadd.f32 %v1919, %v2271
  %2273 = vmatprep.mubr.bf16.mxu0 %v809
  %2274 = vmatmul.mubr.bf16.gmra.mrb[0].mxu0 %v808
  %v2275 = vpop.f32.mrb[0].mxu0
  %v2276 = vadd.f32 %v1923, %v2275
  %v2277 = vpop.f32.mrb[0].mxu0
  %v2278 = vadd.f32 %v1925, %v2277
  %v2279 = vpop.f32.mrb[0].mxu0
  %v2280 = vadd.f32 %v1927, %v2279
  %v2281 = vpop.f32.mrb[0].mxu0
  %v2282 = vadd.f32 %v1929, %v2281
  %2283 = vdwg.mxu0
  %2284 = vmatprep.subr.bf16.mxu0 %v1325
  %2285 = vmatpush1.bf16.msra.mxu0 %v1324
  %2286 = vmatprep.subr.bf16.mxu0 %v1329
  %2287 = vmatpush1.bf16.msra.mxu0 %v1328
  %2288 = vmatprep.subr.bf16.mxu0 %v1333
  %2289 = vmatpush1.bf16.msra.mxu0 %v1332
  %2290 = vmatprep.subr.bf16.mxu0 %v1337
  %2291 = vmatpush1.bf16.msra.mxu0 %v1336
  %2292 = vmatprep.subr.bf16.mxu0 %v1341
  %2293 = vmatpush1.bf16.msra.mxu0 %v1340
  %2294 = vmatprep.subr.bf16.mxu0 %v1345
  %2295 = vmatpush1.bf16.msra.mxu0 %v1344
  %2296 = vmatprep.subr.bf16.mxu0 %v1349
  %2297 = vmatpush1.bf16.msra.mxu0 %v1348
  %2298 = vmatprep.subr.bf16.mxu0 %v1353
  %2299 = vmatpush1.bf16.msra.mxu0 %v1352
  %2300 = vmatprep.subr.bf16.mxu0 %v1357
  %2301 = vmatpush1.bf16.msra.mxu0 %v1356
  %2302 = vmatprep.subr.bf16.mxu0 %v1361
  %2303 = vmatpush1.bf16.msra.mxu0 %v1360
  %2304 = vmatprep.subr.bf16.mxu0 %v1365
  %2305 = vmatpush1.bf16.msra.mxu0 %v1364
  %2306 = vmatprep.subr.bf16.mxu0 %v1369
  %2307 = vmatpush1.bf16.msra.mxu0 %v1368
  %2308 = vmatprep.subr.bf16.mxu0 %v1373
  %2309 = vmatpush1.bf16.msra.mxu0 %v1372
  %2310 = vmatprep.subr.bf16.mxu0 %v1377
  %2311 = vmatpush1.bf16.msra.mxu0 %v1376
  %2312 = vmatprep.subr.bf16.mxu0 %v1381
  %2313 = vmatpush1.bf16.msra.mxu0 %v1380
  %2314 = vmatprep.subr.bf16.mxu0 %v1385
  %2315 = vmatpush1.bf16.msra.mxu0 %v1384
  %2316 = vmatprep.mubr.bf16.mxu0 %v683
  %2317 = vmatmul.mubr.bf16.gmra.mrb[0].mxu0 %v682
  %v2318 = vpop.f32.mrb[0].mxu0
  %v2319 = vadd.f32 %v289, %v2318
  %v2320 = vpop.f32.mrb[0].mxu0
  %v2321 = vadd.f32 %v293, %v2320
  %v2322 = vpop.f32.mrb[0].mxu0
  %v2323 = vadd.f32 %v289, %v2322
  %v2324 = vpop.f32.mrb[0].mxu0
  %v2325 = vadd.f32 %v293, %v2324
  %2326 = vmatprep.mubr.bf16.mxu0 %v687
  %2327 = vmatmul.mubr.bf16.gmra.mrb[0].mxu0 %v686
  %v2328 = vpop.f32.mrb[0].mxu0
  %v2329 = vadd.f32 %v289, %v2328
  %v2330 = vpop.f32.mrb[0].mxu0
  %v2331 = vadd.f32 %v293, %v2330
  %v2332 = vpop.f32.mrb[0].mxu0
  %v2333 = vadd.f32 %v289, %v2332
  %v2334 = vpop.f32.mrb[0].mxu0
  %v2335 = vadd.f32 %v293, %v2334
  %2336 = vmatprep.mubr.bf16.mxu0 %v691
  %2337 = vmatmul.mubr.bf16.gmra.mrb[0].mxu0 %v690
  %v2338 = vpop.f32.mrb[0].mxu0
  %v2339 = vadd.f32 %v289, %v2338
  %v2340 = vpop.f32.mrb[0].mxu0
  %v2341 = vadd.f32 %v293, %v2340
  %v2342 = vpop.f32.mrb[0].mxu0
  %v2343 = vadd.f32 %v289, %v2342
  %v2344 = vpop.f32.mrb[0].mxu0
  %v2345 = vadd.f32 %v293, %v2344
  %2346 = vmatprep.mubr.bf16.mxu0 %v695
  %2347 = vmatmul.mubr.bf16.gmra.mrb[0].mxu0 %v694
  %v2348 = vpop.f32.mrb[0].mxu0
  %v2349 = vadd.f32 %v289, %v2348
  %v2350 = vpop.f32.mrb[0].mxu0
  %v2351 = vadd.f32 %v293, %v2350
  %v2352 = vpop.f32.mrb[0].mxu0
  %v2353 = vadd.f32 %v289, %v2352
  %v2354 = vpop.f32.mrb[0].mxu0
  %v2355 = vadd.f32 %v293, %v2354
  %2356 = vmatprep.mubr.bf16.mxu0 %v699
  %2357 = vmatmul.mubr.bf16.gmra.mrb[0].mxu0 %v698
  %v2358 = vpop.f32.mrb[0].mxu0
  %v2359 = vadd.f32 %v289, %v2358
  %v2360 = vpop.f32.mrb[0].mxu0
  %v2361 = vadd.f32 %v293, %v2360
  %v2362 = vpop.f32.mrb[0].mxu0
  %v2363 = vadd.f32 %v289, %v2362
  %v2364 = vpop.f32.mrb[0].mxu0
  %v2365 = vadd.f32 %v293, %v2364
  %2366 = vmatprep.mubr.bf16.mxu0 %v703
  %2367 = vmatmul.mubr.bf16.gmra.mrb[0].mxu0 %v702
  %v2368 = vpop.f32.mrb[0].mxu0
  %v2369 = vadd.f32 %v289, %v2368
  %v2370 = vpop.f32.mrb[0].mxu0
  %v2371 = vadd.f32 %v293, %v2370
  %v2372 = vpop.f32.mrb[0].mxu0
  %v2373 = vadd.f32 %v289, %v2372
  %v2374 = vpop.f32.mrb[0].mxu0
  %v2375 = vadd.f32 %v293, %v2374
  %2376 = vmatprep.mubr.bf16.mxu0 %v707
  %2377 = vmatmul.mubr.bf16.gmra.mrb[0].mxu0 %v706
  %v2378 = vpop.f32.mrb[0].mxu0
  %v2379 = vadd.f32 %v289, %v2378
  %v2380 = vpop.f32.mrb[0].mxu0
  %v2381 = vadd.f32 %v293, %v2380
  %v2382 = vpop.f32.mrb[0].mxu0
  %v2383 = vadd.f32 %v289, %v2382
  %v2384 = vpop.f32.mrb[0].mxu0
  %v2385 = vadd.f32 %v293, %v2384
  %2386 = vmatprep.mubr.bf16.mxu0 %v711
  %2387 = vmatmul.mubr.bf16.gmra.mrb[0].mxu0 %v710
  %v2388 = vpop.f32.mrb[0].mxu0
  %v2389 = vadd.f32 %v289, %v2388
  %v2390 = vpop.f32.mrb[0].mxu0
  %v2391 = vadd.f32 %v293, %v2390
  %v2392 = vpop.f32.mrb[0].mxu0
  %v2393 = vadd.f32 %v289, %v2392
  %v2394 = vpop.f32.mrb[0].mxu0
  %v2395 = vadd.f32 %v293, %v2394
  %2396 = vmatprep.mubr.bf16.mxu0 %v715
  %2397 = vmatmul.mubr.bf16.gmra.mrb[0].mxu0 %v714
  %v2398 = vpop.f32.mrb[0].mxu0
  %v2399 = vadd.f32 %v289, %v2398
  %v2400 = vpop.f32.mrb[0].mxu0
  %v2401 = vadd.f32 %v293, %v2400
  %v2402 = vpop.f32.mrb[0].mxu0
  %v2403 = vadd.f32 %v289, %v2402
  %v2404 = vpop.f32.mrb[0].mxu0
  %v2405 = vadd.f32 %v293, %v2404
  %2406 = vmatprep.mubr.bf16.mxu0 %v719
  %2407 = vmatmul.mubr.bf16.gmra.mrb[0].mxu0 %v718
  %v2408 = vpop.f32.mrb[0].mxu0
  %v2409 = vadd.f32 %v289, %v2408
  %v2410 = vpop.f32.mrb[0].mxu0
  %v2411 = vadd.f32 %v293, %v2410
  %v2412 = vpop.f32.mrb[0].mxu0
  %v2413 = vadd.f32 %v289, %v2412
  %v2414 = vpop.f32.mrb[0].mxu0
  %v2415 = vadd.f32 %v293, %v2414
  %2416 = vmatprep.mubr.bf16.mxu0 %v723
  %2417 = vmatmul.mubr.bf16.gmra.mrb[0].mxu0 %v722
  %v2418 = vpop.f32.mrb[0].mxu0
  %v2419 = vadd.f32 %v289, %v2418
  %v2420 = vpop.f32.mrb[0].mxu0
  %v2421 = vadd.f32 %v293, %v2420
  %v2422 = vpop.f32.mrb[0].mxu0
  %v2423 = vadd.f32 %v289, %v2422
  %v2424 = vpop.f32.mrb[0].mxu0
  %v2425 = vadd.f32 %v293, %v2424
  %2426 = vmatprep.mubr.bf16.mxu0 %v727
  %2427 = vmatmul.mubr.bf16.gmra.mrb[0].mxu0 %v726
  %v2428 = vpop.f32.mrb[0].mxu0
  %v2429 = vadd.f32 %v289, %v2428
  %v2430 = vpop.f32.mrb[0].mxu0
  %v2431 = vadd.f32 %v293, %v2430
  %v2432 = vpop.f32.mrb[0].mxu0
  %v2433 = vadd.f32 %v289, %v2432
  %v2434 = vpop.f32.mrb[0].mxu0
  %v2435 = vadd.f32 %v293, %v2434
  %2436 = vmatprep.mubr.bf16.mxu0 %v731
  %2437 = vmatmul.mubr.bf16.gmra.mrb[0].mxu0 %v730
  %v2438 = vpop.f32.mrb[0].mxu0
  %v2439 = vadd.f32 %v289, %v2438
  %v2440 = vpop.f32.mrb[0].mxu0
  %v2441 = vadd.f32 %v293, %v2440
  %v2442 = vpop.f32.mrb[0].mxu0
  %v2443 = vadd.f32 %v289, %v2442
  %v2444 = vpop.f32.mrb[0].mxu0
  %v2445 = vadd.f32 %v293, %v2444
  %2446 = vmatprep.mubr.bf16.mxu0 %v735
  %2447 = vmatmul.mubr.bf16.gmra.mrb[0].mxu0 %v734
  %v2448 = vpop.f32.mrb[0].mxu0
  %v2449 = vadd.f32 %v289, %v2448
  %v2450 = vpop.f32.mrb[0].mxu0
  %v2451 = vadd.f32 %v293, %v2450
  %v2452 = vpop.f32.mrb[0].mxu0
  %v2453 = vadd.f32 %v289, %v2452
  %v2454 = vpop.f32.mrb[0].mxu0
  %v2455 = vadd.f32 %v293, %v2454
  %2456 = vmatprep.mubr.bf16.mxu0 %v739
  %2457 = vmatmul.mubr.bf16.gmra.mrb[0].mxu0 %v738
  %v2458 = vpop.f32.mrb[0].mxu0
  %v2459 = vadd.f32 %v289, %v2458
  %v2460 = vpop.f32.mrb[0].mxu0
  %v2461 = vadd.f32 %v293, %v2460
  %v2462 = vpop.f32.mrb[0].mxu0
  %v2463 = vadd.f32 %v289, %v2462
  %v2464 = vpop.f32.mrb[0].mxu0
  %v2465 = vadd.f32 %v293, %v2464
  %2466 = vmatprep.mubr.bf16.mxu0 %v743
  %2467 = vmatmul.mubr.bf16.gmra.mrb[0].mxu0 %v742
  %v2468 = vpop.f32.mrb[0].mxu0
  %v2469 = vadd.f32 %v289, %v2468
  %v2470 = vpop.f32.mrb[0].mxu0
  %v2471 = vadd.f32 %v293, %v2470
  %v2472 = vpop.f32.mrb[0].mxu0
  %v2473 = vadd.f32 %v289, %v2472
  %v2474 = vpop.f32.mrb[0].mxu0
  %v2475 = vadd.f32 %v293, %v2474
  %2476 = vmatprep.mubr.bf16.mxu0 %v747
  %2477 = vmatmul.mubr.bf16.gmra.mrb[0].mxu0 %v746
  %v2478 = vpop.f32.mrb[0].mxu0
  %v2479 = vadd.f32 %v289, %v2478
  %v2480 = vpop.f32.mrb[0].mxu0
  %v2481 = vadd.f32 %v293, %v2480
  %v2482 = vpop.f32.mrb[0].mxu0
  %v2483 = vadd.f32 %v289, %v2482
  %v2484 = vpop.f32.mrb[0].mxu0
  %v2485 = vadd.f32 %v293, %v2484
  %2486 = vmatprep.mubr.bf16.mxu0 %v751
  %2487 = vmatmul.mubr.bf16.gmra.mrb[0].mxu0 %v750
  %v2488 = vpop.f32.mrb[0].mxu0
  %v2489 = vadd.f32 %v289, %v2488
  %v2490 = vpop.f32.mrb[0].mxu0
  %v2491 = vadd.f32 %v293, %v2490
  %v2492 = vpop.f32.mrb[0].mxu0
  %v2493 = vadd.f32 %v289, %v2492
  %v2494 = vpop.f32.mrb[0].mxu0
  %v2495 = vadd.f32 %v293, %v2494
  %2496 = vmatprep.mubr.bf16.mxu0 %v755
  %2497 = vmatmul.mubr.bf16.gmra.mrb[0].mxu0 %v754
  %v2498 = vpop.f32.mrb[0].mxu0
  %v2499 = vadd.f32 %v289, %v2498
  %v2500 = vpop.f32.mrb[0].mxu0
  %v2501 = vadd.f32 %v293, %v2500
  %v2502 = vpop.f32.mrb[0].mxu0
  %v2503 = vadd.f32 %v289, %v2502
  %v2504 = vpop.f32.mrb[0].mxu0
  %v2505 = vadd.f32 %v293, %v2504
  %2506 = vmatprep.mubr.bf16.mxu0 %v759
  %2507 = vmatmul.mubr.bf16.gmra.mrb[0].mxu0 %v758
  %v2508 = vpop.f32.mrb[0].mxu0
  %v2509 = vadd.f32 %v289, %v2508
  %v2510 = vpop.f32.mrb[0].mxu0
  %v2511 = vadd.f32 %v293, %v2510
  %v2512 = vpop.f32.mrb[0].mxu0
  %v2513 = vadd.f32 %v289, %v2512
  %v2514 = vpop.f32.mrb[0].mxu0
  %v2515 = vadd.f32 %v293, %v2514
  %2516 = vmatprep.mubr.bf16.mxu0 %v763
  %2517 = vmatmul.mubr.bf16.gmra.mrb[0].mxu0 %v762
  %v2518 = vpop.f32.mrb[0].mxu0
  %v2519 = vadd.f32 %v289, %v2518
  %v2520 = vpop.f32.mrb[0].mxu0
  %v2521 = vadd.f32 %v293, %v2520
  %v2522 = vpop.f32.mrb[0].mxu0
  %v2523 = vadd.f32 %v289, %v2522
  %v2524 = vpop.f32.mrb[0].mxu0
  %v2525 = vadd.f32 %v293, %v2524
  %2526 = vmatprep.mubr.bf16.mxu0 %v767
  %2527 = vmatmul.mubr.bf16.gmra.mrb[0].mxu0 %v766
  %v2528 = vpop.f32.mrb[0].mxu0
  %v2529 = vadd.f32 %v289, %v2528
  %v2530 = vpop.f32.mrb[0].mxu0
  %v2531 = vadd.f32 %v293, %v2530
  %v2532 = vpop.f32.mrb[0].mxu0
  %v2533 = vadd.f32 %v289, %v2532
  %v2534 = vpop.f32.mrb[0].mxu0
  %v2535 = vadd.f32 %v293, %v2534
  %2536 = vmatprep.mubr.bf16.mxu0 %v771
  %2537 = vmatmul.mubr.bf16.gmra.mrb[0].mxu0 %v770
  %v2538 = vpop.f32.mrb[0].mxu0
  %v2539 = vadd.f32 %v289, %v2538
  %v2540 = vpop.f32.mrb[0].mxu0
  %v2541 = vadd.f32 %v293, %v2540
  %v2542 = vpop.f32.mrb[0].mxu0
  %v2543 = vadd.f32 %v289, %v2542
  %v2544 = vpop.f32.mrb[0].mxu0
  %v2545 = vadd.f32 %v293, %v2544
  %2546 = vmatprep.mubr.bf16.mxu0 %v775
  %2547 = vmatmul.mubr.bf16.gmra.mrb[0].mxu0 %v774
  %v2548 = vpop.f32.mrb[0].mxu0
  %v2549 = vadd.f32 %v289, %v2548
  %v2550 = vpop.f32.mrb[0].mxu0
  %v2551 = vadd.f32 %v293, %v2550
  %v2552 = vpop.f32.mrb[0].mxu0
  %v2553 = vadd.f32 %v289, %v2552
  %v2554 = vpop.f32.mrb[0].mxu0
  %v2555 = vadd.f32 %v293, %v2554
  %2556 = vmatprep.mubr.bf16.mxu0 %v779
  %2557 = vmatmul.mubr.bf16.gmra.mrb[0].mxu0 %v778
  %v2558 = vpop.f32.mrb[0].mxu0
  %v2559 = vadd.f32 %v289, %v2558
  %v2560 = vpop.f32.mrb[0].mxu0
  %v2561 = vadd.f32 %v293, %v2560
  %v2562 = vpop.f32.mrb[0].mxu0
  %v2563 = vadd.f32 %v289, %v2562
  %v2564 = vpop.f32.mrb[0].mxu0
  %v2565 = vadd.f32 %v293, %v2564
  %2566 = vmatprep.mubr.bf16.mxu0 %v783
  %2567 = vmatmul.mubr.bf16.gmra.mrb[0].mxu0 %v782
  %v2568 = vpop.f32.mrb[0].mxu0
  %v2569 = vadd.f32 %v289, %v2568
  %v2570 = vpop.f32.mrb[0].mxu0
  %v2571 = vadd.f32 %v293, %v2570
  %v2572 = vpop.f32.mrb[0].mxu0
  %v2573 = vadd.f32 %v289, %v2572
  %v2574 = vpop.f32.mrb[0].mxu0
  %v2575 = vadd.f32 %v293, %v2574
  %2576 = vmatprep.mubr.bf16.mxu0 %v787
  %2577 = vmatmul.mubr.bf16.gmra.mrb[0].mxu0 %v786
  %v2578 = vpop.f32.mrb[0].mxu0
  %v2579 = vadd.f32 %v289, %v2578
  %v2580 = vpop.f32.mrb[0].mxu0
  %v2581 = vadd.f32 %v293, %v2580
  %v2582 = vpop.f32.mrb[0].mxu0
  %v2583 = vadd.f32 %v289, %v2582
  %v2584 = vpop.f32.mrb[0].mxu0
  %v2585 = vadd.f32 %v293, %v2584
  %2586 = vmatprep.mubr.bf16.mxu0 %v791
  %2587 = vmatmul.mubr.bf16.gmra.mrb[0].mxu0 %v790
  %v2588 = vpop.f32.mrb[0].mxu0
  %v2589 = vadd.f32 %v289, %v2588
  %v2590 = vpop.f32.mrb[0].mxu0
  %v2591 = vadd.f32 %v293, %v2590
  %v2592 = vpop.f32.mrb[0].mxu0
  %v2593 = vadd.f32 %v289, %v2592
  %v2594 = vpop.f32.mrb[0].mxu0
  %v2595 = vadd.f32 %v293, %v2594
  %2596 = vmatprep.mubr.bf16.mxu0 %v795
  %2597 = vmatmul.mubr.bf16.gmra.mrb[0].mxu0 %v794
  %v2598 = vpop.f32.mrb[0].mxu0
  %v2599 = vadd.f32 %v289, %v2598
  %v2600 = vpop.f32.mrb[0].mxu0
  %v2601 = vadd.f32 %v293, %v2600
  %v2602 = vpop.f32.mrb[0].mxu0
  %v2603 = vadd.f32 %v289, %v2602
  %v2604 = vpop.f32.mrb[0].mxu0
  %v2605 = vadd.f32 %v293, %v2604
  %2606 = vmatprep.mubr.bf16.mxu0 %v799
  %2607 = vmatmul.mubr.bf16.gmra.mrb[0].mxu0 %v798
  %v2608 = vpop.f32.mrb[0].mxu0
  %v2609 = vadd.f32 %v289, %v2608
  %v2610 = vpop.f32.mrb[0].mxu0
  %v2611 = vadd.f32 %v293, %v2610
  %v2612 = vpop.f32.mrb[0].mxu0
  %v2613 = vadd.f32 %v289, %v2612
  %v2614 = vpop.f32.mrb[0].mxu0
  %v2615 = vadd.f32 %v293, %v2614
  %2616 = vmatprep.mubr.bf16.mxu0 %v803
  %2617 = vmatmul.mubr.bf16.gmra.mrb[0].mxu0 %v802
  %v2618 = vpop.f32.mrb[0].mxu0
  %v2619 = vadd.f32 %v289, %v2618
  %v2620 = vpop.f32.mrb[0].mxu0
  %v2621 = vadd.f32 %v293, %v2620
  %v2622 = vpop.f32.mrb[0].mxu0
  %v2623 = vadd.f32 %v289, %v2622
  %v2624 = vpop.f32.mrb[0].mxu0
  %v2625 = vadd.f32 %v293, %v2624
  %2626 = vmatprep.mubr.bf16.mxu0 %v807
  %2627 = vmatmul.mubr.bf16.gmra.mrb[0].mxu0 %v806
  %v2628 = vpop.f32.mrb[0].mxu0
  %v2629 = vadd.f32 %v289, %v2628
  %v2630 = vpop.f32.mrb[0].mxu0
  %v2631 = vadd.f32 %v293, %v2630
  %v2632 = vpop.f32.mrb[0].mxu0
  %v2633 = vadd.f32 %v289, %v2632
  %v2634 = vpop.f32.mrb[0].mxu0
  %v2635 = vadd.f32 %v293, %v2634
  %2636 = vdwg.mxu0
  %2637 = vmatprep.subr.bf16.mxu0 %v1389
  %2638 = vmatpush1.bf16.msra.mxu0 %v1388
  %2639 = vmatprep.subr.bf16.mxu0 %v1393
  %2640 = vmatpush1.bf16.msra.mxu0 %v1392
  %2641 = vmatprep.subr.bf16.mxu0 %v1397
  %2642 = vmatpush1.bf16.msra.mxu0 %v1396
  %2643 = vmatprep.subr.bf16.mxu0 %v1401
  %2644 = vmatpush1.bf16.msra.mxu0 %v1400
  %2645 = vmatprep.subr.bf16.mxu0 %v1405
  %2646 = vmatpush1.bf16.msra.mxu0 %v1404
  %2647 = vmatprep.subr.bf16.mxu0 %v1409
  %2648 = vmatpush1.bf16.msra.mxu0 %v1408
  %2649 = vmatprep.subr.bf16.mxu0 %v1413
  %2650 = vmatpush1.bf16.msra.mxu0 %v1412
  %2651 = vmatprep.subr.bf16.mxu0 %v1417
  %2652 = vmatpush1.bf16.msra.mxu0 %v1416
  %2653 = vmatprep.subr.bf16.mxu0 %v1421
  %2654 = vmatpush1.bf16.msra.mxu0 %v1420
  %2655 = vmatprep.subr.bf16.mxu0 %v1425
  %2656 = vmatpush1.bf16.msra.mxu0 %v1424
  %2657 = vmatprep.subr.bf16.mxu0 %v1429
  %2658 = vmatpush1.bf16.msra.mxu0 %v1428
  %2659 = vmatprep.subr.bf16.mxu0 %v1433
  %2660 = vmatpush1.bf16.msra.mxu0 %v1432
  %2661 = vmatprep.subr.bf16.mxu0 %v1437
  %2662 = vmatpush1.bf16.msra.mxu0 %v1436
  %2663 = vmatprep.subr.bf16.mxu0 %v1441
  %2664 = vmatpush1.bf16.msra.mxu0 %v1440
  %2665 = vmatprep.subr.bf16.mxu0 %v1445
  %2666 = vmatpush1.bf16.msra.mxu0 %v1444
  %2667 = vmatprep.subr.bf16.mxu0 %v1449
  %2668 = vmatpush1.bf16.msra.mxu0 %v1448
  %2669 = vmatprep.mubr.bf16.mxu0 %v685
  %2670 = vmatmul.mubr.bf16.gmra.mrb[0].mxu0 %v684
  %v2671 = vpop.f32.mrb[0].mxu0
  %v2672 = vadd.f32 %v2319, %v2671
  %v2673 = vpop.f32.mrb[0].mxu0
  %v2674 = vadd.f32 %v2321, %v2673
  %v2675 = vpop.f32.mrb[0].mxu0
  %v2676 = vadd.f32 %v2323, %v2675
  %v2677 = vpop.f32.mrb[0].mxu0
  %v2678 = vadd.f32 %v2325, %v2677
  %2679 = vmatprep.mubr.bf16.mxu0 %v689
  %2680 = vmatmul.mubr.bf16.gmra.mrb[0].mxu0 %v688
  %v2681 = vpop.f32.mrb[0].mxu0
  %v2682 = vadd.f32 %v2329, %v2681
  %v2683 = vpop.f32.mrb[0].mxu0
  %v2684 = vadd.f32 %v2331, %v2683
  %v2685 = vpop.f32.mrb[0].mxu0
  %v2686 = vadd.f32 %v2333, %v2685
  %v2687 = vpop.f32.mrb[0].mxu0
  %v2688 = vadd.f32 %v2335, %v2687
  %2689 = vmatprep.mubr.bf16.mxu0 %v693
  %2690 = vmatmul.mubr.bf16.gmra.mrb[0].mxu0 %v692
  %v2691 = vpop.f32.mrb[0].mxu0
  %v2692 = vadd.f32 %v2339, %v2691
  %v2693 = vpop.f32.mrb[0].mxu0
  %v2694 = vadd.f32 %v2341, %v2693
  %v2695 = vpop.f32.mrb[0].mxu0
  %v2696 = vadd.f32 %v2343, %v2695
  %v2697 = vpop.f32.mrb[0].mxu0
  %v2698 = vadd.f32 %v2345, %v2697
  %2699 = vmatprep.mubr.bf16.mxu0 %v697
  %2700 = vmatmul.mubr.bf16.gmra.mrb[0].mxu0 %v696
  %v2701 = vpop.f32.mrb[0].mxu0
  %v2702 = vadd.f32 %v2349, %v2701
  %v2703 = vpop.f32.mrb[0].mxu0
  %v2704 = vadd.f32 %v2351, %v2703
  %v2705 = vpop.f32.mrb[0].mxu0
  %v2706 = vadd.f32 %v2353, %v2705
  %v2707 = vpop.f32.mrb[0].mxu0
  %v2708 = vadd.f32 %v2355, %v2707
  %2709 = vmatprep.mubr.bf16.mxu0 %v701
  %2710 = vmatmul.mubr.bf16.gmra.mrb[0].mxu0 %v700
  %v2711 = vpop.f32.mrb[0].mxu0
  %v2712 = vadd.f32 %v2359, %v2711
  %v2713 = vpop.f32.mrb[0].mxu0
  %v2714 = vadd.f32 %v2361, %v2713
  %v2715 = vpop.f32.mrb[0].mxu0
  %v2716 = vadd.f32 %v2363, %v2715
  %v2717 = vpop.f32.mrb[0].mxu0
  %v2718 = vadd.f32 %v2365, %v2717
  %2719 = vmatprep.mubr.bf16.mxu0 %v705
  %2720 = vmatmul.mubr.bf16.gmra.mrb[0].mxu0 %v704
  %v2721 = vpop.f32.mrb[0].mxu0
  %v2722 = vadd.f32 %v2369, %v2721
  %v2723 = vpop.f32.mrb[0].mxu0
  %v2724 = vadd.f32 %v2371, %v2723
  %v2725 = vpop.f32.mrb[0].mxu0
  %v2726 = vadd.f32 %v2373, %v2725
  %v2727 = vpop.f32.mrb[0].mxu0
  %v2728 = vadd.f32 %v2375, %v2727
  %2729 = vmatprep.mubr.bf16.mxu0 %v709
  %2730 = vmatmul.mubr.bf16.gmra.mrb[0].mxu0 %v708
  %v2731 = vpop.f32.mrb[0].mxu0
  %v2732 = vadd.f32 %v2379, %v2731
  %v2733 = vpop.f32.mrb[0].mxu0
  %v2734 = vadd.f32 %v2381, %v2733
  %v2735 = vpop.f32.mrb[0].mxu0
  %v2736 = vadd.f32 %v2383, %v2735
  %v2737 = vpop.f32.mrb[0].mxu0
  %v2738 = vadd.f32 %v2385, %v2737
  %2739 = vmatprep.mubr.bf16.mxu0 %v713
  %2740 = vmatmul.mubr.bf16.gmra.mrb[0].mxu0 %v712
  %v2741 = vpop.f32.mrb[0].mxu0
  %v2742 = vadd.f32 %v2389, %v2741
  %v2743 = vpop.f32.mrb[0].mxu0
  %v2744 = vadd.f32 %v2391, %v2743
  %v2745 = vpop.f32.mrb[0].mxu0
  %v2746 = vadd.f32 %v2393, %v2745
  %v2747 = vpop.f32.mrb[0].mxu0
  %v2748 = vadd.f32 %v2395, %v2747
  %2749 = vmatprep.mubr.bf16.mxu0 %v717
  %2750 = vmatmul.mubr.bf16.gmra.mrb[0].mxu0 %v716
  %v2751 = vpop.f32.mrb[0].mxu0
  %v2752 = vadd.f32 %v2399, %v2751
  %v2753 = vpop.f32.mrb[0].mxu0
  %v2754 = vadd.f32 %v2401, %v2753
  %v2755 = vpop.f32.mrb[0].mxu0
  %v2756 = vadd.f32 %v2403, %v2755
  %v2757 = vpop.f32.mrb[0].mxu0
  %v2758 = vadd.f32 %v2405, %v2757
  %2759 = vmatprep.mubr.bf16.mxu0 %v721
  %2760 = vmatmul.mubr.bf16.gmra.mrb[0].mxu0 %v720
  %v2761 = vpop.f32.mrb[0].mxu0
  %v2762 = vadd.f32 %v2409, %v2761
  %v2763 = vpop.f32.mrb[0].mxu0
  %v2764 = vadd.f32 %v2411, %v2763
  %v2765 = vpop.f32.mrb[0].mxu0
  %v2766 = vadd.f32 %v2413, %v2765
  %v2767 = vpop.f32.mrb[0].mxu0
  %v2768 = vadd.f32 %v2415, %v2767
  %2769 = vmatprep.mubr.bf16.mxu0 %v725
  %2770 = vmatmul.mubr.bf16.gmra.mrb[0].mxu0 %v724
  %v2771 = vpop.f32.mrb[0].mxu0
  %v2772 = vadd.f32 %v2419, %v2771
  %v2773 = vpop.f32.mrb[0].mxu0
  %v2774 = vadd.f32 %v2421, %v2773
  %v2775 = vpop.f32.mrb[0].mxu0
  %v2776 = vadd.f32 %v2423, %v2775
  %v2777 = vpop.f32.mrb[0].mxu0
  %v2778 = vadd.f32 %v2425, %v2777
  %2779 = vmatprep.mubr.bf16.mxu0 %v729
  %2780 = vmatmul.mubr.bf16.gmra.mrb[0].mxu0 %v728
  %v2781 = vpop.f32.mrb[0].mxu0
  %v2782 = vadd.f32 %v2429, %v2781
  %v2783 = vpop.f32.mrb[0].mxu0
  %v2784 = vadd.f32 %v2431, %v2783
  %v2785 = vpop.f32.mrb[0].mxu0
  %v2786 = vadd.f32 %v2433, %v2785
  %v2787 = vpop.f32.mrb[0].mxu0
  %v2788 = vadd.f32 %v2435, %v2787
  %2789 = vmatprep.mubr.bf16.mxu0 %v733
  %2790 = vmatmul.mubr.bf16.gmra.mrb[0].mxu0 %v732
  %v2791 = vpop.f32.mrb[0].mxu0
  %v2792 = vadd.f32 %v2439, %v2791
  %v2793 = vpop.f32.mrb[0].mxu0
  %v2794 = vadd.f32 %v2441, %v2793
  %v2795 = vpop.f32.mrb[0].mxu0
  %v2796 = vadd.f32 %v2443, %v2795
  %v2797 = vpop.f32.mrb[0].mxu0
  %v2798 = vadd.f32 %v2445, %v2797
  %2799 = vmatprep.mubr.bf16.mxu0 %v737
  %2800 = vmatmul.mubr.bf16.gmra.mrb[0].mxu0 %v736
  %v2801 = vpop.f32.mrb[0].mxu0
  %v2802 = vadd.f32 %v2449, %v2801
  %v2803 = vpop.f32.mrb[0].mxu0
  %v2804 = vadd.f32 %v2451, %v2803
  %v2805 = vpop.f32.mrb[0].mxu0
  %v2806 = vadd.f32 %v2453, %v2805
  %v2807 = vpop.f32.mrb[0].mxu0
  %v2808 = vadd.f32 %v2455, %v2807
  %2809 = vmatprep.mubr.bf16.mxu0 %v741
  %2810 = vmatmul.mubr.bf16.gmra.mrb[0].mxu0 %v740
  %v2811 = vpop.f32.mrb[0].mxu0
  %v2812 = vadd.f32 %v2459, %v2811
  %v2813 = vpop.f32.mrb[0].mxu0
  %v2814 = vadd.f32 %v2461, %v2813
  %v2815 = vpop.f32.mrb[0].mxu0
  %v2816 = vadd.f32 %v2463, %v2815
  %v2817 = vpop.f32.mrb[0].mxu0
  %v2818 = vadd.f32 %v2465, %v2817
  %2819 = vmatprep.mubr.bf16.mxu0 %v745
  %2820 = vmatmul.mubr.bf16.gmra.mrb[0].mxu0 %v744
  %v2821 = vpop.f32.mrb[0].mxu0
  %v2822 = vadd.f32 %v2469, %v2821
  %v2823 = vpop.f32.mrb[0].mxu0
  %v2824 = vadd.f32 %v2471, %v2823
  %v2825 = vpop.f32.mrb[0].mxu0
  %v2826 = vadd.f32 %v2473, %v2825
  %v2827 = vpop.f32.mrb[0].mxu0
  %v2828 = vadd.f32 %v2475, %v2827
  %2829 = vmatprep.mubr.bf16.mxu0 %v749
  %2830 = vmatmul.mubr.bf16.gmra.mrb[0].mxu0 %v748
  %v2831 = vpop.f32.mrb[0].mxu0
  %v2832 = vadd.f32 %v2479, %v2831
  %v2833 = vpop.f32.mrb[0].mxu0
  %v2834 = vadd.f32 %v2481, %v2833
  %v2835 = vpop.f32.mrb[0].mxu0
  %v2836 = vadd.f32 %v2483, %v2835
  %v2837 = vpop.f32.mrb[0].mxu0
  %v2838 = vadd.f32 %v2485, %v2837
  %2839 = vmatprep.mubr.bf16.mxu0 %v753
  %2840 = vmatmul.mubr.bf16.gmra.mrb[0].mxu0 %v752
  %v2841 = vpop.f32.mrb[0].mxu0
  %v2842 = vadd.f32 %v2489, %v2841
  %v2843 = vpop.f32.mrb[0].mxu0
  %v2844 = vadd.f32 %v2491, %v2843
  %v2845 = vpop.f32.mrb[0].mxu0
  %v2846 = vadd.f32 %v2493, %v2845
  %v2847 = vpop.f32.mrb[0].mxu0
  %v2848 = vadd.f32 %v2495, %v2847
  %2849 = vmatprep.mubr.bf16.mxu0 %v757
  %2850 = vmatmul.mubr.bf16.gmra.mrb[0].mxu0 %v756
  %v2851 = vpop.f32.mrb[0].mxu0
  %v2852 = vadd.f32 %v2499, %v2851
  %v2853 = vpop.f32.mrb[0].mxu0
  %v2854 = vadd.f32 %v2501, %v2853
  %v2855 = vpop.f32.mrb[0].mxu0
  %v2856 = vadd.f32 %v2503, %v2855
  %v2857 = vpop.f32.mrb[0].mxu0
  %v2858 = vadd.f32 %v2505, %v2857
  %2859 = vmatprep.mubr.bf16.mxu0 %v761
  %2860 = vmatmul.mubr.bf16.gmra.mrb[0].mxu0 %v760
  %v2861 = vpop.f32.mrb[0].mxu0
  %v2862 = vadd.f32 %v2509, %v2861
  %v2863 = vpop.f32.mrb[0].mxu0
  %v2864 = vadd.f32 %v2511, %v2863
  %v2865 = vpop.f32.mrb[0].mxu0
  %v2866 = vadd.f32 %v2513, %v2865
  %v2867 = vpop.f32.mrb[0].mxu0
  %v2868 = vadd.f32 %v2515, %v2867
  %2869 = vmatprep.mubr.bf16.mxu0 %v765
  %2870 = vmatmul.mubr.bf16.gmra.mrb[0].mxu0 %v764
  %v2871 = vpop.f32.mrb[0].mxu0
  %v2872 = vadd.f32 %v2519, %v2871
  %v2873 = vpop.f32.mrb[0].mxu0
  %v2874 = vadd.f32 %v2521, %v2873
  %v2875 = vpop.f32.mrb[0].mxu0
  %v2876 = vadd.f32 %v2523, %v2875
  %v2877 = vpop.f32.mrb[0].mxu0
  %v2878 = vadd.f32 %v2525, %v2877
  %2879 = vmatprep.mubr.bf16.mxu0 %v769
  %2880 = vmatmul.mubr.bf16.gmra.mrb[0].mxu0 %v768
  %v2881 = vpop.f32.mrb[0].mxu0
  %v2882 = vadd.f32 %v2529, %v2881
  %v2883 = vpop.f32.mrb[0].mxu0
  %v2884 = vadd.f32 %v2531, %v2883
  %v2885 = vpop.f32.mrb[0].mxu0
  %v2886 = vadd.f32 %v2533, %v2885
  %v2887 = vpop.f32.mrb[0].mxu0
  %v2888 = vadd.f32 %v2535, %v2887
  %2889 = vmatprep.mubr.bf16.mxu0 %v773
  %2890 = vmatmul.mubr.bf16.gmra.mrb[0].mxu0 %v772
  %v2891 = vpop.f32.mrb[0].mxu0
  %v2892 = vadd.f32 %v2539, %v2891
  %v2893 = vpop.f32.mrb[0].mxu0
  %v2894 = vadd.f32 %v2541, %v2893
  %v2895 = vpop.f32.mrb[0].mxu0
  %v2896 = vadd.f32 %v2543, %v2895
  %v2897 = vpop.f32.mrb[0].mxu0
  %v2898 = vadd.f32 %v2545, %v2897
  %2899 = vmatprep.mubr.bf16.mxu0 %v777
  %2900 = vmatmul.mubr.bf16.gmra.mrb[0].mxu0 %v776
  %v2901 = vpop.f32.mrb[0].mxu0
  %v2902 = vadd.f32 %v2549, %v2901
  %v2903 = vpop.f32.mrb[0].mxu0
  %v2904 = vadd.f32 %v2551, %v2903
  %v2905 = vpop.f32.mrb[0].mxu0
  %v2906 = vadd.f32 %v2553, %v2905
  %v2907 = vpop.f32.mrb[0].mxu0
  %v2908 = vadd.f32 %v2555, %v2907
  %2909 = vmatprep.mubr.bf16.mxu0 %v781
  %2910 = vmatmul.mubr.bf16.gmra.mrb[0].mxu0 %v780
  %v2911 = vpop.f32.mrb[0].mxu0
  %v2912 = vadd.f32 %v2559, %v2911
  %v2913 = vpop.f32.mrb[0].mxu0
  %v2914 = vadd.f32 %v2561, %v2913
  %v2915 = vpop.f32.mrb[0].mxu0
  %v2916 = vadd.f32 %v2563, %v2915
  %v2917 = vpop.f32.mrb[0].mxu0
  %v2918 = vadd.f32 %v2565, %v2917
  %2919 = vmatprep.mubr.bf16.mxu0 %v785
  %2920 = vmatmul.mubr.bf16.gmra.mrb[0].mxu0 %v784
  %v2921 = vpop.f32.mrb[0].mxu0
  %v2922 = vadd.f32 %v2569, %v2921
  %v2923 = vpop.f32.mrb[0].mxu0
  %v2924 = vadd.f32 %v2571, %v2923
  %v2925 = vpop.f32.mrb[0].mxu0
  %v2926 = vadd.f32 %v2573, %v2925
  %v2927 = vpop.f32.mrb[0].mxu0
  %v2928 = vadd.f32 %v2575, %v2927
  %2929 = vmatprep.mubr.bf16.mxu0 %v789
  %2930 = vmatmul.mubr.bf16.gmra.mrb[0].mxu0 %v788
  %v2931 = vpop.f32.mrb[0].mxu0
  %v2932 = vadd.f32 %v2579, %v2931
  %v2933 = vpop.f32.mrb[0].mxu0
  %v2934 = vadd.f32 %v2581, %v2933
  %v2935 = vpop.f32.mrb[0].mxu0
  %v2936 = vadd.f32 %v2583, %v2935
  %v2937 = vpop.f32.mrb[0].mxu0
  %v2938 = vadd.f32 %v2585, %v2937
  %2939 = vmatprep.mubr.bf16.mxu0 %v793
  %2940 = vmatmul.mubr.bf16.gmra.mrb[0].mxu0 %v792
  %v2941 = vpop.f32.mrb[0].mxu0
  %v2942 = vadd.f32 %v2589, %v2941
  %v2943 = vpop.f32.mrb[0].mxu0
  %v2944 = vadd.f32 %v2591, %v2943
  %v2945 = vpop.f32.mrb[0].mxu0
  %v2946 = vadd.f32 %v2593, %v2945
  %v2947 = vpop.f32.mrb[0].mxu0
  %v2948 = vadd.f32 %v2595, %v2947
  %2949 = vmatprep.mubr.bf16.mxu0 %v797
  %2950 = vmatmul.mubr.bf16.gmra.mrb[0].mxu0 %v796
  %v2951 = vpop.f32.mrb[0].mxu0
  %v2952 = vadd.f32 %v2599, %v2951
  %v2953 = vpop.f32.mrb[0].mxu0
  %v2954 = vadd.f32 %v2601, %v2953
  %v2955 = vpop.f32.mrb[0].mxu0
  %v2956 = vadd.f32 %v2603, %v2955
  %v2957 = vpop.f32.mrb[0].mxu0
  %v2958 = vadd.f32 %v2605, %v2957
  %2959 = vmatprep.mubr.bf16.mxu0 %v801
  %2960 = vmatmul.mubr.bf16.gmra.mrb[0].mxu0 %v800
  %v2961 = vpop.f32.mrb[0].mxu0
  %v2962 = vadd.f32 %v2609, %v2961
  %v2963 = vpop.f32.mrb[0].mxu0
  %v2964 = vadd.f32 %v2611, %v2963
  %v2965 = vpop.f32.mrb[0].mxu0
  %v2966 = vadd.f32 %v2613, %v2965
  %v2967 = vpop.f32.mrb[0].mxu0
  %v2968 = vadd.f32 %v2615, %v2967
  %2969 = vmatprep.mubr.bf16.mxu0 %v805
  %2970 = vmatmul.mubr.bf16.gmra.mrb[0].mxu0 %v804
  %v2971 = vpop.f32.mrb[0].mxu0
  %v2972 = vadd.f32 %v2619, %v2971
  %v2973 = vpop.f32.mrb[0].mxu0
  %v2974 = vadd.f32 %v2621, %v2973
  %v2975 = vpop.f32.mrb[0].mxu0
  %v2976 = vadd.f32 %v2623, %v2975
  %v2977 = vpop.f32.mrb[0].mxu0
  %v2978 = vadd.f32 %v2625, %v2977
  %2979 = vmatprep.mubr.bf16.mxu0 %v809
  %2980 = vmatmul.mubr.bf16.gmra.mrb[0].mxu0 %v808
  %v2981 = vpop.f32.mrb[0].mxu0
  %v2982 = vadd.f32 %v2629, %v2981
  %v2983 = vpop.f32.mrb[0].mxu0
  %v2984 = vadd.f32 %v2631, %v2983
  %v2985 = vpop.f32.mrb[0].mxu0
  %v2986 = vadd.f32 %v2633, %v2985
  %v2987 = vpop.f32.mrb[0].mxu0
  %v2988 = vadd.f32 %v2635, %v2987
  %2989 = vdwg.mxu0
  %v2990 = vpack.c.bf16 %v1970, %v1966
  %v2991 = vpack.c.bf16 %v1972, %v1968
  %v2992 = vpack.c.bf16 %v2676, %v2672
  %v2993 = vpack.c.bf16 %v2678, %v2674
  %v2994 = vpack.c.bf16 %v1980, %v1976
  %v2995 = vpack.c.bf16 %v1982, %v1978
  %v2996 = vpack.c.bf16 %v2686, %v2682
  %v2997 = vpack.c.bf16 %v2688, %v2684
  %v2998 = vpack.c.bf16 %v1990, %v1986
  %v2999 = vpack.c.bf16 %v1992, %v1988
  %v3000 = vpack.c.bf16 %v2696, %v2692
  %v3001 = vpack.c.bf16 %v2698, %v2694
  %v3002 = vpack.c.bf16 %v2000, %v1996
  %v3003 = vpack.c.bf16 %v2002, %v1998
  %v3004 = vpack.c.bf16 %v2706, %v2702
  %v3005 = vpack.c.bf16 %v2708, %v2704
  %v3006 = vpack.c.bf16 %v2010, %v2006
  %v3007 = vpack.c.bf16 %v2012, %v2008
  %v3008 = vpack.c.bf16 %v2716, %v2712
  %v3009 = vpack.c.bf16 %v2718, %v2714
  %v3010 = vpack.c.bf16 %v2020, %v2016
  %v3011 = vpack.c.bf16 %v2022, %v2018
  %v3012 = vpack.c.bf16 %v2726, %v2722
  %v3013 = vpack.c.bf16 %v2728, %v2724
  %v3014 = vpack.c.bf16 %v2030, %v2026
  %v3015 = vpack.c.bf16 %v2032, %v2028
  %v3016 = vpack.c.bf16 %v2736, %v2732
  %v3017 = vpack.c.bf16 %v2738, %v2734
  %v3018 = vpack.c.bf16 %v2040, %v2036
  %v3019 = vpack.c.bf16 %v2042, %v2038
  %v3020 = vpack.c.bf16 %v2746, %v2742
  %v3021 = vpack.c.bf16 %v2748, %v2744
  %v3022 = vpack.c.bf16 %v2050, %v2046
  %v3023 = vpack.c.bf16 %v2052, %v2048
  %v3024 = vpack.c.bf16 %v2756, %v2752
  %v3025 = vpack.c.bf16 %v2758, %v2754
  %v3026 = vpack.c.bf16 %v2060, %v2056
  %v3027 = vpack.c.bf16 %v2062, %v2058
  %v3028 = vpack.c.bf16 %v2766, %v2762
  %v3029 = vpack.c.bf16 %v2768, %v2764
  %v3030 = vpack.c.bf16 %v2070, %v2066
  %v3031 = vpack.c.bf16 %v2072, %v2068
  %v3032 = vpack.c.bf16 %v2776, %v2772
  %v3033 = vpack.c.bf16 %v2778, %v2774
  %v3034 = vpack.c.bf16 %v2080, %v2076
  %v3035 = vpack.c.bf16 %v2082, %v2078
  %v3036 = vpack.c.bf16 %v2786, %v2782
  %v3037 = vpack.c.bf16 %v2788, %v2784
  %v3038 = vpack.c.bf16 %v2090, %v2086
  %v3039 = vpack.c.bf16 %v2092, %v2088
  %v3040 = vpack.c.bf16 %v2796, %v2792
  %v3041 = vpack.c.bf16 %v2798, %v2794
  %v3042 = vpack.c.bf16 %v2100, %v2096
  %v3043 = vpack.c.bf16 %v2102, %v2098
  %v3044 = vpack.c.bf16 %v2806, %v2802
  %v3045 = vpack.c.bf16 %v2808, %v2804
  %v3046 = vpack.c.bf16 %v2110, %v2106
  %v3047 = vpack.c.bf16 %v2112, %v2108
  %v3048 = vpack.c.bf16 %v2816, %v2812
  %v3049 = vpack.c.bf16 %v2818, %v2814
  %v3050 = vpack.c.bf16 %v2120, %v2116
  %v3051 = vpack.c.bf16 %v2122, %v2118
  %v3052 = vpack.c.bf16 %v2826, %v2822
  %v3053 = vpack.c.bf16 %v2828, %v2824
  %v3054 = vpack.c.bf16 %v2130, %v2126
  %v3055 = vpack.c.bf16 %v2132, %v2128
  %v3056 = vpack.c.bf16 %v2836, %v2832
  %v3057 = vpack.c.bf16 %v2838, %v2834
  %v3058 = vpack.c.bf16 %v2140, %v2136
  %v3059 = vpack.c.bf16 %v2142, %v2138
  %v3060 = vpack.c.bf16 %v2846, %v2842
  %v3061 = vpack.c.bf16 %v2848, %v2844
  %v3062 = vpack.c.bf16 %v2150, %v2146
  %v3063 = vpack.c.bf16 %v2152, %v2148
  %v3064 = vpack.c.bf16 %v2856, %v2852
  %v3065 = vpack.c.bf16 %v2858, %v2854
  %v3066 = vpack.c.bf16 %v2160, %v2156
  %v3067 = vpack.c.bf16 %v2162, %v2158
  %v3068 = vpack.c.bf16 %v2866, %v2862
  %v3069 = vpack.c.bf16 %v2868, %v2864
  %v3070 = vpack.c.bf16 %v2170, %v2166
  %v3071 = vpack.c.bf16 %v2172, %v2168
  %v3072 = vpack.c.bf16 %v2876, %v2872
  %v3073 = vpack.c.bf16 %v2878, %v2874
  %v3074 = vpack.c.bf16 %v2180, %v2176
  %v3075 = vpack.c.bf16 %v2182, %v2178
  %v3076 = vpack.c.bf16 %v2886, %v2882
  %v3077 = vpack.c.bf16 %v2888, %v2884
  %v3078 = vpack.c.bf16 %v2190, %v2186
  %v3079 = vpack.c.bf16 %v2192, %v2188
  %v3080 = vpack.c.bf16 %v2896, %v2892
  %v3081 = vpack.c.bf16 %v2898, %v2894
  %v3082 = vpack.c.bf16 %v2200, %v2196
  %v3083 = vpack.c.bf16 %v2202, %v2198
  %v3084 = vpack.c.bf16 %v2906, %v2902
  %v3085 = vpack.c.bf16 %v2908, %v2904
  %v3086 = vpack.c.bf16 %v2210, %v2206
  %v3087 = vpack.c.bf16 %v2212, %v2208
  %v3088 = vpack.c.bf16 %v2916, %v2912
  %v3089 = vpack.c.bf16 %v2918, %v2914
  %v3090 = vpack.c.bf16 %v2220, %v2216
  %v3091 = vpack.c.bf16 %v2222, %v2218
  %v3092 = vpack.c.bf16 %v2926, %v2922
  %v3093 = vpack.c.bf16 %v2928, %v2924
  %v3094 = vpack.c.bf16 %v2230, %v2226
  %v3095 = vpack.c.bf16 %v2232, %v2228
  %v3096 = vpack.c.bf16 %v2936, %v2932
  %v3097 = vpack.c.bf16 %v2938, %v2934
  %v3098 = vpack.c.bf16 %v2240, %v2236
  %v3099 = vpack.c.bf16 %v2242, %v2238
  %v3100 = vpack.c.bf16 %v2946, %v2942
  %v3101 = vpack.c.bf16 %v2948, %v2944
  %v3102 = vpack.c.bf16 %v2250, %v2246
  %v3103 = vpack.c.bf16 %v2252, %v2248
  %v3104 = vpack.c.bf16 %v2956, %v2952
  %v3105 = vpack.c.bf16 %v2958, %v2954
  %v3106 = vpack.c.bf16 %v2260, %v2256
  %v3107 = vpack.c.bf16 %v2262, %v2258
  %v3108 = vpack.c.bf16 %v2966, %v2962
  %v3109 = vpack.c.bf16 %v2968, %v2964
  %v3110 = vpack.c.bf16 %v2270, %v2266
  %v3111 = vpack.c.bf16 %v2272, %v2268
  %v3112 = vpack.c.bf16 %v2976, %v2972
  %v3113 = vpack.c.bf16 %v2978, %v2974
  %v3114 = vpack.c.bf16 %v2280, %v2276
  %v3115 = vpack.c.bf16 %v2282, %v2278
  %v3116 = vpack.c.bf16 %v2986, %v2982
  %v3117 = vpack.c.bf16 %v2988, %v2984
  %3118 = vmatprep.subr.bf16.mxu0 %v683
  %3119 = vmatpush1.bf16.xpose.msra.mxu0 %v682
  %3120 = vmatprep.subr.bf16.mxu0 %v687
  %3121 = vmatpush1.bf16.xpose.msra.mxu0 %v686
  %3122 = vmatprep.subr.bf16.mxu0 %v691
  %3123 = vmatpush1.bf16.xpose.msra.mxu0 %v690
  %3124 = vmatprep.subr.bf16.mxu0 %v695
  %3125 = vmatpush1.bf16.xpose.msra.mxu0 %v694
  %3126 = vmatprep.subr.bf16.mxu0 %v699
  %3127 = vmatpush1.bf16.xpose.msra.mxu0 %v698
  %3128 = vmatprep.subr.bf16.mxu0 %v703
  %3129 = vmatpush1.bf16.xpose.msra.mxu0 %v702
  %3130 = vmatprep.subr.bf16.mxu0 %v707
  %3131 = vmatpush1.bf16.xpose.msra.mxu0 %v706
  %3132 = vmatprep.subr.bf16.mxu0 %v711
  %3133 = vmatpush1.bf16.xpose.msra.mxu0 %v710
  %3134 = vmatprep.subr.bf16.mxu0 %v715
  %3135 = vmatpush1.bf16.xpose.msra.mxu0 %v714
  %3136 = vmatprep.subr.bf16.mxu0 %v719
  %3137 = vmatpush1.bf16.xpose.msra.mxu0 %v718
  %3138 = vmatprep.subr.bf16.mxu0 %v723
  %3139 = vmatpush1.bf16.xpose.msra.mxu0 %v722
  %3140 = vmatprep.subr.bf16.mxu0 %v727
  %3141 = vmatpush1.bf16.xpose.msra.mxu0 %v726
  %3142 = vmatprep.subr.bf16.mxu0 %v731
  %3143 = vmatpush1.bf16.xpose.msra.mxu0 %v730
  %3144 = vmatprep.subr.bf16.mxu0 %v735
  %3145 = vmatpush1.bf16.xpose.msra.mxu0 %v734
  %3146 = vmatprep.subr.bf16.mxu0 %v739
  %3147 = vmatpush1.bf16.xpose.msra.mxu0 %v738
  %3148 = vmatprep.subr.bf16.mxu0 %v743
  %3149 = vmatpush1.bf16.xpose.msra.mxu0 %v742
  %3150 = vmatprep.mubr.bf16.mxu0 %v2991
  %3151 = vmatmul.mubr.bf16.gmra.mrb[0].mxu0 %v2990
  %v3152 = vpop.f32.mrb[0].mxu0
  %v3153 = vadd.f32 0.0, %v3152
  %v3154 = vpop.f32.mrb[0].mxu0
  %v3155 = vadd.f32 0.0, %v3154
  %v3156 = vpop.f32.mrb[0].mxu0
  %v3157 = vadd.f32 0.0, %v3156
  %v3158 = vpop.f32.mrb[0].mxu0
  %v3159 = vadd.f32 0.0, %v3158
  %3160 = vmatprep.mubr.bf16.mxu0 %v2995
  %3161 = vmatmul.mubr.bf16.gmra.mrb[0].mxu0 %v2994
  %v3162 = vpop.f32.mrb[0].mxu0
  %v3163 = vadd.f32 0.0, %v3162
  %v3164 = vpop.f32.mrb[0].mxu0
  %v3165 = vadd.f32 0.0, %v3164
  %v3166 = vpop.f32.mrb[0].mxu0
  %v3167 = vadd.f32 0.0, %v3166
  %v3168 = vpop.f32.mrb[0].mxu0
  %v3169 = vadd.f32 0.0, %v3168
  %3170 = vmatprep.mubr.bf16.mxu0 %v2999
  %3171 = vmatmul.mubr.bf16.gmra.mrb[0].mxu0 %v2998
  %v3172 = vpop.f32.mrb[0].mxu0
  %v3173 = vadd.f32 0.0, %v3172
  %v3174 = vpop.f32.mrb[0].mxu0
  %v3175 = vadd.f32 0.0, %v3174
  %v3176 = vpop.f32.mrb[0].mxu0
  %v3177 = vadd.f32 0.0, %v3176
  %v3178 = vpop.f32.mrb[0].mxu0
  %v3179 = vadd.f32 0.0, %v3178
  %3180 = vmatprep.mubr.bf16.mxu0 %v3003
  %3181 = vmatmul.mubr.bf16.gmra.mrb[0].mxu0 %v3002
  %v3182 = vpop.f32.mrb[0].mxu0
  %v3183 = vadd.f32 0.0, %v3182
  %v3184 = vpop.f32.mrb[0].mxu0
  %v3185 = vadd.f32 0.0, %v3184
  %v3186 = vpop.f32.mrb[0].mxu0
  %v3187 = vadd.f32 0.0, %v3186
  %v3188 = vpop.f32.mrb[0].mxu0
  %v3189 = vadd.f32 0.0, %v3188
  %3190 = vmatprep.mubr.bf16.mxu0 %v3007
  %3191 = vmatmul.mubr.bf16.gmra.mrb[0].mxu0 %v3006
  %v3192 = vpop.f32.mrb[0].mxu0
  %v3193 = vadd.f32 0.0, %v3192
  %v3194 = vpop.f32.mrb[0].mxu0
  %v3195 = vadd.f32 0.0, %v3194
  %v3196 = vpop.f32.mrb[0].mxu0
  %v3197 = vadd.f32 0.0, %v3196
  %v3198 = vpop.f32.mrb[0].mxu0
  %v3199 = vadd.f32 0.0, %v3198
  %3200 = vmatprep.mubr.bf16.mxu0 %v3011
  %3201 = vmatmul.mubr.bf16.gmra.mrb[0].mxu0 %v3010
  %v3202 = vpop.f32.mrb[0].mxu0
  %v3203 = vadd.f32 0.0, %v3202
  %v3204 = vpop.f32.mrb[0].mxu0
  %v3205 = vadd.f32 0.0, %v3204
  %v3206 = vpop.f32.mrb[0].mxu0
  %v3207 = vadd.f32 0.0, %v3206
  %v3208 = vpop.f32.mrb[0].mxu0
  %v3209 = vadd.f32 0.0, %v3208
  %3210 = vmatprep.mubr.bf16.mxu0 %v3015
  %3211 = vmatmul.mubr.bf16.gmra.mrb[0].mxu0 %v3014
  %v3212 = vpop.f32.mrb[0].mxu0
  %v3213 = vadd.f32 0.0, %v3212
  %v3214 = vpop.f32.mrb[0].mxu0
  %v3215 = vadd.f32 0.0, %v3214
  %v3216 = vpop.f32.mrb[0].mxu0
  %v3217 = vadd.f32 0.0, %v3216
  %v3218 = vpop.f32.mrb[0].mxu0
  %v3219 = vadd.f32 0.0, %v3218
  %3220 = vmatprep.mubr.bf16.mxu0 %v3019
  %3221 = vmatmul.mubr.bf16.gmra.mrb[0].mxu0 %v3018
  %v3222 = vpop.f32.mrb[0].mxu0
  %v3223 = vadd.f32 0.0, %v3222
  %v3224 = vpop.f32.mrb[0].mxu0
  %v3225 = vadd.f32 0.0, %v3224
  %v3226 = vpop.f32.mrb[0].mxu0
  %v3227 = vadd.f32 0.0, %v3226
  %v3228 = vpop.f32.mrb[0].mxu0
  %v3229 = vadd.f32 0.0, %v3228
  %3230 = vmatprep.mubr.bf16.mxu0 %v3023
  %3231 = vmatmul.mubr.bf16.gmra.mrb[0].mxu0 %v3022
  %v3232 = vpop.f32.mrb[0].mxu0
  %v3233 = vadd.f32 0.0, %v3232
  %v3234 = vpop.f32.mrb[0].mxu0
  %v3235 = vadd.f32 0.0, %v3234
  %v3236 = vpop.f32.mrb[0].mxu0
  %v3237 = vadd.f32 0.0, %v3236
  %v3238 = vpop.f32.mrb[0].mxu0
  %v3239 = vadd.f32 0.0, %v3238
  %3240 = vmatprep.mubr.bf16.mxu0 %v3027
  %3241 = vmatmul.mubr.bf16.gmra.mrb[0].mxu0 %v3026
  %v3242 = vpop.f32.mrb[0].mxu0
  %v3243 = vadd.f32 0.0, %v3242
  %v3244 = vpop.f32.mrb[0].mxu0
  %v3245 = vadd.f32 0.0, %v3244
  %v3246 = vpop.f32.mrb[0].mxu0
  %v3247 = vadd.f32 0.0, %v3246
  %v3248 = vpop.f32.mrb[0].mxu0
  %v3249 = vadd.f32 0.0, %v3248
  %3250 = vmatprep.mubr.bf16.mxu0 %v3031
  %3251 = vmatmul.mubr.bf16.gmra.mrb[0].mxu0 %v3030
  %v3252 = vpop.f32.mrb[0].mxu0
  %v3253 = vadd.f32 0.0, %v3252
  %v3254 = vpop.f32.mrb[0].mxu0
  %v3255 = vadd.f32 0.0, %v3254
  %v3256 = vpop.f32.mrb[0].mxu0
  %v3257 = vadd.f32 0.0, %v3256
  %v3258 = vpop.f32.mrb[0].mxu0
  %v3259 = vadd.f32 0.0, %v3258
  %3260 = vmatprep.mubr.bf16.mxu0 %v3035
  %3261 = vmatmul.mubr.bf16.gmra.mrb[0].mxu0 %v3034
  %v3262 = vpop.f32.mrb[0].mxu0
  %v3263 = vadd.f32 0.0, %v3262
  %v3264 = vpop.f32.mrb[0].mxu0
  %v3265 = vadd.f32 0.0, %v3264
  %v3266 = vpop.f32.mrb[0].mxu0
  %v3267 = vadd.f32 0.0, %v3266
  %v3268 = vpop.f32.mrb[0].mxu0
  %v3269 = vadd.f32 0.0, %v3268
  %3270 = vmatprep.mubr.bf16.mxu0 %v3039
  %3271 = vmatmul.mubr.bf16.gmra.mrb[0].mxu0 %v3038
  %v3272 = vpop.f32.mrb[0].mxu0
  %v3273 = vadd.f32 0.0, %v3272
  %v3274 = vpop.f32.mrb[0].mxu0
  %v3275 = vadd.f32 0.0, %v3274
  %v3276 = vpop.f32.mrb[0].mxu0
  %v3277 = vadd.f32 0.0, %v3276
  %v3278 = vpop.f32.mrb[0].mxu0
  %v3279 = vadd.f32 0.0, %v3278
  %3280 = vmatprep.mubr.bf16.mxu0 %v3043
  %3281 = vmatmul.mubr.bf16.gmra.mrb[0].mxu0 %v3042
  %v3282 = vpop.f32.mrb[0].mxu0
  %v3283 = vadd.f32 0.0, %v3282
  %v3284 = vpop.f32.mrb[0].mxu0
  %v3285 = vadd.f32 0.0, %v3284
  %v3286 = vpop.f32.mrb[0].mxu0
  %v3287 = vadd.f32 0.0, %v3286
  %v3288 = vpop.f32.mrb[0].mxu0
  %v3289 = vadd.f32 0.0, %v3288
  %3290 = vmatprep.mubr.bf16.mxu0 %v3047
  %3291 = vmatmul.mubr.bf16.gmra.mrb[0].mxu0 %v3046
  %v3292 = vpop.f32.mrb[0].mxu0
  %v3293 = vadd.f32 0.0, %v3292
  %v3294 = vpop.f32.mrb[0].mxu0
  %v3295 = vadd.f32 0.0, %v3294
  %v3296 = vpop.f32.mrb[0].mxu0
  %v3297 = vadd.f32 0.0, %v3296
  %v3298 = vpop.f32.mrb[0].mxu0
  %v3299 = vadd.f32 0.0, %v3298
  %3300 = vmatprep.mubr.bf16.mxu0 %v3051
  %3301 = vmatmul.mubr.bf16.gmra.mrb[0].mxu0 %v3050
  %v3302 = vpop.f32.mrb[0].mxu0
  %v3303 = vadd.f32 0.0, %v3302
  %v3304 = vpop.f32.mrb[0].mxu0
  %v3305 = vadd.f32 0.0, %v3304
  %v3306 = vpop.f32.mrb[0].mxu0
  %v3307 = vadd.f32 0.0, %v3306
  %v3308 = vpop.f32.mrb[0].mxu0
  %v3309 = vadd.f32 0.0, %v3308
  %3310 = vmatprep.mubr.bf16.mxu0 %v3055
  %3311 = vmatmul.mubr.bf16.gmra.mrb[0].mxu0 %v3054
  %v3312 = vpop.f32.mrb[0].mxu0
  %v3313 = vadd.f32 0.0, %v3312
  %v3314 = vpop.f32.mrb[0].mxu0
  %v3315 = vadd.f32 0.0, %v3314
  %v3316 = vpop.f32.mrb[0].mxu0
  %v3317 = vadd.f32 0.0, %v3316
  %v3318 = vpop.f32.mrb[0].mxu0
  %v3319 = vadd.f32 0.0, %v3318
  %3320 = vmatprep.mubr.bf16.mxu0 %v3059
  %3321 = vmatmul.mubr.bf16.gmra.mrb[0].mxu0 %v3058
  %v3322 = vpop.f32.mrb[0].mxu0
  %v3323 = vadd.f32 0.0, %v3322
  %v3324 = vpop.f32.mrb[0].mxu0
  %v3325 = vadd.f32 0.0, %v3324
  %v3326 = vpop.f32.mrb[0].mxu0
  %v3327 = vadd.f32 0.0, %v3326
  %v3328 = vpop.f32.mrb[0].mxu0
  %v3329 = vadd.f32 0.0, %v3328
  %3330 = vmatprep.mubr.bf16.mxu0 %v3063
  %3331 = vmatmul.mubr.bf16.gmra.mrb[0].mxu0 %v3062
  %v3332 = vpop.f32.mrb[0].mxu0
  %v3333 = vadd.f32 0.0, %v3332
  %v3334 = vpop.f32.mrb[0].mxu0
  %v3335 = vadd.f32 0.0, %v3334
  %v3336 = vpop.f32.mrb[0].mxu0
  %v3337 = vadd.f32 0.0, %v3336
  %v3338 = vpop.f32.mrb[0].mxu0
  %v3339 = vadd.f32 0.0, %v3338
  %3340 = vmatprep.mubr.bf16.mxu0 %v3067
  %3341 = vmatmul.mubr.bf16.gmra.mrb[0].mxu0 %v3066
  %v3342 = vpop.f32.mrb[0].mxu0
  %v3343 = vadd.f32 0.0, %v3342
  %v3344 = vpop.f32.mrb[0].mxu0
  %v3345 = vadd.f32 0.0, %v3344
  %v3346 = vpop.f32.mrb[0].mxu0
  %v3347 = vadd.f32 0.0, %v3346
  %v3348 = vpop.f32.mrb[0].mxu0
  %v3349 = vadd.f32 0.0, %v3348
  %3350 = vmatprep.mubr.bf16.mxu0 %v3071
  %3351 = vmatmul.mubr.bf16.gmra.mrb[0].mxu0 %v3070
  %v3352 = vpop.f32.mrb[0].mxu0
  %v3353 = vadd.f32 0.0, %v3352
  %v3354 = vpop.f32.mrb[0].mxu0
  %v3355 = vadd.f32 0.0, %v3354
  %v3356 = vpop.f32.mrb[0].mxu0
  %v3357 = vadd.f32 0.0, %v3356
  %v3358 = vpop.f32.mrb[0].mxu0
  %v3359 = vadd.f32 0.0, %v3358
  %3360 = vmatprep.mubr.bf16.mxu0 %v3075
  %3361 = vmatmul.mubr.bf16.gmra.mrb[0].mxu0 %v3074
  %v3362 = vpop.f32.mrb[0].mxu0
  %v3363 = vadd.f32 0.0, %v3362
  %v3364 = vpop.f32.mrb[0].mxu0
  %v3365 = vadd.f32 0.0, %v3364
  %v3366 = vpop.f32.mrb[0].mxu0
  %v3367 = vadd.f32 0.0, %v3366
  %v3368 = vpop.f32.mrb[0].mxu0
  %v3369 = vadd.f32 0.0, %v3368
  %3370 = vmatprep.mubr.bf16.mxu0 %v3079
  %3371 = vmatmul.mubr.bf16.gmra.mrb[0].mxu0 %v3078
  %v3372 = vpop.f32.mrb[0].mxu0
  %v3373 = vadd.f32 0.0, %v3372
  %v3374 = vpop.f32.mrb[0].mxu0
  %v3375 = vadd.f32 0.0, %v3374
  %v3376 = vpop.f32.mrb[0].mxu0
  %v3377 = vadd.f32 0.0, %v3376
  %v3378 = vpop.f32.mrb[0].mxu0
  %v3379 = vadd.f32 0.0, %v3378
  %3380 = vmatprep.mubr.bf16.mxu0 %v3083
  %3381 = vmatmul.mubr.bf16.gmra.mrb[0].mxu0 %v3082
  %v3382 = vpop.f32.mrb[0].mxu0
  %v3383 = vadd.f32 0.0, %v3382
  %v3384 = vpop.f32.mrb[0].mxu0
  %v3385 = vadd.f32 0.0, %v3384
  %v3386 = vpop.f32.mrb[0].mxu0
  %v3387 = vadd.f32 0.0, %v3386
  %v3388 = vpop.f32.mrb[0].mxu0
  %v3389 = vadd.f32 0.0, %v3388
  %3390 = vmatprep.mubr.bf16.mxu0 %v3087
  %3391 = vmatmul.mubr.bf16.gmra.mrb[0].mxu0 %v3086
  %v3392 = vpop.f32.mrb[0].mxu0
  %v3393 = vadd.f32 0.0, %v3392
  %v3394 = vpop.f32.mrb[0].mxu0
  %v3395 = vadd.f32 0.0, %v3394
  %v3396 = vpop.f32.mrb[0].mxu0
  %v3397 = vadd.f32 0.0, %v3396
  %v3398 = vpop.f32.mrb[0].mxu0
  %v3399 = vadd.f32 0.0, %v3398
  %3400 = vmatprep.mubr.bf16.mxu0 %v3091
  %3401 = vmatmul.mubr.bf16.gmra.mrb[0].mxu0 %v3090
  %v3402 = vpop.f32.mrb[0].mxu0
  %v3403 = vadd.f32 0.0, %v3402
  %v3404 = vpop.f32.mrb[0].mxu0
  %v3405 = vadd.f32 0.0, %v3404
  %v3406 = vpop.f32.mrb[0].mxu0
  %v3407 = vadd.f32 0.0, %v3406
  %v3408 = vpop.f32.mrb[0].mxu0
  %v3409 = vadd.f32 0.0, %v3408
  %3410 = vmatprep.mubr.bf16.mxu0 %v3095
  %3411 = vmatmul.mubr.bf16.gmra.mrb[0].mxu0 %v3094
  %v3412 = vpop.f32.mrb[0].mxu0
  %v3413 = vadd.f32 0.0, %v3412
  %v3414 = vpop.f32.mrb[0].mxu0
  %v3415 = vadd.f32 0.0, %v3414
  %v3416 = vpop.f32.mrb[0].mxu0
  %v3417 = vadd.f32 0.0, %v3416
  %v3418 = vpop.f32.mrb[0].mxu0
  %v3419 = vadd.f32 0.0, %v3418
  %3420 = vmatprep.mubr.bf16.mxu0 %v3099
  %3421 = vmatmul.mubr.bf16.gmra.mrb[0].mxu0 %v3098
  %v3422 = vpop.f32.mrb[0].mxu0
  %v3423 = vadd.f32 0.0, %v3422
  %v3424 = vpop.f32.mrb[0].mxu0
  %v3425 = vadd.f32 0.0, %v3424
  %v3426 = vpop.f32.mrb[0].mxu0
  %v3427 = vadd.f32 0.0, %v3426
  %v3428 = vpop.f32.mrb[0].mxu0
  %v3429 = vadd.f32 0.0, %v3428
  %3430 = vmatprep.mubr.bf16.mxu0 %v3103
  %3431 = vmatmul.mubr.bf16.gmra.mrb[0].mxu0 %v3102
  %v3432 = vpop.f32.mrb[0].mxu0
  %v3433 = vadd.f32 0.0, %v3432
  %v3434 = vpop.f32.mrb[0].mxu0
  %v3435 = vadd.f32 0.0, %v3434
  %v3436 = vpop.f32.mrb[0].mxu0
  %v3437 = vadd.f32 0.0, %v3436
  %v3438 = vpop.f32.mrb[0].mxu0
  %v3439 = vadd.f32 0.0, %v3438
  %3440 = vmatprep.mubr.bf16.mxu0 %v3107
  %3441 = vmatmul.mubr.bf16.gmra.mrb[0].mxu0 %v3106
  %v3442 = vpop.f32.mrb[0].mxu0
  %v3443 = vadd.f32 0.0, %v3442
  %v3444 = vpop.f32.mrb[0].mxu0
  %v3445 = vadd.f32 0.0, %v3444
  %v3446 = vpop.f32.mrb[0].mxu0
  %v3447 = vadd.f32 0.0, %v3446
  %v3448 = vpop.f32.mrb[0].mxu0
  %v3449 = vadd.f32 0.0, %v3448
  %3450 = vmatprep.mubr.bf16.mxu0 %v3111
  %3451 = vmatmul.mubr.bf16.gmra.mrb[0].mxu0 %v3110
  %v3452 = vpop.f32.mrb[0].mxu0
  %v3453 = vadd.f32 0.0, %v3452
  %v3454 = vpop.f32.mrb[0].mxu0
  %v3455 = vadd.f32 0.0, %v3454
  %v3456 = vpop.f32.mrb[0].mxu0
  %v3457 = vadd.f32 0.0, %v3456
  %v3458 = vpop.f32.mrb[0].mxu0
  %v3459 = vadd.f32 0.0, %v3458
  %3460 = vmatprep.mubr.bf16.mxu0 %v3115
  %3461 = vmatmul.mubr.bf16.gmra.mrb[0].mxu0 %v3114
  %v3462 = vpop.f32.mrb[0].mxu0
  %v3463 = vadd.f32 0.0, %v3462
  %v3464 = vpop.f32.mrb[0].mxu0
  %v3465 = vadd.f32 0.0, %v3464
  %v3466 = vpop.f32.mrb[0].mxu0
  %v3467 = vadd.f32 0.0, %v3466
  %v3468 = vpop.f32.mrb[0].mxu0
  %v3469 = vadd.f32 0.0, %v3468
  %3470 = vdwg.mxu0
  %3471 = vmatprep.subr.bf16.mxu0 %v685
  %3472 = vmatpush1.bf16.xpose.msra.mxu0 %v684
  %3473 = vmatprep.subr.bf16.mxu0 %v689
  %3474 = vmatpush1.bf16.xpose.msra.mxu0 %v688
  %3475 = vmatprep.subr.bf16.mxu0 %v693
  %3476 = vmatpush1.bf16.xpose.msra.mxu0 %v692
  %3477 = vmatprep.subr.bf16.mxu0 %v697
  %3478 = vmatpush1.bf16.xpose.msra.mxu0 %v696
  %3479 = vmatprep.subr.bf16.mxu0 %v701
  %3480 = vmatpush1.bf16.xpose.msra.mxu0 %v700
  %3481 = vmatprep.subr.bf16.mxu0 %v705
  %3482 = vmatpush1.bf16.xpose.msra.mxu0 %v704
  %3483 = vmatprep.subr.bf16.mxu0 %v709
  %3484 = vmatpush1.bf16.xpose.msra.mxu0 %v708
  %3485 = vmatprep.subr.bf16.mxu0 %v713
  %3486 = vmatpush1.bf16.xpose.msra.mxu0 %v712
  %3487 = vmatprep.subr.bf16.mxu0 %v717
  %3488 = vmatpush1.bf16.xpose.msra.mxu0 %v716
  %3489 = vmatprep.subr.bf16.mxu0 %v721
  %3490 = vmatpush1.bf16.xpose.msra.mxu0 %v720
  %3491 = vmatprep.subr.bf16.mxu0 %v725
  %3492 = vmatpush1.bf16.xpose.msra.mxu0 %v724
  %3493 = vmatprep.subr.bf16.mxu0 %v729
  %3494 = vmatpush1.bf16.xpose.msra.mxu0 %v728
  %3495 = vmatprep.subr.bf16.mxu0 %v733
  %3496 = vmatpush1.bf16.xpose.msra.mxu0 %v732
  %3497 = vmatprep.subr.bf16.mxu0 %v737
  %3498 = vmatpush1.bf16.xpose.msra.mxu0 %v736
  %3499 = vmatprep.subr.bf16.mxu0 %v741
  %3500 = vmatpush1.bf16.xpose.msra.mxu0 %v740
  %3501 = vmatprep.subr.bf16.mxu0 %v745
  %3502 = vmatpush1.bf16.xpose.msra.mxu0 %v744
  %3503 = vmatprep.mubr.bf16.mxu0 %v2993
  %3504 = vmatmul.mubr.bf16.gmra.mrb[0].mxu0 %v2992
  %v3505 = vpop.f32.mrb[0].mxu0
  %v3506 = vadd.f32 %v3153, %v3505
  %v3507 = vpop.f32.mrb[0].mxu0
  %v3508 = vadd.f32 %v3155, %v3507
  %v3509 = vpop.f32.mrb[0].mxu0
  %v3510 = vadd.f32 %v3157, %v3509
  %v3511 = vpop.f32.mrb[0].mxu0
  %v3512 = vadd.f32 %v3159, %v3511
  %3513 = vmatprep.mubr.bf16.mxu0 %v2997
  %3514 = vmatmul.mubr.bf16.gmra.mrb[0].mxu0 %v2996
  %v3515 = vpop.f32.mrb[0].mxu0
  %v3516 = vadd.f32 %v3163, %v3515
  %v3517 = vpop.f32.mrb[0].mxu0
  %v3518 = vadd.f32 %v3165, %v3517
  %v3519 = vpop.f32.mrb[0].mxu0
  %v3520 = vadd.f32 %v3167, %v3519
  %v3521 = vpop.f32.mrb[0].mxu0
  %v3522 = vadd.f32 %v3169, %v3521
  %3523 = vmatprep.mubr.bf16.mxu0 %v3001
  %3524 = vmatmul.mubr.bf16.gmra.mrb[0].mxu0 %v3000
  %v3525 = vpop.f32.mrb[0].mxu0
  %v3526 = vadd.f32 %v3173, %v3525
  %v3527 = vpop.f32.mrb[0].mxu0
  %v3528 = vadd.f32 %v3175, %v3527
  %v3529 = vpop.f32.mrb[0].mxu0
  %v3530 = vadd.f32 %v3177, %v3529
  %v3531 = vpop.f32.mrb[0].mxu0
  %v3532 = vadd.f32 %v3179, %v3531
  %3533 = vmatprep.mubr.bf16.mxu0 %v3005
  %3534 = vmatmul.mubr.bf16.gmra.mrb[0].mxu0 %v3004
  %v3535 = vpop.f32.mrb[0].mxu0
  %v3536 = vadd.f32 %v3183, %v3535
  %v3537 = vpop.f32.mrb[0].mxu0
  %v3538 = vadd.f32 %v3185, %v3537
  %v3539 = vpop.f32.mrb[0].mxu0
  %v3540 = vadd.f32 %v3187, %v3539
  %v3541 = vpop.f32.mrb[0].mxu0
  %v3542 = vadd.f32 %v3189, %v3541
  %3543 = vmatprep.mubr.bf16.mxu0 %v3009
  %3544 = vmatmul.mubr.bf16.gmra.mrb[0].mxu0 %v3008
  %v3545 = vpop.f32.mrb[0].mxu0
  %v3546 = vadd.f32 %v3193, %v3545
  %v3547 = vpop.f32.mrb[0].mxu0
  %v3548 = vadd.f32 %v3195, %v3547
  %v3549 = vpop.f32.mrb[0].mxu0
  %v3550 = vadd.f32 %v3197, %v3549
  %v3551 = vpop.f32.mrb[0].mxu0
  %v3552 = vadd.f32 %v3199, %v3551
  %3553 = vmatprep.mubr.bf16.mxu0 %v3013
  %3554 = vmatmul.mubr.bf16.gmra.mrb[0].mxu0 %v3012
  %v3555 = vpop.f32.mrb[0].mxu0
  %v3556 = vadd.f32 %v3203, %v3555
  %v3557 = vpop.f32.mrb[0].mxu0
  %v3558 = vadd.f32 %v3205, %v3557
  %v3559 = vpop.f32.mrb[0].mxu0
  %v3560 = vadd.f32 %v3207, %v3559
  %v3561 = vpop.f32.mrb[0].mxu0
  %v3562 = vadd.f32 %v3209, %v3561
  %3563 = vmatprep.mubr.bf16.mxu0 %v3017
  %3564 = vmatmul.mubr.bf16.gmra.mrb[0].mxu0 %v3016
  %v3565 = vpop.f32.mrb[0].mxu0
  %v3566 = vadd.f32 %v3213, %v3565
  %v3567 = vpop.f32.mrb[0].mxu0
  %v3568 = vadd.f32 %v3215, %v3567
  %v3569 = vpop.f32.mrb[0].mxu0
  %v3570 = vadd.f32 %v3217, %v3569
  %v3571 = vpop.f32.mrb[0].mxu0
  %v3572 = vadd.f32 %v3219, %v3571
  %3573 = vmatprep.mubr.bf16.mxu0 %v3021
  %3574 = vmatmul.mubr.bf16.gmra.mrb[0].mxu0 %v3020
  %v3575 = vpop.f32.mrb[0].mxu0
  %v3576 = vadd.f32 %v3223, %v3575
  %v3577 = vpop.f32.mrb[0].mxu0
  %v3578 = vadd.f32 %v3225, %v3577
  %v3579 = vpop.f32.mrb[0].mxu0
  %v3580 = vadd.f32 %v3227, %v3579
  %v3581 = vpop.f32.mrb[0].mxu0
  %v3582 = vadd.f32 %v3229, %v3581
  %3583 = vmatprep.mubr.bf16.mxu0 %v3025
  %3584 = vmatmul.mubr.bf16.gmra.mrb[0].mxu0 %v3024
  %v3585 = vpop.f32.mrb[0].mxu0
  %v3586 = vadd.f32 %v3233, %v3585
  %v3587 = vpop.f32.mrb[0].mxu0
  %v3588 = vadd.f32 %v3235, %v3587
  %v3589 = vpop.f32.mrb[0].mxu0
  %v3590 = vadd.f32 %v3237, %v3589
  %v3591 = vpop.f32.mrb[0].mxu0
  %v3592 = vadd.f32 %v3239, %v3591
  %3593 = vmatprep.mubr.bf16.mxu0 %v3029
  %3594 = vmatmul.mubr.bf16.gmra.mrb[0].mxu0 %v3028
  %v3595 = vpop.f32.mrb[0].mxu0
  %v3596 = vadd.f32 %v3243, %v3595
  %v3597 = vpop.f32.mrb[0].mxu0
  %v3598 = vadd.f32 %v3245, %v3597
  %v3599 = vpop.f32.mrb[0].mxu0
  %v3600 = vadd.f32 %v3247, %v3599
  %v3601 = vpop.f32.mrb[0].mxu0
  %v3602 = vadd.f32 %v3249, %v3601
  %3603 = vmatprep.mubr.bf16.mxu0 %v3033
  %3604 = vmatmul.mubr.bf16.gmra.mrb[0].mxu0 %v3032
  %v3605 = vpop.f32.mrb[0].mxu0
  %v3606 = vadd.f32 %v3253, %v3605
  %v3607 = vpop.f32.mrb[0].mxu0
  %v3608 = vadd.f32 %v3255, %v3607
  %v3609 = vpop.f32.mrb[0].mxu0
  %v3610 = vadd.f32 %v3257, %v3609
  %v3611 = vpop.f32.mrb[0].mxu0
  %v3612 = vadd.f32 %v3259, %v3611
  %3613 = vmatprep.mubr.bf16.mxu0 %v3037
  %3614 = vmatmul.mubr.bf16.gmra.mrb[0].mxu0 %v3036
  %v3615 = vpop.f32.mrb[0].mxu0
  %v3616 = vadd.f32 %v3263, %v3615
  %v3617 = vpop.f32.mrb[0].mxu0
  %v3618 = vadd.f32 %v3265, %v3617
  %v3619 = vpop.f32.mrb[0].mxu0
  %v3620 = vadd.f32 %v3267, %v3619
  %v3621 = vpop.f32.mrb[0].mxu0
  %v3622 = vadd.f32 %v3269, %v3621
  %3623 = vmatprep.mubr.bf16.mxu0 %v3041
  %3624 = vmatmul.mubr.bf16.gmra.mrb[0].mxu0 %v3040
  %v3625 = vpop.f32.mrb[0].mxu0
  %v3626 = vadd.f32 %v3273, %v3625
  %v3627 = vpop.f32.mrb[0].mxu0
  %v3628 = vadd.f32 %v3275, %v3627
  %v3629 = vpop.f32.mrb[0].mxu0
  %v3630 = vadd.f32 %v3277, %v3629
  %v3631 = vpop.f32.mrb[0].mxu0
  %v3632 = vadd.f32 %v3279, %v3631
  %3633 = vmatprep.mubr.bf16.mxu0 %v3045
  %3634 = vmatmul.mubr.bf16.gmra.mrb[0].mxu0 %v3044
  %v3635 = vpop.f32.mrb[0].mxu0
  %v3636 = vadd.f32 %v3283, %v3635
  %v3637 = vpop.f32.mrb[0].mxu0
  %v3638 = vadd.f32 %v3285, %v3637
  %v3639 = vpop.f32.mrb[0].mxu0
  %v3640 = vadd.f32 %v3287, %v3639
  %v3641 = vpop.f32.mrb[0].mxu0
  %v3642 = vadd.f32 %v3289, %v3641
  %3643 = vmatprep.mubr.bf16.mxu0 %v3049
  %3644 = vmatmul.mubr.bf16.gmra.mrb[0].mxu0 %v3048
  %v3645 = vpop.f32.mrb[0].mxu0
  %v3646 = vadd.f32 %v3293, %v3645
  %v3647 = vpop.f32.mrb[0].mxu0
  %v3648 = vadd.f32 %v3295, %v3647
  %v3649 = vpop.f32.mrb[0].mxu0
  %v3650 = vadd.f32 %v3297, %v3649
  %v3651 = vpop.f32.mrb[0].mxu0
  %v3652 = vadd.f32 %v3299, %v3651
  %3653 = vmatprep.mubr.bf16.mxu0 %v3053
  %3654 = vmatmul.mubr.bf16.gmra.mrb[0].mxu0 %v3052
  %v3655 = vpop.f32.mrb[0].mxu0
  %v3656 = vadd.f32 %v3303, %v3655
  %v3657 = vpop.f32.mrb[0].mxu0
  %v3658 = vadd.f32 %v3305, %v3657
  %v3659 = vpop.f32.mrb[0].mxu0
  %v3660 = vadd.f32 %v3307, %v3659
  %v3661 = vpop.f32.mrb[0].mxu0
  %v3662 = vadd.f32 %v3309, %v3661
  %3663 = vmatprep.mubr.bf16.mxu0 %v3057
  %3664 = vmatmul.mubr.bf16.gmra.mrb[0].mxu0 %v3056
  %v3665 = vpop.f32.mrb[0].mxu0
  %v3666 = vadd.f32 %v3313, %v3665
  %v3667 = vpop.f32.mrb[0].mxu0
  %v3668 = vadd.f32 %v3315, %v3667
  %v3669 = vpop.f32.mrb[0].mxu0
  %v3670 = vadd.f32 %v3317, %v3669
  %v3671 = vpop.f32.mrb[0].mxu0
  %v3672 = vadd.f32 %v3319, %v3671
  %3673 = vmatprep.mubr.bf16.mxu0 %v3061
  %3674 = vmatmul.mubr.bf16.gmra.mrb[0].mxu0 %v3060
  %v3675 = vpop.f32.mrb[0].mxu0
  %v3676 = vadd.f32 %v3323, %v3675
  %v3677 = vpop.f32.mrb[0].mxu0
  %v3678 = vadd.f32 %v3325, %v3677
  %v3679 = vpop.f32.mrb[0].mxu0
  %v3680 = vadd.f32 %v3327, %v3679
  %v3681 = vpop.f32.mrb[0].mxu0
  %v3682 = vadd.f32 %v3329, %v3681
  %3683 = vmatprep.mubr.bf16.mxu0 %v3065
  %3684 = vmatmul.mubr.bf16.gmra.mrb[0].mxu0 %v3064
  %v3685 = vpop.f32.mrb[0].mxu0
  %v3686 = vadd.f32 %v3333, %v3685
  %v3687 = vpop.f32.mrb[0].mxu0
  %v3688 = vadd.f32 %v3335, %v3687
  %v3689 = vpop.f32.mrb[0].mxu0
  %v3690 = vadd.f32 %v3337, %v3689
  %v3691 = vpop.f32.mrb[0].mxu0
  %v3692 = vadd.f32 %v3339, %v3691
  %3693 = vmatprep.mubr.bf16.mxu0 %v3069
  %3694 = vmatmul.mubr.bf16.gmra.mrb[0].mxu0 %v3068
  %v3695 = vpop.f32.mrb[0].mxu0
  %v3696 = vadd.f32 %v3343, %v3695
  %v3697 = vpop.f32.mrb[0].mxu0
  %v3698 = vadd.f32 %v3345, %v3697
  %v3699 = vpop.f32.mrb[0].mxu0
  %v3700 = vadd.f32 %v3347, %v3699
  %v3701 = vpop.f32.mrb[0].mxu0
  %v3702 = vadd.f32 %v3349, %v3701
  %3703 = vmatprep.mubr.bf16.mxu0 %v3073
  %3704 = vmatmul.mubr.bf16.gmra.mrb[0].mxu0 %v3072
  %v3705 = vpop.f32.mrb[0].mxu0
  %v3706 = vadd.f32 %v3353, %v3705
  %v3707 = vpop.f32.mrb[0].mxu0
  %v3708 = vadd.f32 %v3355, %v3707
  %v3709 = vpop.f32.mrb[0].mxu0
  %v3710 = vadd.f32 %v3357, %v3709
  %v3711 = vpop.f32.mrb[0].mxu0
  %v3712 = vadd.f32 %v3359, %v3711
  %3713 = vmatprep.mubr.bf16.mxu0 %v3077
  %3714 = vmatmul.mubr.bf16.gmra.mrb[0].mxu0 %v3076
  %v3715 = vpop.f32.mrb[0].mxu0
  %v3716 = vadd.f32 %v3363, %v3715
  %v3717 = vpop.f32.mrb[0].mxu0
  %v3718 = vadd.f32 %v3365, %v3717
  %v3719 = vpop.f32.mrb[0].mxu0
  %v3720 = vadd.f32 %v3367, %v3719
  %v3721 = vpop.f32.mrb[0].mxu0
  %v3722 = vadd.f32 %v3369, %v3721
  %3723 = vmatprep.mubr.bf16.mxu0 %v3081
  %3724 = vmatmul.mubr.bf16.gmra.mrb[0].mxu0 %v3080
  %v3725 = vpop.f32.mrb[0].mxu0
  %v3726 = vadd.f32 %v3373, %v3725
  %v3727 = vpop.f32.mrb[0].mxu0
  %v3728 = vadd.f32 %v3375, %v3727
  %v3729 = vpop.f32.mrb[0].mxu0
  %v3730 = vadd.f32 %v3377, %v3729
  %v3731 = vpop.f32.mrb[0].mxu0
  %v3732 = vadd.f32 %v3379, %v3731
  %3733 = vmatprep.mubr.bf16.mxu0 %v3085
  %3734 = vmatmul.mubr.bf16.gmra.mrb[0].mxu0 %v3084
  %v3735 = vpop.f32.mrb[0].mxu0
  %v3736 = vadd.f32 %v3383, %v3735
  %v3737 = vpop.f32.mrb[0].mxu0
  %v3738 = vadd.f32 %v3385, %v3737
  %v3739 = vpop.f32.mrb[0].mxu0
  %v3740 = vadd.f32 %v3387, %v3739
  %v3741 = vpop.f32.mrb[0].mxu0
  %v3742 = vadd.f32 %v3389, %v3741
  %3743 = vmatprep.mubr.bf16.mxu0 %v3089
  %3744 = vmatmul.mubr.bf16.gmra.mrb[0].mxu0 %v3088
  %v3745 = vpop.f32.mrb[0].mxu0
  %v3746 = vadd.f32 %v3393, %v3745
  %v3747 = vpop.f32.mrb[0].mxu0
  %v3748 = vadd.f32 %v3395, %v3747
  %v3749 = vpop.f32.mrb[0].mxu0
  %v3750 = vadd.f32 %v3397, %v3749
  %v3751 = vpop.f32.mrb[0].mxu0
  %v3752 = vadd.f32 %v3399, %v3751
  %3753 = vmatprep.mubr.bf16.mxu0 %v3093
  %3754 = vmatmul.mubr.bf16.gmra.mrb[0].mxu0 %v3092
  %v3755 = vpop.f32.mrb[0].mxu0
  %v3756 = vadd.f32 %v3403, %v3755
  %v3757 = vpop.f32.mrb[0].mxu0
  %v3758 = vadd.f32 %v3405, %v3757
  %v3759 = vpop.f32.mrb[0].mxu0
  %v3760 = vadd.f32 %v3407, %v3759
  %v3761 = vpop.f32.mrb[0].mxu0
  %v3762 = vadd.f32 %v3409, %v3761
  %3763 = vmatprep.mubr.bf16.mxu0 %v3097
  %3764 = vmatmul.mubr.bf16.gmra.mrb[0].mxu0 %v3096
  %v3765 = vpop.f32.mrb[0].mxu0
  %v3766 = vadd.f32 %v3413, %v3765
  %v3767 = vpop.f32.mrb[0].mxu0
  %v3768 = vadd.f32 %v3415, %v3767
  %v3769 = vpop.f32.mrb[0].mxu0
  %v3770 = vadd.f32 %v3417, %v3769
  %v3771 = vpop.f32.mrb[0].mxu0
  %v3772 = vadd.f32 %v3419, %v3771
  %3773 = vmatprep.mubr.bf16.mxu0 %v3101
  %3774 = vmatmul.mubr.bf16.gmra.mrb[0].mxu0 %v3100
  %v3775 = vpop.f32.mrb[0].mxu0
  %v3776 = vadd.f32 %v3423, %v3775
  %v3777 = vpop.f32.mrb[0].mxu0
  %v3778 = vadd.f32 %v3425, %v3777
  %v3779 = vpop.f32.mrb[0].mxu0
  %v3780 = vadd.f32 %v3427, %v3779
  %v3781 = vpop.f32.mrb[0].mxu0
  %v3782 = vadd.f32 %v3429, %v3781
  %3783 = vmatprep.mubr.bf16.mxu0 %v3105
  %3784 = vmatmul.mubr.bf16.gmra.mrb[0].mxu0 %v3104
  %v3785 = vpop.f32.mrb[0].mxu0
  %v3786 = vadd.f32 %v3433, %v3785
  %v3787 = vpop.f32.mrb[0].mxu0
  %v3788 = vadd.f32 %v3435, %v3787
  %v3789 = vpop.f32.mrb[0].mxu0
  %v3790 = vadd.f32 %v3437, %v3789
  %v3791 = vpop.f32.mrb[0].mxu0
  %v3792 = vadd.f32 %v3439, %v3791
  %3793 = vmatprep.mubr.bf16.mxu0 %v3109
  %3794 = vmatmul.mubr.bf16.gmra.mrb[0].mxu0 %v3108
  %v3795 = vpop.f32.mrb[0].mxu0
  %v3796 = vadd.f32 %v3443, %v3795
  %v3797 = vpop.f32.mrb[0].mxu0
  %v3798 = vadd.f32 %v3445, %v3797
  %v3799 = vpop.f32.mrb[0].mxu0
  %v3800 = vadd.f32 %v3447, %v3799
  %v3801 = vpop.f32.mrb[0].mxu0
  %v3802 = vadd.f32 %v3449, %v3801
  %3803 = vmatprep.mubr.bf16.mxu0 %v3113
  %3804 = vmatmul.mubr.bf16.gmra.mrb[0].mxu0 %v3112
  %v3805 = vpop.f32.mrb[0].mxu0
  %v3806 = vadd.f32 %v3453, %v3805
  %v3807 = vpop.f32.mrb[0].mxu0
  %v3808 = vadd.f32 %v3455, %v3807
  %v3809 = vpop.f32.mrb[0].mxu0
  %v3810 = vadd.f32 %v3457, %v3809
  %v3811 = vpop.f32.mrb[0].mxu0
  %v3812 = vadd.f32 %v3459, %v3811
  %3813 = vmatprep.mubr.bf16.mxu0 %v3117
  %3814 = vmatmul.mubr.bf16.gmra.mrb[0].mxu0 %v3116
  %v3815 = vpop.f32.mrb[0].mxu0
  %v3816 = vadd.f32 %v3463, %v3815
  %v3817 = vpop.f32.mrb[0].mxu0
  %v3818 = vadd.f32 %v3465, %v3817
  %v3819 = vpop.f32.mrb[0].mxu0
  %v3820 = vadd.f32 %v3467, %v3819
  %v3821 = vpop.f32.mrb[0].mxu0
  %v3822 = vadd.f32 %v3469, %v3821
  %3823 = vdwg.mxu0
  %3824 = vmatprep.subr.bf16.mxu0 %v747
  %3825 = vmatpush1.bf16.xpose.msra.mxu0 %v746
  %3826 = vmatprep.subr.bf16.mxu0 %v751
  %3827 = vmatpush1.bf16.xpose.msra.mxu0 %v750
  %3828 = vmatprep.subr.bf16.mxu0 %v755
  %3829 = vmatpush1.bf16.xpose.msra.mxu0 %v754
  %3830 = vmatprep.subr.bf16.mxu0 %v759
  %3831 = vmatpush1.bf16.xpose.msra.mxu0 %v758
  %3832 = vmatprep.subr.bf16.mxu0 %v763
  %3833 = vmatpush1.bf16.xpose.msra.mxu0 %v762
  %3834 = vmatprep.subr.bf16.mxu0 %v767
  %3835 = vmatpush1.bf16.xpose.msra.mxu0 %v766
  %3836 = vmatprep.subr.bf16.mxu0 %v771
  %3837 = vmatpush1.bf16.xpose.msra.mxu0 %v770
  %3838 = vmatprep.subr.bf16.mxu0 %v775
  %3839 = vmatpush1.bf16.xpose.msra.mxu0 %v774
  %3840 = vmatprep.subr.bf16.mxu0 %v779
  %3841 = vmatpush1.bf16.xpose.msra.mxu0 %v778
  %3842 = vmatprep.subr.bf16.mxu0 %v783
  %3843 = vmatpush1.bf16.xpose.msra.mxu0 %v782
  %3844 = vmatprep.subr.bf16.mxu0 %v787
  %3845 = vmatpush1.bf16.xpose.msra.mxu0 %v786
  %3846 = vmatprep.subr.bf16.mxu0 %v791
  %3847 = vmatpush1.bf16.xpose.msra.mxu0 %v790
  %3848 = vmatprep.subr.bf16.mxu0 %v795
  %3849 = vmatpush1.bf16.xpose.msra.mxu0 %v794
  %3850 = vmatprep.subr.bf16.mxu0 %v799
  %3851 = vmatpush1.bf16.xpose.msra.mxu0 %v798
  %3852 = vmatprep.subr.bf16.mxu0 %v803
  %3853 = vmatpush1.bf16.xpose.msra.mxu0 %v802
  %3854 = vmatprep.subr.bf16.mxu0 %v807
  %3855 = vmatpush1.bf16.xpose.msra.mxu0 %v806
  %3856 = vmatprep.mubr.bf16.mxu0 %v2991
  %3857 = vmatmul.mubr.bf16.gmra.mrb[0].mxu0 %v2990
  %v3858 = vpop.f32.mrb[0].mxu0
  %v3859 = vadd.f32 0.0, %v3858
  %v3860 = vpop.f32.mrb[0].mxu0
  %v3861 = vadd.f32 0.0, %v3860
  %v3862 = vpop.f32.mrb[0].mxu0
  %v3863 = vadd.f32 0.0, %v3862
  %v3864 = vpop.f32.mrb[0].mxu0
  %v3865 = vadd.f32 0.0, %v3864
  %3866 = vmatprep.mubr.bf16.mxu0 %v2995
  %3867 = vmatmul.mubr.bf16.gmra.mrb[0].mxu0 %v2994
  %v3868 = vpop.f32.mrb[0].mxu0
  %v3869 = vadd.f32 0.0, %v3868
  %v3870 = vpop.f32.mrb[0].mxu0
  %v3871 = vadd.f32 0.0, %v3870
  %v3872 = vpop.f32.mrb[0].mxu0
  %v3873 = vadd.f32 0.0, %v3872
  %v3874 = vpop.f32.mrb[0].mxu0
  %v3875 = vadd.f32 0.0, %v3874
  %3876 = vmatprep.mubr.bf16.mxu0 %v2999
  %3877 = vmatmul.mubr.bf16.gmra.mrb[0].mxu0 %v2998
  %v3878 = vpop.f32.mrb[0].mxu0
  %v3879 = vadd.f32 0.0, %v3878
  %v3880 = vpop.f32.mrb[0].mxu0
  %v3881 = vadd.f32 0.0, %v3880
  %v3882 = vpop.f32.mrb[0].mxu0
  %v3883 = vadd.f32 0.0, %v3882
  %v3884 = vpop.f32.mrb[0].mxu0
  %v3885 = vadd.f32 0.0, %v3884
  %3886 = vmatprep.mubr.bf16.mxu0 %v3003
  %3887 = vmatmul.mubr.bf16.gmra.mrb[0].mxu0 %v3002
  %v3888 = vpop.f32.mrb[0].mxu0
  %v3889 = vadd.f32 0.0, %v3888
  %v3890 = vpop.f32.mrb[0].mxu0
  %v3891 = vadd.f32 0.0, %v3890
  %v3892 = vpop.f32.mrb[0].mxu0
  %v3893 = vadd.f32 0.0, %v3892
  %v3894 = vpop.f32.mrb[0].mxu0
  %v3895 = vadd.f32 0.0, %v3894
  %3896 = vmatprep.mubr.bf16.mxu0 %v3007
  %3897 = vmatmul.mubr.bf16.gmra.mrb[0].mxu0 %v3006
  %v3898 = vpop.f32.mrb[0].mxu0
  %v3899 = vadd.f32 0.0, %v3898
  %v3900 = vpop.f32.mrb[0].mxu0
  %v3901 = vadd.f32 0.0, %v3900
  %v3902 = vpop.f32.mrb[0].mxu0
  %v3903 = vadd.f32 0.0, %v3902
  %v3904 = vpop.f32.mrb[0].mxu0
  %v3905 = vadd.f32 0.0, %v3904
  %3906 = vmatprep.mubr.bf16.mxu0 %v3011
  %3907 = vmatmul.mubr.bf16.gmra.mrb[0].mxu0 %v3010
  %v3908 = vpop.f32.mrb[0].mxu0
  %v3909 = vadd.f32 0.0, %v3908
  %v3910 = vpop.f32.mrb[0].mxu0
  %v3911 = vadd.f32 0.0, %v3910
  %v3912 = vpop.f32.mrb[0].mxu0
  %v3913 = vadd.f32 0.0, %v3912
  %v3914 = vpop.f32.mrb[0].mxu0
  %v3915 = vadd.f32 0.0, %v3914
  %3916 = vmatprep.mubr.bf16.mxu0 %v3015
  %3917 = vmatmul.mubr.bf16.gmra.mrb[0].mxu0 %v3014
  %v3918 = vpop.f32.mrb[0].mxu0
  %v3919 = vadd.f32 0.0, %v3918
  %v3920 = vpop.f32.mrb[0].mxu0
  %v3921 = vadd.f32 0.0, %v3920
  %v3922 = vpop.f32.mrb[0].mxu0
  %v3923 = vadd.f32 0.0, %v3922
  %v3924 = vpop.f32.mrb[0].mxu0
  %v3925 = vadd.f32 0.0, %v3924
  %3926 = vmatprep.mubr.bf16.mxu0 %v3019
  %3927 = vmatmul.mubr.bf16.gmra.mrb[0].mxu0 %v3018
  %v3928 = vpop.f32.mrb[0].mxu0
  %v3929 = vadd.f32 0.0, %v3928
  %v3930 = vpop.f32.mrb[0].mxu0
  %v3931 = vadd.f32 0.0, %v3930
  %v3932 = vpop.f32.mrb[0].mxu0
  %v3933 = vadd.f32 0.0, %v3932
  %v3934 = vpop.f32.mrb[0].mxu0
  %v3935 = vadd.f32 0.0, %v3934
  %3936 = vmatprep.mubr.bf16.mxu0 %v3023
  %3937 = vmatmul.mubr.bf16.gmra.mrb[0].mxu0 %v3022
  %v3938 = vpop.f32.mrb[0].mxu0
  %v3939 = vadd.f32 0.0, %v3938
  %v3940 = vpop.f32.mrb[0].mxu0
  %v3941 = vadd.f32 0.0, %v3940
  %v3942 = vpop.f32.mrb[0].mxu0
  %v3943 = vadd.f32 0.0, %v3942
  %v3944 = vpop.f32.mrb[0].mxu0
  %v3945 = vadd.f32 0.0, %v3944
  %3946 = vmatprep.mubr.bf16.mxu0 %v3027
  %3947 = vmatmul.mubr.bf16.gmra.mrb[0].mxu0 %v3026
  %v3948 = vpop.f32.mrb[0].mxu0
  %v3949 = vadd.f32 0.0, %v3948
  %v3950 = vpop.f32.mrb[0].mxu0
  %v3951 = vadd.f32 0.0, %v3950
  %v3952 = vpop.f32.mrb[0].mxu0
  %v3953 = vadd.f32 0.0, %v3952
  %v3954 = vpop.f32.mrb[0].mxu0
  %v3955 = vadd.f32 0.0, %v3954
  %3956 = vmatprep.mubr.bf16.mxu0 %v3031
  %3957 = vmatmul.mubr.bf16.gmra.mrb[0].mxu0 %v3030
  %v3958 = vpop.f32.mrb[0].mxu0
  %v3959 = vadd.f32 0.0, %v3958
  %v3960 = vpop.f32.mrb[0].mxu0
  %v3961 = vadd.f32 0.0, %v3960
  %v3962 = vpop.f32.mrb[0].mxu0
  %v3963 = vadd.f32 0.0, %v3962
  %v3964 = vpop.f32.mrb[0].mxu0
  %v3965 = vadd.f32 0.0, %v3964
  %3966 = vmatprep.mubr.bf16.mxu0 %v3035
  %3967 = vmatmul.mubr.bf16.gmra.mrb[0].mxu0 %v3034
  %v3968 = vpop.f32.mrb[0].mxu0
  %v3969 = vadd.f32 0.0, %v3968
  %v3970 = vpop.f32.mrb[0].mxu0
  %v3971 = vadd.f32 0.0, %v3970
  %v3972 = vpop.f32.mrb[0].mxu0
  %v3973 = vadd.f32 0.0, %v3972
  %v3974 = vpop.f32.mrb[0].mxu0
  %v3975 = vadd.f32 0.0, %v3974
  %3976 = vmatprep.mubr.bf16.mxu0 %v3039
  %3977 = vmatmul.mubr.bf16.gmra.mrb[0].mxu0 %v3038
  %v3978 = vpop.f32.mrb[0].mxu0
  %v3979 = vadd.f32 0.0, %v3978
  %v3980 = vpop.f32.mrb[0].mxu0
  %v3981 = vadd.f32 0.0, %v3980
  %v3982 = vpop.f32.mrb[0].mxu0
  %v3983 = vadd.f32 0.0, %v3982
  %v3984 = vpop.f32.mrb[0].mxu0
  %v3985 = vadd.f32 0.0, %v3984
  %3986 = vmatprep.mubr.bf16.mxu0 %v3043
  %3987 = vmatmul.mubr.bf16.gmra.mrb[0].mxu0 %v3042
  %v3988 = vpop.f32.mrb[0].mxu0
  %v3989 = vadd.f32 0.0, %v3988
  %v3990 = vpop.f32.mrb[0].mxu0
  %v3991 = vadd.f32 0.0, %v3990
  %v3992 = vpop.f32.mrb[0].mxu0
  %v3993 = vadd.f32 0.0, %v3992
  %v3994 = vpop.f32.mrb[0].mxu0
  %v3995 = vadd.f32 0.0, %v3994
  %3996 = vmatprep.mubr.bf16.mxu0 %v3047
  %3997 = vmatmul.mubr.bf16.gmra.mrb[0].mxu0 %v3046
  %v3998 = vpop.f32.mrb[0].mxu0
  %v3999 = vadd.f32 0.0, %v3998
  %v4000 = vpop.f32.mrb[0].mxu0
  %v4001 = vadd.f32 0.0, %v4000
  %v4002 = vpop.f32.mrb[0].mxu0
  %v4003 = vadd.f32 0.0, %v4002
  %v4004 = vpop.f32.mrb[0].mxu0
  %v4005 = vadd.f32 0.0, %v4004
  %4006 = vmatprep.mubr.bf16.mxu0 %v3051
  %4007 = vmatmul.mubr.bf16.gmra.mrb[0].mxu0 %v3050
  %v4008 = vpop.f32.mrb[0].mxu0
  %v4009 = vadd.f32 0.0, %v4008
  %v4010 = vpop.f32.mrb[0].mxu0
  %v4011 = vadd.f32 0.0, %v4010
  %v4012 = vpop.f32.mrb[0].mxu0
  %v4013 = vadd.f32 0.0, %v4012
  %v4014 = vpop.f32.mrb[0].mxu0
  %v4015 = vadd.f32 0.0, %v4014
  %4016 = vmatprep.mubr.bf16.mxu0 %v3055
  %4017 = vmatmul.mubr.bf16.gmra.mrb[0].mxu0 %v3054
  %v4018 = vpop.f32.mrb[0].mxu0
  %v4019 = vadd.f32 0.0, %v4018
  %v4020 = vpop.f32.mrb[0].mxu0
  %v4021 = vadd.f32 0.0, %v4020
  %v4022 = vpop.f32.mrb[0].mxu0
  %v4023 = vadd.f32 0.0, %v4022
  %v4024 = vpop.f32.mrb[0].mxu0
  %v4025 = vadd.f32 0.0, %v4024
  %4026 = vmatprep.mubr.bf16.mxu0 %v3059
  %4027 = vmatmul.mubr.bf16.gmra.mrb[0].mxu0 %v3058
  %v4028 = vpop.f32.mrb[0].mxu0
  %v4029 = vadd.f32 0.0, %v4028
  %v4030 = vpop.f32.mrb[0].mxu0
  %v4031 = vadd.f32 0.0, %v4030
  %v4032 = vpop.f32.mrb[0].mxu0
  %v4033 = vadd.f32 0.0, %v4032
  %v4034 = vpop.f32.mrb[0].mxu0
  %v4035 = vadd.f32 0.0, %v4034
  %4036 = vmatprep.mubr.bf16.mxu0 %v3063
  %4037 = vmatmul.mubr.bf16.gmra.mrb[0].mxu0 %v3062
  %v4038 = vpop.f32.mrb[0].mxu0
  %v4039 = vadd.f32 0.0, %v4038
  %v4040 = vpop.f32.mrb[0].mxu0
  %v4041 = vadd.f32 0.0, %v4040
  %v4042 = vpop.f32.mrb[0].mxu0
  %v4043 = vadd.f32 0.0, %v4042
  %v4044 = vpop.f32.mrb[0].mxu0
  %v4045 = vadd.f32 0.0, %v4044
  %4046 = vmatprep.mubr.bf16.mxu0 %v3067
  %4047 = vmatmul.mubr.bf16.gmra.mrb[0].mxu0 %v3066
  %v4048 = vpop.f32.mrb[0].mxu0
  %v4049 = vadd.f32 0.0, %v4048
  %v4050 = vpop.f32.mrb[0].mxu0
  %v4051 = vadd.f32 0.0, %v4050
  %v4052 = vpop.f32.mrb[0].mxu0
  %v4053 = vadd.f32 0.0, %v4052
  %v4054 = vpop.f32.mrb[0].mxu0
  %v4055 = vadd.f32 0.0, %v4054
  %4056 = vmatprep.mubr.bf16.mxu0 %v3071
  %4057 = vmatmul.mubr.bf16.gmra.mrb[0].mxu0 %v3070
  %v4058 = vpop.f32.mrb[0].mxu0
  %v4059 = vadd.f32 0.0, %v4058
  %v4060 = vpop.f32.mrb[0].mxu0
  %v4061 = vadd.f32 0.0, %v4060
  %v4062 = vpop.f32.mrb[0].mxu0
  %v4063 = vadd.f32 0.0, %v4062
  %v4064 = vpop.f32.mrb[0].mxu0
  %v4065 = vadd.f32 0.0, %v4064
  %4066 = vmatprep.mubr.bf16.mxu0 %v3075
  %4067 = vmatmul.mubr.bf16.gmra.mrb[0].mxu0 %v3074
  %v4068 = vpop.f32.mrb[0].mxu0
  %v4069 = vadd.f32 0.0, %v4068
  %v4070 = vpop.f32.mrb[0].mxu0
  %v4071 = vadd.f32 0.0, %v4070
  %v4072 = vpop.f32.mrb[0].mxu0
  %v4073 = vadd.f32 0.0, %v4072
  %v4074 = vpop.f32.mrb[0].mxu0
  %v4075 = vadd.f32 0.0, %v4074
  %4076 = vmatprep.mubr.bf16.mxu0 %v3079
  %4077 = vmatmul.mubr.bf16.gmra.mrb[0].mxu0 %v3078
  %v4078 = vpop.f32.mrb[0].mxu0
  %v4079 = vadd.f32 0.0, %v4078
  %v4080 = vpop.f32.mrb[0].mxu0
  %v4081 = vadd.f32 0.0, %v4080
  %v4082 = vpop.f32.mrb[0].mxu0
  %v4083 = vadd.f32 0.0, %v4082
  %v4084 = vpop.f32.mrb[0].mxu0
  %v4085 = vadd.f32 0.0, %v4084
  %4086 = vmatprep.mubr.bf16.mxu0 %v3083
  %4087 = vmatmul.mubr.bf16.gmra.mrb[0].mxu0 %v3082
  %v4088 = vpop.f32.mrb[0].mxu0
  %v4089 = vadd.f32 0.0, %v4088
  %v4090 = vpop.f32.mrb[0].mxu0
  %v4091 = vadd.f32 0.0, %v4090
  %v4092 = vpop.f32.mrb[0].mxu0
  %v4093 = vadd.f32 0.0, %v4092
  %v4094 = vpop.f32.mrb[0].mxu0
  %v4095 = vadd.f32 0.0, %v4094
  %4096 = vmatprep.mubr.bf16.mxu0 %v3087
  %4097 = vmatmul.mubr.bf16.gmra.mrb[0].mxu0 %v3086
  %v4098 = vpop.f32.mrb[0].mxu0
  %v4099 = vadd.f32 0.0, %v4098
  %v4100 = vpop.f32.mrb[0].mxu0
  %v4101 = vadd.f32 0.0, %v4100
  %v4102 = vpop.f32.mrb[0].mxu0
  %v4103 = vadd.f32 0.0, %v4102
  %v4104 = vpop.f32.mrb[0].mxu0
  %v4105 = vadd.f32 0.0, %v4104
  %4106 = vmatprep.mubr.bf16.mxu0 %v3091
  %4107 = vmatmul.mubr.bf16.gmra.mrb[0].mxu0 %v3090
  %v4108 = vpop.f32.mrb[0].mxu0
  %v4109 = vadd.f32 0.0, %v4108
  %v4110 = vpop.f32.mrb[0].mxu0
  %v4111 = vadd.f32 0.0, %v4110
  %v4112 = vpop.f32.mrb[0].mxu0
  %v4113 = vadd.f32 0.0, %v4112
  %v4114 = vpop.f32.mrb[0].mxu0
  %v4115 = vadd.f32 0.0, %v4114
  %4116 = vmatprep.mubr.bf16.mxu0 %v3095
  %4117 = vmatmul.mubr.bf16.gmra.mrb[0].mxu0 %v3094
  %v4118 = vpop.f32.mrb[0].mxu0
  %v4119 = vadd.f32 0.0, %v4118
  %v4120 = vpop.f32.mrb[0].mxu0
  %v4121 = vadd.f32 0.0, %v4120
  %v4122 = vpop.f32.mrb[0].mxu0
  %v4123 = vadd.f32 0.0, %v4122
  %v4124 = vpop.f32.mrb[0].mxu0
  %v4125 = vadd.f32 0.0, %v4124
  %4126 = vmatprep.mubr.bf16.mxu0 %v3099
  %4127 = vmatmul.mubr.bf16.gmra.mrb[0].mxu0 %v3098
  %v4128 = vpop.f32.mrb[0].mxu0
  %v4129 = vadd.f32 0.0, %v4128
  %v4130 = vpop.f32.mrb[0].mxu0
  %v4131 = vadd.f32 0.0, %v4130
  %v4132 = vpop.f32.mrb[0].mxu0
  %v4133 = vadd.f32 0.0, %v4132
  %v4134 = vpop.f32.mrb[0].mxu0
  %v4135 = vadd.f32 0.0, %v4134
  %4136 = vmatprep.mubr.bf16.mxu0 %v3103
  %4137 = vmatmul.mubr.bf16.gmra.mrb[0].mxu0 %v3102
  %v4138 = vpop.f32.mrb[0].mxu0
  %v4139 = vadd.f32 0.0, %v4138
  %v4140 = vpop.f32.mrb[0].mxu0
  %v4141 = vadd.f32 0.0, %v4140
  %v4142 = vpop.f32.mrb[0].mxu0
  %v4143 = vadd.f32 0.0, %v4142
  %v4144 = vpop.f32.mrb[0].mxu0
  %v4145 = vadd.f32 0.0, %v4144
  %4146 = vmatprep.mubr.bf16.mxu0 %v3107
  %4147 = vmatmul.mubr.bf16.gmra.mrb[0].mxu0 %v3106
  %v4148 = vpop.f32.mrb[0].mxu0
  %v4149 = vadd.f32 0.0, %v4148
  %v4150 = vpop.f32.mrb[0].mxu0
  %v4151 = vadd.f32 0.0, %v4150
  %v4152 = vpop.f32.mrb[0].mxu0
  %v4153 = vadd.f32 0.0, %v4152
  %v4154 = vpop.f32.mrb[0].mxu0
  %v4155 = vadd.f32 0.0, %v4154
  %4156 = vmatprep.mubr.bf16.mxu0 %v3111
  %4157 = vmatmul.mubr.bf16.gmra.mrb[0].mxu0 %v3110
  %v4158 = vpop.f32.mrb[0].mxu0
  %v4159 = vadd.f32 0.0, %v4158
  %v4160 = vpop.f32.mrb[0].mxu0
  %v4161 = vadd.f32 0.0, %v4160
  %v4162 = vpop.f32.mrb[0].mxu0
  %v4163 = vadd.f32 0.0, %v4162
  %v4164 = vpop.f32.mrb[0].mxu0
  %v4165 = vadd.f32 0.0, %v4164
  %4166 = vmatprep.mubr.bf16.mxu0 %v3115
  %4167 = vmatmul.mubr.bf16.gmra.mrb[0].mxu0 %v3114
  %v4168 = vpop.f32.mrb[0].mxu0
  %v4169 = vadd.f32 0.0, %v4168
  %v4170 = vpop.f32.mrb[0].mxu0
  %v4171 = vadd.f32 0.0, %v4170
  %v4172 = vpop.f32.mrb[0].mxu0
  %v4173 = vadd.f32 0.0, %v4172
  %v4174 = vpop.f32.mrb[0].mxu0
  %v4175 = vadd.f32 0.0, %v4174
  %4176 = vdwg.mxu0
  %4177 = vmatprep.subr.bf16.mxu0 %v749
  %4178 = vmatpush1.bf16.xpose.msra.mxu0 %v748
  %4179 = vmatprep.subr.bf16.mxu0 %v753
  %4180 = vmatpush1.bf16.xpose.msra.mxu0 %v752
  %4181 = vmatprep.subr.bf16.mxu0 %v757
  %4182 = vmatpush1.bf16.xpose.msra.mxu0 %v756
  %4183 = vmatprep.subr.bf16.mxu0 %v761
  %4184 = vmatpush1.bf16.xpose.msra.mxu0 %v760
  %4185 = vmatprep.subr.bf16.mxu0 %v765
  %4186 = vmatpush1.bf16.xpose.msra.mxu0 %v764
  %4187 = vmatprep.subr.bf16.mxu0 %v769
  %4188 = vmatpush1.bf16.xpose.msra.mxu0 %v768
  %4189 = vmatprep.subr.bf16.mxu0 %v773
  %4190 = vmatpush1.bf16.xpose.msra.mxu0 %v772
  %4191 = vmatprep.subr.bf16.mxu0 %v777
  %4192 = vmatpush1.bf16.xpose.msra.mxu0 %v776
  %4193 = vmatprep.subr.bf16.mxu0 %v781
  %4194 = vmatpush1.bf16.xpose.msra.mxu0 %v780
  %4195 = vmatprep.subr.bf16.mxu0 %v785
  %4196 = vmatpush1.bf16.xpose.msra.mxu0 %v784
  %4197 = vmatprep.subr.bf16.mxu0 %v789
  %4198 = vmatpush1.bf16.xpose.msra.mxu0 %v788
  %4199 = vmatprep.subr.bf16.mxu0 %v793
  %4200 = vmatpush1.bf16.xpose.msra.mxu0 %v792
  %4201 = vmatprep.subr.bf16.mxu0 %v797
  %4202 = vmatpush1.bf16.xpose.msra.mxu0 %v796
  %4203 = vmatprep.subr.bf16.mxu0 %v801
  %4204 = vmatpush1.bf16.xpose.msra.mxu0 %v800
  %4205 = vmatprep.subr.bf16.mxu0 %v805
  %4206 = vmatpush1.bf16.xpose.msra.mxu0 %v804
  %4207 = vmatprep.subr.bf16.mxu0 %v809
  %4208 = vmatpush1.bf16.xpose.msra.mxu0 %v808
  %4209 = vmatprep.mubr.bf16.mxu0 %v2993
  %4210 = vmatmul.mubr.bf16.gmra.mrb[0].mxu0 %v2992
  %v4211 = vpop.f32.mrb[0].mxu0
  %v4212 = vadd.f32 %v3859, %v4211
  %v4213 = vpop.f32.mrb[0].mxu0
  %v4214 = vadd.f32 %v3861, %v4213
  %v4215 = vpop.f32.mrb[0].mxu0
  %v4216 = vadd.f32 %v3863, %v4215
  %v4217 = vpop.f32.mrb[0].mxu0
  %v4218 = vadd.f32 %v3865, %v4217
  %4219 = vmatprep.mubr.bf16.mxu0 %v2997
  %4220 = vmatmul.mubr.bf16.gmra.mrb[0].mxu0 %v2996
  %v4221 = vpop.f32.mrb[0].mxu0
  %v4222 = vadd.f32 %v3869, %v4221
  %v4223 = vpop.f32.mrb[0].mxu0
  %v4224 = vadd.f32 %v3871, %v4223
  %v4225 = vpop.f32.mrb[0].mxu0
  %v4226 = vadd.f32 %v3873, %v4225
  %v4227 = vpop.f32.mrb[0].mxu0
  %v4228 = vadd.f32 %v3875, %v4227
  %4229 = vmatprep.mubr.bf16.mxu0 %v3001
  %4230 = vmatmul.mubr.bf16.gmra.mrb[0].mxu0 %v3000
  %v4231 = vpop.f32.mrb[0].mxu0
  %v4232 = vadd.f32 %v3879, %v4231
  %v4233 = vpop.f32.mrb[0].mxu0
  %v4234 = vadd.f32 %v3881, %v4233
  %v4235 = vpop.f32.mrb[0].mxu0
  %v4236 = vadd.f32 %v3883, %v4235
  %v4237 = vpop.f32.mrb[0].mxu0
  %v4238 = vadd.f32 %v3885, %v4237
  %4239 = vmatprep.mubr.bf16.mxu0 %v3005
  %4240 = vmatmul.mubr.bf16.gmra.mrb[0].mxu0 %v3004
  %v4241 = vpop.f32.mrb[0].mxu0
  %v4242 = vadd.f32 %v3889, %v4241
  %v4243 = vpop.f32.mrb[0].mxu0
  %v4244 = vadd.f32 %v3891, %v4243
  %v4245 = vpop.f32.mrb[0].mxu0
  %v4246 = vadd.f32 %v3893, %v4245
  %v4247 = vpop.f32.mrb[0].mxu0
  %v4248 = vadd.f32 %v3895, %v4247
  %4249 = vmatprep.mubr.bf16.mxu0 %v3009
  %4250 = vmatmul.mubr.bf16.gmra.mrb[0].mxu0 %v3008
  %v4251 = vpop.f32.mrb[0].mxu0
  %v4252 = vadd.f32 %v3899, %v4251
  %v4253 = vpop.f32.mrb[0].mxu0
  %v4254 = vadd.f32 %v3901, %v4253
  %v4255 = vpop.f32.mrb[0].mxu0
  %v4256 = vadd.f32 %v3903, %v4255
  %v4257 = vpop.f32.mrb[0].mxu0
  %v4258 = vadd.f32 %v3905, %v4257
  %4259 = vmatprep.mubr.bf16.mxu0 %v3013
  %4260 = vmatmul.mubr.bf16.gmra.mrb[0].mxu0 %v3012
  %v4261 = vpop.f32.mrb[0].mxu0
  %v4262 = vadd.f32 %v3909, %v4261
  %v4263 = vpop.f32.mrb[0].mxu0
  %v4264 = vadd.f32 %v3911, %v4263
  %v4265 = vpop.f32.mrb[0].mxu0
  %v4266 = vadd.f32 %v3913, %v4265
  %v4267 = vpop.f32.mrb[0].mxu0
  %v4268 = vadd.f32 %v3915, %v4267
  %4269 = vmatprep.mubr.bf16.mxu0 %v3017
  %4270 = vmatmul.mubr.bf16.gmra.mrb[0].mxu0 %v3016
  %v4271 = vpop.f32.mrb[0].mxu0
  %v4272 = vadd.f32 %v3919, %v4271
  %v4273 = vpop.f32.mrb[0].mxu0
  %v4274 = vadd.f32 %v3921, %v4273
  %v4275 = vpop.f32.mrb[0].mxu0
  %v4276 = vadd.f32 %v3923, %v4275
  %v4277 = vpop.f32.mrb[0].mxu0
  %v4278 = vadd.f32 %v3925, %v4277
  %4279 = vmatprep.mubr.bf16.mxu0 %v3021
  %4280 = vmatmul.mubr.bf16.gmra.mrb[0].mxu0 %v3020
  %v4281 = vpop.f32.mrb[0].mxu0
  %v4282 = vadd.f32 %v3929, %v4281
  %v4283 = vpop.f32.mrb[0].mxu0
  %v4284 = vadd.f32 %v3931, %v4283
  %v4285 = vpop.f32.mrb[0].mxu0
  %v4286 = vadd.f32 %v3933, %v4285
  %v4287 = vpop.f32.mrb[0].mxu0
  %v4288 = vadd.f32 %v3935, %v4287
  %4289 = vmatprep.mubr.bf16.mxu0 %v3025
  %4290 = vmatmul.mubr.bf16.gmra.mrb[0].mxu0 %v3024
  %v4291 = vpop.f32.mrb[0].mxu0
  %v4292 = vadd.f32 %v3939, %v4291
  %v4293 = vpop.f32.mrb[0].mxu0
  %v4294 = vadd.f32 %v3941, %v4293
  %v4295 = vpop.f32.mrb[0].mxu0
  %v4296 = vadd.f32 %v3943, %v4295
  %v4297 = vpop.f32.mrb[0].mxu0
  %v4298 = vadd.f32 %v3945, %v4297
  %4299 = vmatprep.mubr.bf16.mxu0 %v3029
  %4300 = vmatmul.mubr.bf16.gmra.mrb[0].mxu0 %v3028
  %v4301 = vpop.f32.mrb[0].mxu0
  %v4302 = vadd.f32 %v3949, %v4301
  %v4303 = vpop.f32.mrb[0].mxu0
  %v4304 = vadd.f32 %v3951, %v4303
  %v4305 = vpop.f32.mrb[0].mxu0
  %v4306 = vadd.f32 %v3953, %v4305
  %v4307 = vpop.f32.mrb[0].mxu0
  %v4308 = vadd.f32 %v3955, %v4307
  %4309 = vmatprep.mubr.bf16.mxu0 %v3033
  %4310 = vmatmul.mubr.bf16.gmra.mrb[0].mxu0 %v3032
  %v4311 = vpop.f32.mrb[0].mxu0
  %v4312 = vadd.f32 %v3959, %v4311
  %v4313 = vpop.f32.mrb[0].mxu0
  %v4314 = vadd.f32 %v3961, %v4313
  %v4315 = vpop.f32.mrb[0].mxu0
  %v4316 = vadd.f32 %v3963, %v4315
  %v4317 = vpop.f32.mrb[0].mxu0
  %v4318 = vadd.f32 %v3965, %v4317
  %4319 = vmatprep.mubr.bf16.mxu0 %v3037
  %4320 = vmatmul.mubr.bf16.gmra.mrb[0].mxu0 %v3036
  %v4321 = vpop.f32.mrb[0].mxu0
  %v4322 = vadd.f32 %v3969, %v4321
  %v4323 = vpop.f32.mrb[0].mxu0
  %v4324 = vadd.f32 %v3971, %v4323
  %v4325 = vpop.f32.mrb[0].mxu0
  %v4326 = vadd.f32 %v3973, %v4325
  %v4327 = vpop.f32.mrb[0].mxu0
  %v4328 = vadd.f32 %v3975, %v4327
  %4329 = vmatprep.mubr.bf16.mxu0 %v3041
  %4330 = vmatmul.mubr.bf16.gmra.mrb[0].mxu0 %v3040
  %v4331 = vpop.f32.mrb[0].mxu0
  %v4332 = vadd.f32 %v3979, %v4331
  %v4333 = vpop.f32.mrb[0].mxu0
  %v4334 = vadd.f32 %v3981, %v4333
  %v4335 = vpop.f32.mrb[0].mxu0
  %v4336 = vadd.f32 %v3983, %v4335
  %v4337 = vpop.f32.mrb[0].mxu0
  %v4338 = vadd.f32 %v3985, %v4337
  %4339 = vmatprep.mubr.bf16.mxu0 %v3045
  %4340 = vmatmul.mubr.bf16.gmra.mrb[0].mxu0 %v3044
  %v4341 = vpop.f32.mrb[0].mxu0
  %v4342 = vadd.f32 %v3989, %v4341
  %v4343 = vpop.f32.mrb[0].mxu0
  %v4344 = vadd.f32 %v3991, %v4343
  %v4345 = vpop.f32.mrb[0].mxu0
  %v4346 = vadd.f32 %v3993, %v4345
  %v4347 = vpop.f32.mrb[0].mxu0
  %v4348 = vadd.f32 %v3995, %v4347
  %4349 = vmatprep.mubr.bf16.mxu0 %v3049
  %4350 = vmatmul.mubr.bf16.gmra.mrb[0].mxu0 %v3048
  %v4351 = vpop.f32.mrb[0].mxu0
  %v4352 = vadd.f32 %v3999, %v4351
  %v4353 = vpop.f32.mrb[0].mxu0
  %v4354 = vadd.f32 %v4001, %v4353
  %v4355 = vpop.f32.mrb[0].mxu0
  %v4356 = vadd.f32 %v4003, %v4355
  %v4357 = vpop.f32.mrb[0].mxu0
  %v4358 = vadd.f32 %v4005, %v4357
  %4359 = vmatprep.mubr.bf16.mxu0 %v3053
  %4360 = vmatmul.mubr.bf16.gmra.mrb[0].mxu0 %v3052
  %v4361 = vpop.f32.mrb[0].mxu0
  %v4362 = vadd.f32 %v4009, %v4361
  %v4363 = vpop.f32.mrb[0].mxu0
  %v4364 = vadd.f32 %v4011, %v4363
  %v4365 = vpop.f32.mrb[0].mxu0
  %v4366 = vadd.f32 %v4013, %v4365
  %v4367 = vpop.f32.mrb[0].mxu0
  %v4368 = vadd.f32 %v4015, %v4367
  %4369 = vmatprep.mubr.bf16.mxu0 %v3057
  %4370 = vmatmul.mubr.bf16.gmra.mrb[0].mxu0 %v3056
  %v4371 = vpop.f32.mrb[0].mxu0
  %v4372 = vadd.f32 %v4019, %v4371
  %v4373 = vpop.f32.mrb[0].mxu0
  %v4374 = vadd.f32 %v4021, %v4373
  %v4375 = vpop.f32.mrb[0].mxu0
  %v4376 = vadd.f32 %v4023, %v4375
  %v4377 = vpop.f32.mrb[0].mxu0
  %v4378 = vadd.f32 %v4025, %v4377
  %4379 = vmatprep.mubr.bf16.mxu0 %v3061
  %4380 = vmatmul.mubr.bf16.gmra.mrb[0].mxu0 %v3060
  %v4381 = vpop.f32.mrb[0].mxu0
  %v4382 = vadd.f32 %v4029, %v4381
  %v4383 = vpop.f32.mrb[0].mxu0
  %v4384 = vadd.f32 %v4031, %v4383
  %v4385 = vpop.f32.mrb[0].mxu0
  %v4386 = vadd.f32 %v4033, %v4385
  %v4387 = vpop.f32.mrb[0].mxu0
  %v4388 = vadd.f32 %v4035, %v4387
  %4389 = vmatprep.mubr.bf16.mxu0 %v3065
  %4390 = vmatmul.mubr.bf16.gmra.mrb[0].mxu0 %v3064
  %v4391 = vpop.f32.mrb[0].mxu0
  %v4392 = vadd.f32 %v4039, %v4391
  %v4393 = vpop.f32.mrb[0].mxu0
  %v4394 = vadd.f32 %v4041, %v4393
  %v4395 = vpop.f32.mrb[0].mxu0
  %v4396 = vadd.f32 %v4043, %v4395
  %v4397 = vpop.f32.mrb[0].mxu0
  %v4398 = vadd.f32 %v4045, %v4397
  %4399 = vmatprep.mubr.bf16.mxu0 %v3069
  %4400 = vmatmul.mubr.bf16.gmra.mrb[0].mxu0 %v3068
  %v4401 = vpop.f32.mrb[0].mxu0
  %v4402 = vadd.f32 %v4049, %v4401
  %v4403 = vpop.f32.mrb[0].mxu0
  %v4404 = vadd.f32 %v4051, %v4403
  %v4405 = vpop.f32.mrb[0].mxu0
  %v4406 = vadd.f32 %v4053, %v4405
  %v4407 = vpop.f32.mrb[0].mxu0
  %v4408 = vadd.f32 %v4055, %v4407
  %4409 = vmatprep.mubr.bf16.mxu0 %v3073
  %4410 = vmatmul.mubr.bf16.gmra.mrb[0].mxu0 %v3072
  %v4411 = vpop.f32.mrb[0].mxu0
  %v4412 = vadd.f32 %v4059, %v4411
  %v4413 = vpop.f32.mrb[0].mxu0
  %v4414 = vadd.f32 %v4061, %v4413
  %v4415 = vpop.f32.mrb[0].mxu0
  %v4416 = vadd.f32 %v4063, %v4415
  %v4417 = vpop.f32.mrb[0].mxu0
  %v4418 = vadd.f32 %v4065, %v4417
  %4419 = vmatprep.mubr.bf16.mxu0 %v3077
  %4420 = vmatmul.mubr.bf16.gmra.mrb[0].mxu0 %v3076
  %v4421 = vpop.f32.mrb[0].mxu0
  %v4422 = vadd.f32 %v4069, %v4421
  %v4423 = vpop.f32.mrb[0].mxu0
  %v4424 = vadd.f32 %v4071, %v4423
  %v4425 = vpop.f32.mrb[0].mxu0
  %v4426 = vadd.f32 %v4073, %v4425
  %v4427 = vpop.f32.mrb[0].mxu0
  %v4428 = vadd.f32 %v4075, %v4427
  %4429 = vmatprep.mubr.bf16.mxu0 %v3081
  %4430 = vmatmul.mubr.bf16.gmra.mrb[0].mxu0 %v3080
  %v4431 = vpop.f32.mrb[0].mxu0
  %v4432 = vadd.f32 %v4079, %v4431
  %v4433 = vpop.f32.mrb[0].mxu0
  %v4434 = vadd.f32 %v4081, %v4433
  %v4435 = vpop.f32.mrb[0].mxu0
  %v4436 = vadd.f32 %v4083, %v4435
  %v4437 = vpop.f32.mrb[0].mxu0
  %v4438 = vadd.f32 %v4085, %v4437
  %4439 = vmatprep.mubr.bf16.mxu0 %v3085
  %4440 = vmatmul.mubr.bf16.gmra.mrb[0].mxu0 %v3084
  %v4441 = vpop.f32.mrb[0].mxu0
  %v4442 = vadd.f32 %v4089, %v4441
  %v4443 = vpop.f32.mrb[0].mxu0
  %v4444 = vadd.f32 %v4091, %v4443
  %v4445 = vpop.f32.mrb[0].mxu0
  %v4446 = vadd.f32 %v4093, %v4445
  %v4447 = vpop.f32.mrb[0].mxu0
  %v4448 = vadd.f32 %v4095, %v4447
  %4449 = vmatprep.mubr.bf16.mxu0 %v3089
  %4450 = vmatmul.mubr.bf16.gmra.mrb[0].mxu0 %v3088
  %v4451 = vpop.f32.mrb[0].mxu0
  %v4452 = vadd.f32 %v4099, %v4451
  %v4453 = vpop.f32.mrb[0].mxu0
  %v4454 = vadd.f32 %v4101, %v4453
  %v4455 = vpop.f32.mrb[0].mxu0
  %v4456 = vadd.f32 %v4103, %v4455
  %v4457 = vpop.f32.mrb[0].mxu0
  %v4458 = vadd.f32 %v4105, %v4457
  %4459 = vmatprep.mubr.bf16.mxu0 %v3093
  %4460 = vmatmul.mubr.bf16.gmra.mrb[0].mxu0 %v3092
  %v4461 = vpop.f32.mrb[0].mxu0
  %v4462 = vadd.f32 %v4109, %v4461
  %v4463 = vpop.f32.mrb[0].mxu0
  %v4464 = vadd.f32 %v4111, %v4463
  %v4465 = vpop.f32.mrb[0].mxu0
  %v4466 = vadd.f32 %v4113, %v4465
  %v4467 = vpop.f32.mrb[0].mxu0
  %v4468 = vadd.f32 %v4115, %v4467
  %4469 = vmatprep.mubr.bf16.mxu0 %v3097
  %4470 = vmatmul.mubr.bf16.gmra.mrb[0].mxu0 %v3096
  %v4471 = vpop.f32.mrb[0].mxu0
  %v4472 = vadd.f32 %v4119, %v4471
  %v4473 = vpop.f32.mrb[0].mxu0
  %v4474 = vadd.f32 %v4121, %v4473
  %v4475 = vpop.f32.mrb[0].mxu0
  %v4476 = vadd.f32 %v4123, %v4475
  %v4477 = vpop.f32.mrb[0].mxu0
  %v4478 = vadd.f32 %v4125, %v4477
  %4479 = vmatprep.mubr.bf16.mxu0 %v3101
  %4480 = vmatmul.mubr.bf16.gmra.mrb[0].mxu0 %v3100
  %v4481 = vpop.f32.mrb[0].mxu0
  %v4482 = vadd.f32 %v4129, %v4481
  %v4483 = vpop.f32.mrb[0].mxu0
  %v4484 = vadd.f32 %v4131, %v4483
  %v4485 = vpop.f32.mrb[0].mxu0
  %v4486 = vadd.f32 %v4133, %v4485
  %v4487 = vpop.f32.mrb[0].mxu0
  %v4488 = vadd.f32 %v4135, %v4487
  %4489 = vmatprep.mubr.bf16.mxu0 %v3105
  %4490 = vmatmul.mubr.bf16.gmra.mrb[0].mxu0 %v3104
  %v4491 = vpop.f32.mrb[0].mxu0
  %v4492 = vadd.f32 %v4139, %v4491
  %v4493 = vpop.f32.mrb[0].mxu0
  %v4494 = vadd.f32 %v4141, %v4493
  %v4495 = vpop.f32.mrb[0].mxu0
  %v4496 = vadd.f32 %v4143, %v4495
  %v4497 = vpop.f32.mrb[0].mxu0
  %v4498 = vadd.f32 %v4145, %v4497
  %4499 = vmatprep.mubr.bf16.mxu0 %v3109
  %4500 = vmatmul.mubr.bf16.gmra.mrb[0].mxu0 %v3108
  %v4501 = vpop.f32.mrb[0].mxu0
  %v4502 = vadd.f32 %v4149, %v4501
  %v4503 = vpop.f32.mrb[0].mxu0
  %v4504 = vadd.f32 %v4151, %v4503
  %v4505 = vpop.f32.mrb[0].mxu0
  %v4506 = vadd.f32 %v4153, %v4505
  %v4507 = vpop.f32.mrb[0].mxu0
  %v4508 = vadd.f32 %v4155, %v4507
  %4509 = vmatprep.mubr.bf16.mxu0 %v3113
  %4510 = vmatmul.mubr.bf16.gmra.mrb[0].mxu0 %v3112
  %v4511 = vpop.f32.mrb[0].mxu0
  %v4512 = vadd.f32 %v4159, %v4511
  %v4513 = vpop.f32.mrb[0].mxu0
  %v4514 = vadd.f32 %v4161, %v4513
  %v4515 = vpop.f32.mrb[0].mxu0
  %v4516 = vadd.f32 %v4163, %v4515
  %v4517 = vpop.f32.mrb[0].mxu0
  %v4518 = vadd.f32 %v4165, %v4517
  %4519 = vmatprep.mubr.bf16.mxu0 %v3117
  %4520 = vmatmul.mubr.bf16.gmra.mrb[0].mxu0 %v3116
  %v4521 = vpop.f32.mrb[0].mxu0
  %v4522 = vadd.f32 %v4169, %v4521
  %v4523 = vpop.f32.mrb[0].mxu0
  %v4524 = vadd.f32 %v4171, %v4523
  %v4525 = vpop.f32.mrb[0].mxu0
  %v4526 = vadd.f32 %v4173, %v4525
  %v4527 = vpop.f32.mrb[0].mxu0
  %v4528 = vadd.f32 %v4175, %v4527
  %4529 = vdwg.mxu0
  %v4530 = vld [vmem:[%s3] sm:$0xff]
  %v4531 = vld [vmem:[%s3 + $0x8] sm:$0xff]
  %v4532 = vld [vmem:[%s3 + $0x10] sm:$0xff]
  %v4533 = vld [vmem:[%s3 + $0x18] sm:$0xff]
  %v4534 = vld [vmem:[%s3 + $0x20] sm:$0xff]
  %v4535 = vld [vmem:[%s3 + $0x28] sm:$0xff]
  %v4536 = vld [vmem:[%s3 + $0x30] sm:$0xff]
  %v4537 = vld [vmem:[%s3 + $0x38] sm:$0xff]
  %v4538 = vld [vmem:[%s3 + $0x40] sm:$0xff]
  %v4539 = vld [vmem:[%s3 + $0x48] sm:$0xff]
  %v4540 = vld [vmem:[%s3 + $0x50] sm:$0xff]
  %v4541 = vld [vmem:[%s3 + $0x58] sm:$0xff]
  %v4542 = vld [vmem:[%s3 + $0x60] sm:$0xff]
  %v4543 = vld [vmem:[%s3 + $0x68] sm:$0xff]
  %v4544 = vld [vmem:[%s3 + $0x70] sm:$0xff]
  %v4545 = vld [vmem:[%s3 + $0x78] sm:$0xff]
  %v4546 = vld [vmem:[%s3 + $0x80] sm:$0xff]
  %v4547 = vld [vmem:[%s3 + $0x88] sm:$0xff]
  %v4548 = vld [vmem:[%s3 + $0x90] sm:$0xff]
  %v4549 = vld [vmem:[%s3 + $0x98] sm:$0xff]
  %v4550 = vld [vmem:[%s3 + $0xa0] sm:$0xff]
  %v4551 = vld [vmem:[%s3 + $0xa8] sm:$0xff]
  %v4552 = vld [vmem:[%s3 + $0xb0] sm:$0xff]
  %v4553 = vld [vmem:[%s3 + $0xb8] sm:$0xff]
  %v4554 = vld [vmem:[%s3 + $0xc0] sm:$0xff]
  %v4555 = vld [vmem:[%s3 + $0xc8] sm:$0xff]
  %v4556 = vld [vmem:[%s3 + $0xd0] sm:$0xff]
  %v4557 = vld [vmem:[%s3 + $0xd8] sm:$0xff]
  %v4558 = vld [vmem:[%s3 + $0xe0] sm:$0xff]
  %v4559 = vld [vmem:[%s3 + $0xe8] sm:$0xff]
  %v4560 = vld [vmem:[%s3 + $0xf0] sm:$0xff]
  %v4561 = vld [vmem:[%s3 + $0xf8] sm:$0xff]
  %v4562 = vld [vmem:[%s3 + $0x100] sm:$0xff]
  %v4563 = vld [vmem:[%s3 + $0x108] sm:$0xff]
  %v4564 = vld [vmem:[%s3 + $0x110] sm:$0xff]
  %v4565 = vld [vmem:[%s3 + $0x118] sm:$0xff]
  %v4566 = vld [vmem:[%s3 + $0x120] sm:$0xff]
  %v4567 = vld [vmem:[%s3 + $0x128] sm:$0xff]
  %v4568 = vld [vmem:[%s3 + $0x130] sm:$0xff]
  %v4569 = vld [vmem:[%s3 + $0x138] sm:$0xff]
  %v4570 = vld [vmem:[%s3 + $0x140] sm:$0xff]
  %v4571 = vld [vmem:[%s3 + $0x148] sm:$0xff]
  %v4572 = vld [vmem:[%s3 + $0x150] sm:$0xff]
  %v4573 = vld [vmem:[%s3 + $0x158] sm:$0xff]
  %v4574 = vld [vmem:[%s3 + $0x160] sm:$0xff]
  %v4575 = vld [vmem:[%s3 + $0x168] sm:$0xff]
  %v4576 = vld [vmem:[%s3 + $0x170] sm:$0xff]
  %v4577 = vld [vmem:[%s3 + $0x178] sm:$0xff]
  %v4578 = vld [vmem:[%s3 + $0x180] sm:$0xff]
  %v4579 = vld [vmem:[%s3 + $0x188] sm:$0xff]
  %v4580 = vld [vmem:[%s3 + $0x190] sm:$0xff]
  %v4581 = vld [vmem:[%s3 + $0x198] sm:$0xff]
  %v4582 = vld [vmem:[%s3 + $0x1a0] sm:$0xff]
  %v4583 = vld [vmem:[%s3 + $0x1a8] sm:$0xff]
  %v4584 = vld [vmem:[%s3 + $0x1b0] sm:$0xff]
  %v4585 = vld [vmem:[%s3 + $0x1b8] sm:$0xff]
  %v4586 = vld [vmem:[%s3 + $0x1c0] sm:$0xff]
  %v4587 = vld [vmem:[%s3 + $0x1c8] sm:$0xff]
  %v4588 = vld [vmem:[%s3 + $0x1d0] sm:$0xff]
  %v4589 = vld [vmem:[%s3 + $0x1d8] sm:$0xff]
  %v4590 = vld [vmem:[%s3 + $0x1e0] sm:$0xff]
  %v4591 = vld [vmem:[%s3 + $0x1e8] sm:$0xff]
  %v4592 = vld [vmem:[%s3 + $0x1f0] sm:$0xff]
  %v4593 = vld [vmem:[%s3 + $0x1f8] sm:$0xff]
  %v4594 = vld [vmem:[%s4] sm:$0xf]
  %4595 = vset.pattern.permute.xlu0 0
  %4596 = vperm.xlu0 %4595, %v4530
  %v4597 = vpop.permute.xlu0 %4596
  %4598 = vset.pattern.permute.xlu0 0
  %4599 = vperm.xlu0 %4598, %v4531
  %v4600 = vpop.permute.xlu0 %4599
  %4601 = vset.pattern.permute.xlu0 0
  %4602 = vperm.xlu0 %4601, %v4532
  %v4603 = vpop.permute.xlu0 %4602
  %4604 = vset.pattern.permute.xlu0 0
  %4605 = vperm.xlu0 %4604, %v4533
  %v4606 = vpop.permute.xlu0 %4605
  %4607 = vset.pattern.permute.xlu0 0
  %4608 = vperm.xlu0 %4607, %v4534
  %v4609 = vpop.permute.xlu0 %4608
  %4610 = vset.pattern.permute.xlu0 0
  %4611 = vperm.xlu0 %4610, %v4535
  %v4612 = vpop.permute.xlu0 %4611
  %4613 = vset.pattern.permute.xlu0 0
  %4614 = vperm.xlu0 %4613, %v4536
  %v4615 = vpop.permute.xlu0 %4614
  %4616 = vset.pattern.permute.xlu0 0
  %4617 = vperm.xlu0 %4616, %v4537
  %v4618 = vpop.permute.xlu0 %4617
  %4619 = vset.pattern.permute.xlu0 0
  %4620 = vperm.xlu0 %4619, %v4538
  %v4621 = vpop.permute.xlu0 %4620
  %4622 = vset.pattern.permute.xlu0 0
  %4623 = vperm.xlu0 %4622, %v4539
  %v4624 = vpop.permute.xlu0 %4623
  %4625 = vset.pattern.permute.xlu0 0
  %4626 = vperm.xlu0 %4625, %v4540
  %v4627 = vpop.permute.xlu0 %4626
  %4628 = vset.pattern.permute.xlu0 0
  %4629 = vperm.xlu0 %4628, %v4541
  %v4630 = vpop.permute.xlu0 %4629
  %4631 = vset.pattern.permute.xlu0 0
  %4632 = vperm.xlu0 %4631, %v4542
  %v4633 = vpop.permute.xlu0 %4632
  %4634 = vset.pattern.permute.xlu0 0
  %4635 = vperm.xlu0 %4634, %v4543
  %v4636 = vpop.permute.xlu0 %4635
  %4637 = vset.pattern.permute.xlu0 0
  %4638 = vperm.xlu0 %4637, %v4544
  %v4639 = vpop.permute.xlu0 %4638
  %4640 = vset.pattern.permute.xlu0 0
  %4641 = vperm.xlu0 %4640, %v4545
  %v4642 = vpop.permute.xlu0 %4641
  %4643 = vset.pattern.permute.xlu0 0
  %4644 = vperm.xlu0 %4643, %v4546
  %v4645 = vpop.permute.xlu0 %4644
  %4646 = vset.pattern.permute.xlu0 0
  %4647 = vperm.xlu0 %4646, %v4547
  %v4648 = vpop.permute.xlu0 %4647
  %4649 = vset.pattern.permute.xlu0 0
  %4650 = vperm.xlu0 %4649, %v4548
  %v4651 = vpop.permute.xlu0 %4650
  %4652 = vset.pattern.permute.xlu0 0
  %4653 = vperm.xlu0 %4652, %v4549
  %v4654 = vpop.permute.xlu0 %4653
  %4655 = vset.pattern.permute.xlu0 0
  %4656 = vperm.xlu0 %4655, %v4550
  %v4657 = vpop.permute.xlu0 %4656
  %4658 = vset.pattern.permute.xlu0 0
  %4659 = vperm.xlu0 %4658, %v4551
  %v4660 = vpop.permute.xlu0 %4659
  %4661 = vset.pattern.permute.xlu0 0
  %4662 = vperm.xlu0 %4661, %v4552
  %v4663 = vpop.permute.xlu0 %4662
  %4664 = vset.pattern.permute.xlu0 0
  %4665 = vperm.xlu0 %4664, %v4553
  %v4666 = vpop.permute.xlu0 %4665
  %4667 = vset.pattern.permute.xlu0 0
  %4668 = vperm.xlu0 %4667, %v4554
  %v4669 = vpop.permute.xlu0 %4668
  %4670 = vset.pattern.permute.xlu0 0
  %4671 = vperm.xlu0 %4670, %v4555
  %v4672 = vpop.permute.xlu0 %4671
  %4673 = vset.pattern.permute.xlu0 0
  %4674 = vperm.xlu0 %4673, %v4556
  %v4675 = vpop.permute.xlu0 %4674
  %4676 = vset.pattern.permute.xlu0 0
  %4677 = vperm.xlu0 %4676, %v4557
  %v4678 = vpop.permute.xlu0 %4677
  %4679 = vset.pattern.permute.xlu0 0
  %4680 = vperm.xlu0 %4679, %v4558
  %v4681 = vpop.permute.xlu0 %4680
  %4682 = vset.pattern.permute.xlu0 0
  %4683 = vperm.xlu0 %4682, %v4559
  %v4684 = vpop.permute.xlu0 %4683
  %4685 = vset.pattern.permute.xlu0 0
  %4686 = vperm.xlu0 %4685, %v4560
  %v4687 = vpop.permute.xlu0 %4686
  %4688 = vset.pattern.permute.xlu0 0
  %4689 = vperm.xlu0 %4688, %v4561
  %v4690 = vpop.permute.xlu0 %4689
  %4691 = vset.pattern.permute.xlu0 0
  %4692 = vperm.xlu0 %4691, %v4562
  %v4693 = vpop.permute.xlu0 %4692
  %4694 = vset.pattern.permute.xlu0 0
  %4695 = vperm.xlu0 %4694, %v4563
  %v4696 = vpop.permute.xlu0 %4695
  %4697 = vset.pattern.permute.xlu0 0
  %4698 = vperm.xlu0 %4697, %v4564
  %v4699 = vpop.permute.xlu0 %4698
  %4700 = vset.pattern.permute.xlu0 0
  %4701 = vperm.xlu0 %4700, %v4565
  %v4702 = vpop.permute.xlu0 %4701
  %4703 = vset.pattern.permute.xlu0 0
  %4704 = vperm.xlu0 %4703, %v4566
  %v4705 = vpop.permute.xlu0 %4704
  %4706 = vset.pattern.permute.xlu0 0
  %4707 = vperm.xlu0 %4706, %v4567
  %v4708 = vpop.permute.xlu0 %4707
  %4709 = vset.pattern.permute.xlu0 0
  %4710 = vperm.xlu0 %4709, %v4568
  %v4711 = vpop.permute.xlu0 %4710
  %4712 = vset.pattern.permute.xlu0 0
  %4713 = vperm.xlu0 %4712, %v4569
  %v4714 = vpop.permute.xlu0 %4713
  %4715 = vset.pattern.permute.xlu0 0
  %4716 = vperm.xlu0 %4715, %v4570
  %v4717 = vpop.permute.xlu0 %4716
  %4718 = vset.pattern.permute.xlu0 0
  %4719 = vperm.xlu0 %4718, %v4571
  %v4720 = vpop.permute.xlu0 %4719
  %4721 = vset.pattern.permute.xlu0 0
  %4722 = vperm.xlu0 %4721, %v4572
  %v4723 = vpop.permute.xlu0 %4722
  %4724 = vset.pattern.permute.xlu0 0
  %4725 = vperm.xlu0 %4724, %v4573
  %v4726 = vpop.permute.xlu0 %4725
  %4727 = vset.pattern.permute.xlu0 0
  %4728 = vperm.xlu0 %4727, %v4574
  %v4729 = vpop.permute.xlu0 %4728
  %4730 = vset.pattern.permute.xlu0 0
  %4731 = vperm.xlu0 %4730, %v4575
  %v4732 = vpop.permute.xlu0 %4731
  %4733 = vset.pattern.permute.xlu0 0
  %4734 = vperm.xlu0 %4733, %v4576
  %v4735 = vpop.permute.xlu0 %4734
  %4736 = vset.pattern.permute.xlu0 0
  %4737 = vperm.xlu0 %4736, %v4577
  %v4738 = vpop.permute.xlu0 %4737
  %4739 = vset.pattern.permute.xlu0 0
  %4740 = vperm.xlu0 %4739, %v4578
  %v4741 = vpop.permute.xlu0 %4740
  %4742 = vset.pattern.permute.xlu0 0
  %4743 = vperm.xlu0 %4742, %v4579
  %v4744 = vpop.permute.xlu0 %4743
  %4745 = vset.pattern.permute.xlu0 0
  %4746 = vperm.xlu0 %4745, %v4580
  %v4747 = vpop.permute.xlu0 %4746
  %4748 = vset.pattern.permute.xlu0 0
  %4749 = vperm.xlu0 %4748, %v4581
  %v4750 = vpop.permute.xlu0 %4749
  %4751 = vset.pattern.permute.xlu0 0
  %4752 = vperm.xlu0 %4751, %v4582
  %v4753 = vpop.permute.xlu0 %4752
  %4754 = vset.pattern.permute.xlu0 0
  %4755 = vperm.xlu0 %4754, %v4583
  %v4756 = vpop.permute.xlu0 %4755
  %4757 = vset.pattern.permute.xlu0 0
  %4758 = vperm.xlu0 %4757, %v4584
  %v4759 = vpop.permute.xlu0 %4758
  %4760 = vset.pattern.permute.xlu0 0
  %4761 = vperm.xlu0 %4760, %v4585
  %v4762 = vpop.permute.xlu0 %4761
  %4763 = vset.pattern.permute.xlu0 0
  %4764 = vperm.xlu0 %4763, %v4586
  %v4765 = vpop.permute.xlu0 %4764
  %4766 = vset.pattern.permute.xlu0 0
  %4767 = vperm.xlu0 %4766, %v4587
  %v4768 = vpop.permute.xlu0 %4767
  %4769 = vset.pattern.permute.xlu0 0
  %4770 = vperm.xlu0 %4769, %v4588
  %v4771 = vpop.permute.xlu0 %4770
  %4772 = vset.pattern.permute.xlu0 0
  %4773 = vperm.xlu0 %4772, %v4589
  %v4774 = vpop.permute.xlu0 %4773
  %4775 = vset.pattern.permute.xlu0 0
  %4776 = vperm.xlu0 %4775, %v4590
  %v4777 = vpop.permute.xlu0 %4776
  %4778 = vset.pattern.permute.xlu0 0
  %4779 = vperm.xlu0 %4778, %v4591
  %v4780 = vpop.permute.xlu0 %4779
  %4781 = vset.pattern.permute.xlu0 0
  %4782 = vperm.xlu0 %4781, %v4592
  %v4783 = vpop.permute.xlu0 %4782
  %4784 = vset.pattern.permute.xlu0 0
  %4785 = vperm.xlu0 %4784, %v4593
  %v4786 = vpop.permute.xlu0 %4785
  %v4787 = vlaneseq
  %v4788 = vshrl.u32 %v4787, 7
  %v4789 = vsub.s32 0, %v4788
  %v4790 = vrot.slane %v4594, %v4789
  %v4791 = vlaneseq
  %v4792 = vshrl.u32 %v4791, 7
  %v4793 = vsub.s32 1, %v4792
  %v4794 = vrot.slane %v4594, %v4793
  %v4795 = vlaneseq
  %v4796 = vshrl.u32 %v4795, 7
  %v4797 = vsub.s32 2, %v4796
  %v4798 = vrot.slane %v4594, %v4797
  %v4799 = vlaneseq
  %v4800 = vshrl.u32 %v4799, 7
  %v4801 = vsub.s32 3, %v4800
  %v4802 = vrot.slane %v4594, %v4801
  %vm4803 = vcmp.eq.s32.totalorder %v4597, %v4790
  %vm4804 = vcmp.eq.s32.totalorder %v4597, %v4794
  %vm4805 = vcmp.eq.s32.totalorder %v4597, %v4798
  %vm4806 = vcmp.eq.s32.totalorder %v4597, %v4802
  %vm4807 = vcmp.eq.s32.totalorder %v4600, %v4790
  %vm4808 = vcmp.eq.s32.totalorder %v4600, %v4794
  %vm4809 = vcmp.eq.s32.totalorder %v4600, %v4798
  %vm4810 = vcmp.eq.s32.totalorder %v4600, %v4802
  %vm4811 = vcmp.eq.s32.totalorder %v4603, %v4790
  %vm4812 = vcmp.eq.s32.totalorder %v4603, %v4794
  %vm4813 = vcmp.eq.s32.totalorder %v4603, %v4798
  %vm4814 = vcmp.eq.s32.totalorder %v4603, %v4802
  %vm4815 = vcmp.eq.s32.totalorder %v4606, %v4790
  %vm4816 = vcmp.eq.s32.totalorder %v4606, %v4794
  %vm4817 = vcmp.eq.s32.totalorder %v4606, %v4798
  %vm4818 = vcmp.eq.s32.totalorder %v4606, %v4802
  %vm4819 = vcmp.eq.s32.totalorder %v4609, %v4790
  %vm4820 = vcmp.eq.s32.totalorder %v4609, %v4794
  %vm4821 = vcmp.eq.s32.totalorder %v4609, %v4798
  %vm4822 = vcmp.eq.s32.totalorder %v4609, %v4802
  %vm4823 = vcmp.eq.s32.totalorder %v4612, %v4790
  %vm4824 = vcmp.eq.s32.totalorder %v4612, %v4794
  %vm4825 = vcmp.eq.s32.totalorder %v4612, %v4798
  %vm4826 = vcmp.eq.s32.totalorder %v4612, %v4802
  %vm4827 = vcmp.eq.s32.totalorder %v4615, %v4790
  %vm4828 = vcmp.eq.s32.totalorder %v4615, %v4794
  %vm4829 = vcmp.eq.s32.totalorder %v4615, %v4798
  %vm4830 = vcmp.eq.s32.totalorder %v4615, %v4802
  %vm4831 = vcmp.eq.s32.totalorder %v4618, %v4790
  %vm4832 = vcmp.eq.s32.totalorder %v4618, %v4794
  %vm4833 = vcmp.eq.s32.totalorder %v4618, %v4798
  %vm4834 = vcmp.eq.s32.totalorder %v4618, %v4802
  %vm4835 = vcmp.eq.s32.totalorder %v4621, %v4790
  %vm4836 = vcmp.eq.s32.totalorder %v4621, %v4794
  %vm4837 = vcmp.eq.s32.totalorder %v4621, %v4798
  %vm4838 = vcmp.eq.s32.totalorder %v4621, %v4802
  %vm4839 = vcmp.eq.s32.totalorder %v4624, %v4790
  %vm4840 = vcmp.eq.s32.totalorder %v4624, %v4794
  %vm4841 = vcmp.eq.s32.totalorder %v4624, %v4798
  %vm4842 = vcmp.eq.s32.totalorder %v4624, %v4802
  %vm4843 = vcmp.eq.s32.totalorder %v4627, %v4790
  %vm4844 = vcmp.eq.s32.totalorder %v4627, %v4794
  %vm4845 = vcmp.eq.s32.totalorder %v4627, %v4798
  %vm4846 = vcmp.eq.s32.totalorder %v4627, %v4802
  %vm4847 = vcmp.eq.s32.totalorder %v4630, %v4790
  %vm4848 = vcmp.eq.s32.totalorder %v4630, %v4794
  %vm4849 = vcmp.eq.s32.totalorder %v4630, %v4798
  %vm4850 = vcmp.eq.s32.totalorder %v4630, %v4802
  %vm4851 = vcmp.eq.s32.totalorder %v4633, %v4790
  %vm4852 = vcmp.eq.s32.totalorder %v4633, %v4794
  %vm4853 = vcmp.eq.s32.totalorder %v4633, %v4798
  %vm4854 = vcmp.eq.s32.totalorder %v4633, %v4802
  %vm4855 = vcmp.eq.s32.totalorder %v4636, %v4790
  %vm4856 = vcmp.eq.s32.totalorder %v4636, %v4794
  %vm4857 = vcmp.eq.s32.totalorder %v4636, %v4798
  %vm4858 = vcmp.eq.s32.totalorder %v4636, %v4802
  %vm4859 = vcmp.eq.s32.totalorder %v4639, %v4790
  %vm4860 = vcmp.eq.s32.totalorder %v4639, %v4794
  %vm4861 = vcmp.eq.s32.totalorder %v4639, %v4798
  %vm4862 = vcmp.eq.s32.totalorder %v4639, %v4802
  %vm4863 = vcmp.eq.s32.totalorder %v4642, %v4790
  %vm4864 = vcmp.eq.s32.totalorder %v4642, %v4794
  %vm4865 = vcmp.eq.s32.totalorder %v4642, %v4798
  %vm4866 = vcmp.eq.s32.totalorder %v4642, %v4802
  %vm4867 = vcmp.eq.s32.totalorder %v4645, %v4790
  %vm4868 = vcmp.eq.s32.totalorder %v4645, %v4794
  %vm4869 = vcmp.eq.s32.totalorder %v4645, %v4798
  %vm4870 = vcmp.eq.s32.totalorder %v4645, %v4802
  %vm4871 = vcmp.eq.s32.totalorder %v4648, %v4790
  %vm4872 = vcmp.eq.s32.totalorder %v4648, %v4794
  %vm4873 = vcmp.eq.s32.totalorder %v4648, %v4798
  %vm4874 = vcmp.eq.s32.totalorder %v4648, %v4802
  %vm4875 = vcmp.eq.s32.totalorder %v4651, %v4790
  %vm4876 = vcmp.eq.s32.totalorder %v4651, %v4794
  %vm4877 = vcmp.eq.s32.totalorder %v4651, %v4798
  %vm4878 = vcmp.eq.s32.totalorder %v4651, %v4802
  %vm4879 = vcmp.eq.s32.totalorder %v4654, %v4790
  %vm4880 = vcmp.eq.s32.totalorder %v4654, %v4794
  %vm4881 = vcmp.eq.s32.totalorder %v4654, %v4798
  %vm4882 = vcmp.eq.s32.totalorder %v4654, %v4802
  %vm4883 = vcmp.eq.s32.totalorder %v4657, %v4790
  %vm4884 = vcmp.eq.s32.totalorder %v4657, %v4794
  %vm4885 = vcmp.eq.s32.totalorder %v4657, %v4798
  %vm4886 = vcmp.eq.s32.totalorder %v4657, %v4802
  %vm4887 = vcmp.eq.s32.totalorder %v4660, %v4790
  %vm4888 = vcmp.eq.s32.totalorder %v4660, %v4794
  %vm4889 = vcmp.eq.s32.totalorder %v4660, %v4798
  %vm4890 = vcmp.eq.s32.totalorder %v4660, %v4802
  %vm4891 = vcmp.eq.s32.totalorder %v4663, %v4790
  %vm4892 = vcmp.eq.s32.totalorder %v4663, %v4794
  %vm4893 = vcmp.eq.s32.totalorder %v4663, %v4798
  %vm4894 = vcmp.eq.s32.totalorder %v4663, %v4802
  %vm4895 = vcmp.eq.s32.totalorder %v4666, %v4790
  %vm4896 = vcmp.eq.s32.totalorder %v4666, %v4794
  %vm4897 = vcmp.eq.s32.totalorder %v4666, %v4798
  %vm4898 = vcmp.eq.s32.totalorder %v4666, %v4802
  %vm4899 = vcmp.eq.s32.totalorder %v4669, %v4790
  %vm4900 = vcmp.eq.s32.totalorder %v4669, %v4794
  %vm4901 = vcmp.eq.s32.totalorder %v4669, %v4798
  %vm4902 = vcmp.eq.s32.totalorder %v4669, %v4802
  %vm4903 = vcmp.eq.s32.totalorder %v4672, %v4790
  %vm4904 = vcmp.eq.s32.totalorder %v4672, %v4794
  %vm4905 = vcmp.eq.s32.totalorder %v4672, %v4798
  %vm4906 = vcmp.eq.s32.totalorder %v4672, %v4802
  %vm4907 = vcmp.eq.s32.totalorder %v4675, %v4790
  %vm4908 = vcmp.eq.s32.totalorder %v4675, %v4794
  %vm4909 = vcmp.eq.s32.totalorder %v4675, %v4798
  %vm4910 = vcmp.eq.s32.totalorder %v4675, %v4802
  %vm4911 = vcmp.eq.s32.totalorder %v4678, %v4790
  %vm4912 = vcmp.eq.s32.totalorder %v4678, %v4794
  %vm4913 = vcmp.eq.s32.totalorder %v4678, %v4798
  %vm4914 = vcmp.eq.s32.totalorder %v4678, %v4802
  %vm4915 = vcmp.eq.s32.totalorder %v4681, %v4790
  %vm4916 = vcmp.eq.s32.totalorder %v4681, %v4794
  %vm4917 = vcmp.eq.s32.totalorder %v4681, %v4798
  %vm4918 = vcmp.eq.s32.totalorder %v4681, %v4802
  %vm4919 = vcmp.eq.s32.totalorder %v4684, %v4790
  %vm4920 = vcmp.eq.s32.totalorder %v4684, %v4794
  %vm4921 = vcmp.eq.s32.totalorder %v4684, %v4798
  %vm4922 = vcmp.eq.s32.totalorder %v4684, %v4802
  %vm4923 = vcmp.eq.s32.totalorder %v4687, %v4790
  %vm4924 = vcmp.eq.s32.totalorder %v4687, %v4794
  %vm4925 = vcmp.eq.s32.totalorder %v4687, %v4798
  %vm4926 = vcmp.eq.s32.totalorder %v4687, %v4802
  %vm4927 = vcmp.eq.s32.totalorder %v4690, %v4790
  %vm4928 = vcmp.eq.s32.totalorder %v4690, %v4794
  %vm4929 = vcmp.eq.s32.totalorder %v4690, %v4798
  %vm4930 = vcmp.eq.s32.totalorder %v4690, %v4802
  %vm4931 = vcmp.eq.s32.totalorder %v4693, %v4790
  %vm4932 = vcmp.eq.s32.totalorder %v4693, %v4794
  %vm4933 = vcmp.eq.s32.totalorder %v4693, %v4798
  %vm4934 = vcmp.eq.s32.totalorder %v4693, %v4802
  %vm4935 = vcmp.eq.s32.totalorder %v4696, %v4790
  %vm4936 = vcmp.eq.s32.totalorder %v4696, %v4794
  %vm4937 = vcmp.eq.s32.totalorder %v4696, %v4798
  %vm4938 = vcmp.eq.s32.totalorder %v4696, %v4802
  %vm4939 = vcmp.eq.s32.totalorder %v4699, %v4790
  %vm4940 = vcmp.eq.s32.totalorder %v4699, %v4794
  %vm4941 = vcmp.eq.s32.totalorder %v4699, %v4798
  %vm4942 = vcmp.eq.s32.totalorder %v4699, %v4802
  %vm4943 = vcmp.eq.s32.totalorder %v4702, %v4790
  %vm4944 = vcmp.eq.s32.totalorder %v4702, %v4794
  %vm4945 = vcmp.eq.s32.totalorder %v4702, %v4798
  %vm4946 = vcmp.eq.s32.totalorder %v4702, %v4802
  %vm4947 = vcmp.eq.s32.totalorder %v4705, %v4790
  %vm4948 = vcmp.eq.s32.totalorder %v4705, %v4794
  %vm4949 = vcmp.eq.s32.totalorder %v4705, %v4798
  %vm4950 = vcmp.eq.s32.totalorder %v4705, %v4802
  %vm4951 = vcmp.eq.s32.totalorder %v4708, %v4790
  %vm4952 = vcmp.eq.s32.totalorder %v4708, %v4794
  %vm4953 = vcmp.eq.s32.totalorder %v4708, %v4798
  %vm4954 = vcmp.eq.s32.totalorder %v4708, %v4802
  %vm4955 = vcmp.eq.s32.totalorder %v4711, %v4790
  %vm4956 = vcmp.eq.s32.totalorder %v4711, %v4794
  %vm4957 = vcmp.eq.s32.totalorder %v4711, %v4798
  %vm4958 = vcmp.eq.s32.totalorder %v4711, %v4802
  %vm4959 = vcmp.eq.s32.totalorder %v4714, %v4790
  %vm4960 = vcmp.eq.s32.totalorder %v4714, %v4794
  %vm4961 = vcmp.eq.s32.totalorder %v4714, %v4798
  %vm4962 = vcmp.eq.s32.totalorder %v4714, %v4802
  %vm4963 = vcmp.eq.s32.totalorder %v4717, %v4790
  %vm4964 = vcmp.eq.s32.totalorder %v4717, %v4794
  %vm4965 = vcmp.eq.s32.totalorder %v4717, %v4798
  %vm4966 = vcmp.eq.s32.totalorder %v4717, %v4802
  %vm4967 = vcmp.eq.s32.totalorder %v4720, %v4790
  %vm4968 = vcmp.eq.s32.totalorder %v4720, %v4794
  %vm4969 = vcmp.eq.s32.totalorder %v4720, %v4798
  %vm4970 = vcmp.eq.s32.totalorder %v4720, %v4802
  %vm4971 = vcmp.eq.s32.totalorder %v4723, %v4790
  %vm4972 = vcmp.eq.s32.totalorder %v4723, %v4794
  %vm4973 = vcmp.eq.s32.totalorder %v4723, %v4798
  %vm4974 = vcmp.eq.s32.totalorder %v4723, %v4802
  %vm4975 = vcmp.eq.s32.totalorder %v4726, %v4790
  %vm4976 = vcmp.eq.s32.totalorder %v4726, %v4794
  %vm4977 = vcmp.eq.s32.totalorder %v4726, %v4798
  %vm4978 = vcmp.eq.s32.totalorder %v4726, %v4802
  %vm4979 = vcmp.eq.s32.totalorder %v4729, %v4790
  %vm4980 = vcmp.eq.s32.totalorder %v4729, %v4794
  %vm4981 = vcmp.eq.s32.totalorder %v4729, %v4798
  %vm4982 = vcmp.eq.s32.totalorder %v4729, %v4802
  %vm4983 = vcmp.eq.s32.totalorder %v4732, %v4790
  %vm4984 = vcmp.eq.s32.totalorder %v4732, %v4794
  %vm4985 = vcmp.eq.s32.totalorder %v4732, %v4798
  %vm4986 = vcmp.eq.s32.totalorder %v4732, %v4802
  %vm4987 = vcmp.eq.s32.totalorder %v4735, %v4790
  %vm4988 = vcmp.eq.s32.totalorder %v4735, %v4794
  %vm4989 = vcmp.eq.s32.totalorder %v4735, %v4798
  %vm4990 = vcmp.eq.s32.totalorder %v4735, %v4802
  %vm4991 = vcmp.eq.s32.totalorder %v4738, %v4790
  %vm4992 = vcmp.eq.s32.totalorder %v4738, %v4794
  %vm4993 = vcmp.eq.s32.totalorder %v4738, %v4798
  %vm4994 = vcmp.eq.s32.totalorder %v4738, %v4802
  %vm4995 = vcmp.eq.s32.totalorder %v4741, %v4790
  %vm4996 = vcmp.eq.s32.totalorder %v4741, %v4794
  %vm4997 = vcmp.eq.s32.totalorder %v4741, %v4798
  %vm4998 = vcmp.eq.s32.totalorder %v4741, %v4802
  %vm4999 = vcmp.eq.s32.totalorder %v4744, %v4790
  %vm5000 = vcmp.eq.s32.totalorder %v4744, %v4794
  %vm5001 = vcmp.eq.s32.totalorder %v4744, %v4798
  %vm5002 = vcmp.eq.s32.totalorder %v4744, %v4802
  %vm5003 = vcmp.eq.s32.totalorder %v4747, %v4790
  %vm5004 = vcmp.eq.s32.totalorder %v4747, %v4794
  %vm5005 = vcmp.eq.s32.totalorder %v4747, %v4798
  %vm5006 = vcmp.eq.s32.totalorder %v4747, %v4802
  %vm5007 = vcmp.eq.s32.totalorder %v4750, %v4790
  %vm5008 = vcmp.eq.s32.totalorder %v4750, %v4794
  %vm5009 = vcmp.eq.s32.totalorder %v4750, %v4798
  %vm5010 = vcmp.eq.s32.totalorder %v4750, %v4802
  %vm5011 = vcmp.eq.s32.totalorder %v4753, %v4790
  %vm5012 = vcmp.eq.s32.totalorder %v4753, %v4794
  %vm5013 = vcmp.eq.s32.totalorder %v4753, %v4798
  %vm5014 = vcmp.eq.s32.totalorder %v4753, %v4802
  %vm5015 = vcmp.eq.s32.totalorder %v4756, %v4790
  %vm5016 = vcmp.eq.s32.totalorder %v4756, %v4794
  %vm5017 = vcmp.eq.s32.totalorder %v4756, %v4798
  %vm5018 = vcmp.eq.s32.totalorder %v4756, %v4802
  %vm5019 = vcmp.eq.s32.totalorder %v4759, %v4790
  %vm5020 = vcmp.eq.s32.totalorder %v4759, %v4794
  %vm5021 = vcmp.eq.s32.totalorder %v4759, %v4798
  %vm5022 = vcmp.eq.s32.totalorder %v4759, %v4802
  %vm5023 = vcmp.eq.s32.totalorder %v4762, %v4790
  %vm5024 = vcmp.eq.s32.totalorder %v4762, %v4794
  %vm5025 = vcmp.eq.s32.totalorder %v4762, %v4798
  %vm5026 = vcmp.eq.s32.totalorder %v4762, %v4802
  %vm5027 = vcmp.eq.s32.totalorder %v4765, %v4790
  %vm5028 = vcmp.eq.s32.totalorder %v4765, %v4794
  %vm5029 = vcmp.eq.s32.totalorder %v4765, %v4798
  %vm5030 = vcmp.eq.s32.totalorder %v4765, %v4802
  %vm5031 = vcmp.eq.s32.totalorder %v4768, %v4790
  %vm5032 = vcmp.eq.s32.totalorder %v4768, %v4794
  %vm5033 = vcmp.eq.s32.totalorder %v4768, %v4798
  %vm5034 = vcmp.eq.s32.totalorder %v4768, %v4802
  %vm5035 = vcmp.eq.s32.totalorder %v4771, %v4790
  %vm5036 = vcmp.eq.s32.totalorder %v4771, %v4794
  %vm5037 = vcmp.eq.s32.totalorder %v4771, %v4798
  %vm5038 = vcmp.eq.s32.totalorder %v4771, %v4802
  %vm5039 = vcmp.eq.s32.totalorder %v4774, %v4790
  %vm5040 = vcmp.eq.s32.totalorder %v4774, %v4794
  %vm5041 = vcmp.eq.s32.totalorder %v4774, %v4798
  %vm5042 = vcmp.eq.s32.totalorder %v4774, %v4802
  %vm5043 = vcmp.eq.s32.totalorder %v4777, %v4790
  %vm5044 = vcmp.eq.s32.totalorder %v4777, %v4794
  %vm5045 = vcmp.eq.s32.totalorder %v4777, %v4798
  %vm5046 = vcmp.eq.s32.totalorder %v4777, %v4802
  %vm5047 = vcmp.eq.s32.totalorder %v4780, %v4790
  %vm5048 = vcmp.eq.s32.totalorder %v4780, %v4794
  %vm5049 = vcmp.eq.s32.totalorder %v4780, %v4798
  %vm5050 = vcmp.eq.s32.totalorder %v4780, %v4802
  %vm5051 = vcmp.eq.s32.totalorder %v4783, %v4790
  %vm5052 = vcmp.eq.s32.totalorder %v4783, %v4794
  %vm5053 = vcmp.eq.s32.totalorder %v4783, %v4798
  %vm5054 = vcmp.eq.s32.totalorder %v4783, %v4802
  %vm5055 = vcmp.eq.s32.totalorder %v4786, %v4790
  %vm5056 = vcmp.eq.s32.totalorder %v4786, %v4794
  %vm5057 = vcmp.eq.s32.totalorder %v4786, %v4798
  %vm5058 = vcmp.eq.s32.totalorder %v4786, %v4802
  %v5059 = vsel %vm4803, %v3506, -1e+30
  %v5060 = vsel %vm4804, %v3508, -1e+30
  %v5061 = vsel %vm4805, %v4212, -1e+30
  %v5062 = vsel %vm4806, %v4214, -1e+30
  %v5063 = vsel %vm4807, %v3510, -1e+30
  %v5064 = vsel %vm4808, %v3512, -1e+30
  %v5065 = vsel %vm4809, %v4216, -1e+30
  %v5066 = vsel %vm4810, %v4218, -1e+30
  %v5067 = vsel %vm4811, %v3516, -1e+30
  %v5068 = vsel %vm4812, %v3518, -1e+30
  %v5069 = vsel %vm4813, %v4222, -1e+30
  %v5070 = vsel %vm4814, %v4224, -1e+30
  %v5071 = vsel %vm4815, %v3520, -1e+30
  %v5072 = vsel %vm4816, %v3522, -1e+30
  %v5073 = vsel %vm4817, %v4226, -1e+30
  %v5074 = vsel %vm4818, %v4228, -1e+30
  %v5075 = vsel %vm4819, %v3526, -1e+30
  %v5076 = vsel %vm4820, %v3528, -1e+30
  %v5077 = vsel %vm4821, %v4232, -1e+30
  %v5078 = vsel %vm4822, %v4234, -1e+30
  %v5079 = vsel %vm4823, %v3530, -1e+30
  %v5080 = vsel %vm4824, %v3532, -1e+30
  %v5081 = vsel %vm4825, %v4236, -1e+30
  %v5082 = vsel %vm4826, %v4238, -1e+30
  %v5083 = vsel %vm4827, %v3536, -1e+30
  %v5084 = vsel %vm4828, %v3538, -1e+30
  %v5085 = vsel %vm4829, %v4242, -1e+30
  %v5086 = vsel %vm4830, %v4244, -1e+30
  %v5087 = vsel %vm4831, %v3540, -1e+30
  %v5088 = vsel %vm4832, %v3542, -1e+30
  %v5089 = vsel %vm4833, %v4246, -1e+30
  %v5090 = vsel %vm4834, %v4248, -1e+30
  %v5091 = vsel %vm4835, %v3546, -1e+30
  %v5092 = vsel %vm4836, %v3548, -1e+30
  %v5093 = vsel %vm4837, %v4252, -1e+30
  %v5094 = vsel %vm4838, %v4254, -1e+30
  %v5095 = vsel %vm4839, %v3550, -1e+30
  %v5096 = vsel %vm4840, %v3552, -1e+30
  %v5097 = vsel %vm4841, %v4256, -1e+30
  %v5098 = vsel %vm4842, %v4258, -1e+30
  %v5099 = vsel %vm4843, %v3556, -1e+30
  %v5100 = vsel %vm4844, %v3558, -1e+30
  %v5101 = vsel %vm4845, %v4262, -1e+30
  %v5102 = vsel %vm4846, %v4264, -1e+30
  %v5103 = vsel %vm4847, %v3560, -1e+30
  %v5104 = vsel %vm4848, %v3562, -1e+30
  %v5105 = vsel %vm4849, %v4266, -1e+30
  %v5106 = vsel %vm4850, %v4268, -1e+30
  %v5107 = vsel %vm4851, %v3566, -1e+30
  %v5108 = vsel %vm4852, %v3568, -1e+30
  %v5109 = vsel %vm4853, %v4272, -1e+30
  %v5110 = vsel %vm4854, %v4274, -1e+30
  %v5111 = vsel %vm4855, %v3570, -1e+30
  %v5112 = vsel %vm4856, %v3572, -1e+30
  %v5113 = vsel %vm4857, %v4276, -1e+30
  %v5114 = vsel %vm4858, %v4278, -1e+30
  %v5115 = vsel %vm4859, %v3576, -1e+30
  %v5116 = vsel %vm4860, %v3578, -1e+30
  %v5117 = vsel %vm4861, %v4282, -1e+30
  %v5118 = vsel %vm4862, %v4284, -1e+30
  %v5119 = vsel %vm4863, %v3580, -1e+30
  %v5120 = vsel %vm4864, %v3582, -1e+30
  %v5121 = vsel %vm4865, %v4286, -1e+30
  %v5122 = vsel %vm4866, %v4288, -1e+30
  %v5123 = vsel %vm4867, %v3586, -1e+30
  %v5124 = vsel %vm4868, %v3588, -1e+30
  %v5125 = vsel %vm4869, %v4292, -1e+30
  %v5126 = vsel %vm4870, %v4294, -1e+30
  %v5127 = vsel %vm4871, %v3590, -1e+30
  %v5128 = vsel %vm4872, %v3592, -1e+30
  %v5129 = vsel %vm4873, %v4296, -1e+30
  %v5130 = vsel %vm4874, %v4298, -1e+30
  %v5131 = vsel %vm4875, %v3596, -1e+30
  %v5132 = vsel %vm4876, %v3598, -1e+30
  %v5133 = vsel %vm4877, %v4302, -1e+30
  %v5134 = vsel %vm4878, %v4304, -1e+30
  %v5135 = vsel %vm4879, %v3600, -1e+30
  %v5136 = vsel %vm4880, %v3602, -1e+30
  %v5137 = vsel %vm4881, %v4306, -1e+30
  %v5138 = vsel %vm4882, %v4308, -1e+30
  %v5139 = vsel %vm4883, %v3606, -1e+30
  %v5140 = vsel %vm4884, %v3608, -1e+30
  %v5141 = vsel %vm4885, %v4312, -1e+30
  %v5142 = vsel %vm4886, %v4314, -1e+30
  %v5143 = vsel %vm4887, %v3610, -1e+30
  %v5144 = vsel %vm4888, %v3612, -1e+30
  %v5145 = vsel %vm4889, %v4316, -1e+30
  %v5146 = vsel %vm4890, %v4318, -1e+30
  %v5147 = vsel %vm4891, %v3616, -1e+30
  %v5148 = vsel %vm4892, %v3618, -1e+30
  %v5149 = vsel %vm4893, %v4322, -1e+30
  %v5150 = vsel %vm4894, %v4324, -1e+30
  %v5151 = vsel %vm4895, %v3620, -1e+30
  %v5152 = vsel %vm4896, %v3622, -1e+30
  %v5153 = vsel %vm4897, %v4326, -1e+30
  %v5154 = vsel %vm4898, %v4328, -1e+30
  %v5155 = vsel %vm4899, %v3626, -1e+30
  %v5156 = vsel %vm4900, %v3628, -1e+30
  %v5157 = vsel %vm4901, %v4332, -1e+30
  %v5158 = vsel %vm4902, %v4334, -1e+30
  %v5159 = vsel %vm4903, %v3630, -1e+30
  %v5160 = vsel %vm4904, %v3632, -1e+30
  %v5161 = vsel %vm4905, %v4336, -1e+30
  %v5162 = vsel %vm4906, %v4338, -1e+30
  %v5163 = vsel %vm4907, %v3636, -1e+30
  %v5164 = vsel %vm4908, %v3638, -1e+30
  %v5165 = vsel %vm4909, %v4342, -1e+30
  %v5166 = vsel %vm4910, %v4344, -1e+30
  %v5167 = vsel %vm4911, %v3640, -1e+30
  %v5168 = vsel %vm4912, %v3642, -1e+30
  %v5169 = vsel %vm4913, %v4346, -1e+30
  %v5170 = vsel %vm4914, %v4348, -1e+30
  %v5171 = vsel %vm4915, %v3646, -1e+30
  %v5172 = vsel %vm4916, %v3648, -1e+30
  %v5173 = vsel %vm4917, %v4352, -1e+30
  %v5174 = vsel %vm4918, %v4354, -1e+30
  %v5175 = vsel %vm4919, %v3650, -1e+30
  %v5176 = vsel %vm4920, %v3652, -1e+30
  %v5177 = vsel %vm4921, %v4356, -1e+30
  %v5178 = vsel %vm4922, %v4358, -1e+30
  %v5179 = vsel %vm4923, %v3656, -1e+30
  %v5180 = vsel %vm4924, %v3658, -1e+30
  %v5181 = vsel %vm4925, %v4362, -1e+30
  %v5182 = vsel %vm4926, %v4364, -1e+30
  %v5183 = vsel %vm4927, %v3660, -1e+30
  %v5184 = vsel %vm4928, %v3662, -1e+30
  %v5185 = vsel %vm4929, %v4366, -1e+30
  %v5186 = vsel %vm4930, %v4368, -1e+30
  %v5187 = vsel %vm4931, %v3666, -1e+30
  %v5188 = vsel %vm4932, %v3668, -1e+30
  %v5189 = vsel %vm4933, %v4372, -1e+30
  %v5190 = vsel %vm4934, %v4374, -1e+30
  %v5191 = vsel %vm4935, %v3670, -1e+30
  %v5192 = vsel %vm4936, %v3672, -1e+30
  %v5193 = vsel %vm4937, %v4376, -1e+30
  %v5194 = vsel %vm4938, %v4378, -1e+30
  %v5195 = vsel %vm4939, %v3676, -1e+30
  %v5196 = vsel %vm4940, %v3678, -1e+30
  %v5197 = vsel %vm4941, %v4382, -1e+30
  %v5198 = vsel %vm4942, %v4384, -1e+30
  %v5199 = vsel %vm4943, %v3680, -1e+30
  %v5200 = vsel %vm4944, %v3682, -1e+30
  %v5201 = vsel %vm4945, %v4386, -1e+30
  %v5202 = vsel %vm4946, %v4388, -1e+30
  %v5203 = vsel %vm4947, %v3686, -1e+30
  %v5204 = vsel %vm4948, %v3688, -1e+30
  %v5205 = vsel %vm4949, %v4392, -1e+30
  %v5206 = vsel %vm4950, %v4394, -1e+30
  %v5207 = vsel %vm4951, %v3690, -1e+30
  %v5208 = vsel %vm4952, %v3692, -1e+30
  %v5209 = vsel %vm4953, %v4396, -1e+30
  %v5210 = vsel %vm4954, %v4398, -1e+30
  %v5211 = vsel %vm4955, %v3696, -1e+30
  %v5212 = vsel %vm4956, %v3698, -1e+30
  %v5213 = vsel %vm4957, %v4402, -1e+30
  %v5214 = vsel %vm4958, %v4404, -1e+30
  %v5215 = vsel %vm4959, %v3700, -1e+30
  %v5216 = vsel %vm4960, %v3702, -1e+30
  %v5217 = vsel %vm4961, %v4406, -1e+30
  %v5218 = vsel %vm4962, %v4408, -1e+30
  %v5219 = vsel %vm4963, %v3706, -1e+30
  %v5220 = vsel %vm4964, %v3708, -1e+30
  %v5221 = vsel %vm4965, %v4412, -1e+30
  %v5222 = vsel %vm4966, %v4414, -1e+30
  %v5223 = vsel %vm4967, %v3710, -1e+30
  %v5224 = vsel %vm4968, %v3712, -1e+30
  %v5225 = vsel %vm4969, %v4416, -1e+30
  %v5226 = vsel %vm4970, %v4418, -1e+30
  %v5227 = vsel %vm4971, %v3716, -1e+30
  %v5228 = vsel %vm4972, %v3718, -1e+30
  %v5229 = vsel %vm4973, %v4422, -1e+30
  %v5230 = vsel %vm4974, %v4424, -1e+30
  %v5231 = vsel %vm4975, %v3720, -1e+30
  %v5232 = vsel %vm4976, %v3722, -1e+30
  %v5233 = vsel %vm4977, %v4426, -1e+30
  %v5234 = vsel %vm4978, %v4428, -1e+30
  %v5235 = vsel %vm4979, %v3726, -1e+30
  %v5236 = vsel %vm4980, %v3728, -1e+30
  %v5237 = vsel %vm4981, %v4432, -1e+30
  %v5238 = vsel %vm4982, %v4434, -1e+30
  %v5239 = vsel %vm4983, %v3730, -1e+30
  %v5240 = vsel %vm4984, %v3732, -1e+30
  %v5241 = vsel %vm4985, %v4436, -1e+30
  %v5242 = vsel %vm4986, %v4438, -1e+30
  %v5243 = vsel %vm4987, %v3736, -1e+30
  %v5244 = vsel %vm4988, %v3738, -1e+30
  %v5245 = vsel %vm4989, %v4442, -1e+30
  %v5246 = vsel %vm4990, %v4444, -1e+30
  %v5247 = vsel %vm4991, %v3740, -1e+30
  %v5248 = vsel %vm4992, %v3742, -1e+30
  %v5249 = vsel %vm4993, %v4446, -1e+30
  %v5250 = vsel %vm4994, %v4448, -1e+30
  %v5251 = vsel %vm4995, %v3746, -1e+30
  %v5252 = vsel %vm4996, %v3748, -1e+30
  %v5253 = vsel %vm4997, %v4452, -1e+30
  %v5254 = vsel %vm4998, %v4454, -1e+30
  %v5255 = vsel %vm4999, %v3750, -1e+30
  %v5256 = vsel %vm5000, %v3752, -1e+30
  %v5257 = vsel %vm5001, %v4456, -1e+30
  %v5258 = vsel %vm5002, %v4458, -1e+30
  %v5259 = vsel %vm5003, %v3756, -1e+30
  %v5260 = vsel %vm5004, %v3758, -1e+30
  %v5261 = vsel %vm5005, %v4462, -1e+30
  %v5262 = vsel %vm5006, %v4464, -1e+30
  %v5263 = vsel %vm5007, %v3760, -1e+30
  %v5264 = vsel %vm5008, %v3762, -1e+30
  %v5265 = vsel %vm5009, %v4466, -1e+30
  %v5266 = vsel %vm5010, %v4468, -1e+30
  %v5267 = vsel %vm5011, %v3766, -1e+30
  %v5268 = vsel %vm5012, %v3768, -1e+30
  %v5269 = vsel %vm5013, %v4472, -1e+30
  %v5270 = vsel %vm5014, %v4474, -1e+30
  %v5271 = vsel %vm5015, %v3770, -1e+30
  %v5272 = vsel %vm5016, %v3772, -1e+30
  %v5273 = vsel %vm5017, %v4476, -1e+30
  %v5274 = vsel %vm5018, %v4478, -1e+30
  %v5275 = vsel %vm5019, %v3776, -1e+30
  %v5276 = vsel %vm5020, %v3778, -1e+30
  %v5277 = vsel %vm5021, %v4482, -1e+30
  %v5278 = vsel %vm5022, %v4484, -1e+30
  %v5279 = vsel %vm5023, %v3780, -1e+30
  %v5280 = vsel %vm5024, %v3782, -1e+30
  %v5281 = vsel %vm5025, %v4486, -1e+30
  %v5282 = vsel %vm5026, %v4488, -1e+30
  %v5283 = vsel %vm5027, %v3786, -1e+30
  %v5284 = vsel %vm5028, %v3788, -1e+30
  %v5285 = vsel %vm5029, %v4492, -1e+30
  %v5286 = vsel %vm5030, %v4494, -1e+30
  %v5287 = vsel %vm5031, %v3790, -1e+30
  %v5288 = vsel %vm5032, %v3792, -1e+30
  %v5289 = vsel %vm5033, %v4496, -1e+30
  %v5290 = vsel %vm5034, %v4498, -1e+30
  %v5291 = vsel %vm5035, %v3796, -1e+30
  %v5292 = vsel %vm5036, %v3798, -1e+30
  %v5293 = vsel %vm5037, %v4502, -1e+30
  %v5294 = vsel %vm5038, %v4504, -1e+30
  %v5295 = vsel %vm5039, %v3800, -1e+30
  %v5296 = vsel %vm5040, %v3802, -1e+30
  %v5297 = vsel %vm5041, %v4506, -1e+30
  %v5298 = vsel %vm5042, %v4508, -1e+30
  %v5299 = vsel %vm5043, %v3806, -1e+30
  %v5300 = vsel %vm5044, %v3808, -1e+30
  %v5301 = vsel %vm5045, %v4512, -1e+30
  %v5302 = vsel %vm5046, %v4514, -1e+30
  %v5303 = vsel %vm5047, %v3810, -1e+30
  %v5304 = vsel %vm5048, %v3812, -1e+30
  %v5305 = vsel %vm5049, %v4516, -1e+30
  %v5306 = vsel %vm5050, %v4518, -1e+30
  %v5307 = vsel %vm5051, %v3816, -1e+30
  %v5308 = vsel %vm5052, %v3818, -1e+30
  %v5309 = vsel %vm5053, %v4522, -1e+30
  %v5310 = vsel %vm5054, %v4524, -1e+30
  %v5311 = vsel %vm5055, %v3820, -1e+30
  %v5312 = vsel %vm5056, %v3822, -1e+30
  %v5313 = vsel %vm5057, %v4526, -1e+30
  %v5314 = vsel %vm5058, %v4528, -1e+30
  %v5315 = vmax.f32 %v5059, %v5060
  %v5316 = vmax.f32 %v5315, %v5061
  %v5317 = vmax.f32 %v5316, %v5062
  %5318 = vmax.xlane.f32.xlu0 %v5317
  %v5319 = vpop.xlane.xlu0 %5318
  %v5320 = vmax.f32 %v5063, %v5064
  %v5321 = vmax.f32 %v5320, %v5065
  %v5322 = vmax.f32 %v5321, %v5066
  %5323 = vmax.xlane.f32.xlu0 %v5322
  %v5324 = vpop.xlane.xlu0 %5323
  %v5325 = vmax.f32 %v5067, %v5068
  %v5326 = vmax.f32 %v5325, %v5069
  %v5327 = vmax.f32 %v5326, %v5070
  %5328 = vmax.xlane.f32.xlu0 %v5327
  %v5329 = vpop.xlane.xlu0 %5328
  %v5330 = vmax.f32 %v5071, %v5072
  %v5331 = vmax.f32 %v5330, %v5073
  %v5332 = vmax.f32 %v5331, %v5074
  %5333 = vmax.xlane.f32.xlu0 %v5332
  %v5334 = vpop.xlane.xlu0 %5333
  %v5335 = vmax.f32 %v5075, %v5076
  %v5336 = vmax.f32 %v5335, %v5077
  %v5337 = vmax.f32 %v5336, %v5078
  %5338 = vmax.xlane.f32.xlu0 %v5337
  %v5339 = vpop.xlane.xlu0 %5338
  %v5340 = vmax.f32 %v5079, %v5080
  %v5341 = vmax.f32 %v5340, %v5081
  %v5342 = vmax.f32 %v5341, %v5082
  %5343 = vmax.xlane.f32.xlu0 %v5342
  %v5344 = vpop.xlane.xlu0 %5343
  %v5345 = vmax.f32 %v5083, %v5084
  %v5346 = vmax.f32 %v5345, %v5085
  %v5347 = vmax.f32 %v5346, %v5086
  %5348 = vmax.xlane.f32.xlu0 %v5347
  %v5349 = vpop.xlane.xlu0 %5348
  %v5350 = vmax.f32 %v5087, %v5088
  %v5351 = vmax.f32 %v5350, %v5089
  %v5352 = vmax.f32 %v5351, %v5090
  %5353 = vmax.xlane.f32.xlu0 %v5352
  %v5354 = vpop.xlane.xlu0 %5353
  %v5355 = vmax.f32 %v5091, %v5092
  %v5356 = vmax.f32 %v5355, %v5093
  %v5357 = vmax.f32 %v5356, %v5094
  %5358 = vmax.xlane.f32.xlu0 %v5357
  %v5359 = vpop.xlane.xlu0 %5358
  %v5360 = vmax.f32 %v5095, %v5096
  %v5361 = vmax.f32 %v5360, %v5097
  %v5362 = vmax.f32 %v5361, %v5098
  %5363 = vmax.xlane.f32.xlu0 %v5362
  %v5364 = vpop.xlane.xlu0 %5363
  %v5365 = vmax.f32 %v5099, %v5100
  %v5366 = vmax.f32 %v5365, %v5101
  %v5367 = vmax.f32 %v5366, %v5102
  %5368 = vmax.xlane.f32.xlu0 %v5367
  %v5369 = vpop.xlane.xlu0 %5368
  %v5370 = vmax.f32 %v5103, %v5104
  %v5371 = vmax.f32 %v5370, %v5105
  %v5372 = vmax.f32 %v5371, %v5106
  %5373 = vmax.xlane.f32.xlu0 %v5372
  %v5374 = vpop.xlane.xlu0 %5373
  %v5375 = vmax.f32 %v5107, %v5108
  %v5376 = vmax.f32 %v5375, %v5109
  %v5377 = vmax.f32 %v5376, %v5110
  %5378 = vmax.xlane.f32.xlu0 %v5377
  %v5379 = vpop.xlane.xlu0 %5378
  %v5380 = vmax.f32 %v5111, %v5112
  %v5381 = vmax.f32 %v5380, %v5113
  %v5382 = vmax.f32 %v5381, %v5114
  %5383 = vmax.xlane.f32.xlu0 %v5382
  %v5384 = vpop.xlane.xlu0 %5383
  %v5385 = vmax.f32 %v5115, %v5116
  %v5386 = vmax.f32 %v5385, %v5117
  %v5387 = vmax.f32 %v5386, %v5118
  %5388 = vmax.xlane.f32.xlu0 %v5387
  %v5389 = vpop.xlane.xlu0 %5388
  %v5390 = vmax.f32 %v5119, %v5120
  %v5391 = vmax.f32 %v5390, %v5121
  %v5392 = vmax.f32 %v5391, %v5122
  %5393 = vmax.xlane.f32.xlu0 %v5392
  %v5394 = vpop.xlane.xlu0 %5393
  %v5395 = vmax.f32 %v5123, %v5124
  %v5396 = vmax.f32 %v5395, %v5125
  %v5397 = vmax.f32 %v5396, %v5126
  %5398 = vmax.xlane.f32.xlu0 %v5397
  %v5399 = vpop.xlane.xlu0 %5398
  %v5400 = vmax.f32 %v5127, %v5128
  %v5401 = vmax.f32 %v5400, %v5129
  %v5402 = vmax.f32 %v5401, %v5130
  %5403 = vmax.xlane.f32.xlu0 %v5402
  %v5404 = vpop.xlane.xlu0 %5403
  %v5405 = vmax.f32 %v5131, %v5132
  %v5406 = vmax.f32 %v5405, %v5133
  %v5407 = vmax.f32 %v5406, %v5134
  %5408 = vmax.xlane.f32.xlu0 %v5407
  %v5409 = vpop.xlane.xlu0 %5408
  %v5410 = vmax.f32 %v5135, %v5136
  %v5411 = vmax.f32 %v5410, %v5137
  %v5412 = vmax.f32 %v5411, %v5138
  %5413 = vmax.xlane.f32.xlu0 %v5412
  %v5414 = vpop.xlane.xlu0 %5413
  %v5415 = vmax.f32 %v5139, %v5140
  %v5416 = vmax.f32 %v5415, %v5141
  %v5417 = vmax.f32 %v5416, %v5142
  %5418 = vmax.xlane.f32.xlu0 %v5417
  %v5419 = vpop.xlane.xlu0 %5418
  %v5420 = vmax.f32 %v5143, %v5144
  %v5421 = vmax.f32 %v5420, %v5145
  %v5422 = vmax.f32 %v5421, %v5146
  %5423 = vmax.xlane.f32.xlu0 %v5422
  %v5424 = vpop.xlane.xlu0 %5423
  %v5425 = vmax.f32 %v5147, %v5148
  %v5426 = vmax.f32 %v5425, %v5149
  %v5427 = vmax.f32 %v5426, %v5150
  %5428 = vmax.xlane.f32.xlu0 %v5427
  %v5429 = vpop.xlane.xlu0 %5428
  %v5430 = vmax.f32 %v5151, %v5152
  %v5431 = vmax.f32 %v5430, %v5153
  %v5432 = vmax.f32 %v5431, %v5154
  %5433 = vmax.xlane.f32.xlu0 %v5432
  %v5434 = vpop.xlane.xlu0 %5433
  %v5435 = vmax.f32 %v5155, %v5156
  %v5436 = vmax.f32 %v5435, %v5157
  %v5437 = vmax.f32 %v5436, %v5158
  %5438 = vmax.xlane.f32.xlu0 %v5437
  %v5439 = vpop.xlane.xlu0 %5438
  %v5440 = vmax.f32 %v5159, %v5160
  %v5441 = vmax.f32 %v5440, %v5161
  %v5442 = vmax.f32 %v5441, %v5162
  %5443 = vmax.xlane.f32.xlu0 %v5442
  %v5444 = vpop.xlane.xlu0 %5443
  %v5445 = vmax.f32 %v5163, %v5164
  %v5446 = vmax.f32 %v5445, %v5165
  %v5447 = vmax.f32 %v5446, %v5166
  %5448 = vmax.xlane.f32.xlu0 %v5447
  %v5449 = vpop.xlane.xlu0 %5448
  %v5450 = vmax.f32 %v5167, %v5168
  %v5451 = vmax.f32 %v5450, %v5169
  %v5452 = vmax.f32 %v5451, %v5170
  %5453 = vmax.xlane.f32.xlu0 %v5452
  %v5454 = vpop.xlane.xlu0 %5453
  %v5455 = vmax.f32 %v5171, %v5172
  %v5456 = vmax.f32 %v5455, %v5173
  %v5457 = vmax.f32 %v5456, %v5174
  %5458 = vmax.xlane.f32.xlu0 %v5457
  %v5459 = vpop.xlane.xlu0 %5458
  %v5460 = vmax.f32 %v5175, %v5176
  %v5461 = vmax.f32 %v5460, %v5177
  %v5462 = vmax.f32 %v5461, %v5178
  %5463 = vmax.xlane.f32.xlu0 %v5462
  %v5464 = vpop.xlane.xlu0 %5463
  %v5465 = vmax.f32 %v5179, %v5180
  %v5466 = vmax.f32 %v5465, %v5181
  %v5467 = vmax.f32 %v5466, %v5182
  %5468 = vmax.xlane.f32.xlu0 %v5467
  %v5469 = vpop.xlane.xlu0 %5468
  %v5470 = vmax.f32 %v5183, %v5184
  %v5471 = vmax.f32 %v5470, %v5185
  %v5472 = vmax.f32 %v5471, %v5186
  %5473 = vmax.xlane.f32.xlu0 %v5472
  %v5474 = vpop.xlane.xlu0 %5473
  %v5475 = vmax.f32 %v5187, %v5188
  %v5476 = vmax.f32 %v5475, %v5189
  %v5477 = vmax.f32 %v5476, %v5190
  %5478 = vmax.xlane.f32.xlu0 %v5477
  %v5479 = vpop.xlane.xlu0 %5478
  %v5480 = vmax.f32 %v5191, %v5192
  %v5481 = vmax.f32 %v5480, %v5193
  %v5482 = vmax.f32 %v5481, %v5194
  %5483 = vmax.xlane.f32.xlu0 %v5482
  %v5484 = vpop.xlane.xlu0 %5483
  %v5485 = vmax.f32 %v5195, %v5196
  %v5486 = vmax.f32 %v5485, %v5197
  %v5487 = vmax.f32 %v5486, %v5198
  %5488 = vmax.xlane.f32.xlu0 %v5487
  %v5489 = vpop.xlane.xlu0 %5488
  %v5490 = vmax.f32 %v5199, %v5200
  %v5491 = vmax.f32 %v5490, %v5201
  %v5492 = vmax.f32 %v5491, %v5202
  %5493 = vmax.xlane.f32.xlu0 %v5492
  %v5494 = vpop.xlane.xlu0 %5493
  %v5495 = vmax.f32 %v5203, %v5204
  %v5496 = vmax.f32 %v5495, %v5205
  %v5497 = vmax.f32 %v5496, %v5206
  %5498 = vmax.xlane.f32.xlu0 %v5497
  %v5499 = vpop.xlane.xlu0 %5498
  %v5500 = vmax.f32 %v5207, %v5208
  %v5501 = vmax.f32 %v5500, %v5209
  %v5502 = vmax.f32 %v5501, %v5210
  %5503 = vmax.xlane.f32.xlu0 %v5502
  %v5504 = vpop.xlane.xlu0 %5503
  %v5505 = vmax.f32 %v5211, %v5212
  %v5506 = vmax.f32 %v5505, %v5213
  %v5507 = vmax.f32 %v5506, %v5214
  %5508 = vmax.xlane.f32.xlu0 %v5507
  %v5509 = vpop.xlane.xlu0 %5508
  %v5510 = vmax.f32 %v5215, %v5216
  %v5511 = vmax.f32 %v5510, %v5217
  %v5512 = vmax.f32 %v5511, %v5218
  %5513 = vmax.xlane.f32.xlu0 %v5512
  %v5514 = vpop.xlane.xlu0 %5513
  %v5515 = vmax.f32 %v5219, %v5220
  %v5516 = vmax.f32 %v5515, %v5221
  %v5517 = vmax.f32 %v5516, %v5222
  %5518 = vmax.xlane.f32.xlu0 %v5517
  %v5519 = vpop.xlane.xlu0 %5518
  %v5520 = vmax.f32 %v5223, %v5224
  %v5521 = vmax.f32 %v5520, %v5225
  %v5522 = vmax.f32 %v5521, %v5226
  %5523 = vmax.xlane.f32.xlu0 %v5522
  %v5524 = vpop.xlane.xlu0 %5523
  %v5525 = vmax.f32 %v5227, %v5228
  %v5526 = vmax.f32 %v5525, %v5229
  %v5527 = vmax.f32 %v5526, %v5230
  %5528 = vmax.xlane.f32.xlu0 %v5527
  %v5529 = vpop.xlane.xlu0 %5528
  %v5530 = vmax.f32 %v5231, %v5232
  %v5531 = vmax.f32 %v5530, %v5233
  %v5532 = vmax.f32 %v5531, %v5234
  %5533 = vmax.xlane.f32.xlu0 %v5532
  %v5534 = vpop.xlane.xlu0 %5533
  %v5535 = vmax.f32 %v5235, %v5236
  %v5536 = vmax.f32 %v5535, %v5237
  %v5537 = vmax.f32 %v5536, %v5238
  %5538 = vmax.xlane.f32.xlu0 %v5537
  %v5539 = vpop.xlane.xlu0 %5538
  %v5540 = vmax.f32 %v5239, %v5240
  %v5541 = vmax.f32 %v5540, %v5241
  %v5542 = vmax.f32 %v5541, %v5242
  %5543 = vmax.xlane.f32.xlu0 %v5542
  %v5544 = vpop.xlane.xlu0 %5543
  %v5545 = vmax.f32 %v5243, %v5244
  %v5546 = vmax.f32 %v5545, %v5245
  %v5547 = vmax.f32 %v5546, %v5246
  %5548 = vmax.xlane.f32.xlu0 %v5547
  %v5549 = vpop.xlane.xlu0 %5548
  %v5550 = vmax.f32 %v5247, %v5248
  %v5551 = vmax.f32 %v5550, %v5249
  %v5552 = vmax.f32 %v5551, %v5250
  %5553 = vmax.xlane.f32.xlu0 %v5552
  %v5554 = vpop.xlane.xlu0 %5553
  %v5555 = vmax.f32 %v5251, %v5252
  %v5556 = vmax.f32 %v5555, %v5253
  %v5557 = vmax.f32 %v5556, %v5254
  %5558 = vmax.xlane.f32.xlu0 %v5557
  %v5559 = vpop.xlane.xlu0 %5558
  %v5560 = vmax.f32 %v5255, %v5256
  %v5561 = vmax.f32 %v5560, %v5257
  %v5562 = vmax.f32 %v5561, %v5258
  %5563 = vmax.xlane.f32.xlu0 %v5562
  %v5564 = vpop.xlane.xlu0 %5563
  %v5565 = vmax.f32 %v5259, %v5260
  %v5566 = vmax.f32 %v5565, %v5261
  %v5567 = vmax.f32 %v5566, %v5262
  %5568 = vmax.xlane.f32.xlu0 %v5567
  %v5569 = vpop.xlane.xlu0 %5568
  %v5570 = vmax.f32 %v5263, %v5264
  %v5571 = vmax.f32 %v5570, %v5265
  %v5572 = vmax.f32 %v5571, %v5266
  %5573 = vmax.xlane.f32.xlu0 %v5572
  %v5574 = vpop.xlane.xlu0 %5573
  %v5575 = vmax.f32 %v5267, %v5268
  %v5576 = vmax.f32 %v5575, %v5269
  %v5577 = vmax.f32 %v5576, %v5270
  %5578 = vmax.xlane.f32.xlu0 %v5577
  %v5579 = vpop.xlane.xlu0 %5578
  %v5580 = vmax.f32 %v5271, %v5272
  %v5581 = vmax.f32 %v5580, %v5273
  %v5582 = vmax.f32 %v5581, %v5274
  %5583 = vmax.xlane.f32.xlu0 %v5582
  %v5584 = vpop.xlane.xlu0 %5583
  %v5585 = vmax.f32 %v5275, %v5276
  %v5586 = vmax.f32 %v5585, %v5277
  %v5587 = vmax.f32 %v5586, %v5278
  %5588 = vmax.xlane.f32.xlu0 %v5587
  %v5589 = vpop.xlane.xlu0 %5588
  %v5590 = vmax.f32 %v5279, %v5280
  %v5591 = vmax.f32 %v5590, %v5281
  %v5592 = vmax.f32 %v5591, %v5282
  %5593 = vmax.xlane.f32.xlu0 %v5592
  %v5594 = vpop.xlane.xlu0 %5593
  %v5595 = vmax.f32 %v5283, %v5284
  %v5596 = vmax.f32 %v5595, %v5285
  %v5597 = vmax.f32 %v5596, %v5286
  %5598 = vmax.xlane.f32.xlu0 %v5597
  %v5599 = vpop.xlane.xlu0 %5598
  %v5600 = vmax.f32 %v5287, %v5288
  %v5601 = vmax.f32 %v5600, %v5289
  %v5602 = vmax.f32 %v5601, %v5290
  %5603 = vmax.xlane.f32.xlu0 %v5602
  %v5604 = vpop.xlane.xlu0 %5603
  %v5605 = vmax.f32 %v5291, %v5292
  %v5606 = vmax.f32 %v5605, %v5293
  %v5607 = vmax.f32 %v5606, %v5294
  %5608 = vmax.xlane.f32.xlu0 %v5607
  %v5609 = vpop.xlane.xlu0 %5608
  %v5610 = vmax.f32 %v5295, %v5296
  %v5611 = vmax.f32 %v5610, %v5297
  %v5612 = vmax.f32 %v5611, %v5298
  %5613 = vmax.xlane.f32.xlu0 %v5612
  %v5614 = vpop.xlane.xlu0 %5613
  %v5615 = vmax.f32 %v5299, %v5300
  %v5616 = vmax.f32 %v5615, %v5301
  %v5617 = vmax.f32 %v5616, %v5302
  %5618 = vmax.xlane.f32.xlu0 %v5617
  %v5619 = vpop.xlane.xlu0 %5618
  %v5620 = vmax.f32 %v5303, %v5304
  %v5621 = vmax.f32 %v5620, %v5305
  %v5622 = vmax.f32 %v5621, %v5306
  %5623 = vmax.xlane.f32.xlu0 %v5622
  %v5624 = vpop.xlane.xlu0 %5623
  %v5625 = vmax.f32 %v5307, %v5308
  %v5626 = vmax.f32 %v5625, %v5309
  %v5627 = vmax.f32 %v5626, %v5310
  %5628 = vmax.xlane.f32.xlu0 %v5627
  %v5629 = vpop.xlane.xlu0 %5628
  %v5630 = vmax.f32 %v5311, %v5312
  %v5631 = vmax.f32 %v5630, %v5313
  %v5632 = vmax.f32 %v5631, %v5314
  %5633 = vmax.xlane.f32.xlu0 %v5632
  %v5634 = vpop.xlane.xlu0 %5633
  %v5635 = vsub.f32 %v5059, %v5319
  %v5636 = vsub.f32 %v5060, %v5319
  %v5637 = vsub.f32 %v5061, %v5319
  %v5638 = vsub.f32 %v5062, %v5319
  %v5639 = vsub.f32 %v5063, %v5324
  %v5640 = vsub.f32 %v5064, %v5324
  %v5641 = vsub.f32 %v5065, %v5324
  %v5642 = vsub.f32 %v5066, %v5324
  %v5643 = vsub.f32 %v5067, %v5329
  %v5644 = vsub.f32 %v5068, %v5329
  %v5645 = vsub.f32 %v5069, %v5329
  %v5646 = vsub.f32 %v5070, %v5329
  %v5647 = vsub.f32 %v5071, %v5334
  %v5648 = vsub.f32 %v5072, %v5334
  %v5649 = vsub.f32 %v5073, %v5334
  %v5650 = vsub.f32 %v5074, %v5334
  %v5651 = vsub.f32 %v5075, %v5339
  %v5652 = vsub.f32 %v5076, %v5339
  %v5653 = vsub.f32 %v5077, %v5339
  %v5654 = vsub.f32 %v5078, %v5339
  %v5655 = vsub.f32 %v5079, %v5344
  %v5656 = vsub.f32 %v5080, %v5344
  %v5657 = vsub.f32 %v5081, %v5344
  %v5658 = vsub.f32 %v5082, %v5344
  %v5659 = vsub.f32 %v5083, %v5349
  %v5660 = vsub.f32 %v5084, %v5349
  %v5661 = vsub.f32 %v5085, %v5349
  %v5662 = vsub.f32 %v5086, %v5349
  %v5663 = vsub.f32 %v5087, %v5354
  %v5664 = vsub.f32 %v5088, %v5354
  %v5665 = vsub.f32 %v5089, %v5354
  %v5666 = vsub.f32 %v5090, %v5354
  %v5667 = vsub.f32 %v5091, %v5359
  %v5668 = vsub.f32 %v5092, %v5359
  %v5669 = vsub.f32 %v5093, %v5359
  %v5670 = vsub.f32 %v5094, %v5359
  %v5671 = vsub.f32 %v5095, %v5364
  %v5672 = vsub.f32 %v5096, %v5364
  %v5673 = vsub.f32 %v5097, %v5364
  %v5674 = vsub.f32 %v5098, %v5364
  %v5675 = vsub.f32 %v5099, %v5369
  %v5676 = vsub.f32 %v5100, %v5369
  %v5677 = vsub.f32 %v5101, %v5369
  %v5678 = vsub.f32 %v5102, %v5369
  %v5679 = vsub.f32 %v5103, %v5374
  %v5680 = vsub.f32 %v5104, %v5374
  %v5681 = vsub.f32 %v5105, %v5374
  %v5682 = vsub.f32 %v5106, %v5374
  %v5683 = vsub.f32 %v5107, %v5379
  %v5684 = vsub.f32 %v5108, %v5379
  %v5685 = vsub.f32 %v5109, %v5379
  %v5686 = vsub.f32 %v5110, %v5379
  %v5687 = vsub.f32 %v5111, %v5384
  %v5688 = vsub.f32 %v5112, %v5384
  %v5689 = vsub.f32 %v5113, %v5384
  %v5690 = vsub.f32 %v5114, %v5384
  %v5691 = vsub.f32 %v5115, %v5389
  %v5692 = vsub.f32 %v5116, %v5389
  %v5693 = vsub.f32 %v5117, %v5389
  %v5694 = vsub.f32 %v5118, %v5389
  %v5695 = vsub.f32 %v5119, %v5394
  %v5696 = vsub.f32 %v5120, %v5394
  %v5697 = vsub.f32 %v5121, %v5394
  %v5698 = vsub.f32 %v5122, %v5394
  %v5699 = vsub.f32 %v5123, %v5399
  %v5700 = vsub.f32 %v5124, %v5399
  %v5701 = vsub.f32 %v5125, %v5399
  %v5702 = vsub.f32 %v5126, %v5399
  %v5703 = vsub.f32 %v5127, %v5404
  %v5704 = vsub.f32 %v5128, %v5404
  %v5705 = vsub.f32 %v5129, %v5404
  %v5706 = vsub.f32 %v5130, %v5404
  %v5707 = vsub.f32 %v5131, %v5409
  %v5708 = vsub.f32 %v5132, %v5409
  %v5709 = vsub.f32 %v5133, %v5409
  %v5710 = vsub.f32 %v5134, %v5409
  %v5711 = vsub.f32 %v5135, %v5414
  %v5712 = vsub.f32 %v5136, %v5414
  %v5713 = vsub.f32 %v5137, %v5414
  %v5714 = vsub.f32 %v5138, %v5414
  %v5715 = vsub.f32 %v5139, %v5419
  %v5716 = vsub.f32 %v5140, %v5419
  %v5717 = vsub.f32 %v5141, %v5419
  %v5718 = vsub.f32 %v5142, %v5419
  %v5719 = vsub.f32 %v5143, %v5424
  %v5720 = vsub.f32 %v5144, %v5424
  %v5721 = vsub.f32 %v5145, %v5424
  %v5722 = vsub.f32 %v5146, %v5424
  %v5723 = vsub.f32 %v5147, %v5429
  %v5724 = vsub.f32 %v5148, %v5429
  %v5725 = vsub.f32 %v5149, %v5429
  %v5726 = vsub.f32 %v5150, %v5429
  %v5727 = vsub.f32 %v5151, %v5434
  %v5728 = vsub.f32 %v5152, %v5434
  %v5729 = vsub.f32 %v5153, %v5434
  %v5730 = vsub.f32 %v5154, %v5434
  %v5731 = vsub.f32 %v5155, %v5439
  %v5732 = vsub.f32 %v5156, %v5439
  %v5733 = vsub.f32 %v5157, %v5439
  %v5734 = vsub.f32 %v5158, %v5439
  %v5735 = vsub.f32 %v5159, %v5444
  %v5736 = vsub.f32 %v5160, %v5444
  %v5737 = vsub.f32 %v5161, %v5444
  %v5738 = vsub.f32 %v5162, %v5444
  %v5739 = vsub.f32 %v5163, %v5449
  %v5740 = vsub.f32 %v5164, %v5449
  %v5741 = vsub.f32 %v5165, %v5449
  %v5742 = vsub.f32 %v5166, %v5449
  %v5743 = vsub.f32 %v5167, %v5454
  %v5744 = vsub.f32 %v5168, %v5454
  %v5745 = vsub.f32 %v5169, %v5454
  %v5746 = vsub.f32 %v5170, %v5454
  %v5747 = vsub.f32 %v5171, %v5459
  %v5748 = vsub.f32 %v5172, %v5459
  %v5749 = vsub.f32 %v5173, %v5459
  %v5750 = vsub.f32 %v5174, %v5459
  %v5751 = vsub.f32 %v5175, %v5464
  %v5752 = vsub.f32 %v5176, %v5464
  %v5753 = vsub.f32 %v5177, %v5464
  %v5754 = vsub.f32 %v5178, %v5464
  %v5755 = vsub.f32 %v5179, %v5469
  %v5756 = vsub.f32 %v5180, %v5469
  %v5757 = vsub.f32 %v5181, %v5469
  %v5758 = vsub.f32 %v5182, %v5469
  %v5759 = vsub.f32 %v5183, %v5474
  %v5760 = vsub.f32 %v5184, %v5474
  %v5761 = vsub.f32 %v5185, %v5474
  %v5762 = vsub.f32 %v5186, %v5474
  %v5763 = vsub.f32 %v5187, %v5479
  %v5764 = vsub.f32 %v5188, %v5479
  %v5765 = vsub.f32 %v5189, %v5479
  %v5766 = vsub.f32 %v5190, %v5479
  %v5767 = vsub.f32 %v5191, %v5484
  %v5768 = vsub.f32 %v5192, %v5484
  %v5769 = vsub.f32 %v5193, %v5484
  %v5770 = vsub.f32 %v5194, %v5484
  %v5771 = vsub.f32 %v5195, %v5489
  %v5772 = vsub.f32 %v5196, %v5489
  %v5773 = vsub.f32 %v5197, %v5489
  %v5774 = vsub.f32 %v5198, %v5489
  %v5775 = vsub.f32 %v5199, %v5494
  %v5776 = vsub.f32 %v5200, %v5494
  %v5777 = vsub.f32 %v5201, %v5494
  %v5778 = vsub.f32 %v5202, %v5494
  %v5779 = vsub.f32 %v5203, %v5499
  %v5780 = vsub.f32 %v5204, %v5499
  %v5781 = vsub.f32 %v5205, %v5499
  %v5782 = vsub.f32 %v5206, %v5499
  %v5783 = vsub.f32 %v5207, %v5504
  %v5784 = vsub.f32 %v5208, %v5504
  %v5785 = vsub.f32 %v5209, %v5504
  %v5786 = vsub.f32 %v5210, %v5504
  %v5787 = vsub.f32 %v5211, %v5509
  %v5788 = vsub.f32 %v5212, %v5509
  %v5789 = vsub.f32 %v5213, %v5509
  %v5790 = vsub.f32 %v5214, %v5509
  %v5791 = vsub.f32 %v5215, %v5514
  %v5792 = vsub.f32 %v5216, %v5514
  %v5793 = vsub.f32 %v5217, %v5514
  %v5794 = vsub.f32 %v5218, %v5514
  %v5795 = vsub.f32 %v5219, %v5519
  %v5796 = vsub.f32 %v5220, %v5519
  %v5797 = vsub.f32 %v5221, %v5519
  %v5798 = vsub.f32 %v5222, %v5519
  %v5799 = vsub.f32 %v5223, %v5524
  %v5800 = vsub.f32 %v5224, %v5524
  %v5801 = vsub.f32 %v5225, %v5524
  %v5802 = vsub.f32 %v5226, %v5524
  %v5803 = vsub.f32 %v5227, %v5529
  %v5804 = vsub.f32 %v5228, %v5529
  %v5805 = vsub.f32 %v5229, %v5529
  %v5806 = vsub.f32 %v5230, %v5529
  %v5807 = vsub.f32 %v5231, %v5534
  %v5808 = vsub.f32 %v5232, %v5534
  %v5809 = vsub.f32 %v5233, %v5534
  %v5810 = vsub.f32 %v5234, %v5534
  %v5811 = vsub.f32 %v5235, %v5539
  %v5812 = vsub.f32 %v5236, %v5539
  %v5813 = vsub.f32 %v5237, %v5539
  %v5814 = vsub.f32 %v5238, %v5539
  %v5815 = vsub.f32 %v5239, %v5544
  %v5816 = vsub.f32 %v5240, %v5544
  %v5817 = vsub.f32 %v5241, %v5544
  %v5818 = vsub.f32 %v5242, %v5544
  %v5819 = vsub.f32 %v5243, %v5549
  %v5820 = vsub.f32 %v5244, %v5549
  %v5821 = vsub.f32 %v5245, %v5549
  %v5822 = vsub.f32 %v5246, %v5549
  %v5823 = vsub.f32 %v5247, %v5554
  %v5824 = vsub.f32 %v5248, %v5554
  %v5825 = vsub.f32 %v5249, %v5554
  %v5826 = vsub.f32 %v5250, %v5554
  %v5827 = vsub.f32 %v5251, %v5559
  %v5828 = vsub.f32 %v5252, %v5559
  %v5829 = vsub.f32 %v5253, %v5559
  %v5830 = vsub.f32 %v5254, %v5559
  %v5831 = vsub.f32 %v5255, %v5564
  %v5832 = vsub.f32 %v5256, %v5564
  %v5833 = vsub.f32 %v5257, %v5564
  %v5834 = vsub.f32 %v5258, %v5564
  %v5835 = vsub.f32 %v5259, %v5569
  %v5836 = vsub.f32 %v5260, %v5569
  %v5837 = vsub.f32 %v5261, %v5569
  %v5838 = vsub.f32 %v5262, %v5569
  %v5839 = vsub.f32 %v5263, %v5574
  %v5840 = vsub.f32 %v5264, %v5574
  %v5841 = vsub.f32 %v5265, %v5574
  %v5842 = vsub.f32 %v5266, %v5574
  %v5843 = vsub.f32 %v5267, %v5579
  %v5844 = vsub.f32 %v5268, %v5579
  %v5845 = vsub.f32 %v5269, %v5579
  %v5846 = vsub.f32 %v5270, %v5579
  %v5847 = vsub.f32 %v5271, %v5584
  %v5848 = vsub.f32 %v5272, %v5584
  %v5849 = vsub.f32 %v5273, %v5584
  %v5850 = vsub.f32 %v5274, %v5584
  %v5851 = vsub.f32 %v5275, %v5589
  %v5852 = vsub.f32 %v5276, %v5589
  %v5853 = vsub.f32 %v5277, %v5589
  %v5854 = vsub.f32 %v5278, %v5589
  %v5855 = vsub.f32 %v5279, %v5594
  %v5856 = vsub.f32 %v5280, %v5594
  %v5857 = vsub.f32 %v5281, %v5594
  %v5858 = vsub.f32 %v5282, %v5594
  %v5859 = vsub.f32 %v5283, %v5599
  %v5860 = vsub.f32 %v5284, %v5599
  %v5861 = vsub.f32 %v5285, %v5599
  %v5862 = vsub.f32 %v5286, %v5599
  %v5863 = vsub.f32 %v5287, %v5604
  %v5864 = vsub.f32 %v5288, %v5604
  %v5865 = vsub.f32 %v5289, %v5604
  %v5866 = vsub.f32 %v5290, %v5604
  %v5867 = vsub.f32 %v5291, %v5609
  %v5868 = vsub.f32 %v5292, %v5609
  %v5869 = vsub.f32 %v5293, %v5609
  %v5870 = vsub.f32 %v5294, %v5609
  %v5871 = vsub.f32 %v5295, %v5614
  %v5872 = vsub.f32 %v5296, %v5614
  %v5873 = vsub.f32 %v5297, %v5614
  %v5874 = vsub.f32 %v5298, %v5614
  %v5875 = vsub.f32 %v5299, %v5619
  %v5876 = vsub.f32 %v5300, %v5619
  %v5877 = vsub.f32 %v5301, %v5619
  %v5878 = vsub.f32 %v5302, %v5619
  %v5879 = vsub.f32 %v5303, %v5624
  %v5880 = vsub.f32 %v5304, %v5624
  %v5881 = vsub.f32 %v5305, %v5624
  %v5882 = vsub.f32 %v5306, %v5624
  %v5883 = vsub.f32 %v5307, %v5629
  %v5884 = vsub.f32 %v5308, %v5629
  %v5885 = vsub.f32 %v5309, %v5629
  %v5886 = vsub.f32 %v5310, %v5629
  %v5887 = vsub.f32 %v5311, %v5634
  %v5888 = vsub.f32 %v5312, %v5634
  %v5889 = vsub.f32 %v5313, %v5634
  %v5890 = vsub.f32 %v5314, %v5634
  %v5891 = vmul.f32 %v5635, 1.442695
  %v5892 = vpow.pop %v5891
  %v5893 = vmul.f32 %v5636, 1.442695
  %v5894 = vpow.pop %v5893
  %v5895 = vmul.f32 %v5637, 1.442695
  %v5896 = vpow.pop %v5895
  %v5897 = vmul.f32 %v5638, 1.442695
  %v5898 = vpow.pop %v5897
  %v5899 = vmul.f32 %v5639, 1.442695
  %v5900 = vpow.pop %v5899
  %v5901 = vmul.f32 %v5640, 1.442695
  %v5902 = vpow.pop %v5901
  %v5903 = vmul.f32 %v5641, 1.442695
  %v5904 = vpow.pop %v5903
  %v5905 = vmul.f32 %v5642, 1.442695
  %v5906 = vpow.pop %v5905
  %v5907 = vmul.f32 %v5643, 1.442695
  %v5908 = vpow.pop %v5907
  %v5909 = vmul.f32 %v5644, 1.442695
  %v5910 = vpow.pop %v5909
  %v5911 = vmul.f32 %v5645, 1.442695
  %v5912 = vpow.pop %v5911
  %v5913 = vmul.f32 %v5646, 1.442695
  %v5914 = vpow.pop %v5913
  %v5915 = vmul.f32 %v5647, 1.442695
  %v5916 = vpow.pop %v5915
  %v5917 = vmul.f32 %v5648, 1.442695
  %v5918 = vpow.pop %v5917
  %v5919 = vmul.f32 %v5649, 1.442695
  %v5920 = vpow.pop %v5919
  %v5921 = vmul.f32 %v5650, 1.442695
  %v5922 = vpow.pop %v5921
  %v5923 = vmul.f32 %v5651, 1.442695
  %v5924 = vpow.pop %v5923
  %v5925 = vmul.f32 %v5652, 1.442695
  %v5926 = vpow.pop %v5925
  %v5927 = vmul.f32 %v5653, 1.442695
  %v5928 = vpow.pop %v5927
  %v5929 = vmul.f32 %v5654, 1.442695
  %v5930 = vpow.pop %v5929
  %v5931 = vmul.f32 %v5655, 1.442695
  %v5932 = vpow.pop %v5931
  %v5933 = vmul.f32 %v5656, 1.442695
  %v5934 = vpow.pop %v5933
  %v5935 = vmul.f32 %v5657, 1.442695
  %v5936 = vpow.pop %v5935
  %v5937 = vmul.f32 %v5658, 1.442695
  %v5938 = vpow.pop %v5937
  %v5939 = vmul.f32 %v5659, 1.442695
  %v5940 = vpow.pop %v5939
  %v5941 = vmul.f32 %v5660, 1.442695
  %v5942 = vpow.pop %v5941
  %v5943 = vmul.f32 %v5661, 1.442695
  %v5944 = vpow.pop %v5943
  %v5945 = vmul.f32 %v5662, 1.442695
  %v5946 = vpow.pop %v5945
  %v5947 = vmul.f32 %v5663, 1.442695
  %v5948 = vpow.pop %v5947
  %v5949 = vmul.f32 %v5664, 1.442695
  %v5950 = vpow.pop %v5949
  %v5951 = vmul.f32 %v5665, 1.442695
  %v5952 = vpow.pop %v5951
  %v5953 = vmul.f32 %v5666, 1.442695
  %v5954 = vpow.pop %v5953
  %v5955 = vmul.f32 %v5667, 1.442695
  %v5956 = vpow.pop %v5955
  %v5957 = vmul.f32 %v5668, 1.442695
  %v5958 = vpow.pop %v5957
  %v5959 = vmul.f32 %v5669, 1.442695
  %v5960 = vpow.pop %v5959
  %v5961 = vmul.f32 %v5670, 1.442695
  %v5962 = vpow.pop %v5961
  %v5963 = vmul.f32 %v5671, 1.442695
  %v5964 = vpow.pop %v5963
  %v5965 = vmul.f32 %v5672, 1.442695
  %v5966 = vpow.pop %v5965
  %v5967 = vmul.f32 %v5673, 1.442695
  %v5968 = vpow.pop %v5967
  %v5969 = vmul.f32 %v5674, 1.442695
  %v5970 = vpow.pop %v5969
  %v5971 = vmul.f32 %v5675, 1.442695
  %v5972 = vpow.pop %v5971
  %v5973 = vmul.f32 %v5676, 1.442695
  %v5974 = vpow.pop %v5973
  %v5975 = vmul.f32 %v5677, 1.442695
  %v5976 = vpow.pop %v5975
  %v5977 = vmul.f32 %v5678, 1.442695
  %v5978 = vpow.pop %v5977
  %v5979 = vmul.f32 %v5679, 1.442695
  %v5980 = vpow.pop %v5979
  %v5981 = vmul.f32 %v5680, 1.442695
  %v5982 = vpow.pop %v5981
  %v5983 = vmul.f32 %v5681, 1.442695
  %v5984 = vpow.pop %v5983
  %v5985 = vmul.f32 %v5682, 1.442695
  %v5986 = vpow.pop %v5985
  %v5987 = vmul.f32 %v5683, 1.442695
  %v5988 = vpow.pop %v5987
  %v5989 = vmul.f32 %v5684, 1.442695
  %v5990 = vpow.pop %v5989
  %v5991 = vmul.f32 %v5685, 1.442695
  %v5992 = vpow.pop %v5991
  %v5993 = vmul.f32 %v5686, 1.442695
  %v5994 = vpow.pop %v5993
  %v5995 = vmul.f32 %v5687, 1.442695
  %v5996 = vpow.pop %v5995
  %v5997 = vmul.f32 %v5688, 1.442695
  %v5998 = vpow.pop %v5997
  %v5999 = vmul.f32 %v5689, 1.442695
  %v6000 = vpow.pop %v5999
  %v6001 = vmul.f32 %v5690, 1.442695
  %v6002 = vpow.pop %v6001
  %v6003 = vmul.f32 %v5691, 1.442695
  %v6004 = vpow.pop %v6003
  %v6005 = vmul.f32 %v5692, 1.442695
  %v6006 = vpow.pop %v6005
  %v6007 = vmul.f32 %v5693, 1.442695
  %v6008 = vpow.pop %v6007
  %v6009 = vmul.f32 %v5694, 1.442695
  %v6010 = vpow.pop %v6009
  %v6011 = vmul.f32 %v5695, 1.442695
  %v6012 = vpow.pop %v6011
  %v6013 = vmul.f32 %v5696, 1.442695
  %v6014 = vpow.pop %v6013
  %v6015 = vmul.f32 %v5697, 1.442695
  %v6016 = vpow.pop %v6015
  %v6017 = vmul.f32 %v5698, 1.442695
  %v6018 = vpow.pop %v6017
  %v6019 = vmul.f32 %v5699, 1.442695
  %v6020 = vpow.pop %v6019
  %v6021 = vmul.f32 %v5700, 1.442695
  %v6022 = vpow.pop %v6021
  %v6023 = vmul.f32 %v5701, 1.442695
  %v6024 = vpow.pop %v6023
  %v6025 = vmul.f32 %v5702, 1.442695
  %v6026 = vpow.pop %v6025
  %v6027 = vmul.f32 %v5703, 1.442695
  %v6028 = vpow.pop %v6027
  %v6029 = vmul.f32 %v5704, 1.442695
  %v6030 = vpow.pop %v6029
  %v6031 = vmul.f32 %v5705, 1.442695
  %v6032 = vpow.pop %v6031
  %v6033 = vmul.f32 %v5706, 1.442695
  %v6034 = vpow.pop %v6033
  %v6035 = vmul.f32 %v5707, 1.442695
  %v6036 = vpow.pop %v6035
  %v6037 = vmul.f32 %v5708, 1.442695
  %v6038 = vpow.pop %v6037
  %v6039 = vmul.f32 %v5709, 1.442695
  %v6040 = vpow.pop %v6039
  %v6041 = vmul.f32 %v5710, 1.442695
  %v6042 = vpow.pop %v6041
  %v6043 = vmul.f32 %v5711, 1.442695
  %v6044 = vpow.pop %v6043
  %v6045 = vmul.f32 %v5712, 1.442695
  %v6046 = vpow.pop %v6045
  %v6047 = vmul.f32 %v5713, 1.442695
  %v6048 = vpow.pop %v6047
  %v6049 = vmul.f32 %v5714, 1.442695
  %v6050 = vpow.pop %v6049
  %v6051 = vmul.f32 %v5715, 1.442695
  %v6052 = vpow.pop %v6051
  %v6053 = vmul.f32 %v5716, 1.442695
  %v6054 = vpow.pop %v6053
  %v6055 = vmul.f32 %v5717, 1.442695
  %v6056 = vpow.pop %v6055
  %v6057 = vmul.f32 %v5718, 1.442695
  %v6058 = vpow.pop %v6057
  %v6059 = vmul.f32 %v5719, 1.442695
  %v6060 = vpow.pop %v6059
  %v6061 = vmul.f32 %v5720, 1.442695
  %v6062 = vpow.pop %v6061
  %v6063 = vmul.f32 %v5721, 1.442695
  %v6064 = vpow.pop %v6063
  %v6065 = vmul.f32 %v5722, 1.442695
  %v6066 = vpow.pop %v6065
  %v6067 = vmul.f32 %v5723, 1.442695
  %v6068 = vpow.pop %v6067
  %v6069 = vmul.f32 %v5724, 1.442695
  %v6070 = vpow.pop %v6069
  %v6071 = vmul.f32 %v5725, 1.442695
  %v6072 = vpow.pop %v6071
  %v6073 = vmul.f32 %v5726, 1.442695
  %v6074 = vpow.pop %v6073
  %v6075 = vmul.f32 %v5727, 1.442695
  %v6076 = vpow.pop %v6075
  %v6077 = vmul.f32 %v5728, 1.442695
  %v6078 = vpow.pop %v6077
  %v6079 = vmul.f32 %v5729, 1.442695
  %v6080 = vpow.pop %v6079
  %v6081 = vmul.f32 %v5730, 1.442695
  %v6082 = vpow.pop %v6081
  %v6083 = vmul.f32 %v5731, 1.442695
  %v6084 = vpow.pop %v6083
  %v6085 = vmul.f32 %v5732, 1.442695
  %v6086 = vpow.pop %v6085
  %v6087 = vmul.f32 %v5733, 1.442695
  %v6088 = vpow.pop %v6087
  %v6089 = vmul.f32 %v5734, 1.442695
  %v6090 = vpow.pop %v6089
  %v6091 = vmul.f32 %v5735, 1.442695
  %v6092 = vpow.pop %v6091
  %v6093 = vmul.f32 %v5736, 1.442695
  %v6094 = vpow.pop %v6093
  %v6095 = vmul.f32 %v5737, 1.442695
  %v6096 = vpow.pop %v6095
  %v6097 = vmul.f32 %v5738, 1.442695
  %v6098 = vpow.pop %v6097
  %v6099 = vmul.f32 %v5739, 1.442695
  %v6100 = vpow.pop %v6099
  %v6101 = vmul.f32 %v5740, 1.442695
  %v6102 = vpow.pop %v6101
  %v6103 = vmul.f32 %v5741, 1.442695
  %v6104 = vpow.pop %v6103
  %v6105 = vmul.f32 %v5742, 1.442695
  %v6106 = vpow.pop %v6105
  %v6107 = vmul.f32 %v5743, 1.442695
  %v6108 = vpow.pop %v6107
  %v6109 = vmul.f32 %v5744, 1.442695
  %v6110 = vpow.pop %v6109
  %v6111 = vmul.f32 %v5745, 1.442695
  %v6112 = vpow.pop %v6111
  %v6113 = vmul.f32 %v5746, 1.442695
  %v6114 = vpow.pop %v6113
  %v6115 = vmul.f32 %v5747, 1.442695
  %v6116 = vpow.pop %v6115
  %v6117 = vmul.f32 %v5748, 1.442695
  %v6118 = vpow.pop %v6117
  %v6119 = vmul.f32 %v5749, 1.442695
  %v6120 = vpow.pop %v6119
  %v6121 = vmul.f32 %v5750, 1.442695
  %v6122 = vpow.pop %v6121
  %v6123 = vmul.f32 %v5751, 1.442695
  %v6124 = vpow.pop %v6123
  %v6125 = vmul.f32 %v5752, 1.442695
  %v6126 = vpow.pop %v6125
  %v6127 = vmul.f32 %v5753, 1.442695
  %v6128 = vpow.pop %v6127
  %v6129 = vmul.f32 %v5754, 1.442695
  %v6130 = vpow.pop %v6129
  %v6131 = vmul.f32 %v5755, 1.442695
  %v6132 = vpow.pop %v6131
  %v6133 = vmul.f32 %v5756, 1.442695
  %v6134 = vpow.pop %v6133
  %v6135 = vmul.f32 %v5757, 1.442695
  %v6136 = vpow.pop %v6135
  %v6137 = vmul.f32 %v5758, 1.442695
  %v6138 = vpow.pop %v6137
  %v6139 = vmul.f32 %v5759, 1.442695
  %v6140 = vpow.pop %v6139
  %v6141 = vmul.f32 %v5760, 1.442695
  %v6142 = vpow.pop %v6141
  %v6143 = vmul.f32 %v5761, 1.442695
  %v6144 = vpow.pop %v6143
  %v6145 = vmul.f32 %v5762, 1.442695
  %v6146 = vpow.pop %v6145
  %v6147 = vmul.f32 %v5763, 1.442695
  %v6148 = vpow.pop %v6147
  %v6149 = vmul.f32 %v5764, 1.442695
  %v6150 = vpow.pop %v6149
  %v6151 = vmul.f32 %v5765, 1.442695
  %v6152 = vpow.pop %v6151
  %v6153 = vmul.f32 %v5766, 1.442695
  %v6154 = vpow.pop %v6153
  %v6155 = vmul.f32 %v5767, 1.442695
  %v6156 = vpow.pop %v6155
  %v6157 = vmul.f32 %v5768, 1.442695
  %v6158 = vpow.pop %v6157
  %v6159 = vmul.f32 %v5769, 1.442695
  %v6160 = vpow.pop %v6159
  %v6161 = vmul.f32 %v5770, 1.442695
  %v6162 = vpow.pop %v6161
  %v6163 = vmul.f32 %v5771, 1.442695
  %v6164 = vpow.pop %v6163
  %v6165 = vmul.f32 %v5772, 1.442695
  %v6166 = vpow.pop %v6165
  %v6167 = vmul.f32 %v5773, 1.442695
  %v6168 = vpow.pop %v6167
  %v6169 = vmul.f32 %v5774, 1.442695
  %v6170 = vpow.pop %v6169
  %v6171 = vmul.f32 %v5775, 1.442695
  %v6172 = vpow.pop %v6171
  %v6173 = vmul.f32 %v5776, 1.442695
  %v6174 = vpow.pop %v6173
  %v6175 = vmul.f32 %v5777, 1.442695
  %v6176 = vpow.pop %v6175
  %v6177 = vmul.f32 %v5778, 1.442695
  %v6178 = vpow.pop %v6177
  %v6179 = vmul.f32 %v5779, 1.442695
  %v6180 = vpow.pop %v6179
  %v6181 = vmul.f32 %v5780, 1.442695
  %v6182 = vpow.pop %v6181
  %v6183 = vmul.f32 %v5781, 1.442695
  %v6184 = vpow.pop %v6183
  %v6185 = vmul.f32 %v5782, 1.442695
  %v6186 = vpow.pop %v6185
  %v6187 = vmul.f32 %v5783, 1.442695
  %v6188 = vpow.pop %v6187
  %v6189 = vmul.f32 %v5784, 1.442695
  %v6190 = vpow.pop %v6189
  %v6191 = vmul.f32 %v5785, 1.442695
  %v6192 = vpow.pop %v6191
  %v6193 = vmul.f32 %v5786, 1.442695
  %v6194 = vpow.pop %v6193
  %v6195 = vmul.f32 %v5787, 1.442695
  %v6196 = vpow.pop %v6195
  %v6197 = vmul.f32 %v5788, 1.442695
  %v6198 = vpow.pop %v6197
  %v6199 = vmul.f32 %v5789, 1.442695
  %v6200 = vpow.pop %v6199
  %v6201 = vmul.f32 %v5790, 1.442695
  %v6202 = vpow.pop %v6201
  %v6203 = vmul.f32 %v5791, 1.442695
  %v6204 = vpow.pop %v6203
  %v6205 = vmul.f32 %v5792, 1.442695
  %v6206 = vpow.pop %v6205
  %v6207 = vmul.f32 %v5793, 1.442695
  %v6208 = vpow.pop %v6207
  %v6209 = vmul.f32 %v5794, 1.442695
  %v6210 = vpow.pop %v6209
  %v6211 = vmul.f32 %v5795, 1.442695
  %v6212 = vpow.pop %v6211
  %v6213 = vmul.f32 %v5796, 1.442695
  %v6214 = vpow.pop %v6213
  %v6215 = vmul.f32 %v5797, 1.442695
  %v6216 = vpow.pop %v6215
  %v6217 = vmul.f32 %v5798, 1.442695
  %v6218 = vpow.pop %v6217
  %v6219 = vmul.f32 %v5799, 1.442695
  %v6220 = vpow.pop %v6219
  %v6221 = vmul.f32 %v5800, 1.442695
  %v6222 = vpow.pop %v6221
  %v6223 = vmul.f32 %v5801, 1.442695
  %v6224 = vpow.pop %v6223
  %v6225 = vmul.f32 %v5802, 1.442695
  %v6226 = vpow.pop %v6225
  %v6227 = vmul.f32 %v5803, 1.442695
  %v6228 = vpow.pop %v6227
  %v6229 = vmul.f32 %v5804, 1.442695
  %v6230 = vpow.pop %v6229
  %v6231 = vmul.f32 %v5805, 1.442695
  %v6232 = vpow.pop %v6231
  %v6233 = vmul.f32 %v5806, 1.442695
  %v6234 = vpow.pop %v6233
  %v6235 = vmul.f32 %v5807, 1.442695
  %v6236 = vpow.pop %v6235
  %v6237 = vmul.f32 %v5808, 1.442695
  %v6238 = vpow.pop %v6237
  %v6239 = vmul.f32 %v5809, 1.442695
  %v6240 = vpow.pop %v6239
  %v6241 = vmul.f32 %v5810, 1.442695
  %v6242 = vpow.pop %v6241
  %v6243 = vmul.f32 %v5811, 1.442695
  %v6244 = vpow.pop %v6243
  %v6245 = vmul.f32 %v5812, 1.442695
  %v6246 = vpow.pop %v6245
  %v6247 = vmul.f32 %v5813, 1.442695
  %v6248 = vpow.pop %v6247
  %v6249 = vmul.f32 %v5814, 1.442695
  %v6250 = vpow.pop %v6249
  %v6251 = vmul.f32 %v5815, 1.442695
  %v6252 = vpow.pop %v6251
  %v6253 = vmul.f32 %v5816, 1.442695
  %v6254 = vpow.pop %v6253
  %v6255 = vmul.f32 %v5817, 1.442695
  %v6256 = vpow.pop %v6255
  %v6257 = vmul.f32 %v5818, 1.442695
  %v6258 = vpow.pop %v6257
  %v6259 = vmul.f32 %v5819, 1.442695
  %v6260 = vpow.pop %v6259
  %v6261 = vmul.f32 %v5820, 1.442695
  %v6262 = vpow.pop %v6261
  %v6263 = vmul.f32 %v5821, 1.442695
  %v6264 = vpow.pop %v6263
  %v6265 = vmul.f32 %v5822, 1.442695
  %v6266 = vpow.pop %v6265
  %v6267 = vmul.f32 %v5823, 1.442695
  %v6268 = vpow.pop %v6267
  %v6269 = vmul.f32 %v5824, 1.442695
  %v6270 = vpow.pop %v6269
  %v6271 = vmul.f32 %v5825, 1.442695
  %v6272 = vpow.pop %v6271
  %v6273 = vmul.f32 %v5826, 1.442695
  %v6274 = vpow.pop %v6273
  %v6275 = vmul.f32 %v5827, 1.442695
  %v6276 = vpow.pop %v6275
  %v6277 = vmul.f32 %v5828, 1.442695
  %v6278 = vpow.pop %v6277
  %v6279 = vmul.f32 %v5829, 1.442695
  %v6280 = vpow.pop %v6279
  %v6281 = vmul.f32 %v5830, 1.442695
  %v6282 = vpow.pop %v6281
  %v6283 = vmul.f32 %v5831, 1.442695
  %v6284 = vpow.pop %v6283
  %v6285 = vmul.f32 %v5832, 1.442695
  %v6286 = vpow.pop %v6285
  %v6287 = vmul.f32 %v5833, 1.442695
  %v6288 = vpow.pop %v6287
  %v6289 = vmul.f32 %v5834, 1.442695
  %v6290 = vpow.pop %v6289
  %v6291 = vmul.f32 %v5835, 1.442695
  %v6292 = vpow.pop %v6291
  %v6293 = vmul.f32 %v5836, 1.442695
  %v6294 = vpow.pop %v6293
  %v6295 = vmul.f32 %v5837, 1.442695
  %v6296 = vpow.pop %v6295
  %v6297 = vmul.f32 %v5838, 1.442695
  %v6298 = vpow.pop %v6297
  %v6299 = vmul.f32 %v5839, 1.442695
  %v6300 = vpow.pop %v6299
  %v6301 = vmul.f32 %v5840, 1.442695
  %v6302 = vpow.pop %v6301
  %v6303 = vmul.f32 %v5841, 1.442695
  %v6304 = vpow.pop %v6303
  %v6305 = vmul.f32 %v5842, 1.442695
  %v6306 = vpow.pop %v6305
  %v6307 = vmul.f32 %v5843, 1.442695
  %v6308 = vpow.pop %v6307
  %v6309 = vmul.f32 %v5844, 1.442695
  %v6310 = vpow.pop %v6309
  %v6311 = vmul.f32 %v5845, 1.442695
  %v6312 = vpow.pop %v6311
  %v6313 = vmul.f32 %v5846, 1.442695
  %v6314 = vpow.pop %v6313
  %v6315 = vmul.f32 %v5847, 1.442695
  %v6316 = vpow.pop %v6315
  %v6317 = vmul.f32 %v5848, 1.442695
  %v6318 = vpow.pop %v6317
  %v6319 = vmul.f32 %v5849, 1.442695
  %v6320 = vpow.pop %v6319
  %v6321 = vmul.f32 %v5850, 1.442695
  %v6322 = vpow.pop %v6321
  %v6323 = vmul.f32 %v5851, 1.442695
  %v6324 = vpow.pop %v6323
  %v6325 = vmul.f32 %v5852, 1.442695
  %v6326 = vpow.pop %v6325
  %v6327 = vmul.f32 %v5853, 1.442695
  %v6328 = vpow.pop %v6327
  %v6329 = vmul.f32 %v5854, 1.442695
  %v6330 = vpow.pop %v6329
  %v6331 = vmul.f32 %v5855, 1.442695
  %v6332 = vpow.pop %v6331
  %v6333 = vmul.f32 %v5856, 1.442695
  %v6334 = vpow.pop %v6333
  %v6335 = vmul.f32 %v5857, 1.442695
  %v6336 = vpow.pop %v6335
  %v6337 = vmul.f32 %v5858, 1.442695
  %v6338 = vpow.pop %v6337
  %v6339 = vmul.f32 %v5859, 1.442695
  %v6340 = vpow.pop %v6339
  %v6341 = vmul.f32 %v5860, 1.442695
  %v6342 = vpow.pop %v6341
  %v6343 = vmul.f32 %v5861, 1.442695
  %v6344 = vpow.pop %v6343
  %v6345 = vmul.f32 %v5862, 1.442695
  %v6346 = vpow.pop %v6345
  %v6347 = vmul.f32 %v5863, 1.442695
  %v6348 = vpow.pop %v6347
  %v6349 = vmul.f32 %v5864, 1.442695
  %v6350 = vpow.pop %v6349
  %v6351 = vmul.f32 %v5865, 1.442695
  %v6352 = vpow.pop %v6351
  %v6353 = vmul.f32 %v5866, 1.442695
  %v6354 = vpow.pop %v6353
  %v6355 = vmul.f32 %v5867, 1.442695
  %v6356 = vpow.pop %v6355
  %v6357 = vmul.f32 %v5868, 1.442695
  %v6358 = vpow.pop %v6357
  %v6359 = vmul.f32 %v5869, 1.442695
  %v6360 = vpow.pop %v6359
  %v6361 = vmul.f32 %v5870, 1.442695
  %v6362 = vpow.pop %v6361
  %v6363 = vmul.f32 %v5871, 1.442695
  %v6364 = vpow.pop %v6363
  %v6365 = vmul.f32 %v5872, 1.442695
  %v6366 = vpow.pop %v6365
  %v6367 = vmul.f32 %v5873, 1.442695
  %v6368 = vpow.pop %v6367
  %v6369 = vmul.f32 %v5874, 1.442695
  %v6370 = vpow.pop %v6369
  %v6371 = vmul.f32 %v5875, 1.442695
  %v6372 = vpow.pop %v6371
  %v6373 = vmul.f32 %v5876, 1.442695
  %v6374 = vpow.pop %v6373
  %v6375 = vmul.f32 %v5877, 1.442695
  %v6376 = vpow.pop %v6375
  %v6377 = vmul.f32 %v5878, 1.442695
  %v6378 = vpow.pop %v6377
  %v6379 = vmul.f32 %v5879, 1.442695
  %v6380 = vpow.pop %v6379
  %v6381 = vmul.f32 %v5880, 1.442695
  %v6382 = vpow.pop %v6381
  %v6383 = vmul.f32 %v5881, 1.442695
  %v6384 = vpow.pop %v6383
  %v6385 = vmul.f32 %v5882, 1.442695
  %v6386 = vpow.pop %v6385
  %v6387 = vmul.f32 %v5883, 1.442695
  %v6388 = vpow.pop %v6387
  %v6389 = vmul.f32 %v5884, 1.442695
  %v6390 = vpow.pop %v6389
  %v6391 = vmul.f32 %v5885, 1.442695
  %v6392 = vpow.pop %v6391
  %v6393 = vmul.f32 %v5886, 1.442695
  %v6394 = vpow.pop %v6393
  %v6395 = vmul.f32 %v5887, 1.442695
  %v6396 = vpow.pop %v6395
  %v6397 = vmul.f32 %v5888, 1.442695
  %v6398 = vpow.pop %v6397
  %v6399 = vmul.f32 %v5889, 1.442695
  %v6400 = vpow.pop %v6399
  %v6401 = vmul.f32 %v5890, 1.442695
  %v6402 = vpow.pop %v6401
  %v6403 = vadd.f32 %v5892, %v5894
  %v6404 = vadd.f32 %v6403, %v5896
  %v6405 = vadd.f32 %v6404, %v5898
  %6406 = vadd.xlane.f32.xlu0 %v6405
  %v6407 = vpop.xlane.xlu0 %6406
  %v6408 = vadd.f32 %v5900, %v5902
  %v6409 = vadd.f32 %v6408, %v5904
  %v6410 = vadd.f32 %v6409, %v5906
  %6411 = vadd.xlane.f32.xlu0 %v6410
  %v6412 = vpop.xlane.xlu0 %6411
  %v6413 = vadd.f32 %v5908, %v5910
  %v6414 = vadd.f32 %v6413, %v5912
  %v6415 = vadd.f32 %v6414, %v5914
  %6416 = vadd.xlane.f32.xlu0 %v6415
  %v6417 = vpop.xlane.xlu0 %6416
  %v6418 = vadd.f32 %v5916, %v5918
  %v6419 = vadd.f32 %v6418, %v5920
  %v6420 = vadd.f32 %v6419, %v5922
  %6421 = vadd.xlane.f32.xlu0 %v6420
  %v6422 = vpop.xlane.xlu0 %6421
  %v6423 = vadd.f32 %v5924, %v5926
  %v6424 = vadd.f32 %v6423, %v5928
  %v6425 = vadd.f32 %v6424, %v5930
  %6426 = vadd.xlane.f32.xlu0 %v6425
  %v6427 = vpop.xlane.xlu0 %6426
  %v6428 = vadd.f32 %v5932, %v5934
  %v6429 = vadd.f32 %v6428, %v5936
  %v6430 = vadd.f32 %v6429, %v5938
  %6431 = vadd.xlane.f32.xlu0 %v6430
  %v6432 = vpop.xlane.xlu0 %6431
  %v6433 = vadd.f32 %v5940, %v5942
  %v6434 = vadd.f32 %v6433, %v5944
  %v6435 = vadd.f32 %v6434, %v5946
  %6436 = vadd.xlane.f32.xlu0 %v6435
  %v6437 = vpop.xlane.xlu0 %6436
  %v6438 = vadd.f32 %v5948, %v5950
  %v6439 = vadd.f32 %v6438, %v5952
  %v6440 = vadd.f32 %v6439, %v5954
  %6441 = vadd.xlane.f32.xlu0 %v6440
  %v6442 = vpop.xlane.xlu0 %6441
  %v6443 = vadd.f32 %v5956, %v5958
  %v6444 = vadd.f32 %v6443, %v5960
  %v6445 = vadd.f32 %v6444, %v5962
  %6446 = vadd.xlane.f32.xlu0 %v6445
  %v6447 = vpop.xlane.xlu0 %6446
  %v6448 = vadd.f32 %v5964, %v5966
  %v6449 = vadd.f32 %v6448, %v5968
  %v6450 = vadd.f32 %v6449, %v5970
  %6451 = vadd.xlane.f32.xlu0 %v6450
  %v6452 = vpop.xlane.xlu0 %6451
  %v6453 = vadd.f32 %v5972, %v5974
  %v6454 = vadd.f32 %v6453, %v5976
  %v6455 = vadd.f32 %v6454, %v5978
  %6456 = vadd.xlane.f32.xlu0 %v6455
  %v6457 = vpop.xlane.xlu0 %6456
  %v6458 = vadd.f32 %v5980, %v5982
  %v6459 = vadd.f32 %v6458, %v5984
  %v6460 = vadd.f32 %v6459, %v5986
  %6461 = vadd.xlane.f32.xlu0 %v6460
  %v6462 = vpop.xlane.xlu0 %6461
  %v6463 = vadd.f32 %v5988, %v5990
  %v6464 = vadd.f32 %v6463, %v5992
  %v6465 = vadd.f32 %v6464, %v5994
  %6466 = vadd.xlane.f32.xlu0 %v6465
  %v6467 = vpop.xlane.xlu0 %6466
  %v6468 = vadd.f32 %v5996, %v5998
  %v6469 = vadd.f32 %v6468, %v6000
  %v6470 = vadd.f32 %v6469, %v6002
  %6471 = vadd.xlane.f32.xlu0 %v6470
  %v6472 = vpop.xlane.xlu0 %6471
  %v6473 = vadd.f32 %v6004, %v6006
  %v6474 = vadd.f32 %v6473, %v6008
  %v6475 = vadd.f32 %v6474, %v6010
  %6476 = vadd.xlane.f32.xlu0 %v6475
  %v6477 = vpop.xlane.xlu0 %6476
  %v6478 = vadd.f32 %v6012, %v6014
  %v6479 = vadd.f32 %v6478, %v6016
  %v6480 = vadd.f32 %v6479, %v6018
  %6481 = vadd.xlane.f32.xlu0 %v6480
  %v6482 = vpop.xlane.xlu0 %6481
  %v6483 = vadd.f32 %v6020, %v6022
  %v6484 = vadd.f32 %v6483, %v6024
  %v6485 = vadd.f32 %v6484, %v6026
  %6486 = vadd.xlane.f32.xlu0 %v6485
  %v6487 = vpop.xlane.xlu0 %6486
  %v6488 = vadd.f32 %v6028, %v6030
  %v6489 = vadd.f32 %v6488, %v6032
  %v6490 = vadd.f32 %v6489, %v6034
  %6491 = vadd.xlane.f32.xlu0 %v6490
  %v6492 = vpop.xlane.xlu0 %6491
  %v6493 = vadd.f32 %v6036, %v6038
  %v6494 = vadd.f32 %v6493, %v6040
  %v6495 = vadd.f32 %v6494, %v6042
  %6496 = vadd.xlane.f32.xlu0 %v6495
  %v6497 = vpop.xlane.xlu0 %6496
  %v6498 = vadd.f32 %v6044, %v6046
  %v6499 = vadd.f32 %v6498, %v6048
  %v6500 = vadd.f32 %v6499, %v6050
  %6501 = vadd.xlane.f32.xlu0 %v6500
  %v6502 = vpop.xlane.xlu0 %6501
  %v6503 = vadd.f32 %v6052, %v6054
  %v6504 = vadd.f32 %v6503, %v6056
  %v6505 = vadd.f32 %v6504, %v6058
  %6506 = vadd.xlane.f32.xlu0 %v6505
  %v6507 = vpop.xlane.xlu0 %6506
  %v6508 = vadd.f32 %v6060, %v6062
  %v6509 = vadd.f32 %v6508, %v6064
  %v6510 = vadd.f32 %v6509, %v6066
  %6511 = vadd.xlane.f32.xlu0 %v6510
  %v6512 = vpop.xlane.xlu0 %6511
  %v6513 = vadd.f32 %v6068, %v6070
  %v6514 = vadd.f32 %v6513, %v6072
  %v6515 = vadd.f32 %v6514, %v6074
  %6516 = vadd.xlane.f32.xlu0 %v6515
  %v6517 = vpop.xlane.xlu0 %6516
  %v6518 = vadd.f32 %v6076, %v6078
  %v6519 = vadd.f32 %v6518, %v6080
  %v6520 = vadd.f32 %v6519, %v6082
  %6521 = vadd.xlane.f32.xlu0 %v6520
  %v6522 = vpop.xlane.xlu0 %6521
  %v6523 = vadd.f32 %v6084, %v6086
  %v6524 = vadd.f32 %v6523, %v6088
  %v6525 = vadd.f32 %v6524, %v6090
  %6526 = vadd.xlane.f32.xlu0 %v6525
  %v6527 = vpop.xlane.xlu0 %6526
  %v6528 = vadd.f32 %v6092, %v6094
  %v6529 = vadd.f32 %v6528, %v6096
  %v6530 = vadd.f32 %v6529, %v6098
  %6531 = vadd.xlane.f32.xlu0 %v6530
  %v6532 = vpop.xlane.xlu0 %6531
  %v6533 = vadd.f32 %v6100, %v6102
  %v6534 = vadd.f32 %v6533, %v6104
  %v6535 = vadd.f32 %v6534, %v6106
  %6536 = vadd.xlane.f32.xlu0 %v6535
  %v6537 = vpop.xlane.xlu0 %6536
  %v6538 = vadd.f32 %v6108, %v6110
  %v6539 = vadd.f32 %v6538, %v6112
  %v6540 = vadd.f32 %v6539, %v6114
  %6541 = vadd.xlane.f32.xlu0 %v6540
  %v6542 = vpop.xlane.xlu0 %6541
  %v6543 = vadd.f32 %v6116, %v6118
  %v6544 = vadd.f32 %v6543, %v6120
  %v6545 = vadd.f32 %v6544, %v6122
  %6546 = vadd.xlane.f32.xlu0 %v6545
  %v6547 = vpop.xlane.xlu0 %6546
  %v6548 = vadd.f32 %v6124, %v6126
  %v6549 = vadd.f32 %v6548, %v6128
  %v6550 = vadd.f32 %v6549, %v6130
  %6551 = vadd.xlane.f32.xlu0 %v6550
  %v6552 = vpop.xlane.xlu0 %6551
  %v6553 = vadd.f32 %v6132, %v6134
  %v6554 = vadd.f32 %v6553, %v6136
  %v6555 = vadd.f32 %v6554, %v6138
  %6556 = vadd.xlane.f32.xlu0 %v6555
  %v6557 = vpop.xlane.xlu0 %6556
  %v6558 = vadd.f32 %v6140, %v6142
  %v6559 = vadd.f32 %v6558, %v6144
  %v6560 = vadd.f32 %v6559, %v6146
  %6561 = vadd.xlane.f32.xlu0 %v6560
  %v6562 = vpop.xlane.xlu0 %6561
  %v6563 = vadd.f32 %v6148, %v6150
  %v6564 = vadd.f32 %v6563, %v6152
  %v6565 = vadd.f32 %v6564, %v6154
  %6566 = vadd.xlane.f32.xlu0 %v6565
  %v6567 = vpop.xlane.xlu0 %6566
  %v6568 = vadd.f32 %v6156, %v6158
  %v6569 = vadd.f32 %v6568, %v6160
  %v6570 = vadd.f32 %v6569, %v6162
  %6571 = vadd.xlane.f32.xlu0 %v6570
  %v6572 = vpop.xlane.xlu0 %6571
  %v6573 = vadd.f32 %v6164, %v6166
  %v6574 = vadd.f32 %v6573, %v6168
  %v6575 = vadd.f32 %v6574, %v6170
  %6576 = vadd.xlane.f32.xlu0 %v6575
  %v6577 = vpop.xlane.xlu0 %6576
  %v6578 = vadd.f32 %v6172, %v6174
  %v6579 = vadd.f32 %v6578, %v6176
  %v6580 = vadd.f32 %v6579, %v6178
  %6581 = vadd.xlane.f32.xlu0 %v6580
  %v6582 = vpop.xlane.xlu0 %6581
  %v6583 = vadd.f32 %v6180, %v6182
  %v6584 = vadd.f32 %v6583, %v6184
  %v6585 = vadd.f32 %v6584, %v6186
  %6586 = vadd.xlane.f32.xlu0 %v6585
  %v6587 = vpop.xlane.xlu0 %6586
  %v6588 = vadd.f32 %v6188, %v6190
  %v6589 = vadd.f32 %v6588, %v6192
  %v6590 = vadd.f32 %v6589, %v6194
  %6591 = vadd.xlane.f32.xlu0 %v6590
  %v6592 = vpop.xlane.xlu0 %6591
  %v6593 = vadd.f32 %v6196, %v6198
  %v6594 = vadd.f32 %v6593, %v6200
  %v6595 = vadd.f32 %v6594, %v6202
  %6596 = vadd.xlane.f32.xlu0 %v6595
  %v6597 = vpop.xlane.xlu0 %6596
  %v6598 = vadd.f32 %v6204, %v6206
  %v6599 = vadd.f32 %v6598, %v6208
  %v6600 = vadd.f32 %v6599, %v6210
  %6601 = vadd.xlane.f32.xlu0 %v6600
  %v6602 = vpop.xlane.xlu0 %6601
  %v6603 = vadd.f32 %v6212, %v6214
  %v6604 = vadd.f32 %v6603, %v6216
  %v6605 = vadd.f32 %v6604, %v6218
  %6606 = vadd.xlane.f32.xlu0 %v6605
  %v6607 = vpop.xlane.xlu0 %6606
  %v6608 = vadd.f32 %v6220, %v6222
  %v6609 = vadd.f32 %v6608, %v6224
  %v6610 = vadd.f32 %v6609, %v6226
  %6611 = vadd.xlane.f32.xlu0 %v6610
  %v6612 = vpop.xlane.xlu0 %6611
  %v6613 = vadd.f32 %v6228, %v6230
  %v6614 = vadd.f32 %v6613, %v6232
  %v6615 = vadd.f32 %v6614, %v6234
  %6616 = vadd.xlane.f32.xlu0 %v6615
  %v6617 = vpop.xlane.xlu0 %6616
  %v6618 = vadd.f32 %v6236, %v6238
  %v6619 = vadd.f32 %v6618, %v6240
  %v6620 = vadd.f32 %v6619, %v6242
  %6621 = vadd.xlane.f32.xlu0 %v6620
  %v6622 = vpop.xlane.xlu0 %6621
  %v6623 = vadd.f32 %v6244, %v6246
  %v6624 = vadd.f32 %v6623, %v6248
  %v6625 = vadd.f32 %v6624, %v6250
  %6626 = vadd.xlane.f32.xlu0 %v6625
  %v6627 = vpop.xlane.xlu0 %6626
  %v6628 = vadd.f32 %v6252, %v6254
  %v6629 = vadd.f32 %v6628, %v6256
  %v6630 = vadd.f32 %v6629, %v6258
  %6631 = vadd.xlane.f32.xlu0 %v6630
  %v6632 = vpop.xlane.xlu0 %6631
  %v6633 = vadd.f32 %v6260, %v6262
  %v6634 = vadd.f32 %v6633, %v6264
  %v6635 = vadd.f32 %v6634, %v6266
  %6636 = vadd.xlane.f32.xlu0 %v6635
  %v6637 = vpop.xlane.xlu0 %6636
  %v6638 = vadd.f32 %v6268, %v6270
  %v6639 = vadd.f32 %v6638, %v6272
  %v6640 = vadd.f32 %v6639, %v6274
  %6641 = vadd.xlane.f32.xlu0 %v6640
  %v6642 = vpop.xlane.xlu0 %6641
  %v6643 = vadd.f32 %v6276, %v6278
  %v6644 = vadd.f32 %v6643, %v6280
  %v6645 = vadd.f32 %v6644, %v6282
  %6646 = vadd.xlane.f32.xlu0 %v6645
  %v6647 = vpop.xlane.xlu0 %6646
  %v6648 = vadd.f32 %v6284, %v6286
  %v6649 = vadd.f32 %v6648, %v6288
  %v6650 = vadd.f32 %v6649, %v6290
  %6651 = vadd.xlane.f32.xlu0 %v6650
  %v6652 = vpop.xlane.xlu0 %6651
  %v6653 = vadd.f32 %v6292, %v6294
  %v6654 = vadd.f32 %v6653, %v6296
  %v6655 = vadd.f32 %v6654, %v6298
  %6656 = vadd.xlane.f32.xlu0 %v6655
  %v6657 = vpop.xlane.xlu0 %6656
  %v6658 = vadd.f32 %v6300, %v6302
  %v6659 = vadd.f32 %v6658, %v6304
  %v6660 = vadd.f32 %v6659, %v6306
  %6661 = vadd.xlane.f32.xlu0 %v6660
  %v6662 = vpop.xlane.xlu0 %6661
  %v6663 = vadd.f32 %v6308, %v6310
  %v6664 = vadd.f32 %v6663, %v6312
  %v6665 = vadd.f32 %v6664, %v6314
  %6666 = vadd.xlane.f32.xlu0 %v6665
  %v6667 = vpop.xlane.xlu0 %6666
  %v6668 = vadd.f32 %v6316, %v6318
  %v6669 = vadd.f32 %v6668, %v6320
  %v6670 = vadd.f32 %v6669, %v6322
  %6671 = vadd.xlane.f32.xlu0 %v6670
  %v6672 = vpop.xlane.xlu0 %6671
  %v6673 = vadd.f32 %v6324, %v6326
  %v6674 = vadd.f32 %v6673, %v6328
  %v6675 = vadd.f32 %v6674, %v6330
  %6676 = vadd.xlane.f32.xlu0 %v6675
  %v6677 = vpop.xlane.xlu0 %6676
  %v6678 = vadd.f32 %v6332, %v6334
  %v6679 = vadd.f32 %v6678, %v6336
  %v6680 = vadd.f32 %v6679, %v6338
  %6681 = vadd.xlane.f32.xlu0 %v6680
  %v6682 = vpop.xlane.xlu0 %6681
  %v6683 = vadd.f32 %v6340, %v6342
  %v6684 = vadd.f32 %v6683, %v6344
  %v6685 = vadd.f32 %v6684, %v6346
  %6686 = vadd.xlane.f32.xlu0 %v6685
  %v6687 = vpop.xlane.xlu0 %6686
  %v6688 = vadd.f32 %v6348, %v6350
  %v6689 = vadd.f32 %v6688, %v6352
  %v6690 = vadd.f32 %v6689, %v6354
  %6691 = vadd.xlane.f32.xlu0 %v6690
  %v6692 = vpop.xlane.xlu0 %6691
  %v6693 = vadd.f32 %v6356, %v6358
  %v6694 = vadd.f32 %v6693, %v6360
  %v6695 = vadd.f32 %v6694, %v6362
  %6696 = vadd.xlane.f32.xlu0 %v6695
  %v6697 = vpop.xlane.xlu0 %6696
  %v6698 = vadd.f32 %v6364, %v6366
  %v6699 = vadd.f32 %v6698, %v6368
  %v6700 = vadd.f32 %v6699, %v6370
  %6701 = vadd.xlane.f32.xlu0 %v6700
  %v6702 = vpop.xlane.xlu0 %6701
  %v6703 = vadd.f32 %v6372, %v6374
  %v6704 = vadd.f32 %v6703, %v6376
  %v6705 = vadd.f32 %v6704, %v6378
  %6706 = vadd.xlane.f32.xlu0 %v6705
  %v6707 = vpop.xlane.xlu0 %6706
  %v6708 = vadd.f32 %v6380, %v6382
  %v6709 = vadd.f32 %v6708, %v6384
  %v6710 = vadd.f32 %v6709, %v6386
  %6711 = vadd.xlane.f32.xlu0 %v6710
  %v6712 = vpop.xlane.xlu0 %6711
  %v6713 = vadd.f32 %v6388, %v6390
  %v6714 = vadd.f32 %v6713, %v6392
  %v6715 = vadd.f32 %v6714, %v6394
  %6716 = vadd.xlane.f32.xlu0 %v6715
  %v6717 = vpop.xlane.xlu0 %6716
  %v6718 = vadd.f32 %v6396, %v6398
  %v6719 = vadd.f32 %v6718, %v6400
  %v6720 = vadd.f32 %v6719, %v6402
  %6721 = vadd.xlane.f32.xlu0 %v6720
  %v6722 = vpop.xlane.xlu0 %6721
  %v6723 = vrcp.pop %v6407
  %v6724 = vrcp.pop %v6412
  %v6725 = vrcp.pop %v6417
  %v6726 = vrcp.pop %v6422
  %v6727 = vrcp.pop %v6427
  %v6728 = vrcp.pop %v6432
  %v6729 = vrcp.pop %v6437
  %v6730 = vrcp.pop %v6442
  %v6731 = vrcp.pop %v6447
  %v6732 = vrcp.pop %v6452
  %v6733 = vrcp.pop %v6457
  %v6734 = vrcp.pop %v6462
  %v6735 = vrcp.pop %v6467
  %v6736 = vrcp.pop %v6472
  %v6737 = vrcp.pop %v6477
  %v6738 = vrcp.pop %v6482
  %v6739 = vrcp.pop %v6487
  %v6740 = vrcp.pop %v6492
  %v6741 = vrcp.pop %v6497
  %v6742 = vrcp.pop %v6502
  %v6743 = vrcp.pop %v6507
  %v6744 = vrcp.pop %v6512
  %v6745 = vrcp.pop %v6517
  %v6746 = vrcp.pop %v6522
  %v6747 = vrcp.pop %v6527
  %v6748 = vrcp.pop %v6532
  %v6749 = vrcp.pop %v6537
  %v6750 = vrcp.pop %v6542
  %v6751 = vrcp.pop %v6547
  %v6752 = vrcp.pop %v6552
  %v6753 = vrcp.pop %v6557
  %v6754 = vrcp.pop %v6562
  %v6755 = vrcp.pop %v6567
  %v6756 = vrcp.pop %v6572
  %v6757 = vrcp.pop %v6577
  %v6758 = vrcp.pop %v6582
  %v6759 = vrcp.pop %v6587
  %v6760 = vrcp.pop %v6592
  %v6761 = vrcp.pop %v6597
  %v6762 = vrcp.pop %v6602
  %v6763 = vrcp.pop %v6607
  %v6764 = vrcp.pop %v6612
  %v6765 = vrcp.pop %v6617
  %v6766 = vrcp.pop %v6622
  %v6767 = vrcp.pop %v6627
  %v6768 = vrcp.pop %v6632
  %v6769 = vrcp.pop %v6637
  %v6770 = vrcp.pop %v6642
  %v6771 = vrcp.pop %v6647
  %v6772 = vrcp.pop %v6652
  %v6773 = vrcp.pop %v6657
  %v6774 = vrcp.pop %v6662
  %v6775 = vrcp.pop %v6667
  %v6776 = vrcp.pop %v6672
  %v6777 = vrcp.pop %v6677
  %v6778 = vrcp.pop %v6682
  %v6779 = vrcp.pop %v6687
  %v6780 = vrcp.pop %v6692
  %v6781 = vrcp.pop %v6697
  %v6782 = vrcp.pop %v6702
  %v6783 = vrcp.pop %v6707
  %v6784 = vrcp.pop %v6712
  %v6785 = vrcp.pop %v6717
  %v6786 = vrcp.pop %v6722
  %v6787 = vmul.f32 %v5892, %v6723
  %v6788 = vmul.f32 %v5894, %v6723
  %v6789 = vmul.f32 %v5896, %v6723
  %v6790 = vmul.f32 %v5898, %v6723
  %v6791 = vmul.f32 %v5900, %v6724
  %v6792 = vmul.f32 %v5902, %v6724
  %v6793 = vmul.f32 %v5904, %v6724
  %v6794 = vmul.f32 %v5906, %v6724
  %v6795 = vmul.f32 %v5908, %v6725
  %v6796 = vmul.f32 %v5910, %v6725
  %v6797 = vmul.f32 %v5912, %v6725
  %v6798 = vmul.f32 %v5914, %v6725
  %v6799 = vmul.f32 %v5916, %v6726
  %v6800 = vmul.f32 %v5918, %v6726
  %v6801 = vmul.f32 %v5920, %v6726
  %v6802 = vmul.f32 %v5922, %v6726
  %v6803 = vmul.f32 %v5924, %v6727
  %v6804 = vmul.f32 %v5926, %v6727
  %v6805 = vmul.f32 %v5928, %v6727
  %v6806 = vmul.f32 %v5930, %v6727
  %v6807 = vmul.f32 %v5932, %v6728
  %v6808 = vmul.f32 %v5934, %v6728
  %v6809 = vmul.f32 %v5936, %v6728
  %v6810 = vmul.f32 %v5938, %v6728
  %v6811 = vmul.f32 %v5940, %v6729
  %v6812 = vmul.f32 %v5942, %v6729
  %v6813 = vmul.f32 %v5944, %v6729
  %v6814 = vmul.f32 %v5946, %v6729
  %v6815 = vmul.f32 %v5948, %v6730
  %v6816 = vmul.f32 %v5950, %v6730
  %v6817 = vmul.f32 %v5952, %v6730
  %v6818 = vmul.f32 %v5954, %v6730
  %v6819 = vmul.f32 %v5956, %v6731
  %v6820 = vmul.f32 %v5958, %v6731
  %v6821 = vmul.f32 %v5960, %v6731
  %v6822 = vmul.f32 %v5962, %v6731
  %v6823 = vmul.f32 %v5964, %v6732
  %v6824 = vmul.f32 %v5966, %v6732
  %v6825 = vmul.f32 %v5968, %v6732
  %v6826 = vmul.f32 %v5970, %v6732
  %v6827 = vmul.f32 %v5972, %v6733
  %v6828 = vmul.f32 %v5974, %v6733
  %v6829 = vmul.f32 %v5976, %v6733
  %v6830 = vmul.f32 %v5978, %v6733
  %v6831 = vmul.f32 %v5980, %v6734
  %v6832 = vmul.f32 %v5982, %v6734
  %v6833 = vmul.f32 %v5984, %v6734
  %v6834 = vmul.f32 %v5986, %v6734
  %v6835 = vmul.f32 %v5988, %v6735
  %v6836 = vmul.f32 %v5990, %v6735
  %v6837 = vmul.f32 %v5992, %v6735
  %v6838 = vmul.f32 %v5994, %v6735
  %v6839 = vmul.f32 %v5996, %v6736
  %v6840 = vmul.f32 %v5998, %v6736
  %v6841 = vmul.f32 %v6000, %v6736
  %v6842 = vmul.f32 %v6002, %v6736
  %v6843 = vmul.f32 %v6004, %v6737
  %v6844 = vmul.f32 %v6006, %v6737
  %v6845 = vmul.f32 %v6008, %v6737
  %v6846 = vmul.f32 %v6010, %v6737
  %v6847 = vmul.f32 %v6012, %v6738
  %v6848 = vmul.f32 %v6014, %v6738
  %v6849 = vmul.f32 %v6016, %v6738
  %v6850 = vmul.f32 %v6018, %v6738
  %v6851 = vmul.f32 %v6020, %v6739
  %v6852 = vmul.f32 %v6022, %v6739
  %v6853 = vmul.f32 %v6024, %v6739
  %v6854 = vmul.f32 %v6026, %v6739
  %v6855 = vmul.f32 %v6028, %v6740
  %v6856 = vmul.f32 %v6030, %v6740
  %v6857 = vmul.f32 %v6032, %v6740
  %v6858 = vmul.f32 %v6034, %v6740
  %v6859 = vmul.f32 %v6036, %v6741
  %v6860 = vmul.f32 %v6038, %v6741
  %v6861 = vmul.f32 %v6040, %v6741
  %v6862 = vmul.f32 %v6042, %v6741
  %v6863 = vmul.f32 %v6044, %v6742
  %v6864 = vmul.f32 %v6046, %v6742
  %v6865 = vmul.f32 %v6048, %v6742
  %v6866 = vmul.f32 %v6050, %v6742
  %v6867 = vmul.f32 %v6052, %v6743
  %v6868 = vmul.f32 %v6054, %v6743
  %v6869 = vmul.f32 %v6056, %v6743
  %v6870 = vmul.f32 %v6058, %v6743
  %v6871 = vmul.f32 %v6060, %v6744
  %v6872 = vmul.f32 %v6062, %v6744
  %v6873 = vmul.f32 %v6064, %v6744
  %v6874 = vmul.f32 %v6066, %v6744
  %v6875 = vmul.f32 %v6068, %v6745
  %v6876 = vmul.f32 %v6070, %v6745
  %v6877 = vmul.f32 %v6072, %v6745
  %v6878 = vmul.f32 %v6074, %v6745
  %v6879 = vmul.f32 %v6076, %v6746
  %v6880 = vmul.f32 %v6078, %v6746
  %v6881 = vmul.f32 %v6080, %v6746
  %v6882 = vmul.f32 %v6082, %v6746
  %v6883 = vmul.f32 %v6084, %v6747
  %v6884 = vmul.f32 %v6086, %v6747
  %v6885 = vmul.f32 %v6088, %v6747
  %v6886 = vmul.f32 %v6090, %v6747
  %v6887 = vmul.f32 %v6092, %v6748
  %v6888 = vmul.f32 %v6094, %v6748
  %v6889 = vmul.f32 %v6096, %v6748
  %v6890 = vmul.f32 %v6098, %v6748
  %v6891 = vmul.f32 %v6100, %v6749
  %v6892 = vmul.f32 %v6102, %v6749
  %v6893 = vmul.f32 %v6104, %v6749
  %v6894 = vmul.f32 %v6106, %v6749
  %v6895 = vmul.f32 %v6108, %v6750
  %v6896 = vmul.f32 %v6110, %v6750
  %v6897 = vmul.f32 %v6112, %v6750
  %v6898 = vmul.f32 %v6114, %v6750
  %v6899 = vmul.f32 %v6116, %v6751
  %v6900 = vmul.f32 %v6118, %v6751
  %v6901 = vmul.f32 %v6120, %v6751
  %v6902 = vmul.f32 %v6122, %v6751
  %v6903 = vmul.f32 %v6124, %v6752
  %v6904 = vmul.f32 %v6126, %v6752
  %v6905 = vmul.f32 %v6128, %v6752
  %v6906 = vmul.f32 %v6130, %v6752
  %v6907 = vmul.f32 %v6132, %v6753
  %v6908 = vmul.f32 %v6134, %v6753
  %v6909 = vmul.f32 %v6136, %v6753
  %v6910 = vmul.f32 %v6138, %v6753
  %v6911 = vmul.f32 %v6140, %v6754
  %v6912 = vmul.f32 %v6142, %v6754
  %v6913 = vmul.f32 %v6144, %v6754
  %v6914 = vmul.f32 %v6146, %v6754
  %v6915 = vmul.f32 %v6148, %v6755
  %v6916 = vmul.f32 %v6150, %v6755
  %v6917 = vmul.f32 %v6152, %v6755
  %v6918 = vmul.f32 %v6154, %v6755
  %v6919 = vmul.f32 %v6156, %v6756
  %v6920 = vmul.f32 %v6158, %v6756
  %v6921 = vmul.f32 %v6160, %v6756
  %v6922 = vmul.f32 %v6162, %v6756
  %v6923 = vmul.f32 %v6164, %v6757
  %v6924 = vmul.f32 %v6166, %v6757
  %v6925 = vmul.f32 %v6168, %v6757
  %v6926 = vmul.f32 %v6170, %v6757
  %v6927 = vmul.f32 %v6172, %v6758
  %v6928 = vmul.f32 %v6174, %v6758
  %v6929 = vmul.f32 %v6176, %v6758
  %v6930 = vmul.f32 %v6178, %v6758
  %v6931 = vmul.f32 %v6180, %v6759
  %v6932 = vmul.f32 %v6182, %v6759
  %v6933 = vmul.f32 %v6184, %v6759
  %v6934 = vmul.f32 %v6186, %v6759
  %v6935 = vmul.f32 %v6188, %v6760
  %v6936 = vmul.f32 %v6190, %v6760
  %v6937 = vmul.f32 %v6192, %v6760
  %v6938 = vmul.f32 %v6194, %v6760
  %v6939 = vmul.f32 %v6196, %v6761
  %v6940 = vmul.f32 %v6198, %v6761
  %v6941 = vmul.f32 %v6200, %v6761
  %v6942 = vmul.f32 %v6202, %v6761
  %v6943 = vmul.f32 %v6204, %v6762
  %v6944 = vmul.f32 %v6206, %v6762
  %v6945 = vmul.f32 %v6208, %v6762
  %v6946 = vmul.f32 %v6210, %v6762
  %v6947 = vmul.f32 %v6212, %v6763
  %v6948 = vmul.f32 %v6214, %v6763
  %v6949 = vmul.f32 %v6216, %v6763
  %v6950 = vmul.f32 %v6218, %v6763
  %v6951 = vmul.f32 %v6220, %v6764
  %v6952 = vmul.f32 %v6222, %v6764
  %v6953 = vmul.f32 %v6224, %v6764
  %v6954 = vmul.f32 %v6226, %v6764
  %v6955 = vmul.f32 %v6228, %v6765
  %v6956 = vmul.f32 %v6230, %v6765
  %v6957 = vmul.f32 %v6232, %v6765
  %v6958 = vmul.f32 %v6234, %v6765
  %v6959 = vmul.f32 %v6236, %v6766
  %v6960 = vmul.f32 %v6238, %v6766
  %v6961 = vmul.f32 %v6240, %v6766
  %v6962 = vmul.f32 %v6242, %v6766
  %v6963 = vmul.f32 %v6244, %v6767
  %v6964 = vmul.f32 %v6246, %v6767
  %v6965 = vmul.f32 %v6248, %v6767
  %v6966 = vmul.f32 %v6250, %v6767
  %v6967 = vmul.f32 %v6252, %v6768
  %v6968 = vmul.f32 %v6254, %v6768
  %v6969 = vmul.f32 %v6256, %v6768
  %v6970 = vmul.f32 %v6258, %v6768
  %v6971 = vmul.f32 %v6260, %v6769
  %v6972 = vmul.f32 %v6262, %v6769
  %v6973 = vmul.f32 %v6264, %v6769
  %v6974 = vmul.f32 %v6266, %v6769
  %v6975 = vmul.f32 %v6268, %v6770
  %v6976 = vmul.f32 %v6270, %v6770
  %v6977 = vmul.f32 %v6272, %v6770
  %v6978 = vmul.f32 %v6274, %v6770
  %v6979 = vmul.f32 %v6276, %v6771
  %v6980 = vmul.f32 %v6278, %v6771
  %v6981 = vmul.f32 %v6280, %v6771
  %v6982 = vmul.f32 %v6282, %v6771
  %v6983 = vmul.f32 %v6284, %v6772
  %v6984 = vmul.f32 %v6286, %v6772
  %v6985 = vmul.f32 %v6288, %v6772
  %v6986 = vmul.f32 %v6290, %v6772
  %v6987 = vmul.f32 %v6292, %v6773
  %v6988 = vmul.f32 %v6294, %v6773
  %v6989 = vmul.f32 %v6296, %v6773
  %v6990 = vmul.f32 %v6298, %v6773
  %v6991 = vmul.f32 %v6300, %v6774
  %v6992 = vmul.f32 %v6302, %v6774
  %v6993 = vmul.f32 %v6304, %v6774
  %v6994 = vmul.f32 %v6306, %v6774
  %v6995 = vmul.f32 %v6308, %v6775
  %v6996 = vmul.f32 %v6310, %v6775
  %v6997 = vmul.f32 %v6312, %v6775
  %v6998 = vmul.f32 %v6314, %v6775
  %v6999 = vmul.f32 %v6316, %v6776
  %v7000 = vmul.f32 %v6318, %v6776
  %v7001 = vmul.f32 %v6320, %v6776
  %v7002 = vmul.f32 %v6322, %v6776
  %v7003 = vmul.f32 %v6324, %v6777
  %v7004 = vmul.f32 %v6326, %v6777
  %v7005 = vmul.f32 %v6328, %v6777
  %v7006 = vmul.f32 %v6330, %v6777
  %v7007 = vmul.f32 %v6332, %v6778
  %v7008 = vmul.f32 %v6334, %v6778
  %v7009 = vmul.f32 %v6336, %v6778
  %v7010 = vmul.f32 %v6338, %v6778
  %v7011 = vmul.f32 %v6340, %v6779
  %v7012 = vmul.f32 %v6342, %v6779
  %v7013 = vmul.f32 %v6344, %v6779
  %v7014 = vmul.f32 %v6346, %v6779
  %v7015 = vmul.f32 %v6348, %v6780
  %v7016 = vmul.f32 %v6350, %v6780
  %v7017 = vmul.f32 %v6352, %v6780
  %v7018 = vmul.f32 %v6354, %v6780
  %v7019 = vmul.f32 %v6356, %v6781
  %v7020 = vmul.f32 %v6358, %v6781
  %v7021 = vmul.f32 %v6360, %v6781
  %v7022 = vmul.f32 %v6362, %v6781
  %v7023 = vmul.f32 %v6364, %v6782
  %v7024 = vmul.f32 %v6366, %v6782
  %v7025 = vmul.f32 %v6368, %v6782
  %v7026 = vmul.f32 %v6370, %v6782
  %v7027 = vmul.f32 %v6372, %v6783
  %v7028 = vmul.f32 %v6374, %v6783
  %v7029 = vmul.f32 %v6376, %v6783
  %v7030 = vmul.f32 %v6378, %v6783
  %v7031 = vmul.f32 %v6380, %v6784
  %v7032 = vmul.f32 %v6382, %v6784
  %v7033 = vmul.f32 %v6384, %v6784
  %v7034 = vmul.f32 %v6386, %v6784
  %v7035 = vmul.f32 %v6388, %v6785
  %v7036 = vmul.f32 %v6390, %v6785
  %v7037 = vmul.f32 %v6392, %v6785
  %v7038 = vmul.f32 %v6394, %v6785
  %v7039 = vmul.f32 %v6396, %v6786
  %v7040 = vmul.f32 %v6398, %v6786
  %v7041 = vmul.f32 %v6400, %v6786
  %v7042 = vmul.f32 %v6402, %v6786
  %v7043 = vadd.f32 %v6787, %v6791
  %v7044 = vrot.slane %v7043, 4
  %v7045 = vadd.f32 %v7043, %v7044
  %v7046 = vrot.slane %v7045, 2
  %v7047 = vadd.f32 %v7045, %v7046
  %v7048 = vrot.slane %v7047, 1
  %v7049 = vadd.f32 %v7047, %v7048
  %v7050 = vadd.f32 %v6788, %v6792
  %v7051 = vrot.slane %v7050, 4
  %v7052 = vadd.f32 %v7050, %v7051
  %v7053 = vrot.slane %v7052, 2
  %v7054 = vadd.f32 %v7052, %v7053
  %v7055 = vrot.slane %v7054, 1
  %v7056 = vadd.f32 %v7054, %v7055
  %v7057 = vadd.f32 %v6789, %v6793
  %v7058 = vrot.slane %v7057, 4
  %v7059 = vadd.f32 %v7057, %v7058
  %v7060 = vrot.slane %v7059, 2
  %v7061 = vadd.f32 %v7059, %v7060
  %v7062 = vrot.slane %v7061, 1
  %v7063 = vadd.f32 %v7061, %v7062
  %v7064 = vadd.f32 %v6790, %v6794
  %v7065 = vrot.slane %v7064, 4
  %v7066 = vadd.f32 %v7064, %v7065
  %v7067 = vrot.slane %v7066, 2
  %v7068 = vadd.f32 %v7066, %v7067
  %v7069 = vrot.slane %v7068, 1
  %v7070 = vadd.f32 %v7068, %v7069
  %v7071 = vadd.f32 %v6795, %v6799
  %v7072 = vrot.slane %v7071, 4
  %v7073 = vadd.f32 %v7071, %v7072
  %v7074 = vrot.slane %v7073, 2
  %v7075 = vadd.f32 %v7073, %v7074
  %v7076 = vrot.slane %v7075, 1
  %v7077 = vadd.f32 %v7075, %v7076
  %v7078 = vadd.f32 %v6796, %v6800
  %v7079 = vrot.slane %v7078, 4
  %v7080 = vadd.f32 %v7078, %v7079
  %v7081 = vrot.slane %v7080, 2
  %v7082 = vadd.f32 %v7080, %v7081
  %v7083 = vrot.slane %v7082, 1
  %v7084 = vadd.f32 %v7082, %v7083
  %v7085 = vadd.f32 %v6797, %v6801
  %v7086 = vrot.slane %v7085, 4
  %v7087 = vadd.f32 %v7085, %v7086
  %v7088 = vrot.slane %v7087, 2
  %v7089 = vadd.f32 %v7087, %v7088
  %v7090 = vrot.slane %v7089, 1
  %v7091 = vadd.f32 %v7089, %v7090
  %v7092 = vadd.f32 %v6798, %v6802
  %v7093 = vrot.slane %v7092, 4
  %v7094 = vadd.f32 %v7092, %v7093
  %v7095 = vrot.slane %v7094, 2
  %v7096 = vadd.f32 %v7094, %v7095
  %v7097 = vrot.slane %v7096, 1
  %v7098 = vadd.f32 %v7096, %v7097
  %v7099 = vadd.f32 %v6803, %v6807
  %v7100 = vrot.slane %v7099, 4
  %v7101 = vadd.f32 %v7099, %v7100
  %v7102 = vrot.slane %v7101, 2
  %v7103 = vadd.f32 %v7101, %v7102
  %v7104 = vrot.slane %v7103, 1
  %v7105 = vadd.f32 %v7103, %v7104
  %v7106 = vadd.f32 %v6804, %v6808
  %v7107 = vrot.slane %v7106, 4
  %v7108 = vadd.f32 %v7106, %v7107
  %v7109 = vrot.slane %v7108, 2
  %v7110 = vadd.f32 %v7108, %v7109
  %v7111 = vrot.slane %v7110, 1
  %v7112 = vadd.f32 %v7110, %v7111
  %v7113 = vadd.f32 %v6805, %v6809
  %v7114 = vrot.slane %v7113, 4
  %v7115 = vadd.f32 %v7113, %v7114
  %v7116 = vrot.slane %v7115, 2
  %v7117 = vadd.f32 %v7115, %v7116
  %v7118 = vrot.slane %v7117, 1
  %v7119 = vadd.f32 %v7117, %v7118
  %v7120 = vadd.f32 %v6806, %v6810
  %v7121 = vrot.slane %v7120, 4
  %v7122 = vadd.f32 %v7120, %v7121
  %v7123 = vrot.slane %v7122, 2
  %v7124 = vadd.f32 %v7122, %v7123
  %v7125 = vrot.slane %v7124, 1
  %v7126 = vadd.f32 %v7124, %v7125
  %v7127 = vadd.f32 %v6811, %v6815
  %v7128 = vrot.slane %v7127, 4
  %v7129 = vadd.f32 %v7127, %v7128
  %v7130 = vrot.slane %v7129, 2
  %v7131 = vadd.f32 %v7129, %v7130
  %v7132 = vrot.slane %v7131, 1
  %v7133 = vadd.f32 %v7131, %v7132
  %v7134 = vadd.f32 %v6812, %v6816
  %v7135 = vrot.slane %v7134, 4
  %v7136 = vadd.f32 %v7134, %v7135
  %v7137 = vrot.slane %v7136, 2
  %v7138 = vadd.f32 %v7136, %v7137
  %v7139 = vrot.slane %v7138, 1
  %v7140 = vadd.f32 %v7138, %v7139
  %v7141 = vadd.f32 %v6813, %v6817
  %v7142 = vrot.slane %v7141, 4
  %v7143 = vadd.f32 %v7141, %v7142
  %v7144 = vrot.slane %v7143, 2
  %v7145 = vadd.f32 %v7143, %v7144
  %v7146 = vrot.slane %v7145, 1
  %v7147 = vadd.f32 %v7145, %v7146
  %v7148 = vadd.f32 %v6814, %v6818
  %v7149 = vrot.slane %v7148, 4
  %v7150 = vadd.f32 %v7148, %v7149
  %v7151 = vrot.slane %v7150, 2
  %v7152 = vadd.f32 %v7150, %v7151
  %v7153 = vrot.slane %v7152, 1
  %v7154 = vadd.f32 %v7152, %v7153
  %v7155 = vadd.f32 %v6819, %v6823
  %v7156 = vrot.slane %v7155, 4
  %v7157 = vadd.f32 %v7155, %v7156
  %v7158 = vrot.slane %v7157, 2
  %v7159 = vadd.f32 %v7157, %v7158
  %v7160 = vrot.slane %v7159, 1
  %v7161 = vadd.f32 %v7159, %v7160
  %v7162 = vadd.f32 %v6820, %v6824
  %v7163 = vrot.slane %v7162, 4
  %v7164 = vadd.f32 %v7162, %v7163
  %v7165 = vrot.slane %v7164, 2
  %v7166 = vadd.f32 %v7164, %v7165
  %v7167 = vrot.slane %v7166, 1
  %v7168 = vadd.f32 %v7166, %v7167
  %v7169 = vadd.f32 %v6821, %v6825
  %v7170 = vrot.slane %v7169, 4
  %v7171 = vadd.f32 %v7169, %v7170
  %v7172 = vrot.slane %v7171, 2
  %v7173 = vadd.f32 %v7171, %v7172
  %v7174 = vrot.slane %v7173, 1
  %v7175 = vadd.f32 %v7173, %v7174
  %v7176 = vadd.f32 %v6822, %v6826
  %v7177 = vrot.slane %v7176, 4
  %v7178 = vadd.f32 %v7176, %v7177
  %v7179 = vrot.slane %v7178, 2
  %v7180 = vadd.f32 %v7178, %v7179
  %v7181 = vrot.slane %v7180, 1
  %v7182 = vadd.f32 %v7180, %v7181
  %v7183 = vadd.f32 %v6827, %v6831
  %v7184 = vrot.slane %v7183, 4
  %v7185 = vadd.f32 %v7183, %v7184
  %v7186 = vrot.slane %v7185, 2
  %v7187 = vadd.f32 %v7185, %v7186
  %v7188 = vrot.slane %v7187, 1
  %v7189 = vadd.f32 %v7187, %v7188
  %v7190 = vadd.f32 %v6828, %v6832
  %v7191 = vrot.slane %v7190, 4
  %v7192 = vadd.f32 %v7190, %v7191
  %v7193 = vrot.slane %v7192, 2
  %v7194 = vadd.f32 %v7192, %v7193
  %v7195 = vrot.slane %v7194, 1
  %v7196 = vadd.f32 %v7194, %v7195
  %v7197 = vadd.f32 %v6829, %v6833
  %v7198 = vrot.slane %v7197, 4
  %v7199 = vadd.f32 %v7197, %v7198
  %v7200 = vrot.slane %v7199, 2
  %v7201 = vadd.f32 %v7199, %v7200
  %v7202 = vrot.slane %v7201, 1
  %v7203 = vadd.f32 %v7201, %v7202
  %v7204 = vadd.f32 %v6830, %v6834
  %v7205 = vrot.slane %v7204, 4
  %v7206 = vadd.f32 %v7204, %v7205
  %v7207 = vrot.slane %v7206, 2
  %v7208 = vadd.f32 %v7206, %v7207
  %v7209 = vrot.slane %v7208, 1
  %v7210 = vadd.f32 %v7208, %v7209
  %v7211 = vadd.f32 %v6835, %v6839
  %v7212 = vrot.slane %v7211, 4
  %v7213 = vadd.f32 %v7211, %v7212
  %v7214 = vrot.slane %v7213, 2
  %v7215 = vadd.f32 %v7213, %v7214
  %v7216 = vrot.slane %v7215, 1
  %v7217 = vadd.f32 %v7215, %v7216
  %v7218 = vadd.f32 %v6836, %v6840
  %v7219 = vrot.slane %v7218, 4
  %v7220 = vadd.f32 %v7218, %v7219
  %v7221 = vrot.slane %v7220, 2
  %v7222 = vadd.f32 %v7220, %v7221
  %v7223 = vrot.slane %v7222, 1
  %v7224 = vadd.f32 %v7222, %v7223
  %v7225 = vadd.f32 %v6837, %v6841
  %v7226 = vrot.slane %v7225, 4
  %v7227 = vadd.f32 %v7225, %v7226
  %v7228 = vrot.slane %v7227, 2
  %v7229 = vadd.f32 %v7227, %v7228
  %v7230 = vrot.slane %v7229, 1
  %v7231 = vadd.f32 %v7229, %v7230
  %v7232 = vadd.f32 %v6838, %v6842
  %v7233 = vrot.slane %v7232, 4
  %v7234 = vadd.f32 %v7232, %v7233
  %v7235 = vrot.slane %v7234, 2
  %v7236 = vadd.f32 %v7234, %v7235
  %v7237 = vrot.slane %v7236, 1
  %v7238 = vadd.f32 %v7236, %v7237
  %v7239 = vadd.f32 %v6843, %v6847
  %v7240 = vrot.slane %v7239, 4
  %v7241 = vadd.f32 %v7239, %v7240
  %v7242 = vrot.slane %v7241, 2
  %v7243 = vadd.f32 %v7241, %v7242
  %v7244 = vrot.slane %v7243, 1
  %v7245 = vadd.f32 %v7243, %v7244
  %v7246 = vadd.f32 %v6844, %v6848
  %v7247 = vrot.slane %v7246, 4
  %v7248 = vadd.f32 %v7246, %v7247
  %v7249 = vrot.slane %v7248, 2
  %v7250 = vadd.f32 %v7248, %v7249
  %v7251 = vrot.slane %v7250, 1
  %v7252 = vadd.f32 %v7250, %v7251
  %v7253 = vadd.f32 %v6845, %v6849
  %v7254 = vrot.slane %v7253, 4
  %v7255 = vadd.f32 %v7253, %v7254
  %v7256 = vrot.slane %v7255, 2
  %v7257 = vadd.f32 %v7255, %v7256
  %v7258 = vrot.slane %v7257, 1
  %v7259 = vadd.f32 %v7257, %v7258
  %v7260 = vadd.f32 %v6846, %v6850
  %v7261 = vrot.slane %v7260, 4
  %v7262 = vadd.f32 %v7260, %v7261
  %v7263 = vrot.slane %v7262, 2
  %v7264 = vadd.f32 %v7262, %v7263
  %v7265 = vrot.slane %v7264, 1
  %v7266 = vadd.f32 %v7264, %v7265
  %v7267 = vadd.f32 %v6851, %v6855
  %v7268 = vrot.slane %v7267, 4
  %v7269 = vadd.f32 %v7267, %v7268
  %v7270 = vrot.slane %v7269, 2
  %v7271 = vadd.f32 %v7269, %v7270
  %v7272 = vrot.slane %v7271, 1
  %v7273 = vadd.f32 %v7271, %v7272
  %v7274 = vadd.f32 %v6852, %v6856
  %v7275 = vrot.slane %v7274, 4
  %v7276 = vadd.f32 %v7274, %v7275
  %v7277 = vrot.slane %v7276, 2
  %v7278 = vadd.f32 %v7276, %v7277
  %v7279 = vrot.slane %v7278, 1
  %v7280 = vadd.f32 %v7278, %v7279
  %v7281 = vadd.f32 %v6853, %v6857
  %v7282 = vrot.slane %v7281, 4
  %v7283 = vadd.f32 %v7281, %v7282
  %v7284 = vrot.slane %v7283, 2
  %v7285 = vadd.f32 %v7283, %v7284
  %v7286 = vrot.slane %v7285, 1
  %v7287 = vadd.f32 %v7285, %v7286
  %v7288 = vadd.f32 %v6854, %v6858
  %v7289 = vrot.slane %v7288, 4
  %v7290 = vadd.f32 %v7288, %v7289
  %v7291 = vrot.slane %v7290, 2
  %v7292 = vadd.f32 %v7290, %v7291
  %v7293 = vrot.slane %v7292, 1
  %v7294 = vadd.f32 %v7292, %v7293
  %v7295 = vadd.f32 %v6859, %v6863
  %v7296 = vrot.slane %v7295, 4
  %v7297 = vadd.f32 %v7295, %v7296
  %v7298 = vrot.slane %v7297, 2
  %v7299 = vadd.f32 %v7297, %v7298
  %v7300 = vrot.slane %v7299, 1
  %v7301 = vadd.f32 %v7299, %v7300
  %v7302 = vadd.f32 %v6860, %v6864
  %v7303 = vrot.slane %v7302, 4
  %v7304 = vadd.f32 %v7302, %v7303
  %v7305 = vrot.slane %v7304, 2
  %v7306 = vadd.f32 %v7304, %v7305
  %v7307 = vrot.slane %v7306, 1
  %v7308 = vadd.f32 %v7306, %v7307
  %v7309 = vadd.f32 %v6861, %v6865
  %v7310 = vrot.slane %v7309, 4
  %v7311 = vadd.f32 %v7309, %v7310
  %v7312 = vrot.slane %v7311, 2
  %v7313 = vadd.f32 %v7311, %v7312
  %v7314 = vrot.slane %v7313, 1
  %v7315 = vadd.f32 %v7313, %v7314
  %v7316 = vadd.f32 %v6862, %v6866
  %v7317 = vrot.slane %v7316, 4
  %v7318 = vadd.f32 %v7316, %v7317
  %v7319 = vrot.slane %v7318, 2
  %v7320 = vadd.f32 %v7318, %v7319
  %v7321 = vrot.slane %v7320, 1
  %v7322 = vadd.f32 %v7320, %v7321
  %v7323 = vadd.f32 %v6867, %v6871
  %v7324 = vrot.slane %v7323, 4
  %v7325 = vadd.f32 %v7323, %v7324
  %v7326 = vrot.slane %v7325, 2
  %v7327 = vadd.f32 %v7325, %v7326
  %v7328 = vrot.slane %v7327, 1
  %v7329 = vadd.f32 %v7327, %v7328
  %v7330 = vadd.f32 %v6868, %v6872
  %v7331 = vrot.slane %v7330, 4
  %v7332 = vadd.f32 %v7330, %v7331
  %v7333 = vrot.slane %v7332, 2
  %v7334 = vadd.f32 %v7332, %v7333
  %v7335 = vrot.slane %v7334, 1
  %v7336 = vadd.f32 %v7334, %v7335
  %v7337 = vadd.f32 %v6869, %v6873
  %v7338 = vrot.slane %v7337, 4
  %v7339 = vadd.f32 %v7337, %v7338
  %v7340 = vrot.slane %v7339, 2
  %v7341 = vadd.f32 %v7339, %v7340
  %v7342 = vrot.slane %v7341, 1
  %v7343 = vadd.f32 %v7341, %v7342
  %v7344 = vadd.f32 %v6870, %v6874
  %v7345 = vrot.slane %v7344, 4
  %v7346 = vadd.f32 %v7344, %v7345
  %v7347 = vrot.slane %v7346, 2
  %v7348 = vadd.f32 %v7346, %v7347
  %v7349 = vrot.slane %v7348, 1
  %v7350 = vadd.f32 %v7348, %v7349
  %v7351 = vadd.f32 %v6875, %v6879
  %v7352 = vrot.slane %v7351, 4
  %v7353 = vadd.f32 %v7351, %v7352
  %v7354 = vrot.slane %v7353, 2
  %v7355 = vadd.f32 %v7353, %v7354
  %v7356 = vrot.slane %v7355, 1
  %v7357 = vadd.f32 %v7355, %v7356
  %v7358 = vadd.f32 %v6876, %v6880
  %v7359 = vrot.slane %v7358, 4
  %v7360 = vadd.f32 %v7358, %v7359
  %v7361 = vrot.slane %v7360, 2
  %v7362 = vadd.f32 %v7360, %v7361
  %v7363 = vrot.slane %v7362, 1
  %v7364 = vadd.f32 %v7362, %v7363
  %v7365 = vadd.f32 %v6877, %v6881
  %v7366 = vrot.slane %v7365, 4
  %v7367 = vadd.f32 %v7365, %v7366
  %v7368 = vrot.slane %v7367, 2
  %v7369 = vadd.f32 %v7367, %v7368
  %v7370 = vrot.slane %v7369, 1
  %v7371 = vadd.f32 %v7369, %v7370
  %v7372 = vadd.f32 %v6878, %v6882
  %v7373 = vrot.slane %v7372, 4
  %v7374 = vadd.f32 %v7372, %v7373
  %v7375 = vrot.slane %v7374, 2
  %v7376 = vadd.f32 %v7374, %v7375
  %v7377 = vrot.slane %v7376, 1
  %v7378 = vadd.f32 %v7376, %v7377
  %v7379 = vadd.f32 %v6883, %v6887
  %v7380 = vrot.slane %v7379, 4
  %v7381 = vadd.f32 %v7379, %v7380
  %v7382 = vrot.slane %v7381, 2
  %v7383 = vadd.f32 %v7381, %v7382
  %v7384 = vrot.slane %v7383, 1
  %v7385 = vadd.f32 %v7383, %v7384
  %v7386 = vadd.f32 %v6884, %v6888
  %v7387 = vrot.slane %v7386, 4
  %v7388 = vadd.f32 %v7386, %v7387
  %v7389 = vrot.slane %v7388, 2
  %v7390 = vadd.f32 %v7388, %v7389
  %v7391 = vrot.slane %v7390, 1
  %v7392 = vadd.f32 %v7390, %v7391
  %v7393 = vadd.f32 %v6885, %v6889
  %v7394 = vrot.slane %v7393, 4
  %v7395 = vadd.f32 %v7393, %v7394
  %v7396 = vrot.slane %v7395, 2
  %v7397 = vadd.f32 %v7395, %v7396
  %v7398 = vrot.slane %v7397, 1
  %v7399 = vadd.f32 %v7397, %v7398
  %v7400 = vadd.f32 %v6886, %v6890
  %v7401 = vrot.slane %v7400, 4
  %v7402 = vadd.f32 %v7400, %v7401
  %v7403 = vrot.slane %v7402, 2
  %v7404 = vadd.f32 %v7402, %v7403
  %v7405 = vrot.slane %v7404, 1
  %v7406 = vadd.f32 %v7404, %v7405
  %v7407 = vadd.f32 %v6891, %v6895
  %v7408 = vrot.slane %v7407, 4
  %v7409 = vadd.f32 %v7407, %v7408
  %v7410 = vrot.slane %v7409, 2
  %v7411 = vadd.f32 %v7409, %v7410
  %v7412 = vrot.slane %v7411, 1
  %v7413 = vadd.f32 %v7411, %v7412
  %v7414 = vadd.f32 %v6892, %v6896
  %v7415 = vrot.slane %v7414, 4
  %v7416 = vadd.f32 %v7414, %v7415
  %v7417 = vrot.slane %v7416, 2
  %v7418 = vadd.f32 %v7416, %v7417
  %v7419 = vrot.slane %v7418, 1
  %v7420 = vadd.f32 %v7418, %v7419
  %v7421 = vadd.f32 %v6893, %v6897
  %v7422 = vrot.slane %v7421, 4
  %v7423 = vadd.f32 %v7421, %v7422
  %v7424 = vrot.slane %v7423, 2
  %v7425 = vadd.f32 %v7423, %v7424
  %v7426 = vrot.slane %v7425, 1
  %v7427 = vadd.f32 %v7425, %v7426
  %v7428 = vadd.f32 %v6894, %v6898
  %v7429 = vrot.slane %v7428, 4
  %v7430 = vadd.f32 %v7428, %v7429
  %v7431 = vrot.slane %v7430, 2
  %v7432 = vadd.f32 %v7430, %v7431
  %v7433 = vrot.slane %v7432, 1
  %v7434 = vadd.f32 %v7432, %v7433
  %v7435 = vadd.f32 %v6899, %v6903
  %v7436 = vrot.slane %v7435, 4
  %v7437 = vadd.f32 %v7435, %v7436
  %v7438 = vrot.slane %v7437, 2
  %v7439 = vadd.f32 %v7437, %v7438
  %v7440 = vrot.slane %v7439, 1
  %v7441 = vadd.f32 %v7439, %v7440
  %v7442 = vadd.f32 %v6900, %v6904
  %v7443 = vrot.slane %v7442, 4
  %v7444 = vadd.f32 %v7442, %v7443
  %v7445 = vrot.slane %v7444, 2
  %v7446 = vadd.f32 %v7444, %v7445
  %v7447 = vrot.slane %v7446, 1
  %v7448 = vadd.f32 %v7446, %v7447
  %v7449 = vadd.f32 %v6901, %v6905
  %v7450 = vrot.slane %v7449, 4
  %v7451 = vadd.f32 %v7449, %v7450
  %v7452 = vrot.slane %v7451, 2
  %v7453 = vadd.f32 %v7451, %v7452
  %v7454 = vrot.slane %v7453, 1
  %v7455 = vadd.f32 %v7453, %v7454
  %v7456 = vadd.f32 %v6902, %v6906
  %v7457 = vrot.slane %v7456, 4
  %v7458 = vadd.f32 %v7456, %v7457
  %v7459 = vrot.slane %v7458, 2
  %v7460 = vadd.f32 %v7458, %v7459
  %v7461 = vrot.slane %v7460, 1
  %v7462 = vadd.f32 %v7460, %v7461
  %v7463 = vadd.f32 %v6907, %v6911
  %v7464 = vrot.slane %v7463, 4
  %v7465 = vadd.f32 %v7463, %v7464
  %v7466 = vrot.slane %v7465, 2
  %v7467 = vadd.f32 %v7465, %v7466
  %v7468 = vrot.slane %v7467, 1
  %v7469 = vadd.f32 %v7467, %v7468
  %v7470 = vadd.f32 %v6908, %v6912
  %v7471 = vrot.slane %v7470, 4
  %v7472 = vadd.f32 %v7470, %v7471
  %v7473 = vrot.slane %v7472, 2
  %v7474 = vadd.f32 %v7472, %v7473
  %v7475 = vrot.slane %v7474, 1
  %v7476 = vadd.f32 %v7474, %v7475
  %v7477 = vadd.f32 %v6909, %v6913
  %v7478 = vrot.slane %v7477, 4
  %v7479 = vadd.f32 %v7477, %v7478
  %v7480 = vrot.slane %v7479, 2
  %v7481 = vadd.f32 %v7479, %v7480
  %v7482 = vrot.slane %v7481, 1
  %v7483 = vadd.f32 %v7481, %v7482
  %v7484 = vadd.f32 %v6910, %v6914
  %v7485 = vrot.slane %v7484, 4
  %v7486 = vadd.f32 %v7484, %v7485
  %v7487 = vrot.slane %v7486, 2
  %v7488 = vadd.f32 %v7486, %v7487
  %v7489 = vrot.slane %v7488, 1
  %v7490 = vadd.f32 %v7488, %v7489
  %v7491 = vadd.f32 %v6915, %v6919
  %v7492 = vrot.slane %v7491, 4
  %v7493 = vadd.f32 %v7491, %v7492
  %v7494 = vrot.slane %v7493, 2
  %v7495 = vadd.f32 %v7493, %v7494
  %v7496 = vrot.slane %v7495, 1
  %v7497 = vadd.f32 %v7495, %v7496
  %v7498 = vadd.f32 %v6916, %v6920
  %v7499 = vrot.slane %v7498, 4
  %v7500 = vadd.f32 %v7498, %v7499
  %v7501 = vrot.slane %v7500, 2
  %v7502 = vadd.f32 %v7500, %v7501
  %v7503 = vrot.slane %v7502, 1
  %v7504 = vadd.f32 %v7502, %v7503
  %v7505 = vadd.f32 %v6917, %v6921
  %v7506 = vrot.slane %v7505, 4
  %v7507 = vadd.f32 %v7505, %v7506
  %v7508 = vrot.slane %v7507, 2
  %v7509 = vadd.f32 %v7507, %v7508
  %v7510 = vrot.slane %v7509, 1
  %v7511 = vadd.f32 %v7509, %v7510
  %v7512 = vadd.f32 %v6918, %v6922
  %v7513 = vrot.slane %v7512, 4
  %v7514 = vadd.f32 %v7512, %v7513
  %v7515 = vrot.slane %v7514, 2
  %v7516 = vadd.f32 %v7514, %v7515
  %v7517 = vrot.slane %v7516, 1
  %v7518 = vadd.f32 %v7516, %v7517
  %v7519 = vadd.f32 %v6923, %v6927
  %v7520 = vrot.slane %v7519, 4
  %v7521 = vadd.f32 %v7519, %v7520
  %v7522 = vrot.slane %v7521, 2
  %v7523 = vadd.f32 %v7521, %v7522
  %v7524 = vrot.slane %v7523, 1
  %v7525 = vadd.f32 %v7523, %v7524
  %v7526 = vadd.f32 %v6924, %v6928
  %v7527 = vrot.slane %v7526, 4
  %v7528 = vadd.f32 %v7526, %v7527
  %v7529 = vrot.slane %v7528, 2
  %v7530 = vadd.f32 %v7528, %v7529
  %v7531 = vrot.slane %v7530, 1
  %v7532 = vadd.f32 %v7530, %v7531
  %v7533 = vadd.f32 %v6925, %v6929
  %v7534 = vrot.slane %v7533, 4
  %v7535 = vadd.f32 %v7533, %v7534
  %v7536 = vrot.slane %v7535, 2
  %v7537 = vadd.f32 %v7535, %v7536
  %v7538 = vrot.slane %v7537, 1
  %v7539 = vadd.f32 %v7537, %v7538
  %v7540 = vadd.f32 %v6926, %v6930
  %v7541 = vrot.slane %v7540, 4
  %v7542 = vadd.f32 %v7540, %v7541
  %v7543 = vrot.slane %v7542, 2
  %v7544 = vadd.f32 %v7542, %v7543
  %v7545 = vrot.slane %v7544, 1
  %v7546 = vadd.f32 %v7544, %v7545
  %v7547 = vadd.f32 %v6931, %v6935
  %v7548 = vrot.slane %v7547, 4
  %v7549 = vadd.f32 %v7547, %v7548
  %v7550 = vrot.slane %v7549, 2
  %v7551 = vadd.f32 %v7549, %v7550
  %v7552 = vrot.slane %v7551, 1
  %v7553 = vadd.f32 %v7551, %v7552
  %v7554 = vadd.f32 %v6932, %v6936
  %v7555 = vrot.slane %v7554, 4
  %v7556 = vadd.f32 %v7554, %v7555
  %v7557 = vrot.slane %v7556, 2
  %v7558 = vadd.f32 %v7556, %v7557
  %v7559 = vrot.slane %v7558, 1
  %v7560 = vadd.f32 %v7558, %v7559
  %v7561 = vadd.f32 %v6933, %v6937
  %v7562 = vrot.slane %v7561, 4
  %v7563 = vadd.f32 %v7561, %v7562
  %v7564 = vrot.slane %v7563, 2
  %v7565 = vadd.f32 %v7563, %v7564
  %v7566 = vrot.slane %v7565, 1
  %v7567 = vadd.f32 %v7565, %v7566
  %v7568 = vadd.f32 %v6934, %v6938
  %v7569 = vrot.slane %v7568, 4
  %v7570 = vadd.f32 %v7568, %v7569
  %v7571 = vrot.slane %v7570, 2
  %v7572 = vadd.f32 %v7570, %v7571
  %v7573 = vrot.slane %v7572, 1
  %v7574 = vadd.f32 %v7572, %v7573
  %v7575 = vadd.f32 %v6939, %v6943
  %v7576 = vrot.slane %v7575, 4
  %v7577 = vadd.f32 %v7575, %v7576
  %v7578 = vrot.slane %v7577, 2
  %v7579 = vadd.f32 %v7577, %v7578
  %v7580 = vrot.slane %v7579, 1
  %v7581 = vadd.f32 %v7579, %v7580
  %v7582 = vadd.f32 %v6940, %v6944
  %v7583 = vrot.slane %v7582, 4
  %v7584 = vadd.f32 %v7582, %v7583
  %v7585 = vrot.slane %v7584, 2
  %v7586 = vadd.f32 %v7584, %v7585
  %v7587 = vrot.slane %v7586, 1
  %v7588 = vadd.f32 %v7586, %v7587
  %v7589 = vadd.f32 %v6941, %v6945
  %v7590 = vrot.slane %v7589, 4
  %v7591 = vadd.f32 %v7589, %v7590
  %v7592 = vrot.slane %v7591, 2
  %v7593 = vadd.f32 %v7591, %v7592
  %v7594 = vrot.slane %v7593, 1
  %v7595 = vadd.f32 %v7593, %v7594
  %v7596 = vadd.f32 %v6942, %v6946
  %v7597 = vrot.slane %v7596, 4
  %v7598 = vadd.f32 %v7596, %v7597
  %v7599 = vrot.slane %v7598, 2
  %v7600 = vadd.f32 %v7598, %v7599
  %v7601 = vrot.slane %v7600, 1
  %v7602 = vadd.f32 %v7600, %v7601
  %v7603 = vadd.f32 %v6947, %v6951
  %v7604 = vrot.slane %v7603, 4
  %v7605 = vadd.f32 %v7603, %v7604
  %v7606 = vrot.slane %v7605, 2
  %v7607 = vadd.f32 %v7605, %v7606
  %v7608 = vrot.slane %v7607, 1
  %v7609 = vadd.f32 %v7607, %v7608
  %v7610 = vadd.f32 %v6948, %v6952
  %v7611 = vrot.slane %v7610, 4
  %v7612 = vadd.f32 %v7610, %v7611
  %v7613 = vrot.slane %v7612, 2
  %v7614 = vadd.f32 %v7612, %v7613
  %v7615 = vrot.slane %v7614, 1
  %v7616 = vadd.f32 %v7614, %v7615
  %v7617 = vadd.f32 %v6949, %v6953
  %v7618 = vrot.slane %v7617, 4
  %v7619 = vadd.f32 %v7617, %v7618
  %v7620 = vrot.slane %v7619, 2
  %v7621 = vadd.f32 %v7619, %v7620
  %v7622 = vrot.slane %v7621, 1
  %v7623 = vadd.f32 %v7621, %v7622
  %v7624 = vadd.f32 %v6950, %v6954
  %v7625 = vrot.slane %v7624, 4
  %v7626 = vadd.f32 %v7624, %v7625
  %v7627 = vrot.slane %v7626, 2
  %v7628 = vadd.f32 %v7626, %v7627
  %v7629 = vrot.slane %v7628, 1
  %v7630 = vadd.f32 %v7628, %v7629
  %v7631 = vadd.f32 %v6955, %v6959
  %v7632 = vrot.slane %v7631, 4
  %v7633 = vadd.f32 %v7631, %v7632
  %v7634 = vrot.slane %v7633, 2
  %v7635 = vadd.f32 %v7633, %v7634
  %v7636 = vrot.slane %v7635, 1
  %v7637 = vadd.f32 %v7635, %v7636
  %v7638 = vadd.f32 %v6956, %v6960
  %v7639 = vrot.slane %v7638, 4
  %v7640 = vadd.f32 %v7638, %v7639
  %v7641 = vrot.slane %v7640, 2
  %v7642 = vadd.f32 %v7640, %v7641
  %v7643 = vrot.slane %v7642, 1
  %v7644 = vadd.f32 %v7642, %v7643
  %v7645 = vadd.f32 %v6957, %v6961
  %v7646 = vrot.slane %v7645, 4
  %v7647 = vadd.f32 %v7645, %v7646
  %v7648 = vrot.slane %v7647, 2
  %v7649 = vadd.f32 %v7647, %v7648
  %v7650 = vrot.slane %v7649, 1
  %v7651 = vadd.f32 %v7649, %v7650
  %v7652 = vadd.f32 %v6958, %v6962
  %v7653 = vrot.slane %v7652, 4
  %v7654 = vadd.f32 %v7652, %v7653
  %v7655 = vrot.slane %v7654, 2
  %v7656 = vadd.f32 %v7654, %v7655
  %v7657 = vrot.slane %v7656, 1
  %v7658 = vadd.f32 %v7656, %v7657
  %v7659 = vadd.f32 %v6963, %v6967
  %v7660 = vrot.slane %v7659, 4
  %v7661 = vadd.f32 %v7659, %v7660
  %v7662 = vrot.slane %v7661, 2
  %v7663 = vadd.f32 %v7661, %v7662
  %v7664 = vrot.slane %v7663, 1
  %v7665 = vadd.f32 %v7663, %v7664
  %v7666 = vadd.f32 %v6964, %v6968
  %v7667 = vrot.slane %v7666, 4
  %v7668 = vadd.f32 %v7666, %v7667
  %v7669 = vrot.slane %v7668, 2
  %v7670 = vadd.f32 %v7668, %v7669
  %v7671 = vrot.slane %v7670, 1
  %v7672 = vadd.f32 %v7670, %v7671
  %v7673 = vadd.f32 %v6965, %v6969
  %v7674 = vrot.slane %v7673, 4
  %v7675 = vadd.f32 %v7673, %v7674
  %v7676 = vrot.slane %v7675, 2
  %v7677 = vadd.f32 %v7675, %v7676
  %v7678 = vrot.slane %v7677, 1
  %v7679 = vadd.f32 %v7677, %v7678
  %v7680 = vadd.f32 %v6966, %v6970
  %v7681 = vrot.slane %v7680, 4
  %v7682 = vadd.f32 %v7680, %v7681
  %v7683 = vrot.slane %v7682, 2
  %v7684 = vadd.f32 %v7682, %v7683
  %v7685 = vrot.slane %v7684, 1
  %v7686 = vadd.f32 %v7684, %v7685
  %v7687 = vadd.f32 %v6971, %v6975
  %v7688 = vrot.slane %v7687, 4
  %v7689 = vadd.f32 %v7687, %v7688
  %v7690 = vrot.slane %v7689, 2
  %v7691 = vadd.f32 %v7689, %v7690
  %v7692 = vrot.slane %v7691, 1
  %v7693 = vadd.f32 %v7691, %v7692
  %v7694 = vadd.f32 %v6972, %v6976
  %v7695 = vrot.slane %v7694, 4
  %v7696 = vadd.f32 %v7694, %v7695
  %v7697 = vrot.slane %v7696, 2
  %v7698 = vadd.f32 %v7696, %v7697
  %v7699 = vrot.slane %v7698, 1
  %v7700 = vadd.f32 %v7698, %v7699
  %v7701 = vadd.f32 %v6973, %v6977
  %v7702 = vrot.slane %v7701, 4
  %v7703 = vadd.f32 %v7701, %v7702
  %v7704 = vrot.slane %v7703, 2
  %v7705 = vadd.f32 %v7703, %v7704
  %v7706 = vrot.slane %v7705, 1
  %v7707 = vadd.f32 %v7705, %v7706
  %v7708 = vadd.f32 %v6974, %v6978
  %v7709 = vrot.slane %v7708, 4
  %v7710 = vadd.f32 %v7708, %v7709
  %v7711 = vrot.slane %v7710, 2
  %v7712 = vadd.f32 %v7710, %v7711
  %v7713 = vrot.slane %v7712, 1
  %v7714 = vadd.f32 %v7712, %v7713
  %v7715 = vadd.f32 %v6979, %v6983
  %v7716 = vrot.slane %v7715, 4
  %v7717 = vadd.f32 %v7715, %v7716
  %v7718 = vrot.slane %v7717, 2
  %v7719 = vadd.f32 %v7717, %v7718
  %v7720 = vrot.slane %v7719, 1
  %v7721 = vadd.f32 %v7719, %v7720
  %v7722 = vadd.f32 %v6980, %v6984
  %v7723 = vrot.slane %v7722, 4
  %v7724 = vadd.f32 %v7722, %v7723
  %v7725 = vrot.slane %v7724, 2
  %v7726 = vadd.f32 %v7724, %v7725
  %v7727 = vrot.slane %v7726, 1
  %v7728 = vadd.f32 %v7726, %v7727
  %v7729 = vadd.f32 %v6981, %v6985
  %v7730 = vrot.slane %v7729, 4
  %v7731 = vadd.f32 %v7729, %v7730
  %v7732 = vrot.slane %v7731, 2
  %v7733 = vadd.f32 %v7731, %v7732
  %v7734 = vrot.slane %v7733, 1
  %v7735 = vadd.f32 %v7733, %v7734
  %v7736 = vadd.f32 %v6982, %v6986
  %v7737 = vrot.slane %v7736, 4
  %v7738 = vadd.f32 %v7736, %v7737
  %v7739 = vrot.slane %v7738, 2
  %v7740 = vadd.f32 %v7738, %v7739
  %v7741 = vrot.slane %v7740, 1
  %v7742 = vadd.f32 %v7740, %v7741
  %v7743 = vadd.f32 %v6987, %v6991
  %v7744 = vrot.slane %v7743, 4
  %v7745 = vadd.f32 %v7743, %v7744
  %v7746 = vrot.slane %v7745, 2
  %v7747 = vadd.f32 %v7745, %v7746
  %v7748 = vrot.slane %v7747, 1
  %v7749 = vadd.f32 %v7747, %v7748
  %v7750 = vadd.f32 %v6988, %v6992
  %v7751 = vrot.slane %v7750, 4
  %v7752 = vadd.f32 %v7750, %v7751
  %v7753 = vrot.slane %v7752, 2
  %v7754 = vadd.f32 %v7752, %v7753
  %v7755 = vrot.slane %v7754, 1
  %v7756 = vadd.f32 %v7754, %v7755
  %v7757 = vadd.f32 %v6989, %v6993
  %v7758 = vrot.slane %v7757, 4
  %v7759 = vadd.f32 %v7757, %v7758
  %v7760 = vrot.slane %v7759, 2
  %v7761 = vadd.f32 %v7759, %v7760
  %v7762 = vrot.slane %v7761, 1
  %v7763 = vadd.f32 %v7761, %v7762
  %v7764 = vadd.f32 %v6990, %v6994
  %v7765 = vrot.slane %v7764, 4
  %v7766 = vadd.f32 %v7764, %v7765
  %v7767 = vrot.slane %v7766, 2
  %v7768 = vadd.f32 %v7766, %v7767
  %v7769 = vrot.slane %v7768, 1
  %v7770 = vadd.f32 %v7768, %v7769
  %v7771 = vadd.f32 %v6995, %v6999
  %v7772 = vrot.slane %v7771, 4
  %v7773 = vadd.f32 %v7771, %v7772
  %v7774 = vrot.slane %v7773, 2
  %v7775 = vadd.f32 %v7773, %v7774
  %v7776 = vrot.slane %v7775, 1
  %v7777 = vadd.f32 %v7775, %v7776
  %v7778 = vadd.f32 %v6996, %v7000
  %v7779 = vrot.slane %v7778, 4
  %v7780 = vadd.f32 %v7778, %v7779
  %v7781 = vrot.slane %v7780, 2
  %v7782 = vadd.f32 %v7780, %v7781
  %v7783 = vrot.slane %v7782, 1
  %v7784 = vadd.f32 %v7782, %v7783
  %v7785 = vadd.f32 %v6997, %v7001
  %v7786 = vrot.slane %v7785, 4
  %v7787 = vadd.f32 %v7785, %v7786
  %v7788 = vrot.slane %v7787, 2
  %v7789 = vadd.f32 %v7787, %v7788
  %v7790 = vrot.slane %v7789, 1
  %v7791 = vadd.f32 %v7789, %v7790
  %v7792 = vadd.f32 %v6998, %v7002
  %v7793 = vrot.slane %v7792, 4
  %v7794 = vadd.f32 %v7792, %v7793
  %v7795 = vrot.slane %v7794, 2
  %v7796 = vadd.f32 %v7794, %v7795
  %v7797 = vrot.slane %v7796, 1
  %v7798 = vadd.f32 %v7796, %v7797
  %v7799 = vadd.f32 %v7003, %v7007
  %v7800 = vrot.slane %v7799, 4
  %v7801 = vadd.f32 %v7799, %v7800
  %v7802 = vrot.slane %v7801, 2
  %v7803 = vadd.f32 %v7801, %v7802
  %v7804 = vrot.slane %v7803, 1
  %v7805 = vadd.f32 %v7803, %v7804
  %v7806 = vadd.f32 %v7004, %v7008
  %v7807 = vrot.slane %v7806, 4
  %v7808 = vadd.f32 %v7806, %v7807
  %v7809 = vrot.slane %v7808, 2
  %v7810 = vadd.f32 %v7808, %v7809
  %v7811 = vrot.slane %v7810, 1
  %v7812 = vadd.f32 %v7810, %v7811
  %v7813 = vadd.f32 %v7005, %v7009
  %v7814 = vrot.slane %v7813, 4
  %v7815 = vadd.f32 %v7813, %v7814
  %v7816 = vrot.slane %v7815, 2
  %v7817 = vadd.f32 %v7815, %v7816
  %v7818 = vrot.slane %v7817, 1
  %v7819 = vadd.f32 %v7817, %v7818
  %v7820 = vadd.f32 %v7006, %v7010
  %v7821 = vrot.slane %v7820, 4
  %v7822 = vadd.f32 %v7820, %v7821
  %v7823 = vrot.slane %v7822, 2
  %v7824 = vadd.f32 %v7822, %v7823
  %v7825 = vrot.slane %v7824, 1
  %v7826 = vadd.f32 %v7824, %v7825
  %v7827 = vadd.f32 %v7011, %v7015
  %v7828 = vrot.slane %v7827, 4
  %v7829 = vadd.f32 %v7827, %v7828
  %v7830 = vrot.slane %v7829, 2
  %v7831 = vadd.f32 %v7829, %v7830
  %v7832 = vrot.slane %v7831, 1
  %v7833 = vadd.f32 %v7831, %v7832
  %v7834 = vadd.f32 %v7012, %v7016
  %v7835 = vrot.slane %v7834, 4
  %v7836 = vadd.f32 %v7834, %v7835
  %v7837 = vrot.slane %v7836, 2
  %v7838 = vadd.f32 %v7836, %v7837
  %v7839 = vrot.slane %v7838, 1
  %v7840 = vadd.f32 %v7838, %v7839
  %v7841 = vadd.f32 %v7013, %v7017
  %v7842 = vrot.slane %v7841, 4
  %v7843 = vadd.f32 %v7841, %v7842
  %v7844 = vrot.slane %v7843, 2
  %v7845 = vadd.f32 %v7843, %v7844
  %v7846 = vrot.slane %v7845, 1
  %v7847 = vadd.f32 %v7845, %v7846
  %v7848 = vadd.f32 %v7014, %v7018
  %v7849 = vrot.slane %v7848, 4
  %v7850 = vadd.f32 %v7848, %v7849
  %v7851 = vrot.slane %v7850, 2
  %v7852 = vadd.f32 %v7850, %v7851
  %v7853 = vrot.slane %v7852, 1
  %v7854 = vadd.f32 %v7852, %v7853
  %v7855 = vadd.f32 %v7019, %v7023
  %v7856 = vrot.slane %v7855, 4
  %v7857 = vadd.f32 %v7855, %v7856
  %v7858 = vrot.slane %v7857, 2
  %v7859 = vadd.f32 %v7857, %v7858
  %v7860 = vrot.slane %v7859, 1
  %v7861 = vadd.f32 %v7859, %v7860
  %v7862 = vadd.f32 %v7020, %v7024
  %v7863 = vrot.slane %v7862, 4
  %v7864 = vadd.f32 %v7862, %v7863
  %v7865 = vrot.slane %v7864, 2
  %v7866 = vadd.f32 %v7864, %v7865
  %v7867 = vrot.slane %v7866, 1
  %v7868 = vadd.f32 %v7866, %v7867
  %v7869 = vadd.f32 %v7021, %v7025
  %v7870 = vrot.slane %v7869, 4
  %v7871 = vadd.f32 %v7869, %v7870
  %v7872 = vrot.slane %v7871, 2
  %v7873 = vadd.f32 %v7871, %v7872
  %v7874 = vrot.slane %v7873, 1
  %v7875 = vadd.f32 %v7873, %v7874
  %v7876 = vadd.f32 %v7022, %v7026
  %v7877 = vrot.slane %v7876, 4
  %v7878 = vadd.f32 %v7876, %v7877
  %v7879 = vrot.slane %v7878, 2
  %v7880 = vadd.f32 %v7878, %v7879
  %v7881 = vrot.slane %v7880, 1
  %v7882 = vadd.f32 %v7880, %v7881
  %v7883 = vadd.f32 %v7027, %v7031
  %v7884 = vrot.slane %v7883, 4
  %v7885 = vadd.f32 %v7883, %v7884
  %v7886 = vrot.slane %v7885, 2
  %v7887 = vadd.f32 %v7885, %v7886
  %v7888 = vrot.slane %v7887, 1
  %v7889 = vadd.f32 %v7887, %v7888
  %v7890 = vadd.f32 %v7028, %v7032
  %v7891 = vrot.slane %v7890, 4
  %v7892 = vadd.f32 %v7890, %v7891
  %v7893 = vrot.slane %v7892, 2
  %v7894 = vadd.f32 %v7892, %v7893
  %v7895 = vrot.slane %v7894, 1
  %v7896 = vadd.f32 %v7894, %v7895
  %v7897 = vadd.f32 %v7029, %v7033
  %v7898 = vrot.slane %v7897, 4
  %v7899 = vadd.f32 %v7897, %v7898
  %v7900 = vrot.slane %v7899, 2
  %v7901 = vadd.f32 %v7899, %v7900
  %v7902 = vrot.slane %v7901, 1
  %v7903 = vadd.f32 %v7901, %v7902
  %v7904 = vadd.f32 %v7030, %v7034
  %v7905 = vrot.slane %v7904, 4
  %v7906 = vadd.f32 %v7904, %v7905
  %v7907 = vrot.slane %v7906, 2
  %v7908 = vadd.f32 %v7906, %v7907
  %v7909 = vrot.slane %v7908, 1
  %v7910 = vadd.f32 %v7908, %v7909
  %v7911 = vadd.f32 %v7035, %v7039
  %v7912 = vrot.slane %v7911, 4
  %v7913 = vadd.f32 %v7911, %v7912
  %v7914 = vrot.slane %v7913, 2
  %v7915 = vadd.f32 %v7913, %v7914
  %v7916 = vrot.slane %v7915, 1
  %v7917 = vadd.f32 %v7915, %v7916
  %v7918 = vadd.f32 %v7036, %v7040
  %v7919 = vrot.slane %v7918, 4
  %v7920 = vadd.f32 %v7918, %v7919
  %v7921 = vrot.slane %v7920, 2
  %v7922 = vadd.f32 %v7920, %v7921
  %v7923 = vrot.slane %v7922, 1
  %v7924 = vadd.f32 %v7922, %v7923
  %v7925 = vadd.f32 %v7037, %v7041
  %v7926 = vrot.slane %v7925, 4
  %v7927 = vadd.f32 %v7925, %v7926
  %v7928 = vrot.slane %v7927, 2
  %v7929 = vadd.f32 %v7927, %v7928
  %v7930 = vrot.slane %v7929, 1
  %v7931 = vadd.f32 %v7929, %v7930
  %v7932 = vadd.f32 %v7038, %v7042
  %v7933 = vrot.slane %v7932, 4
  %v7934 = vadd.f32 %v7932, %v7933
  %v7935 = vrot.slane %v7934, 2
  %v7936 = vadd.f32 %v7934, %v7935
  %v7937 = vrot.slane %v7936, 1
  %v7938 = vadd.f32 %v7936, %v7937
  %v7939 = vpack.c.bf16 %v7049, %v7049
  %v7940 = vpack.c.bf16 %v7056, %v7056
  %v7941 = vpack.c.bf16 %v7063, %v7063
  %v7942 = vpack.c.bf16 %v7070, %v7070
  %v7943 = vpack.c.bf16 %v7077, %v7077
  %v7944 = vpack.c.bf16 %v7084, %v7084
  %v7945 = vpack.c.bf16 %v7091, %v7091
  %v7946 = vpack.c.bf16 %v7098, %v7098
  %v7947 = vpack.c.bf16 %v7105, %v7105
  %v7948 = vpack.c.bf16 %v7112, %v7112
  %v7949 = vpack.c.bf16 %v7119, %v7119
  %v7950 = vpack.c.bf16 %v7126, %v7126
  %v7951 = vpack.c.bf16 %v7133, %v7133
  %v7952 = vpack.c.bf16 %v7140, %v7140
  %v7953 = vpack.c.bf16 %v7147, %v7147
  %v7954 = vpack.c.bf16 %v7154, %v7154
  %v7955 = vpack.c.bf16 %v7161, %v7161
  %v7956 = vpack.c.bf16 %v7168, %v7168
  %v7957 = vpack.c.bf16 %v7175, %v7175
  %v7958 = vpack.c.bf16 %v7182, %v7182
  %v7959 = vpack.c.bf16 %v7189, %v7189
  %v7960 = vpack.c.bf16 %v7196, %v7196
  %v7961 = vpack.c.bf16 %v7203, %v7203
  %v7962 = vpack.c.bf16 %v7210, %v7210
  %v7963 = vpack.c.bf16 %v7217, %v7217
  %v7964 = vpack.c.bf16 %v7224, %v7224
  %v7965 = vpack.c.bf16 %v7231, %v7231
  %v7966 = vpack.c.bf16 %v7238, %v7238
  %v7967 = vpack.c.bf16 %v7245, %v7245
  %v7968 = vpack.c.bf16 %v7252, %v7252
  %v7969 = vpack.c.bf16 %v7259, %v7259
  %v7970 = vpack.c.bf16 %v7266, %v7266
  %v7971 = vpack.c.bf16 %v7273, %v7273
  %v7972 = vpack.c.bf16 %v7280, %v7280
  %v7973 = vpack.c.bf16 %v7287, %v7287
  %v7974 = vpack.c.bf16 %v7294, %v7294
  %v7975 = vpack.c.bf16 %v7301, %v7301
  %v7976 = vpack.c.bf16 %v7308, %v7308
  %v7977 = vpack.c.bf16 %v7315, %v7315
  %v7978 = vpack.c.bf16 %v7322, %v7322
  %v7979 = vpack.c.bf16 %v7329, %v7329
  %v7980 = vpack.c.bf16 %v7336, %v7336
  %v7981 = vpack.c.bf16 %v7343, %v7343
  %v7982 = vpack.c.bf16 %v7350, %v7350
  %v7983 = vpack.c.bf16 %v7357, %v7357
  %v7984 = vpack.c.bf16 %v7364, %v7364
  %v7985 = vpack.c.bf16 %v7371, %v7371
  %v7986 = vpack.c.bf16 %v7378, %v7378
  %v7987 = vpack.c.bf16 %v7385, %v7385
  %v7988 = vpack.c.bf16 %v7392, %v7392
  %v7989 = vpack.c.bf16 %v7399, %v7399
  %v7990 = vpack.c.bf16 %v7406, %v7406
  %v7991 = vpack.c.bf16 %v7413, %v7413
  %v7992 = vpack.c.bf16 %v7420, %v7420
  %v7993 = vpack.c.bf16 %v7427, %v7427
  %v7994 = vpack.c.bf16 %v7434, %v7434
  %v7995 = vpack.c.bf16 %v7441, %v7441
  %v7996 = vpack.c.bf16 %v7448, %v7448
  %v7997 = vpack.c.bf16 %v7455, %v7455
  %v7998 = vpack.c.bf16 %v7462, %v7462
  %v7999 = vpack.c.bf16 %v7469, %v7469
  %v8000 = vpack.c.bf16 %v7476, %v7476
  %v8001 = vpack.c.bf16 %v7483, %v7483
  %v8002 = vpack.c.bf16 %v7490, %v7490
  %v8003 = vpack.c.bf16 %v7497, %v7497
  %v8004 = vpack.c.bf16 %v7504, %v7504
  %v8005 = vpack.c.bf16 %v7511, %v7511
  %v8006 = vpack.c.bf16 %v7518, %v7518
  %v8007 = vpack.c.bf16 %v7525, %v7525
  %v8008 = vpack.c.bf16 %v7532, %v7532
  %v8009 = vpack.c.bf16 %v7539, %v7539
  %v8010 = vpack.c.bf16 %v7546, %v7546
  %v8011 = vpack.c.bf16 %v7553, %v7553
  %v8012 = vpack.c.bf16 %v7560, %v7560
  %v8013 = vpack.c.bf16 %v7567, %v7567
  %v8014 = vpack.c.bf16 %v7574, %v7574
  %v8015 = vpack.c.bf16 %v7581, %v7581
  %v8016 = vpack.c.bf16 %v7588, %v7588
  %v8017 = vpack.c.bf16 %v7595, %v7595
  %v8018 = vpack.c.bf16 %v7602, %v7602
  %v8019 = vpack.c.bf16 %v7609, %v7609
  %v8020 = vpack.c.bf16 %v7616, %v7616
  %v8021 = vpack.c.bf16 %v7623, %v7623
  %v8022 = vpack.c.bf16 %v7630, %v7630
  %v8023 = vpack.c.bf16 %v7637, %v7637
  %v8024 = vpack.c.bf16 %v7644, %v7644
  %v8025 = vpack.c.bf16 %v7651, %v7651
  %v8026 = vpack.c.bf16 %v7658, %v7658
  %v8027 = vpack.c.bf16 %v7665, %v7665
  %v8028 = vpack.c.bf16 %v7672, %v7672
  %v8029 = vpack.c.bf16 %v7679, %v7679
  %v8030 = vpack.c.bf16 %v7686, %v7686
  %v8031 = vpack.c.bf16 %v7693, %v7693
  %v8032 = vpack.c.bf16 %v7700, %v7700
  %v8033 = vpack.c.bf16 %v7707, %v7707
  %v8034 = vpack.c.bf16 %v7714, %v7714
  %v8035 = vpack.c.bf16 %v7721, %v7721
  %v8036 = vpack.c.bf16 %v7728, %v7728
  %v8037 = vpack.c.bf16 %v7735, %v7735
  %v8038 = vpack.c.bf16 %v7742, %v7742
  %v8039 = vpack.c.bf16 %v7749, %v7749
  %v8040 = vpack.c.bf16 %v7756, %v7756
  %v8041 = vpack.c.bf16 %v7763, %v7763
  %v8042 = vpack.c.bf16 %v7770, %v7770
  %v8043 = vpack.c.bf16 %v7777, %v7777
  %v8044 = vpack.c.bf16 %v7784, %v7784
  %v8045 = vpack.c.bf16 %v7791, %v7791
  %v8046 = vpack.c.bf16 %v7798, %v7798
  %v8047 = vpack.c.bf16 %v7805, %v7805
  %v8048 = vpack.c.bf16 %v7812, %v7812
  %v8049 = vpack.c.bf16 %v7819, %v7819
  %v8050 = vpack.c.bf16 %v7826, %v7826
  %v8051 = vpack.c.bf16 %v7833, %v7833
  %v8052 = vpack.c.bf16 %v7840, %v7840
  %v8053 = vpack.c.bf16 %v7847, %v7847
  %v8054 = vpack.c.bf16 %v7854, %v7854
  %v8055 = vpack.c.bf16 %v7861, %v7861
  %v8056 = vpack.c.bf16 %v7868, %v7868
  %v8057 = vpack.c.bf16 %v7875, %v7875
  %v8058 = vpack.c.bf16 %v7882, %v7882
  %v8059 = vpack.c.bf16 %v7889, %v7889
  %v8060 = vpack.c.bf16 %v7896, %v7896
  %v8061 = vpack.c.bf16 %v7903, %v7903
  %v8062 = vpack.c.bf16 %v7910, %v7910
  %v8063 = vpack.c.bf16 %v7917, %v7917
  %v8064 = vpack.c.bf16 %v7924, %v7924
  %v8065 = vpack.c.bf16 %v7931, %v7931
  %v8066 = vpack.c.bf16 %v7938, %v7938
  %v8067 = vunpack.c.l.bf16 %v20
  %v8068 = vunpack.c.h.bf16 %v20
  %v8069 = vunpack.c.l.bf16 %v21
  %v8070 = vunpack.c.h.bf16 %v21
  %v8071 = vunpack.c.l.bf16 %v22
  %v8072 = vunpack.c.h.bf16 %v22
  %v8073 = vunpack.c.l.bf16 %v23
  %v8074 = vunpack.c.h.bf16 %v23
  %v8075 = vunpack.c.l.bf16 %v24
  %v8076 = vunpack.c.h.bf16 %v24
  %v8077 = vunpack.c.l.bf16 %v25
  %v8078 = vunpack.c.h.bf16 %v25
  %v8079 = vunpack.c.l.bf16 %v26
  %v8080 = vunpack.c.h.bf16 %v26
  %v8081 = vunpack.c.l.bf16 %v27
  %v8082 = vunpack.c.h.bf16 %v27
  %v8083 = vunpack.c.l.bf16 %v28
  %v8084 = vunpack.c.h.bf16 %v28
  %v8085 = vunpack.c.l.bf16 %v29
  %v8086 = vunpack.c.h.bf16 %v29
  %v8087 = vunpack.c.l.bf16 %v30
  %v8088 = vunpack.c.h.bf16 %v30
  %v8089 = vunpack.c.l.bf16 %v31
  %v8090 = vunpack.c.h.bf16 %v31
  %v8091 = vunpack.c.l.bf16 %v32
  %v8092 = vunpack.c.h.bf16 %v32
  %v8093 = vunpack.c.l.bf16 %v33
  %v8094 = vunpack.c.h.bf16 %v33
  %v8095 = vunpack.c.l.bf16 %v34
  %v8096 = vunpack.c.h.bf16 %v34
  %v8097 = vunpack.c.l.bf16 %v35
  %v8098 = vunpack.c.h.bf16 %v35
  %v8099 = vunpack.c.l.bf16 %v36
  %v8100 = vunpack.c.h.bf16 %v36
  %v8101 = vunpack.c.l.bf16 %v37
  %v8102 = vunpack.c.h.bf16 %v37
  %v8103 = vunpack.c.l.bf16 %v38
  %v8104 = vunpack.c.h.bf16 %v38
  %v8105 = vunpack.c.l.bf16 %v39
  %v8106 = vunpack.c.h.bf16 %v39
  %v8107 = vunpack.c.l.bf16 %v40
  %v8108 = vunpack.c.h.bf16 %v40
  %v8109 = vunpack.c.l.bf16 %v41
  %v8110 = vunpack.c.h.bf16 %v41
  %v8111 = vunpack.c.l.bf16 %v42
  %v8112 = vunpack.c.h.bf16 %v42
  %v8113 = vunpack.c.l.bf16 %v43
  %v8114 = vunpack.c.h.bf16 %v43
  %v8115 = vunpack.c.l.bf16 %v44
  %v8116 = vunpack.c.h.bf16 %v44
  %v8117 = vunpack.c.l.bf16 %v45
  %v8118 = vunpack.c.h.bf16 %v45
  %v8119 = vunpack.c.l.bf16 %v46
  %v8120 = vunpack.c.h.bf16 %v46
  %v8121 = vunpack.c.l.bf16 %v47
  %v8122 = vunpack.c.h.bf16 %v47
  %v8123 = vunpack.c.l.bf16 %v48
  %v8124 = vunpack.c.h.bf16 %v48
  %v8125 = vunpack.c.l.bf16 %v49
  %v8126 = vunpack.c.h.bf16 %v49
  %v8127 = vunpack.c.l.bf16 %v50
  %v8128 = vunpack.c.h.bf16 %v50
  %v8129 = vunpack.c.l.bf16 %v51
  %v8130 = vunpack.c.h.bf16 %v51
  %v8131 = vunpack.c.l.bf16 %v52
  %v8132 = vunpack.c.h.bf16 %v52
  %v8133 = vunpack.c.l.bf16 %v53
  %v8134 = vunpack.c.h.bf16 %v53
  %v8135 = vunpack.c.l.bf16 %v54
  %v8136 = vunpack.c.h.bf16 %v54
  %v8137 = vunpack.c.l.bf16 %v55
  %v8138 = vunpack.c.h.bf16 %v55
  %v8139 = vunpack.c.l.bf16 %v56
  %v8140 = vunpack.c.h.bf16 %v56
  %v8141 = vunpack.c.l.bf16 %v57
  %v8142 = vunpack.c.h.bf16 %v57
  %v8143 = vunpack.c.l.bf16 %v58
  %v8144 = vunpack.c.h.bf16 %v58
  %v8145 = vunpack.c.l.bf16 %v59
  %v8146 = vunpack.c.h.bf16 %v59
  %v8147 = vunpack.c.l.bf16 %v60
  %v8148 = vunpack.c.h.bf16 %v60
  %v8149 = vunpack.c.l.bf16 %v61
  %v8150 = vunpack.c.h.bf16 %v61
  %v8151 = vunpack.c.l.bf16 %v62
  %v8152 = vunpack.c.h.bf16 %v62
  %v8153 = vunpack.c.l.bf16 %v63
  %v8154 = vunpack.c.h.bf16 %v63
  %v8155 = vunpack.c.l.bf16 %v64
  %v8156 = vunpack.c.h.bf16 %v64
  %v8157 = vunpack.c.l.bf16 %v65
  %v8158 = vunpack.c.h.bf16 %v65
  %v8159 = vunpack.c.l.bf16 %v66
  %v8160 = vunpack.c.h.bf16 %v66
  %v8161 = vunpack.c.l.bf16 %v67
  %v8162 = vunpack.c.h.bf16 %v67
  %v8163 = vunpack.c.l.bf16 %v68
  %v8164 = vunpack.c.h.bf16 %v68
  %v8165 = vunpack.c.l.bf16 %v69
  %v8166 = vunpack.c.h.bf16 %v69
  %v8167 = vunpack.c.l.bf16 %v70
  %v8168 = vunpack.c.h.bf16 %v70
  %v8169 = vunpack.c.l.bf16 %v71
  %v8170 = vunpack.c.h.bf16 %v71
  %v8171 = vunpack.c.l.bf16 %v72
  %v8172 = vunpack.c.h.bf16 %v72
  %v8173 = vunpack.c.l.bf16 %v73
  %v8174 = vunpack.c.h.bf16 %v73
  %v8175 = vunpack.c.l.bf16 %v74
  %v8176 = vunpack.c.h.bf16 %v74
  %v8177 = vunpack.c.l.bf16 %v75
  %v8178 = vunpack.c.h.bf16 %v75
  %v8179 = vunpack.c.l.bf16 %v76
  %v8180 = vunpack.c.h.bf16 %v76
  %v8181 = vunpack.c.l.bf16 %v77
  %v8182 = vunpack.c.h.bf16 %v77
  %v8183 = vunpack.c.l.bf16 %v78
  %v8184 = vunpack.c.h.bf16 %v78
  %v8185 = vunpack.c.l.bf16 %v79
  %v8186 = vunpack.c.h.bf16 %v79
  %v8187 = vunpack.c.l.bf16 %v80
  %v8188 = vunpack.c.h.bf16 %v80
  %v8189 = vunpack.c.l.bf16 %v81
  %v8190 = vunpack.c.h.bf16 %v81
  %v8191 = vunpack.c.l.bf16 %v82
  %v8192 = vunpack.c.h.bf16 %v82
  %v8193 = vunpack.c.l.bf16 %v83
  %v8194 = vunpack.c.h.bf16 %v83
  %v8195 = vunpack.c.l.bf16 %v84
  %v8196 = vunpack.c.h.bf16 %v84
  %v8197 = vunpack.c.l.bf16 %v85
  %v8198 = vunpack.c.h.bf16 %v85
  %v8199 = vunpack.c.l.bf16 %v86
  %v8200 = vunpack.c.h.bf16 %v86
  %v8201 = vunpack.c.l.bf16 %v87
  %v8202 = vunpack.c.h.bf16 %v87
  %v8203 = vunpack.c.l.bf16 %v88
  %v8204 = vunpack.c.h.bf16 %v88
  %v8205 = vunpack.c.l.bf16 %v89
  %v8206 = vunpack.c.h.bf16 %v89
  %v8207 = vunpack.c.l.bf16 %v90
  %v8208 = vunpack.c.h.bf16 %v90
  %v8209 = vunpack.c.l.bf16 %v91
  %v8210 = vunpack.c.h.bf16 %v91
  %v8211 = vunpack.c.l.bf16 %v92
  %v8212 = vunpack.c.h.bf16 %v92
  %v8213 = vunpack.c.l.bf16 %v93
  %v8214 = vunpack.c.h.bf16 %v93
  %v8215 = vunpack.c.l.bf16 %v94
  %v8216 = vunpack.c.h.bf16 %v94
  %v8217 = vunpack.c.l.bf16 %v95
  %v8218 = vunpack.c.h.bf16 %v95
  %v8219 = vunpack.c.l.bf16 %v96
  %v8220 = vunpack.c.h.bf16 %v96
  %v8221 = vunpack.c.l.bf16 %v97
  %v8222 = vunpack.c.h.bf16 %v97
  %v8223 = vunpack.c.l.bf16 %v98
  %v8224 = vunpack.c.h.bf16 %v98
  %v8225 = vunpack.c.l.bf16 %v99
  %v8226 = vunpack.c.h.bf16 %v99
  %v8227 = vunpack.c.l.bf16 %v100
  %v8228 = vunpack.c.h.bf16 %v100
  %v8229 = vunpack.c.l.bf16 %v101
  %v8230 = vunpack.c.h.bf16 %v101
  %v8231 = vunpack.c.l.bf16 %v102
  %v8232 = vunpack.c.h.bf16 %v102
  %v8233 = vunpack.c.l.bf16 %v103
  %v8234 = vunpack.c.h.bf16 %v103
  %v8235 = vunpack.c.l.bf16 %v104
  %v8236 = vunpack.c.h.bf16 %v104
  %v8237 = vunpack.c.l.bf16 %v105
  %v8238 = vunpack.c.h.bf16 %v105
  %v8239 = vunpack.c.l.bf16 %v106
  %v8240 = vunpack.c.h.bf16 %v106
  %v8241 = vunpack.c.l.bf16 %v107
  %v8242 = vunpack.c.h.bf16 %v107
  %v8243 = vunpack.c.l.bf16 %v108
  %v8244 = vunpack.c.h.bf16 %v108
  %v8245 = vunpack.c.l.bf16 %v109
  %v8246 = vunpack.c.h.bf16 %v109
  %v8247 = vunpack.c.l.bf16 %v110
  %v8248 = vunpack.c.h.bf16 %v110
  %v8249 = vunpack.c.l.bf16 %v111
  %v8250 = vunpack.c.h.bf16 %v111
  %v8251 = vunpack.c.l.bf16 %v112
  %v8252 = vunpack.c.h.bf16 %v112
  %v8253 = vunpack.c.l.bf16 %v113
  %v8254 = vunpack.c.h.bf16 %v113
  %v8255 = vunpack.c.l.bf16 %v114
  %v8256 = vunpack.c.h.bf16 %v114
  %v8257 = vunpack.c.l.bf16 %v115
  %v8258 = vunpack.c.h.bf16 %v115
  %v8259 = vunpack.c.l.bf16 %v116
  %v8260 = vunpack.c.h.bf16 %v116
  %v8261 = vunpack.c.l.bf16 %v117
  %v8262 = vunpack.c.h.bf16 %v117
  %v8263 = vunpack.c.l.bf16 %v118
  %v8264 = vunpack.c.h.bf16 %v118
  %v8265 = vunpack.c.l.bf16 %v119
  %v8266 = vunpack.c.h.bf16 %v119
  %v8267 = vunpack.c.l.bf16 %v120
  %v8268 = vunpack.c.h.bf16 %v120
  %v8269 = vunpack.c.l.bf16 %v121
  %v8270 = vunpack.c.h.bf16 %v121
  %v8271 = vunpack.c.l.bf16 %v122
  %v8272 = vunpack.c.h.bf16 %v122
  %v8273 = vunpack.c.l.bf16 %v123
  %v8274 = vunpack.c.h.bf16 %v123
  %v8275 = vunpack.c.l.bf16 %v124
  %v8276 = vunpack.c.h.bf16 %v124
  %v8277 = vunpack.c.l.bf16 %v125
  %v8278 = vunpack.c.h.bf16 %v125
  %v8279 = vunpack.c.l.bf16 %v126
  %v8280 = vunpack.c.h.bf16 %v126
  %v8281 = vunpack.c.l.bf16 %v127
  %v8282 = vunpack.c.h.bf16 %v127
  %v8283 = vunpack.c.l.bf16 %v128
  %v8284 = vunpack.c.h.bf16 %v128
  %v8285 = vunpack.c.l.bf16 %v129
  %v8286 = vunpack.c.h.bf16 %v129
  %v8287 = vunpack.c.l.bf16 %v130
  %v8288 = vunpack.c.h.bf16 %v130
  %v8289 = vunpack.c.l.bf16 %v131
  %v8290 = vunpack.c.h.bf16 %v131
  %v8291 = vunpack.c.l.bf16 %v132
  %v8292 = vunpack.c.h.bf16 %v132
  %v8293 = vunpack.c.l.bf16 %v133
  %v8294 = vunpack.c.h.bf16 %v133
  %v8295 = vunpack.c.l.bf16 %v134
  %v8296 = vunpack.c.h.bf16 %v134
  %v8297 = vunpack.c.l.bf16 %v135
  %v8298 = vunpack.c.h.bf16 %v135
  %v8299 = vunpack.c.l.bf16 %v136
  %v8300 = vunpack.c.h.bf16 %v136
  %v8301 = vunpack.c.l.bf16 %v137
  %v8302 = vunpack.c.h.bf16 %v137
  %v8303 = vunpack.c.l.bf16 %v138
  %v8304 = vunpack.c.h.bf16 %v138
  %v8305 = vunpack.c.l.bf16 %v139
  %v8306 = vunpack.c.h.bf16 %v139
  %v8307 = vunpack.c.l.bf16 %v140
  %v8308 = vunpack.c.h.bf16 %v140
  %v8309 = vunpack.c.l.bf16 %v141
  %v8310 = vunpack.c.h.bf16 %v141
  %v8311 = vunpack.c.l.bf16 %v142
  %v8312 = vunpack.c.h.bf16 %v142
  %v8313 = vunpack.c.l.bf16 %v143
  %v8314 = vunpack.c.h.bf16 %v143
  %v8315 = vunpack.c.l.bf16 %v144
  %v8316 = vunpack.c.h.bf16 %v144
  %v8317 = vunpack.c.l.bf16 %v145
  %v8318 = vunpack.c.h.bf16 %v145
  %v8319 = vunpack.c.l.bf16 %v146
  %v8320 = vunpack.c.h.bf16 %v146
  %v8321 = vunpack.c.l.bf16 %v147
  %v8322 = vunpack.c.h.bf16 %v147
  %v8323 = vadd.f32 %v8067, %v8071
  %v8324 = vrot.slane %v8323, 4
  %v8325 = vadd.f32 %v8323, %v8324
  %v8326 = vrot.slane %v8325, 2
  %v8327 = vadd.f32 %v8325, %v8326
  %v8328 = vrot.slane %v8327, 1
  %v8329 = vadd.f32 %v8327, %v8328
  %v8330 = vadd.f32 %v8068, %v8072
  %v8331 = vrot.slane %v8330, 4
  %v8332 = vadd.f32 %v8330, %v8331
  %v8333 = vrot.slane %v8332, 2
  %v8334 = vadd.f32 %v8332, %v8333
  %v8335 = vrot.slane %v8334, 1
  %v8336 = vadd.f32 %v8334, %v8335
  %v8337 = vadd.f32 %v8069, %v8073
  %v8338 = vrot.slane %v8337, 4
  %v8339 = vadd.f32 %v8337, %v8338
  %v8340 = vrot.slane %v8339, 2
  %v8341 = vadd.f32 %v8339, %v8340
  %v8342 = vrot.slane %v8341, 1
  %v8343 = vadd.f32 %v8341, %v8342
  %v8344 = vadd.f32 %v8070, %v8074
  %v8345 = vrot.slane %v8344, 4
  %v8346 = vadd.f32 %v8344, %v8345
  %v8347 = vrot.slane %v8346, 2
  %v8348 = vadd.f32 %v8346, %v8347
  %v8349 = vrot.slane %v8348, 1
  %v8350 = vadd.f32 %v8348, %v8349
  %v8351 = vadd.f32 %v8075, %v8079
  %v8352 = vrot.slane %v8351, 4
  %v8353 = vadd.f32 %v8351, %v8352
  %v8354 = vrot.slane %v8353, 2
  %v8355 = vadd.f32 %v8353, %v8354
  %v8356 = vrot.slane %v8355, 1
  %v8357 = vadd.f32 %v8355, %v8356
  %v8358 = vadd.f32 %v8076, %v8080
  %v8359 = vrot.slane %v8358, 4
  %v8360 = vadd.f32 %v8358, %v8359
  %v8361 = vrot.slane %v8360, 2
  %v8362 = vadd.f32 %v8360, %v8361
  %v8363 = vrot.slane %v8362, 1
  %v8364 = vadd.f32 %v8362, %v8363
  %v8365 = vadd.f32 %v8077, %v8081
  %v8366 = vrot.slane %v8365, 4
  %v8367 = vadd.f32 %v8365, %v8366
  %v8368 = vrot.slane %v8367, 2
  %v8369 = vadd.f32 %v8367, %v8368
  %v8370 = vrot.slane %v8369, 1
  %v8371 = vadd.f32 %v8369, %v8370
  %v8372 = vadd.f32 %v8078, %v8082
  %v8373 = vrot.slane %v8372, 4
  %v8374 = vadd.f32 %v8372, %v8373
  %v8375 = vrot.slane %v8374, 2
  %v8376 = vadd.f32 %v8374, %v8375
  %v8377 = vrot.slane %v8376, 1
  %v8378 = vadd.f32 %v8376, %v8377
  %v8379 = vadd.f32 %v8083, %v8087
  %v8380 = vrot.slane %v8379, 4
  %v8381 = vadd.f32 %v8379, %v8380
  %v8382 = vrot.slane %v8381, 2
  %v8383 = vadd.f32 %v8381, %v8382
  %v8384 = vrot.slane %v8383, 1
  %v8385 = vadd.f32 %v8383, %v8384
  %v8386 = vadd.f32 %v8084, %v8088
  %v8387 = vrot.slane %v8386, 4
  %v8388 = vadd.f32 %v8386, %v8387
  %v8389 = vrot.slane %v8388, 2
  %v8390 = vadd.f32 %v8388, %v8389
  %v8391 = vrot.slane %v8390, 1
  %v8392 = vadd.f32 %v8390, %v8391
  %v8393 = vadd.f32 %v8085, %v8089
  %v8394 = vrot.slane %v8393, 4
  %v8395 = vadd.f32 %v8393, %v8394
  %v8396 = vrot.slane %v8395, 2
  %v8397 = vadd.f32 %v8395, %v8396
  %v8398 = vrot.slane %v8397, 1
  %v8399 = vadd.f32 %v8397, %v8398
  %v8400 = vadd.f32 %v8086, %v8090
  %v8401 = vrot.slane %v8400, 4
  %v8402 = vadd.f32 %v8400, %v8401
  %v8403 = vrot.slane %v8402, 2
  %v8404 = vadd.f32 %v8402, %v8403
  %v8405 = vrot.slane %v8404, 1
  %v8406 = vadd.f32 %v8404, %v8405
  %v8407 = vadd.f32 %v8091, %v8095
  %v8408 = vrot.slane %v8407, 4
  %v8409 = vadd.f32 %v8407, %v8408
  %v8410 = vrot.slane %v8409, 2
  %v8411 = vadd.f32 %v8409, %v8410
  %v8412 = vrot.slane %v8411, 1
  %v8413 = vadd.f32 %v8411, %v8412
  %v8414 = vadd.f32 %v8092, %v8096
  %v8415 = vrot.slane %v8414, 4
  %v8416 = vadd.f32 %v8414, %v8415
  %v8417 = vrot.slane %v8416, 2
  %v8418 = vadd.f32 %v8416, %v8417
  %v8419 = vrot.slane %v8418, 1
  %v8420 = vadd.f32 %v8418, %v8419
  %v8421 = vadd.f32 %v8093, %v8097
  %v8422 = vrot.slane %v8421, 4
  %v8423 = vadd.f32 %v8421, %v8422
  %v8424 = vrot.slane %v8423, 2
  %v8425 = vadd.f32 %v8423, %v8424
  %v8426 = vrot.slane %v8425, 1
  %v8427 = vadd.f32 %v8425, %v8426
  %v8428 = vadd.f32 %v8094, %v8098
  %v8429 = vrot.slane %v8428, 4
  %v8430 = vadd.f32 %v8428, %v8429
  %v8431 = vrot.slane %v8430, 2
  %v8432 = vadd.f32 %v8430, %v8431
  %v8433 = vrot.slane %v8432, 1
  %v8434 = vadd.f32 %v8432, %v8433
  %v8435 = vadd.f32 %v8099, %v8103
  %v8436 = vrot.slane %v8435, 4
  %v8437 = vadd.f32 %v8435, %v8436
  %v8438 = vrot.slane %v8437, 2
  %v8439 = vadd.f32 %v8437, %v8438
  %v8440 = vrot.slane %v8439, 1
  %v8441 = vadd.f32 %v8439, %v8440
  %v8442 = vadd.f32 %v8100, %v8104
  %v8443 = vrot.slane %v8442, 4
  %v8444 = vadd.f32 %v8442, %v8443
  %v8445 = vrot.slane %v8444, 2
  %v8446 = vadd.f32 %v8444, %v8445
  %v8447 = vrot.slane %v8446, 1
  %v8448 = vadd.f32 %v8446, %v8447
  %v8449 = vadd.f32 %v8101, %v8105
  %v8450 = vrot.slane %v8449, 4
  %v8451 = vadd.f32 %v8449, %v8450
  %v8452 = vrot.slane %v8451, 2
  %v8453 = vadd.f32 %v8451, %v8452
  %v8454 = vrot.slane %v8453, 1
  %v8455 = vadd.f32 %v8453, %v8454
  %v8456 = vadd.f32 %v8102, %v8106
  %v8457 = vrot.slane %v8456, 4
  %v8458 = vadd.f32 %v8456, %v8457
  %v8459 = vrot.slane %v8458, 2
  %v8460 = vadd.f32 %v8458, %v8459
  %v8461 = vrot.slane %v8460, 1
  %v8462 = vadd.f32 %v8460, %v8461
  %v8463 = vadd.f32 %v8107, %v8111
  %v8464 = vrot.slane %v8463, 4
  %v8465 = vadd.f32 %v8463, %v8464
  %v8466 = vrot.slane %v8465, 2
  %v8467 = vadd.f32 %v8465, %v8466
  %v8468 = vrot.slane %v8467, 1
  %v8469 = vadd.f32 %v8467, %v8468
  %v8470 = vadd.f32 %v8108, %v8112
  %v8471 = vrot.slane %v8470, 4
  %v8472 = vadd.f32 %v8470, %v8471
  %v8473 = vrot.slane %v8472, 2
  %v8474 = vadd.f32 %v8472, %v8473
  %v8475 = vrot.slane %v8474, 1
  %v8476 = vadd.f32 %v8474, %v8475
  %v8477 = vadd.f32 %v8109, %v8113
  %v8478 = vrot.slane %v8477, 4
  %v8479 = vadd.f32 %v8477, %v8478
  %v8480 = vrot.slane %v8479, 2
  %v8481 = vadd.f32 %v8479, %v8480
  %v8482 = vrot.slane %v8481, 1
  %v8483 = vadd.f32 %v8481, %v8482
  %v8484 = vadd.f32 %v8110, %v8114
  %v8485 = vrot.slane %v8484, 4
  %v8486 = vadd.f32 %v8484, %v8485
  %v8487 = vrot.slane %v8486, 2
  %v8488 = vadd.f32 %v8486, %v8487
  %v8489 = vrot.slane %v8488, 1
  %v8490 = vadd.f32 %v8488, %v8489
  %v8491 = vadd.f32 %v8115, %v8119
  %v8492 = vrot.slane %v8491, 4
  %v8493 = vadd.f32 %v8491, %v8492
  %v8494 = vrot.slane %v8493, 2
  %v8495 = vadd.f32 %v8493, %v8494
  %v8496 = vrot.slane %v8495, 1
  %v8497 = vadd.f32 %v8495, %v8496
  %v8498 = vadd.f32 %v8116, %v8120
  %v8499 = vrot.slane %v8498, 4
  %v8500 = vadd.f32 %v8498, %v8499
  %v8501 = vrot.slane %v8500, 2
  %v8502 = vadd.f32 %v8500, %v8501
  %v8503 = vrot.slane %v8502, 1
  %v8504 = vadd.f32 %v8502, %v8503
  %v8505 = vadd.f32 %v8117, %v8121
  %v8506 = vrot.slane %v8505, 4
  %v8507 = vadd.f32 %v8505, %v8506
  %v8508 = vrot.slane %v8507, 2
  %v8509 = vadd.f32 %v8507, %v8508
  %v8510 = vrot.slane %v8509, 1
  %v8511 = vadd.f32 %v8509, %v8510
  %v8512 = vadd.f32 %v8118, %v8122
  %v8513 = vrot.slane %v8512, 4
  %v8514 = vadd.f32 %v8512, %v8513
  %v8515 = vrot.slane %v8514, 2
  %v8516 = vadd.f32 %v8514, %v8515
  %v8517 = vrot.slane %v8516, 1
  %v8518 = vadd.f32 %v8516, %v8517
  %v8519 = vadd.f32 %v8123, %v8127
  %v8520 = vrot.slane %v8519, 4
  %v8521 = vadd.f32 %v8519, %v8520
  %v8522 = vrot.slane %v8521, 2
  %v8523 = vadd.f32 %v8521, %v8522
  %v8524 = vrot.slane %v8523, 1
  %v8525 = vadd.f32 %v8523, %v8524
  %v8526 = vadd.f32 %v8124, %v8128
  %v8527 = vrot.slane %v8526, 4
  %v8528 = vadd.f32 %v8526, %v8527
  %v8529 = vrot.slane %v8528, 2
  %v8530 = vadd.f32 %v8528, %v8529
  %v8531 = vrot.slane %v8530, 1
  %v8532 = vadd.f32 %v8530, %v8531
  %v8533 = vadd.f32 %v8125, %v8129
  %v8534 = vrot.slane %v8533, 4
  %v8535 = vadd.f32 %v8533, %v8534
  %v8536 = vrot.slane %v8535, 2
  %v8537 = vadd.f32 %v8535, %v8536
  %v8538 = vrot.slane %v8537, 1
  %v8539 = vadd.f32 %v8537, %v8538
  %v8540 = vadd.f32 %v8126, %v8130
  %v8541 = vrot.slane %v8540, 4
  %v8542 = vadd.f32 %v8540, %v8541
  %v8543 = vrot.slane %v8542, 2
  %v8544 = vadd.f32 %v8542, %v8543
  %v8545 = vrot.slane %v8544, 1
  %v8546 = vadd.f32 %v8544, %v8545
  %v8547 = vadd.f32 %v8131, %v8135
  %v8548 = vrot.slane %v8547, 4
  %v8549 = vadd.f32 %v8547, %v8548
  %v8550 = vrot.slane %v8549, 2
  %v8551 = vadd.f32 %v8549, %v8550
  %v8552 = vrot.slane %v8551, 1
  %v8553 = vadd.f32 %v8551, %v8552
  %v8554 = vadd.f32 %v8132, %v8136
  %v8555 = vrot.slane %v8554, 4
  %v8556 = vadd.f32 %v8554, %v8555
  %v8557 = vrot.slane %v8556, 2
  %v8558 = vadd.f32 %v8556, %v8557
  %v8559 = vrot.slane %v8558, 1
  %v8560 = vadd.f32 %v8558, %v8559
  %v8561 = vadd.f32 %v8133, %v8137
  %v8562 = vrot.slane %v8561, 4
  %v8563 = vadd.f32 %v8561, %v8562
  %v8564 = vrot.slane %v8563, 2
  %v8565 = vadd.f32 %v8563, %v8564
  %v8566 = vrot.slane %v8565, 1
  %v8567 = vadd.f32 %v8565, %v8566
  %v8568 = vadd.f32 %v8134, %v8138
  %v8569 = vrot.slane %v8568, 4
  %v8570 = vadd.f32 %v8568, %v8569
  %v8571 = vrot.slane %v8570, 2
  %v8572 = vadd.f32 %v8570, %v8571
  %v8573 = vrot.slane %v8572, 1
  %v8574 = vadd.f32 %v8572, %v8573
  %v8575 = vadd.f32 %v8139, %v8143
  %v8576 = vrot.slane %v8575, 4
  %v8577 = vadd.f32 %v8575, %v8576
  %v8578 = vrot.slane %v8577, 2
  %v8579 = vadd.f32 %v8577, %v8578
  %v8580 = vrot.slane %v8579, 1
  %v8581 = vadd.f32 %v8579, %v8580
  %v8582 = vadd.f32 %v8140, %v8144
  %v8583 = vrot.slane %v8582, 4
  %v8584 = vadd.f32 %v8582, %v8583
  %v8585 = vrot.slane %v8584, 2
  %v8586 = vadd.f32 %v8584, %v8585
  %v8587 = vrot.slane %v8586, 1
  %v8588 = vadd.f32 %v8586, %v8587
  %v8589 = vadd.f32 %v8141, %v8145
  %v8590 = vrot.slane %v8589, 4
  %v8591 = vadd.f32 %v8589, %v8590
  %v8592 = vrot.slane %v8591, 2
  %v8593 = vadd.f32 %v8591, %v8592
  %v8594 = vrot.slane %v8593, 1
  %v8595 = vadd.f32 %v8593, %v8594
  %v8596 = vadd.f32 %v8142, %v8146
  %v8597 = vrot.slane %v8596, 4
  %v8598 = vadd.f32 %v8596, %v8597
  %v8599 = vrot.slane %v8598, 2
  %v8600 = vadd.f32 %v8598, %v8599
  %v8601 = vrot.slane %v8600, 1
  %v8602 = vadd.f32 %v8600, %v8601
  %v8603 = vadd.f32 %v8147, %v8151
  %v8604 = vrot.slane %v8603, 4
  %v8605 = vadd.f32 %v8603, %v8604
  %v8606 = vrot.slane %v8605, 2
  %v8607 = vadd.f32 %v8605, %v8606
  %v8608 = vrot.slane %v8607, 1
  %v8609 = vadd.f32 %v8607, %v8608
  %v8610 = vadd.f32 %v8148, %v8152
  %v8611 = vrot.slane %v8610, 4
  %v8612 = vadd.f32 %v8610, %v8611
  %v8613 = vrot.slane %v8612, 2
  %v8614 = vadd.f32 %v8612, %v8613
  %v8615 = vrot.slane %v8614, 1
  %v8616 = vadd.f32 %v8614, %v8615
  %v8617 = vadd.f32 %v8149, %v8153
  %v8618 = vrot.slane %v8617, 4
  %v8619 = vadd.f32 %v8617, %v8618
  %v8620 = vrot.slane %v8619, 2
  %v8621 = vadd.f32 %v8619, %v8620
  %v8622 = vrot.slane %v8621, 1
  %v8623 = vadd.f32 %v8621, %v8622
  %v8624 = vadd.f32 %v8150, %v8154
  %v8625 = vrot.slane %v8624, 4
  %v8626 = vadd.f32 %v8624, %v8625
  %v8627 = vrot.slane %v8626, 2
  %v8628 = vadd.f32 %v8626, %v8627
  %v8629 = vrot.slane %v8628, 1
  %v8630 = vadd.f32 %v8628, %v8629
  %v8631 = vadd.f32 %v8155, %v8159
  %v8632 = vrot.slane %v8631, 4
  %v8633 = vadd.f32 %v8631, %v8632
  %v8634 = vrot.slane %v8633, 2
  %v8635 = vadd.f32 %v8633, %v8634
  %v8636 = vrot.slane %v8635, 1
  %v8637 = vadd.f32 %v8635, %v8636
  %v8638 = vadd.f32 %v8156, %v8160
  %v8639 = vrot.slane %v8638, 4
  %v8640 = vadd.f32 %v8638, %v8639
  %v8641 = vrot.slane %v8640, 2
  %v8642 = vadd.f32 %v8640, %v8641
  %v8643 = vrot.slane %v8642, 1
  %v8644 = vadd.f32 %v8642, %v8643
  %v8645 = vadd.f32 %v8157, %v8161
  %v8646 = vrot.slane %v8645, 4
  %v8647 = vadd.f32 %v8645, %v8646
  %v8648 = vrot.slane %v8647, 2
  %v8649 = vadd.f32 %v8647, %v8648
  %v8650 = vrot.slane %v8649, 1
  %v8651 = vadd.f32 %v8649, %v8650
  %v8652 = vadd.f32 %v8158, %v8162
  %v8653 = vrot.slane %v8652, 4
  %v8654 = vadd.f32 %v8652, %v8653
  %v8655 = vrot.slane %v8654, 2
  %v8656 = vadd.f32 %v8654, %v8655
  %v8657 = vrot.slane %v8656, 1
  %v8658 = vadd.f32 %v8656, %v8657
  %v8659 = vadd.f32 %v8163, %v8167
  %v8660 = vrot.slane %v8659, 4
  %v8661 = vadd.f32 %v8659, %v8660
  %v8662 = vrot.slane %v8661, 2
  %v8663 = vadd.f32 %v8661, %v8662
  %v8664 = vrot.slane %v8663, 1
  %v8665 = vadd.f32 %v8663, %v8664
  %v8666 = vadd.f32 %v8164, %v8168
  %v8667 = vrot.slane %v8666, 4
  %v8668 = vadd.f32 %v8666, %v8667
  %v8669 = vrot.slane %v8668, 2
  %v8670 = vadd.f32 %v8668, %v8669
  %v8671 = vrot.slane %v8670, 1
  %v8672 = vadd.f32 %v8670, %v8671
  %v8673 = vadd.f32 %v8165, %v8169
  %v8674 = vrot.slane %v8673, 4
  %v8675 = vadd.f32 %v8673, %v8674
  %v8676 = vrot.slane %v8675, 2
  %v8677 = vadd.f32 %v8675, %v8676
  %v8678 = vrot.slane %v8677, 1
  %v8679 = vadd.f32 %v8677, %v8678
  %v8680 = vadd.f32 %v8166, %v8170
  %v8681 = vrot.slane %v8680, 4
  %v8682 = vadd.f32 %v8680, %v8681
  %v8683 = vrot.slane %v8682, 2
  %v8684 = vadd.f32 %v8682, %v8683
  %v8685 = vrot.slane %v8684, 1
  %v8686 = vadd.f32 %v8684, %v8685
  %v8687 = vadd.f32 %v8171, %v8175
  %v8688 = vrot.slane %v8687, 4
  %v8689 = vadd.f32 %v8687, %v8688
  %v8690 = vrot.slane %v8689, 2
  %v8691 = vadd.f32 %v8689, %v8690
  %v8692 = vrot.slane %v8691, 1
  %v8693 = vadd.f32 %v8691, %v8692
  %v8694 = vadd.f32 %v8172, %v8176
  %v8695 = vrot.slane %v8694, 4
  %v8696 = vadd.f32 %v8694, %v8695
  %v8697 = vrot.slane %v8696, 2
  %v8698 = vadd.f32 %v8696, %v8697
  %v8699 = vrot.slane %v8698, 1
  %v8700 = vadd.f32 %v8698, %v8699
  %v8701 = vadd.f32 %v8173, %v8177
  %v8702 = vrot.slane %v8701, 4
  %v8703 = vadd.f32 %v8701, %v8702
  %v8704 = vrot.slane %v8703, 2
  %v8705 = vadd.f32 %v8703, %v8704
  %v8706 = vrot.slane %v8705, 1
  %v8707 = vadd.f32 %v8705, %v8706
  %v8708 = vadd.f32 %v8174, %v8178
  %v8709 = vrot.slane %v8708, 4
  %v8710 = vadd.f32 %v8708, %v8709
  %v8711 = vrot.slane %v8710, 2
  %v8712 = vadd.f32 %v8710, %v8711
  %v8713 = vrot.slane %v8712, 1
  %v8714 = vadd.f32 %v8712, %v8713
  %v8715 = vadd.f32 %v8179, %v8183
  %v8716 = vrot.slane %v8715, 4
  %v8717 = vadd.f32 %v8715, %v8716
  %v8718 = vrot.slane %v8717, 2
  %v8719 = vadd.f32 %v8717, %v8718
  %v8720 = vrot.slane %v8719, 1
  %v8721 = vadd.f32 %v8719, %v8720
  %v8722 = vadd.f32 %v8180, %v8184
  %v8723 = vrot.slane %v8722, 4
  %v8724 = vadd.f32 %v8722, %v8723
  %v8725 = vrot.slane %v8724, 2
  %v8726 = vadd.f32 %v8724, %v8725
  %v8727 = vrot.slane %v8726, 1
  %v8728 = vadd.f32 %v8726, %v8727
  %v8729 = vadd.f32 %v8181, %v8185
  %v8730 = vrot.slane %v8729, 4
  %v8731 = vadd.f32 %v8729, %v8730
  %v8732 = vrot.slane %v8731, 2
  %v8733 = vadd.f32 %v8731, %v8732
  %v8734 = vrot.slane %v8733, 1
  %v8735 = vadd.f32 %v8733, %v8734
  %v8736 = vadd.f32 %v8182, %v8186
  %v8737 = vrot.slane %v8736, 4
  %v8738 = vadd.f32 %v8736, %v8737
  %v8739 = vrot.slane %v8738, 2
  %v8740 = vadd.f32 %v8738, %v8739
  %v8741 = vrot.slane %v8740, 1
  %v8742 = vadd.f32 %v8740, %v8741
  %v8743 = vadd.f32 %v8187, %v8191
  %v8744 = vrot.slane %v8743, 4
  %v8745 = vadd.f32 %v8743, %v8744
  %v8746 = vrot.slane %v8745, 2
  %v8747 = vadd.f32 %v8745, %v8746
  %v8748 = vrot.slane %v8747, 1
  %v8749 = vadd.f32 %v8747, %v8748
  %v8750 = vadd.f32 %v8188, %v8192
  %v8751 = vrot.slane %v8750, 4
  %v8752 = vadd.f32 %v8750, %v8751
  %v8753 = vrot.slane %v8752, 2
  %v8754 = vadd.f32 %v8752, %v8753
  %v8755 = vrot.slane %v8754, 1
  %v8756 = vadd.f32 %v8754, %v8755
  %v8757 = vadd.f32 %v8189, %v8193
  %v8758 = vrot.slane %v8757, 4
  %v8759 = vadd.f32 %v8757, %v8758
  %v8760 = vrot.slane %v8759, 2
  %v8761 = vadd.f32 %v8759, %v8760
  %v8762 = vrot.slane %v8761, 1
  %v8763 = vadd.f32 %v8761, %v8762
  %v8764 = vadd.f32 %v8190, %v8194
  %v8765 = vrot.slane %v8764, 4
  %v8766 = vadd.f32 %v8764, %v8765
  %v8767 = vrot.slane %v8766, 2
  %v8768 = vadd.f32 %v8766, %v8767
  %v8769 = vrot.slane %v8768, 1
  %v8770 = vadd.f32 %v8768, %v8769
  %v8771 = vadd.f32 %v8195, %v8199
  %v8772 = vrot.slane %v8771, 4
  %v8773 = vadd.f32 %v8771, %v8772
  %v8774 = vrot.slane %v8773, 2
  %v8775 = vadd.f32 %v8773, %v8774
  %v8776 = vrot.slane %v8775, 1
  %v8777 = vadd.f32 %v8775, %v8776
  %v8778 = vadd.f32 %v8196, %v8200
  %v8779 = vrot.slane %v8778, 4
  %v8780 = vadd.f32 %v8778, %v8779
  %v8781 = vrot.slane %v8780, 2
  %v8782 = vadd.f32 %v8780, %v8781
  %v8783 = vrot.slane %v8782, 1
  %v8784 = vadd.f32 %v8782, %v8783
  %v8785 = vadd.f32 %v8197, %v8201
  %v8786 = vrot.slane %v8785, 4
  %v8787 = vadd.f32 %v8785, %v8786
  %v8788 = vrot.slane %v8787, 2
  %v8789 = vadd.f32 %v8787, %v8788
  %v8790 = vrot.slane %v8789, 1
  %v8791 = vadd.f32 %v8789, %v8790
  %v8792 = vadd.f32 %v8198, %v8202
  %v8793 = vrot.slane %v8792, 4
  %v8794 = vadd.f32 %v8792, %v8793
  %v8795 = vrot.slane %v8794, 2
  %v8796 = vadd.f32 %v8794, %v8795
  %v8797 = vrot.slane %v8796, 1
  %v8798 = vadd.f32 %v8796, %v8797
  %v8799 = vadd.f32 %v8203, %v8207
  %v8800 = vrot.slane %v8799, 4
  %v8801 = vadd.f32 %v8799, %v8800
  %v8802 = vrot.slane %v8801, 2
  %v8803 = vadd.f32 %v8801, %v8802
  %v8804 = vrot.slane %v8803, 1
  %v8805 = vadd.f32 %v8803, %v8804
  %v8806 = vadd.f32 %v8204, %v8208
  %v8807 = vrot.slane %v8806, 4
  %v8808 = vadd.f32 %v8806, %v8807
  %v8809 = vrot.slane %v8808, 2
  %v8810 = vadd.f32 %v8808, %v8809
  %v8811 = vrot.slane %v8810, 1
  %v8812 = vadd.f32 %v8810, %v8811
  %v8813 = vadd.f32 %v8205, %v8209
  %v8814 = vrot.slane %v8813, 4
  %v8815 = vadd.f32 %v8813, %v8814
  %v8816 = vrot.slane %v8815, 2
  %v8817 = vadd.f32 %v8815, %v8816
  %v8818 = vrot.slane %v8817, 1
  %v8819 = vadd.f32 %v8817, %v8818
  %v8820 = vadd.f32 %v8206, %v8210
  %v8821 = vrot.slane %v8820, 4
  %v8822 = vadd.f32 %v8820, %v8821
  %v8823 = vrot.slane %v8822, 2
  %v8824 = vadd.f32 %v8822, %v8823
  %v8825 = vrot.slane %v8824, 1
  %v8826 = vadd.f32 %v8824, %v8825
  %v8827 = vadd.f32 %v8211, %v8215
  %v8828 = vrot.slane %v8827, 4
  %v8829 = vadd.f32 %v8827, %v8828
  %v8830 = vrot.slane %v8829, 2
  %v8831 = vadd.f32 %v8829, %v8830
  %v8832 = vrot.slane %v8831, 1
  %v8833 = vadd.f32 %v8831, %v8832
  %v8834 = vadd.f32 %v8212, %v8216
  %v8835 = vrot.slane %v8834, 4
  %v8836 = vadd.f32 %v8834, %v8835
  %v8837 = vrot.slane %v8836, 2
  %v8838 = vadd.f32 %v8836, %v8837
  %v8839 = vrot.slane %v8838, 1
  %v8840 = vadd.f32 %v8838, %v8839
  %v8841 = vadd.f32 %v8213, %v8217
  %v8842 = vrot.slane %v8841, 4
  %v8843 = vadd.f32 %v8841, %v8842
  %v8844 = vrot.slane %v8843, 2
  %v8845 = vadd.f32 %v8843, %v8844
  %v8846 = vrot.slane %v8845, 1
  %v8847 = vadd.f32 %v8845, %v8846
  %v8848 = vadd.f32 %v8214, %v8218
  %v8849 = vrot.slane %v8848, 4
  %v8850 = vadd.f32 %v8848, %v8849
  %v8851 = vrot.slane %v8850, 2
  %v8852 = vadd.f32 %v8850, %v8851
  %v8853 = vrot.slane %v8852, 1
  %v8854 = vadd.f32 %v8852, %v8853
  %v8855 = vadd.f32 %v8219, %v8223
  %v8856 = vrot.slane %v8855, 4
  %v8857 = vadd.f32 %v8855, %v8856
  %v8858 = vrot.slane %v8857, 2
  %v8859 = vadd.f32 %v8857, %v8858
  %v8860 = vrot.slane %v8859, 1
  %v8861 = vadd.f32 %v8859, %v8860
  %v8862 = vadd.f32 %v8220, %v8224
  %v8863 = vrot.slane %v8862, 4
  %v8864 = vadd.f32 %v8862, %v8863
  %v8865 = vrot.slane %v8864, 2
  %v8866 = vadd.f32 %v8864, %v8865
  %v8867 = vrot.slane %v8866, 1
  %v8868 = vadd.f32 %v8866, %v8867
  %v8869 = vadd.f32 %v8221, %v8225
  %v8870 = vrot.slane %v8869, 4
  %v8871 = vadd.f32 %v8869, %v8870
  %v8872 = vrot.slane %v8871, 2
  %v8873 = vadd.f32 %v8871, %v8872
  %v8874 = vrot.slane %v8873, 1
  %v8875 = vadd.f32 %v8873, %v8874
  %v8876 = vadd.f32 %v8222, %v8226
  %v8877 = vrot.slane %v8876, 4
  %v8878 = vadd.f32 %v8876, %v8877
  %v8879 = vrot.slane %v8878, 2
  %v8880 = vadd.f32 %v8878, %v8879
  %v8881 = vrot.slane %v8880, 1
  %v8882 = vadd.f32 %v8880, %v8881
  %v8883 = vadd.f32 %v8227, %v8231
  %v8884 = vrot.slane %v8883, 4
  %v8885 = vadd.f32 %v8883, %v8884
  %v8886 = vrot.slane %v8885, 2
  %v8887 = vadd.f32 %v8885, %v8886
  %v8888 = vrot.slane %v8887, 1
  %v8889 = vadd.f32 %v8887, %v8888
  %v8890 = vadd.f32 %v8228, %v8232
  %v8891 = vrot.slane %v8890, 4
  %v8892 = vadd.f32 %v8890, %v8891
  %v8893 = vrot.slane %v8892, 2
  %v8894 = vadd.f32 %v8892, %v8893
  %v8895 = vrot.slane %v8894, 1
  %v8896 = vadd.f32 %v8894, %v8895
  %v8897 = vadd.f32 %v8229, %v8233
  %v8898 = vrot.slane %v8897, 4
  %v8899 = vadd.f32 %v8897, %v8898
  %v8900 = vrot.slane %v8899, 2
  %v8901 = vadd.f32 %v8899, %v8900
  %v8902 = vrot.slane %v8901, 1
  %v8903 = vadd.f32 %v8901, %v8902
  %v8904 = vadd.f32 %v8230, %v8234
  %v8905 = vrot.slane %v8904, 4
  %v8906 = vadd.f32 %v8904, %v8905
  %v8907 = vrot.slane %v8906, 2
  %v8908 = vadd.f32 %v8906, %v8907
  %v8909 = vrot.slane %v8908, 1
  %v8910 = vadd.f32 %v8908, %v8909
  %v8911 = vadd.f32 %v8235, %v8239
  %v8912 = vrot.slane %v8911, 4
  %v8913 = vadd.f32 %v8911, %v8912
  %v8914 = vrot.slane %v8913, 2
  %v8915 = vadd.f32 %v8913, %v8914
  %v8916 = vrot.slane %v8915, 1
  %v8917 = vadd.f32 %v8915, %v8916
  %v8918 = vadd.f32 %v8236, %v8240
  %v8919 = vrot.slane %v8918, 4
  %v8920 = vadd.f32 %v8918, %v8919
  %v8921 = vrot.slane %v8920, 2
  %v8922 = vadd.f32 %v8920, %v8921
  %v8923 = vrot.slane %v8922, 1
  %v8924 = vadd.f32 %v8922, %v8923
  %v8925 = vadd.f32 %v8237, %v8241
  %v8926 = vrot.slane %v8925, 4
  %v8927 = vadd.f32 %v8925, %v8926
  %v8928 = vrot.slane %v8927, 2
  %v8929 = vadd.f32 %v8927, %v8928
  %v8930 = vrot.slane %v8929, 1
  %v8931 = vadd.f32 %v8929, %v8930
  %v8932 = vadd.f32 %v8238, %v8242
  %v8933 = vrot.slane %v8932, 4
  %v8934 = vadd.f32 %v8932, %v8933
  %v8935 = vrot.slane %v8934, 2
  %v8936 = vadd.f32 %v8934, %v8935
  %v8937 = vrot.slane %v8936, 1
  %v8938 = vadd.f32 %v8936, %v8937
  %v8939 = vadd.f32 %v8243, %v8247
  %v8940 = vrot.slane %v8939, 4
  %v8941 = vadd.f32 %v8939, %v8940
  %v8942 = vrot.slane %v8941, 2
  %v8943 = vadd.f32 %v8941, %v8942
  %v8944 = vrot.slane %v8943, 1
  %v8945 = vadd.f32 %v8943, %v8944
  %v8946 = vadd.f32 %v8244, %v8248
  %v8947 = vrot.slane %v8946, 4
  %v8948 = vadd.f32 %v8946, %v8947
  %v8949 = vrot.slane %v8948, 2
  %v8950 = vadd.f32 %v8948, %v8949
  %v8951 = vrot.slane %v8950, 1
  %v8952 = vadd.f32 %v8950, %v8951
  %v8953 = vadd.f32 %v8245, %v8249
  %v8954 = vrot.slane %v8953, 4
  %v8955 = vadd.f32 %v8953, %v8954
  %v8956 = vrot.slane %v8955, 2
  %v8957 = vadd.f32 %v8955, %v8956
  %v8958 = vrot.slane %v8957, 1
  %v8959 = vadd.f32 %v8957, %v8958
  %v8960 = vadd.f32 %v8246, %v8250
  %v8961 = vrot.slane %v8960, 4
  %v8962 = vadd.f32 %v8960, %v8961
  %v8963 = vrot.slane %v8962, 2
  %v8964 = vadd.f32 %v8962, %v8963
  %v8965 = vrot.slane %v8964, 1
  %v8966 = vadd.f32 %v8964, %v8965
  %v8967 = vadd.f32 %v8251, %v8255
  %v8968 = vrot.slane %v8967, 4
  %v8969 = vadd.f32 %v8967, %v8968
  %v8970 = vrot.slane %v8969, 2
  %v8971 = vadd.f32 %v8969, %v8970
  %v8972 = vrot.slane %v8971, 1
  %v8973 = vadd.f32 %v8971, %v8972
  %v8974 = vadd.f32 %v8252, %v8256
  %v8975 = vrot.slane %v8974, 4
  %v8976 = vadd.f32 %v8974, %v8975
  %v8977 = vrot.slane %v8976, 2
  %v8978 = vadd.f32 %v8976, %v8977
  %v8979 = vrot.slane %v8978, 1
  %v8980 = vadd.f32 %v8978, %v8979
  %v8981 = vadd.f32 %v8253, %v8257
  %v8982 = vrot.slane %v8981, 4
  %v8983 = vadd.f32 %v8981, %v8982
  %v8984 = vrot.slane %v8983, 2
  %v8985 = vadd.f32 %v8983, %v8984
  %v8986 = vrot.slane %v8985, 1
  %v8987 = vadd.f32 %v8985, %v8986
  %v8988 = vadd.f32 %v8254, %v8258
  %v8989 = vrot.slane %v8988, 4
  %v8990 = vadd.f32 %v8988, %v8989
  %v8991 = vrot.slane %v8990, 2
  %v8992 = vadd.f32 %v8990, %v8991
  %v8993 = vrot.slane %v8992, 1
  %v8994 = vadd.f32 %v8992, %v8993
  %v8995 = vadd.f32 %v8259, %v8263
  %v8996 = vrot.slane %v8995, 4
  %v8997 = vadd.f32 %v8995, %v8996
  %v8998 = vrot.slane %v8997, 2
  %v8999 = vadd.f32 %v8997, %v8998
  %v9000 = vrot.slane %v8999, 1
  %v9001 = vadd.f32 %v8999, %v9000
  %v9002 = vadd.f32 %v8260, %v8264
  %v9003 = vrot.slane %v9002, 4
  %v9004 = vadd.f32 %v9002, %v9003
  %v9005 = vrot.slane %v9004, 2
  %v9006 = vadd.f32 %v9004, %v9005
  %v9007 = vrot.slane %v9006, 1
  %v9008 = vadd.f32 %v9006, %v9007
  %v9009 = vadd.f32 %v8261, %v8265
  %v9010 = vrot.slane %v9009, 4
  %v9011 = vadd.f32 %v9009, %v9010
  %v9012 = vrot.slane %v9011, 2
  %v9013 = vadd.f32 %v9011, %v9012
  %v9014 = vrot.slane %v9013, 1
  %v9015 = vadd.f32 %v9013, %v9014
  %v9016 = vadd.f32 %v8262, %v8266
  %v9017 = vrot.slane %v9016, 4
  %v9018 = vadd.f32 %v9016, %v9017
  %v9019 = vrot.slane %v9018, 2
  %v9020 = vadd.f32 %v9018, %v9019
  %v9021 = vrot.slane %v9020, 1
  %v9022 = vadd.f32 %v9020, %v9021
  %v9023 = vadd.f32 %v8267, %v8271
  %v9024 = vrot.slane %v9023, 4
  %v9025 = vadd.f32 %v9023, %v9024
  %v9026 = vrot.slane %v9025, 2
  %v9027 = vadd.f32 %v9025, %v9026
  %v9028 = vrot.slane %v9027, 1
  %v9029 = vadd.f32 %v9027, %v9028
  %v9030 = vadd.f32 %v8268, %v8272
  %v9031 = vrot.slane %v9030, 4
  %v9032 = vadd.f32 %v9030, %v9031
  %v9033 = vrot.slane %v9032, 2
  %v9034 = vadd.f32 %v9032, %v9033
  %v9035 = vrot.slane %v9034, 1
  %v9036 = vadd.f32 %v9034, %v9035
  %v9037 = vadd.f32 %v8269, %v8273
  %v9038 = vrot.slane %v9037, 4
  %v9039 = vadd.f32 %v9037, %v9038
  %v9040 = vrot.slane %v9039, 2
  %v9041 = vadd.f32 %v9039, %v9040
  %v9042 = vrot.slane %v9041, 1
  %v9043 = vadd.f32 %v9041, %v9042
  %v9044 = vadd.f32 %v8270, %v8274
  %v9045 = vrot.slane %v9044, 4
  %v9046 = vadd.f32 %v9044, %v9045
  %v9047 = vrot.slane %v9046, 2
  %v9048 = vadd.f32 %v9046, %v9047
  %v9049 = vrot.slane %v9048, 1
  %v9050 = vadd.f32 %v9048, %v9049
  %v9051 = vadd.f32 %v8275, %v8279
  %v9052 = vrot.slane %v9051, 4
  %v9053 = vadd.f32 %v9051, %v9052
  %v9054 = vrot.slane %v9053, 2
  %v9055 = vadd.f32 %v9053, %v9054
  %v9056 = vrot.slane %v9055, 1
  %v9057 = vadd.f32 %v9055, %v9056
  %v9058 = vadd.f32 %v8276, %v8280
  %v9059 = vrot.slane %v9058, 4
  %v9060 = vadd.f32 %v9058, %v9059
  %v9061 = vrot.slane %v9060, 2
  %v9062 = vadd.f32 %v9060, %v9061
  %v9063 = vrot.slane %v9062, 1
  %v9064 = vadd.f32 %v9062, %v9063
  %v9065 = vadd.f32 %v8277, %v8281
  %v9066 = vrot.slane %v9065, 4
  %v9067 = vadd.f32 %v9065, %v9066
  %v9068 = vrot.slane %v9067, 2
  %v9069 = vadd.f32 %v9067, %v9068
  %v9070 = vrot.slane %v9069, 1
  %v9071 = vadd.f32 %v9069, %v9070
  %v9072 = vadd.f32 %v8278, %v8282
  %v9073 = vrot.slane %v9072, 4
  %v9074 = vadd.f32 %v9072, %v9073
  %v9075 = vrot.slane %v9074, 2
  %v9076 = vadd.f32 %v9074, %v9075
  %v9077 = vrot.slane %v9076, 1
  %v9078 = vadd.f32 %v9076, %v9077
  %v9079 = vadd.f32 %v8283, %v8287
  %v9080 = vrot.slane %v9079, 4
  %v9081 = vadd.f32 %v9079, %v9080
  %v9082 = vrot.slane %v9081, 2
  %v9083 = vadd.f32 %v9081, %v9082
  %v9084 = vrot.slane %v9083, 1
  %v9085 = vadd.f32 %v9083, %v9084
  %v9086 = vadd.f32 %v8284, %v8288
  %v9087 = vrot.slane %v9086, 4
  %v9088 = vadd.f32 %v9086, %v9087
  %v9089 = vrot.slane %v9088, 2
  %v9090 = vadd.f32 %v9088, %v9089
  %v9091 = vrot.slane %v9090, 1
  %v9092 = vadd.f32 %v9090, %v9091
  %v9093 = vadd.f32 %v8285, %v8289
  %v9094 = vrot.slane %v9093, 4
  %v9095 = vadd.f32 %v9093, %v9094
  %v9096 = vrot.slane %v9095, 2
  %v9097 = vadd.f32 %v9095, %v9096
  %v9098 = vrot.slane %v9097, 1
  %v9099 = vadd.f32 %v9097, %v9098
  %v9100 = vadd.f32 %v8286, %v8290
  %v9101 = vrot.slane %v9100, 4
  %v9102 = vadd.f32 %v9100, %v9101
  %v9103 = vrot.slane %v9102, 2
  %v9104 = vadd.f32 %v9102, %v9103
  %v9105 = vrot.slane %v9104, 1
  %v9106 = vadd.f32 %v9104, %v9105
  %v9107 = vadd.f32 %v8291, %v8295
  %v9108 = vrot.slane %v9107, 4
  %v9109 = vadd.f32 %v9107, %v9108
  %v9110 = vrot.slane %v9109, 2
  %v9111 = vadd.f32 %v9109, %v9110
  %v9112 = vrot.slane %v9111, 1
  %v9113 = vadd.f32 %v9111, %v9112
  %v9114 = vadd.f32 %v8292, %v8296
  %v9115 = vrot.slane %v9114, 4
  %v9116 = vadd.f32 %v9114, %v9115
  %v9117 = vrot.slane %v9116, 2
  %v9118 = vadd.f32 %v9116, %v9117
  %v9119 = vrot.slane %v9118, 1
  %v9120 = vadd.f32 %v9118, %v9119
  %v9121 = vadd.f32 %v8293, %v8297
  %v9122 = vrot.slane %v9121, 4
  %v9123 = vadd.f32 %v9121, %v9122
  %v9124 = vrot.slane %v9123, 2
  %v9125 = vadd.f32 %v9123, %v9124
  %v9126 = vrot.slane %v9125, 1
  %v9127 = vadd.f32 %v9125, %v9126
  %v9128 = vadd.f32 %v8294, %v8298
  %v9129 = vrot.slane %v9128, 4
  %v9130 = vadd.f32 %v9128, %v9129
  %v9131 = vrot.slane %v9130, 2
  %v9132 = vadd.f32 %v9130, %v9131
  %v9133 = vrot.slane %v9132, 1
  %v9134 = vadd.f32 %v9132, %v9133
  %v9135 = vadd.f32 %v8299, %v8303
  %v9136 = vrot.slane %v9135, 4
  %v9137 = vadd.f32 %v9135, %v9136
  %v9138 = vrot.slane %v9137, 2
  %v9139 = vadd.f32 %v9137, %v9138
  %v9140 = vrot.slane %v9139, 1
  %v9141 = vadd.f32 %v9139, %v9140
  %v9142 = vadd.f32 %v8300, %v8304
  %v9143 = vrot.slane %v9142, 4
  %v9144 = vadd.f32 %v9142, %v9143
  %v9145 = vrot.slane %v9144, 2
  %v9146 = vadd.f32 %v9144, %v9145
  %v9147 = vrot.slane %v9146, 1
  %v9148 = vadd.f32 %v9146, %v9147
  %v9149 = vadd.f32 %v8301, %v8305
  %v9150 = vrot.slane %v9149, 4
  %v9151 = vadd.f32 %v9149, %v9150
  %v9152 = vrot.slane %v9151, 2
  %v9153 = vadd.f32 %v9151, %v9152
  %v9154 = vrot.slane %v9153, 1
  %v9155 = vadd.f32 %v9153, %v9154
  %v9156 = vadd.f32 %v8302, %v8306
  %v9157 = vrot.slane %v9156, 4
  %v9158 = vadd.f32 %v9156, %v9157
  %v9159 = vrot.slane %v9158, 2
  %v9160 = vadd.f32 %v9158, %v9159
  %v9161 = vrot.slane %v9160, 1
  %v9162 = vadd.f32 %v9160, %v9161
  %v9163 = vadd.f32 %v8307, %v8311
  %v9164 = vrot.slane %v9163, 4
  %v9165 = vadd.f32 %v9163, %v9164
  %v9166 = vrot.slane %v9165, 2
  %v9167 = vadd.f32 %v9165, %v9166
  %v9168 = vrot.slane %v9167, 1
  %v9169 = vadd.f32 %v9167, %v9168
  %v9170 = vadd.f32 %v8308, %v8312
  %v9171 = vrot.slane %v9170, 4
  %v9172 = vadd.f32 %v9170, %v9171
  %v9173 = vrot.slane %v9172, 2
  %v9174 = vadd.f32 %v9172, %v9173
  %v9175 = vrot.slane %v9174, 1
  %v9176 = vadd.f32 %v9174, %v9175
  %v9177 = vadd.f32 %v8309, %v8313
  %v9178 = vrot.slane %v9177, 4
  %v9179 = vadd.f32 %v9177, %v9178
  %v9180 = vrot.slane %v9179, 2
  %v9181 = vadd.f32 %v9179, %v9180
  %v9182 = vrot.slane %v9181, 1
  %v9183 = vadd.f32 %v9181, %v9182
  %v9184 = vadd.f32 %v8310, %v8314
  %v9185 = vrot.slane %v9184, 4
  %v9186 = vadd.f32 %v9184, %v9185
  %v9187 = vrot.slane %v9186, 2
  %v9188 = vadd.f32 %v9186, %v9187
  %v9189 = vrot.slane %v9188, 1
  %v9190 = vadd.f32 %v9188, %v9189
  %v9191 = vadd.f32 %v8315, %v8319
  %v9192 = vrot.slane %v9191, 4
  %v9193 = vadd.f32 %v9191, %v9192
  %v9194 = vrot.slane %v9193, 2
  %v9195 = vadd.f32 %v9193, %v9194
  %v9196 = vrot.slane %v9195, 1
  %v9197 = vadd.f32 %v9195, %v9196
  %v9198 = vadd.f32 %v8316, %v8320
  %v9199 = vrot.slane %v9198, 4
  %v9200 = vadd.f32 %v9198, %v9199
  %v9201 = vrot.slane %v9200, 2
  %v9202 = vadd.f32 %v9200, %v9201
  %v9203 = vrot.slane %v9202, 1
  %v9204 = vadd.f32 %v9202, %v9203
  %v9205 = vadd.f32 %v8317, %v8321
  %v9206 = vrot.slane %v9205, 4
  %v9207 = vadd.f32 %v9205, %v9206
  %v9208 = vrot.slane %v9207, 2
  %v9209 = vadd.f32 %v9207, %v9208
  %v9210 = vrot.slane %v9209, 1
  %v9211 = vadd.f32 %v9209, %v9210
  %v9212 = vadd.f32 %v8318, %v8322
  %v9213 = vrot.slane %v9212, 4
  %v9214 = vadd.f32 %v9212, %v9213
  %v9215 = vrot.slane %v9214, 2
  %v9216 = vadd.f32 %v9214, %v9215
  %v9217 = vrot.slane %v9216, 1
  %v9218 = vadd.f32 %v9216, %v9217
  %v9347 = vunpack.c.l.b16 %v7939
  %v9348 = vunpack.c.l.b16 %v7940
  %v9349 = vunpack.c.l.b16 %v7941
  %v9350 = vunpack.c.l.b16 %v7942
  %v9351 = vunpack.c.l.b16 %v7943
  %v9352 = vunpack.c.l.b16 %v7944
  %v9353 = vunpack.c.l.b16 %v7945
  %v9354 = vunpack.c.l.b16 %v7946
  %v9355 = vunpack.c.l.b16 %v7947
  %v9356 = vunpack.c.l.b16 %v7948
  %v9357 = vunpack.c.l.b16 %v7949
  %v9358 = vunpack.c.l.b16 %v7950
  %v9359 = vunpack.c.l.b16 %v7951
  %v9360 = vunpack.c.l.b16 %v7952
  %v9361 = vunpack.c.l.b16 %v7953
  %v9362 = vunpack.c.l.b16 %v7954
  %v9363 = vunpack.c.l.b16 %v7955
  %v9364 = vunpack.c.l.b16 %v7956
  %v9365 = vunpack.c.l.b16 %v7957
  %v9366 = vunpack.c.l.b16 %v7958
  %v9367 = vunpack.c.l.b16 %v7959
  %v9368 = vunpack.c.l.b16 %v7960
  %v9369 = vunpack.c.l.b16 %v7961
  %v9370 = vunpack.c.l.b16 %v7962
  %v9371 = vunpack.c.l.b16 %v7963
  %v9372 = vunpack.c.l.b16 %v7964
  %v9373 = vunpack.c.l.b16 %v7965
  %v9374 = vunpack.c.l.b16 %v7966
  %v9375 = vunpack.c.l.b16 %v7967
  %v9376 = vunpack.c.l.b16 %v7968
  %v9377 = vunpack.c.l.b16 %v7969
  %v9378 = vunpack.c.l.b16 %v7970
  %v9379 = vunpack.c.l.b16 %v7971
  %v9380 = vunpack.c.l.b16 %v7972
  %v9381 = vunpack.c.l.b16 %v7973
  %v9382 = vunpack.c.l.b16 %v7974
  %v9383 = vunpack.c.l.b16 %v7975
  %v9384 = vunpack.c.l.b16 %v7976
  %v9385 = vunpack.c.l.b16 %v7977
  %v9386 = vunpack.c.l.b16 %v7978
  %v9387 = vunpack.c.l.b16 %v7979
  %v9388 = vunpack.c.l.b16 %v7980
  %v9389 = vunpack.c.l.b16 %v7981
  %v9390 = vunpack.c.l.b16 %v7982
  %v9391 = vunpack.c.l.b16 %v7983
  %v9392 = vunpack.c.l.b16 %v7984
  %v9393 = vunpack.c.l.b16 %v7985
  %v9394 = vunpack.c.l.b16 %v7986
  %v9395 = vunpack.c.l.b16 %v7987
  %v9396 = vunpack.c.l.b16 %v7988
  %v9397 = vunpack.c.l.b16 %v7989
  %v9398 = vunpack.c.l.b16 %v7990
  %v9399 = vunpack.c.l.b16 %v7991
  %v9400 = vunpack.c.l.b16 %v7992
  %v9401 = vunpack.c.l.b16 %v7993
  %v9402 = vunpack.c.l.b16 %v7994
  %v9403 = vunpack.c.l.b16 %v7995
  %v9404 = vunpack.c.l.b16 %v7996
  %v9405 = vunpack.c.l.b16 %v7997
  %v9406 = vunpack.c.l.b16 %v7998
  %v9407 = vunpack.c.l.b16 %v7999
  %v9408 = vunpack.c.l.b16 %v8000
  %v9409 = vunpack.c.l.b16 %v8001
  %v9410 = vunpack.c.l.b16 %v8002
  %v9411 = vunpack.c.l.b16 %v8003
  %v9412 = vunpack.c.l.b16 %v8004
  %v9413 = vunpack.c.l.b16 %v8005
  %v9414 = vunpack.c.l.b16 %v8006
  %v9415 = vunpack.c.l.b16 %v8007
  %v9416 = vunpack.c.l.b16 %v8008
  %v9417 = vunpack.c.l.b16 %v8009
  %v9418 = vunpack.c.l.b16 %v8010
  %v9419 = vunpack.c.l.b16 %v8011
  %v9420 = vunpack.c.l.b16 %v8012
  %v9421 = vunpack.c.l.b16 %v8013
  %v9422 = vunpack.c.l.b16 %v8014
  %v9423 = vunpack.c.l.b16 %v8015
  %v9424 = vunpack.c.l.b16 %v8016
  %v9425 = vunpack.c.l.b16 %v8017
  %v9426 = vunpack.c.l.b16 %v8018
  %v9427 = vunpack.c.l.b16 %v8019
  %v9428 = vunpack.c.l.b16 %v8020
  %v9429 = vunpack.c.l.b16 %v8021
  %v9430 = vunpack.c.l.b16 %v8022
  %v9431 = vunpack.c.l.b16 %v8023
  %v9432 = vunpack.c.l.b16 %v8024
  %v9433 = vunpack.c.l.b16 %v8025
  %v9434 = vunpack.c.l.b16 %v8026
  %v9435 = vunpack.c.l.b16 %v8027
  %v9436 = vunpack.c.l.b16 %v8028
  %v9437 = vunpack.c.l.b16 %v8029
  %v9438 = vunpack.c.l.b16 %v8030
  %v9439 = vunpack.c.l.b16 %v8031
  %v9440 = vunpack.c.l.b16 %v8032
  %v9441 = vunpack.c.l.b16 %v8033
  %v9442 = vunpack.c.l.b16 %v8034
  %v9443 = vunpack.c.l.b16 %v8035
  %v9444 = vunpack.c.l.b16 %v8036
  %v9445 = vunpack.c.l.b16 %v8037
  %v9446 = vunpack.c.l.b16 %v8038
  %v9447 = vunpack.c.l.b16 %v8039
  %v9448 = vunpack.c.l.b16 %v8040
  %v9449 = vunpack.c.l.b16 %v8041
  %v9450 = vunpack.c.l.b16 %v8042
  %v9451 = vunpack.c.l.b16 %v8043
  %v9452 = vunpack.c.l.b16 %v8044
  %v9453 = vunpack.c.l.b16 %v8045
  %v9454 = vunpack.c.l.b16 %v8046
  %v9455 = vunpack.c.l.b16 %v8047
  %v9456 = vunpack.c.l.b16 %v8048
  %v9457 = vunpack.c.l.b16 %v8049
  %v9458 = vunpack.c.l.b16 %v8050
  %v9459 = vunpack.c.l.b16 %v8051
  %v9460 = vunpack.c.l.b16 %v8052
  %v9461 = vunpack.c.l.b16 %v8053
  %v9462 = vunpack.c.l.b16 %v8054
  %v9463 = vunpack.c.l.b16 %v8055
  %v9464 = vunpack.c.l.b16 %v8056
  %v9465 = vunpack.c.l.b16 %v8057
  %v9466 = vunpack.c.l.b16 %v8058
  %v9467 = vunpack.c.l.b16 %v8059
  %v9468 = vunpack.c.l.b16 %v8060
  %v9469 = vunpack.c.l.b16 %v8061
  %v9470 = vunpack.c.l.b16 %v8062
  %v9471 = vunpack.c.l.b16 %v8063
  %v9472 = vunpack.c.l.b16 %v8064
  %v9473 = vunpack.c.l.b16 %v8065
  %v9474 = vunpack.c.l.b16 %v8066
  %vm9475 = vcmask 1041409
  %v9476 = vsel %vm9475, %v9351, %v9347
  %vm9477 = vcmask 1042434
  %v9478 = vsel %vm9477, %v9355, %v9476
  %vm9479 = vcmask 1043459
  %v9480 = vsel %vm9479, %v9359, %v9478
  %vm9481 = vcmask 1044484
  %v9482 = vsel %vm9481, %v9363, %v9480
  %vm9483 = vcmask 1045509
  %v9484 = vsel %vm9483, %v9367, %v9482
  %vm9485 = vcmask 1046534
  %v9486 = vsel %vm9485, %v9371, %v9484
  %vm9487 = vcmask 1047559
  %v9488 = vsel %vm9487, %v9375, %v9486
  %v9489 = vsel %vm9475, %v9352, %v9348
  %v9490 = vsel %vm9477, %v9356, %v9489
  %v9491 = vsel %vm9479, %v9360, %v9490
  %v9492 = vsel %vm9481, %v9364, %v9491
  %v9493 = vsel %vm9483, %v9368, %v9492
  %v9494 = vsel %vm9485, %v9372, %v9493
  %v9495 = vsel %vm9487, %v9376, %v9494
  %v9496 = vsel %vm9475, %v9353, %v9349
  %v9497 = vsel %vm9477, %v9357, %v9496
  %v9498 = vsel %vm9479, %v9361, %v9497
  %v9499 = vsel %vm9481, %v9365, %v9498
  %v9500 = vsel %vm9483, %v9369, %v9499
  %v9501 = vsel %vm9485, %v9373, %v9500
  %v9502 = vsel %vm9487, %v9377, %v9501
  %v9503 = vsel %vm9475, %v9354, %v9350
  %v9504 = vsel %vm9477, %v9358, %v9503
  %v9505 = vsel %vm9479, %v9362, %v9504
  %v9506 = vsel %vm9481, %v9366, %v9505
  %v9507 = vsel %vm9483, %v9370, %v9506
  %v9508 = vsel %vm9485, %v9374, %v9507
  %v9509 = vsel %vm9487, %v9378, %v9508
  %v9510 = vsel %vm9475, %v9383, %v9379
  %v9511 = vsel %vm9477, %v9387, %v9510
  %v9512 = vsel %vm9479, %v9391, %v9511
  %v9513 = vsel %vm9481, %v9395, %v9512
  %v9514 = vsel %vm9483, %v9399, %v9513
  %v9515 = vsel %vm9485, %v9403, %v9514
  %v9516 = vsel %vm9487, %v9407, %v9515
  %v9517 = vsel %vm9475, %v9384, %v9380
  %v9518 = vsel %vm9477, %v9388, %v9517
  %v9519 = vsel %vm9479, %v9392, %v9518
  %v9520 = vsel %vm9481, %v9396, %v9519
  %v9521 = vsel %vm9483, %v9400, %v9520
  %v9522 = vsel %vm9485, %v9404, %v9521
  %v9523 = vsel %vm9487, %v9408, %v9522
  %v9524 = vsel %vm9475, %v9385, %v9381
  %v9525 = vsel %vm9477, %v9389, %v9524
  %v9526 = vsel %vm9479, %v9393, %v9525
  %v9527 = vsel %vm9481, %v9397, %v9526
  %v9528 = vsel %vm9483, %v9401, %v9527
  %v9529 = vsel %vm9485, %v9405, %v9528
  %v9530 = vsel %vm9487, %v9409, %v9529
  %v9531 = vsel %vm9475, %v9386, %v9382
  %v9532 = vsel %vm9477, %v9390, %v9531
  %v9533 = vsel %vm9479, %v9394, %v9532
  %v9534 = vsel %vm9481, %v9398, %v9533
  %v9535 = vsel %vm9483, %v9402, %v9534
  %v9536 = vsel %vm9485, %v9406, %v9535
  %v9537 = vsel %vm9487, %v9410, %v9536
  %v9538 = vsel %vm9475, %v9415, %v9411
  %v9539 = vsel %vm9477, %v9419, %v9538
  %v9540 = vsel %vm9479, %v9423, %v9539
  %v9541 = vsel %vm9481, %v9427, %v9540
  %v9542 = vsel %vm9483, %v9431, %v9541
  %v9543 = vsel %vm9485, %v9435, %v9542
  %v9544 = vsel %vm9487, %v9439, %v9543
  %v9545 = vsel %vm9475, %v9416, %v9412
  %v9546 = vsel %vm9477, %v9420, %v9545
  %v9547 = vsel %vm9479, %v9424, %v9546
  %v9548 = vsel %vm9481, %v9428, %v9547
  %v9549 = vsel %vm9483, %v9432, %v9548
  %v9550 = vsel %vm9485, %v9436, %v9549
  %v9551 = vsel %vm9487, %v9440, %v9550
  %v9552 = vsel %vm9475, %v9417, %v9413
  %v9553 = vsel %vm9477, %v9421, %v9552
  %v9554 = vsel %vm9479, %v9425, %v9553
  %v9555 = vsel %vm9481, %v9429, %v9554
  %v9556 = vsel %vm9483, %v9433, %v9555
  %v9557 = vsel %vm9485, %v9437, %v9556
  %v9558 = vsel %vm9487, %v9441, %v9557
  %v9559 = vsel %vm9475, %v9418, %v9414
  %v9560 = vsel %vm9477, %v9422, %v9559
  %v9561 = vsel %vm9479, %v9426, %v9560
  %v9562 = vsel %vm9481, %v9430, %v9561
  %v9563 = vsel %vm9483, %v9434, %v9562
  %v9564 = vsel %vm9485, %v9438, %v9563
  %v9565 = vsel %vm9487, %v9442, %v9564
  %v9566 = vsel %vm9475, %v9447, %v9443
  %v9567 = vsel %vm9477, %v9451, %v9566
  %v9568 = vsel %vm9479, %v9455, %v9567
  %v9569 = vsel %vm9481, %v9459, %v9568
  %v9570 = vsel %vm9483, %v9463, %v9569
  %v9571 = vsel %vm9485, %v9467, %v9570
  %v9572 = vsel %vm9487, %v9471, %v9571
  %v9573 = vsel %vm9475, %v9448, %v9444
  %v9574 = vsel %vm9477, %v9452, %v9573
  %v9575 = vsel %vm9479, %v9456, %v9574
  %v9576 = vsel %vm9481, %v9460, %v9575
  %v9577 = vsel %vm9483, %v9464, %v9576
  %v9578 = vsel %vm9485, %v9468, %v9577
  %v9579 = vsel %vm9487, %v9472, %v9578
  %v9580 = vsel %vm9475, %v9449, %v9445
  %v9581 = vsel %vm9477, %v9453, %v9580
  %v9582 = vsel %vm9479, %v9457, %v9581
  %v9583 = vsel %vm9481, %v9461, %v9582
  %v9584 = vsel %vm9483, %v9465, %v9583
  %v9585 = vsel %vm9485, %v9469, %v9584
  %v9586 = vsel %vm9487, %v9473, %v9585
  %v9587 = vsel %vm9475, %v9450, %v9446
  %v9588 = vsel %vm9477, %v9454, %v9587
  %v9589 = vsel %vm9479, %v9458, %v9588
  %v9590 = vsel %vm9481, %v9462, %v9589
  %v9591 = vsel %vm9483, %v9466, %v9590
  %v9592 = vsel %vm9485, %v9470, %v9591
  %v9593 = vsel %vm9487, %v9474, %v9592
  %v9594 = vpack.c.b16 %v9516, %v9488
  %v9595 = vpack.c.b16 %v9523, %v9495
  %v9596 = vpack.c.b16 %v9530, %v9502
  %v9597 = vpack.c.b16 %v9537, %v9509
  %v9598 = vpack.c.b16 %v9572, %v9544
  %v9599 = vpack.c.b16 %v9579, %v9551
  %v9600 = vpack.c.b16 %v9586, %v9558
  %v9601 = vpack.c.b16 %v9593, %v9565
  %v9738 = vsel %vm9475, %v8357, %v8329
  %v9739 = vsel %vm9477, %v8385, %v9738
  %v9740 = vsel %vm9479, %v8413, %v9739
  %v9741 = vsel %vm9481, %v8441, %v9740
  %v9742 = vsel %vm9483, %v8469, %v9741
  %v9743 = vsel %vm9485, %v8497, %v9742
  %v9744 = vsel %vm9487, %v8525, %v9743
  %v9745 = vsel %vm9475, %v8364, %v8336
  %v9746 = vsel %vm9477, %v8392, %v9745
  %v9747 = vsel %vm9479, %v8420, %v9746
  %v9748 = vsel %vm9481, %v8448, %v9747
  %v9749 = vsel %vm9483, %v8476, %v9748
  %v9750 = vsel %vm9485, %v8504, %v9749
  %v9751 = vsel %vm9487, %v8532, %v9750
  %v9752 = vsel %vm9475, %v8371, %v8343
  %v9753 = vsel %vm9477, %v8399, %v9752
  %v9754 = vsel %vm9479, %v8427, %v9753
  %v9755 = vsel %vm9481, %v8455, %v9754
  %v9756 = vsel %vm9483, %v8483, %v9755
  %v9757 = vsel %vm9485, %v8511, %v9756
  %v9758 = vsel %vm9487, %v8539, %v9757
  %v9759 = vsel %vm9475, %v8378, %v8350
  %v9760 = vsel %vm9477, %v8406, %v9759
  %v9761 = vsel %vm9479, %v8434, %v9760
  %v9762 = vsel %vm9481, %v8462, %v9761
  %v9763 = vsel %vm9483, %v8490, %v9762
  %v9764 = vsel %vm9485, %v8518, %v9763
  %v9765 = vsel %vm9487, %v8546, %v9764
  %v9766 = vsel %vm9475, %v8581, %v8553
  %v9767 = vsel %vm9477, %v8609, %v9766
  %v9768 = vsel %vm9479, %v8637, %v9767
  %v9769 = vsel %vm9481, %v8665, %v9768
  %v9770 = vsel %vm9483, %v8693, %v9769
  %v9771 = vsel %vm9485, %v8721, %v9770
  %v9772 = vsel %vm9487, %v8749, %v9771
  %v9773 = vsel %vm9475, %v8588, %v8560
  %v9774 = vsel %vm9477, %v8616, %v9773
  %v9775 = vsel %vm9479, %v8644, %v9774
  %v9776 = vsel %vm9481, %v8672, %v9775
  %v9777 = vsel %vm9483, %v8700, %v9776
  %v9778 = vsel %vm9485, %v8728, %v9777
  %v9779 = vsel %vm9487, %v8756, %v9778
  %v9780 = vsel %vm9475, %v8595, %v8567
  %v9781 = vsel %vm9477, %v8623, %v9780
  %v9782 = vsel %vm9479, %v8651, %v9781
  %v9783 = vsel %vm9481, %v8679, %v9782
  %v9784 = vsel %vm9483, %v8707, %v9783
  %v9785 = vsel %vm9485, %v8735, %v9784
  %v9786 = vsel %vm9487, %v8763, %v9785
  %v9787 = vsel %vm9475, %v8602, %v8574
  %v9788 = vsel %vm9477, %v8630, %v9787
  %v9789 = vsel %vm9479, %v8658, %v9788
  %v9790 = vsel %vm9481, %v8686, %v9789
  %v9791 = vsel %vm9483, %v8714, %v9790
  %v9792 = vsel %vm9485, %v8742, %v9791
  %v9793 = vsel %vm9487, %v8770, %v9792
  %v9794 = vsel %vm9475, %v8805, %v8777
  %v9795 = vsel %vm9477, %v8833, %v9794
  %v9796 = vsel %vm9479, %v8861, %v9795
  %v9797 = vsel %vm9481, %v8889, %v9796
  %v9798 = vsel %vm9483, %v8917, %v9797
  %v9799 = vsel %vm9485, %v8945, %v9798
  %v9800 = vsel %vm9487, %v8973, %v9799
  %v9801 = vsel %vm9475, %v8812, %v8784
  %v9802 = vsel %vm9477, %v8840, %v9801
  %v9803 = vsel %vm9479, %v8868, %v9802
  %v9804 = vsel %vm9481, %v8896, %v9803
  %v9805 = vsel %vm9483, %v8924, %v9804
  %v9806 = vsel %vm9485, %v8952, %v9805
  %v9807 = vsel %vm9487, %v8980, %v9806
  %v9808 = vsel %vm9475, %v8819, %v8791
  %v9809 = vsel %vm9477, %v8847, %v9808
  %v9810 = vsel %vm9479, %v8875, %v9809
  %v9811 = vsel %vm9481, %v8903, %v9810
  %v9812 = vsel %vm9483, %v8931, %v9811
  %v9813 = vsel %vm9485, %v8959, %v9812
  %v9814 = vsel %vm9487, %v8987, %v9813
  %v9815 = vsel %vm9475, %v8826, %v8798
  %v9816 = vsel %vm9477, %v8854, %v9815
  %v9817 = vsel %vm9479, %v8882, %v9816
  %v9818 = vsel %vm9481, %v8910, %v9817
  %v9819 = vsel %vm9483, %v8938, %v9818
  %v9820 = vsel %vm9485, %v8966, %v9819
  %v9821 = vsel %vm9487, %v8994, %v9820
  %v9822 = vsel %vm9475, %v9029, %v9001
  %v9823 = vsel %vm9477, %v9057, %v9822
  %v9824 = vsel %vm9479, %v9085, %v9823
  %v9825 = vsel %vm9481, %v9113, %v9824
  %v9826 = vsel %vm9483, %v9141, %v9825
  %v9827 = vsel %vm9485, %v9169, %v9826
  %v9828 = vsel %vm9487, %v9197, %v9827
  %v9829 = vsel %vm9475, %v9036, %v9008
  %v9830 = vsel %vm9477, %v9064, %v9829
  %v9831 = vsel %vm9479, %v9092, %v9830
  %v9832 = vsel %vm9481, %v9120, %v9831
  %v9833 = vsel %vm9483, %v9148, %v9832
  %v9834 = vsel %vm9485, %v9176, %v9833
  %v9835 = vsel %vm9487, %v9204, %v9834
  %v9836 = vsel %vm9475, %v9043, %v9015
  %v9837 = vsel %vm9477, %v9071, %v9836
  %v9838 = vsel %vm9479, %v9099, %v9837
  %v9839 = vsel %vm9481, %v9127, %v9838
  %v9840 = vsel %vm9483, %v9155, %v9839
  %v9841 = vsel %vm9485, %v9183, %v9840
  %v9842 = vsel %vm9487, %v9211, %v9841
  %v9843 = vsel %vm9475, %v9050, %v9022
  %v9844 = vsel %vm9477, %v9078, %v9843
  %v9845 = vsel %vm9479, %v9106, %v9844
  %v9846 = vsel %vm9481, %v9134, %v9845
  %v9847 = vsel %vm9483, %v9162, %v9846
  %v9848 = vsel %vm9485, %v9190, %v9847
  %v9849 = vsel %vm9487, %v9218, %v9848
  %9866 = vmatprep.subr.bf16.mxu0 %v683
  %9867 = vmatpush1.bf16.msra.mxu0 %v682
  %9868 = vmatprep.subr.bf16.mxu0 %v687
  %9869 = vmatpush1.bf16.msra.mxu0 %v686
  %9870 = vmatprep.subr.bf16.mxu0 %v691
  %9871 = vmatpush1.bf16.msra.mxu0 %v690
  %9872 = vmatprep.subr.bf16.mxu0 %v695
  %9873 = vmatpush1.bf16.msra.mxu0 %v694
  %9874 = vmatprep.subr.bf16.mxu0 %v699
  %9875 = vmatpush1.bf16.msra.mxu0 %v698
  %9876 = vmatprep.subr.bf16.mxu0 %v703
  %9877 = vmatpush1.bf16.msra.mxu0 %v702
  %9878 = vmatprep.subr.bf16.mxu0 %v707
  %9879 = vmatpush1.bf16.msra.mxu0 %v706
  %9880 = vmatprep.subr.bf16.mxu0 %v711
  %9881 = vmatpush1.bf16.msra.mxu0 %v710
  %9882 = vmatprep.subr.bf16.mxu0 %v715
  %9883 = vmatpush1.bf16.msra.mxu0 %v714
  %9884 = vmatprep.subr.bf16.mxu0 %v719
  %9885 = vmatpush1.bf16.msra.mxu0 %v718
  %9886 = vmatprep.subr.bf16.mxu0 %v723
  %9887 = vmatpush1.bf16.msra.mxu0 %v722
  %9888 = vmatprep.subr.bf16.mxu0 %v727
  %9889 = vmatpush1.bf16.msra.mxu0 %v726
  %9890 = vmatprep.subr.bf16.mxu0 %v731
  %9891 = vmatpush1.bf16.msra.mxu0 %v730
  %9892 = vmatprep.subr.bf16.mxu0 %v735
  %9893 = vmatpush1.bf16.msra.mxu0 %v734
  %9894 = vmatprep.subr.bf16.mxu0 %v739
  %9895 = vmatpush1.bf16.msra.mxu0 %v738
  %9896 = vmatprep.subr.bf16.mxu0 %v743
  %9897 = vmatpush1.bf16.msra.mxu0 %v742
  %9898 = vmatprep.mubr.bf16.mxu0 %v9595
  %9899 = vmatmul.mubr.bf16.gmra.mrb[0].mxu0 %v9594
  %v9900 = vpop.f32.mrb[0].mxu0
  %v9901 = vadd.f32 %v9744, %v9900
  %v9902 = vpop.f32.mrb[0].mxu0
  %v9903 = vadd.f32 %v9751, %v9902
  %v9904 = vpop.f32.mrb[0].mxu0
  %v9905 = vadd.f32 %v9772, %v9904
  %v9906 = vpop.f32.mrb[0].mxu0
  %v9907 = vadd.f32 %v9779, %v9906
  %9908 = vmatprep.mubr.bf16.mxu0 %v9599
  %9909 = vmatmul.mubr.bf16.gmra.mrb[0].mxu0 %v9598
  %v9910 = vpop.f32.mrb[0].mxu0
  %v9911 = vadd.f32 %v9800, %v9910
  %v9912 = vpop.f32.mrb[0].mxu0
  %v9913 = vadd.f32 %v9807, %v9912
  %v9914 = vpop.f32.mrb[0].mxu0
  %v9915 = vadd.f32 %v9828, %v9914
  %v9916 = vpop.f32.mrb[0].mxu0
  %v9917 = vadd.f32 %v9835, %v9916
  %9918 = vdwg.mxu0
  %9919 = vmatprep.subr.bf16.mxu0 %v747
  %9920 = vmatpush1.bf16.msra.mxu0 %v746
  %9921 = vmatprep.subr.bf16.mxu0 %v751
  %9922 = vmatpush1.bf16.msra.mxu0 %v750
  %9923 = vmatprep.subr.bf16.mxu0 %v755
  %9924 = vmatpush1.bf16.msra.mxu0 %v754
  %9925 = vmatprep.subr.bf16.mxu0 %v759
  %9926 = vmatpush1.bf16.msra.mxu0 %v758
  %9927 = vmatprep.subr.bf16.mxu0 %v763
  %9928 = vmatpush1.bf16.msra.mxu0 %v762
  %9929 = vmatprep.subr.bf16.mxu0 %v767
  %9930 = vmatpush1.bf16.msra.mxu0 %v766
  %9931 = vmatprep.subr.bf16.mxu0 %v771
  %9932 = vmatpush1.bf16.msra.mxu0 %v770
  %9933 = vmatprep.subr.bf16.mxu0 %v775
  %9934 = vmatpush1.bf16.msra.mxu0 %v774
  %9935 = vmatprep.subr.bf16.mxu0 %v779
  %9936 = vmatpush1.bf16.msra.mxu0 %v778
  %9937 = vmatprep.subr.bf16.mxu0 %v783
  %9938 = vmatpush1.bf16.msra.mxu0 %v782
  %9939 = vmatprep.subr.bf16.mxu0 %v787
  %9940 = vmatpush1.bf16.msra.mxu0 %v786
  %9941 = vmatprep.subr.bf16.mxu0 %v791
  %9942 = vmatpush1.bf16.msra.mxu0 %v790
  %9943 = vmatprep.subr.bf16.mxu0 %v795
  %9944 = vmatpush1.bf16.msra.mxu0 %v794
  %9945 = vmatprep.subr.bf16.mxu0 %v799
  %9946 = vmatpush1.bf16.msra.mxu0 %v798
  %9947 = vmatprep.subr.bf16.mxu0 %v803
  %9948 = vmatpush1.bf16.msra.mxu0 %v802
  %9949 = vmatprep.subr.bf16.mxu0 %v807
  %9950 = vmatpush1.bf16.msra.mxu0 %v806
  %9951 = vmatprep.mubr.bf16.mxu0 %v9597
  %9952 = vmatmul.mubr.bf16.gmra.mrb[0].mxu0 %v9596
  %v9953 = vpop.f32.mrb[0].mxu0
  %v9954 = vadd.f32 %v9901, %v9953
  %v9955 = vpop.f32.mrb[0].mxu0
  %v9956 = vadd.f32 %v9903, %v9955
  %v9957 = vpop.f32.mrb[0].mxu0
  %v9958 = vadd.f32 %v9905, %v9957
  %v9959 = vpop.f32.mrb[0].mxu0
  %v9960 = vadd.f32 %v9907, %v9959
  %9961 = vmatprep.mubr.bf16.mxu0 %v9601
  %9962 = vmatmul.mubr.bf16.gmra.mrb[0].mxu0 %v9600
  %v9963 = vpop.f32.mrb[0].mxu0
  %v9964 = vadd.f32 %v9911, %v9963
  %v9965 = vpop.f32.mrb[0].mxu0
  %v9966 = vadd.f32 %v9913, %v9965
  %v9967 = vpop.f32.mrb[0].mxu0
  %v9968 = vadd.f32 %v9915, %v9967
  %v9969 = vpop.f32.mrb[0].mxu0
  %v9970 = vadd.f32 %v9917, %v9969
  %9971 = vdwg.mxu0
  %9972 = vmatprep.subr.bf16.mxu0 %v685
  %9973 = vmatpush1.bf16.msra.mxu0 %v684
  %9974 = vmatprep.subr.bf16.mxu0 %v689
  %9975 = vmatpush1.bf16.msra.mxu0 %v688
  %9976 = vmatprep.subr.bf16.mxu0 %v693
  %9977 = vmatpush1.bf16.msra.mxu0 %v692
  %9978 = vmatprep.subr.bf16.mxu0 %v697
  %9979 = vmatpush1.bf16.msra.mxu0 %v696
  %9980 = vmatprep.subr.bf16.mxu0 %v701
  %9981 = vmatpush1.bf16.msra.mxu0 %v700
  %9982 = vmatprep.subr.bf16.mxu0 %v705
  %9983 = vmatpush1.bf16.msra.mxu0 %v704
  %9984 = vmatprep.subr.bf16.mxu0 %v709
  %9985 = vmatpush1.bf16.msra.mxu0 %v708
  %9986 = vmatprep.subr.bf16.mxu0 %v713
  %9987 = vmatpush1.bf16.msra.mxu0 %v712
  %9988 = vmatprep.subr.bf16.mxu0 %v717
  %9989 = vmatpush1.bf16.msra.mxu0 %v716
  %9990 = vmatprep.subr.bf16.mxu0 %v721
  %9991 = vmatpush1.bf16.msra.mxu0 %v720
  %9992 = vmatprep.subr.bf16.mxu0 %v725
  %9993 = vmatpush1.bf16.msra.mxu0 %v724
  %9994 = vmatprep.subr.bf16.mxu0 %v729
  %9995 = vmatpush1.bf16.msra.mxu0 %v728
  %9996 = vmatprep.subr.bf16.mxu0 %v733
  %9997 = vmatpush1.bf16.msra.mxu0 %v732
  %9998 = vmatprep.subr.bf16.mxu0 %v737
  %9999 = vmatpush1.bf16.msra.mxu0 %v736
  %10000 = vmatprep.subr.bf16.mxu0 %v741
  %10001 = vmatpush1.bf16.msra.mxu0 %v740
  %10002 = vmatprep.subr.bf16.mxu0 %v745
  %10003 = vmatpush1.bf16.msra.mxu0 %v744
  %10004 = vmatprep.mubr.bf16.mxu0 %v9595
  %10005 = vmatmul.mubr.bf16.gmra.mrb[0].mxu0 %v9594
  %v10006 = vpop.f32.mrb[0].mxu0
  %v10007 = vadd.f32 %v9758, %v10006
  %v10008 = vpop.f32.mrb[0].mxu0
  %v10009 = vadd.f32 %v9765, %v10008
  %v10010 = vpop.f32.mrb[0].mxu0
  %v10011 = vadd.f32 %v9786, %v10010
  %v10012 = vpop.f32.mrb[0].mxu0
  %v10013 = vadd.f32 %v9793, %v10012
  %10014 = vmatprep.mubr.bf16.mxu0 %v9599
  %10015 = vmatmul.mubr.bf16.gmra.mrb[0].mxu0 %v9598
  %v10016 = vpop.f32.mrb[0].mxu0
  %v10017 = vadd.f32 %v9814, %v10016
  %v10018 = vpop.f32.mrb[0].mxu0
  %v10019 = vadd.f32 %v9821, %v10018
  %v10020 = vpop.f32.mrb[0].mxu0
  %v10021 = vadd.f32 %v9842, %v10020
  %v10022 = vpop.f32.mrb[0].mxu0
  %v10023 = vadd.f32 %v9849, %v10022
  %10024 = vdwg.mxu0
  %10025 = vmatprep.subr.bf16.mxu0 %v749
  %10026 = vmatpush1.bf16.msra.mxu0 %v748
  %10027 = vmatprep.subr.bf16.mxu0 %v753
  %10028 = vmatpush1.bf16.msra.mxu0 %v752
  %10029 = vmatprep.subr.bf16.mxu0 %v757
  %10030 = vmatpush1.bf16.msra.mxu0 %v756
  %10031 = vmatprep.subr.bf16.mxu0 %v761
  %10032 = vmatpush1.bf16.msra.mxu0 %v760
  %10033 = vmatprep.subr.bf16.mxu0 %v765
  %10034 = vmatpush1.bf16.msra.mxu0 %v764
  %10035 = vmatprep.subr.bf16.mxu0 %v769
  %10036 = vmatpush1.bf16.msra.mxu0 %v768
  %10037 = vmatprep.subr.bf16.mxu0 %v773
  %10038 = vmatpush1.bf16.msra.mxu0 %v772
  %10039 = vmatprep.subr.bf16.mxu0 %v777
  %10040 = vmatpush1.bf16.msra.mxu0 %v776
  %10041 = vmatprep.subr.bf16.mxu0 %v781
  %10042 = vmatpush1.bf16.msra.mxu0 %v780
  %10043 = vmatprep.subr.bf16.mxu0 %v785
  %10044 = vmatpush1.bf16.msra.mxu0 %v784
  %10045 = vmatprep.subr.bf16.mxu0 %v789
  %10046 = vmatpush1.bf16.msra.mxu0 %v788
  %10047 = vmatprep.subr.bf16.mxu0 %v793
  %10048 = vmatpush1.bf16.msra.mxu0 %v792
  %10049 = vmatprep.subr.bf16.mxu0 %v797
  %10050 = vmatpush1.bf16.msra.mxu0 %v796
  %10051 = vmatprep.subr.bf16.mxu0 %v801
  %10052 = vmatpush1.bf16.msra.mxu0 %v800
  %10053 = vmatprep.subr.bf16.mxu0 %v805
  %10054 = vmatpush1.bf16.msra.mxu0 %v804
  %10055 = vmatprep.subr.bf16.mxu0 %v809
  %10056 = vmatpush1.bf16.msra.mxu0 %v808
  %10057 = vmatprep.mubr.bf16.mxu0 %v9597
  %10058 = vmatmul.mubr.bf16.gmra.mrb[0].mxu0 %v9596
  %v10059 = vpop.f32.mrb[0].mxu0
  %v10060 = vadd.f32 %v10007, %v10059
  %v10061 = vpop.f32.mrb[0].mxu0
  %v10062 = vadd.f32 %v10009, %v10061
  %v10063 = vpop.f32.mrb[0].mxu0
  %v10064 = vadd.f32 %v10011, %v10063
  %v10065 = vpop.f32.mrb[0].mxu0
  %v10066 = vadd.f32 %v10013, %v10065
  %10067 = vmatprep.mubr.bf16.mxu0 %v9601
  %10068 = vmatmul.mubr.bf16.gmra.mrb[0].mxu0 %v9600
  %v10069 = vpop.f32.mrb[0].mxu0
  %v10070 = vadd.f32 %v10017, %v10069
  %v10071 = vpop.f32.mrb[0].mxu0
  %v10072 = vadd.f32 %v10019, %v10071
  %v10073 = vpop.f32.mrb[0].mxu0
  %v10074 = vadd.f32 %v10021, %v10073
  %v10075 = vpop.f32.mrb[0].mxu0
  %v10076 = vadd.f32 %v10023, %v10075
  %10077 = vdwg.mxu0
  %v10078 = vmul.f32 %v9954, 0.0625
  %v10079 = vmul.f32 %v9956, 0.0625
  %v10080 = vmul.f32 %v10060, 0.0625
  %v10081 = vmul.f32 %v10062, 0.0625
  %v10082 = vmul.f32 %v9958, 0.0625
  %v10083 = vmul.f32 %v9960, 0.0625
  %v10084 = vmul.f32 %v10064, 0.0625
  %v10085 = vmul.f32 %v10066, 0.0625
  %v10086 = vmul.f32 %v9964, 0.0625
  %v10087 = vmul.f32 %v9966, 0.0625
  %v10088 = vmul.f32 %v10070, 0.0625
  %v10089 = vmul.f32 %v10072, 0.0625
  %v10090 = vmul.f32 %v9968, 0.0625
  %v10091 = vmul.f32 %v9970, 0.0625
  %v10092 = vmul.f32 %v10074, 0.0625
  %v10093 = vmul.f32 %v10076, 0.0625
  %10094 = vst [vmem:[%s5] sm:$0xff] %v10078
  %10095 = vst [vmem:[%s5 + $0x8] sm:$0xff] %v10079
  %10096 = vst [vmem:[%s5 + $0x10] sm:$0xff] %v10080
  %10097 = vst [vmem:[%s5 + $0x18] sm:$0xff] %v10081
  %10098 = vst [vmem:[%s5 + $0x20] sm:$0xff] %v10082
  %10099 = vst [vmem:[%s5 + $0x28] sm:$0xff] %v10083
  %10100 = vst [vmem:[%s5 + $0x30] sm:$0xff] %v10084
  %10101 = vst [vmem:[%s5 + $0x38] sm:$0xff] %v10085
  %10102 = vst [vmem:[%s5 + $0x40] sm:$0xff] %v10086
  %10103 = vst [vmem:[%s5 + $0x48] sm:$0xff] %v10087
  %10104 = vst [vmem:[%s5 + $0x50] sm:$0xff] %v10088
  %10105 = vst [vmem:[%s5 + $0x58] sm:$0xff] %v10089
  %10106 = vst [vmem:[%s5 + $0x60] sm:$0xff] %v10090
  %10107 = vst [vmem:[%s5 + $0x68] sm:$0xff] %v10091
  %10108 = vst [vmem:[%s5 + $0x70] sm:$0xff] %v10092
  %10109 = vst [vmem:[%s5 + $0x78] sm:$0xff] %v10093
  // Predicated region
  $region22: #{_forward_impl.1} parent=0 // pred_check
    _
  $region23: #{_forward_impl.1} parent=0 // pred_check_branch
    %10111 = sbr.rel (0) target = $region25
  $region24: #{_forward_impl.1} parent=0 // pred_region
    _
  $region25: #{_forward_impl.1} parent=0 // pred_fallthru
    _
  // Predicated region
  $region26: #{_forward_impl.1} parent=0 // pred_check
    _
  $region27: #{_forward_impl.1} parent=0 // pred_check_branch
    %10113 = sbr.rel (0) target = $region29
  $region28: #{_forward_impl.1} parent=0 // pred_region
    _
  $region29: #{_forward_impl.1} parent=0 // pred_fallthru
    _

</llo_original>
